<compile_context>
chip_gen: v7x
topology: tpu7x:2x2x1
jax: 0.10.0
libtpu: 0.0.40
codegen_flags: <defaults>
</compile_context>

<pallas_src>
import functools

import jax
import jax.numpy as jnp
from jax.experimental import pallas as pl
from jax.experimental.pallas import tpu as pltpu

# ----------------------------- small config --------------------------------
B = 2            # batch
N = 8            # EEG channels -> one token per channel patch
T = 16           # samples per patch (encoder input feature dim)
ENC_D = 32       # encoder n_embd
DEC_D = 32       # decoder n_embd  (== ENC_D; required by the packed task slab)
EMBED_DIM = 32   # quantizer embedding_dim (decoder in_chans rewritten to this)
N_EMBED = 128    # codebook size (n_embed)
DEC_OUT = 16     # decoder_out_dim ; rec_freq dim = DEC_OUT // 2
BETA = 1.0       # quantizer beta (module uses beta=1.0)

_VMEM = functools.partial(pl.BlockSpec, memory_space=pltpu.MemorySpace.VMEM)

# Rough advisory cost for the single fused call (matmuls + attention + VQ).
_COST = pl.CostEstimate(flops=1_900_000, transcendentals=9_000, bytes_accessed=240_000)


# ------------------------------- kernel --------------------------------------
def _ln(x, g, b, eps=1e-5):
    mu = jnp.mean(x, axis=-1, keepdims=True)
    var = jnp.mean((x - mu) ** 2, axis=-1, keepdims=True)
    return (x - mu) * jax.lax.rsqrt(var + eps) * g + b


def vq_fused_kernel(x_ref, mask_ref, maskc_ref, yf_ref, yr_ref,
                    enc_big_ref, enc_w2_ref, enc_vec_ref,
                    dcf_big_ref, dcf_w2_ref, dcf_vec_ref,
                    dcr_big_ref, dcr_w2_ref, dcr_vec_ref,
                    task_w_ref, task_b_ref, emb_ref,
                    feat_ref, idx_ref, loss_ref):
    """Entire VQ.forward in one kernel: encode -> quantize -> decode -> losses."""
    Bb, Nn, Tt = x_ref.shape
    M = Bb * Nn
    De = enc_big_ref.shape[0]        # encoder n_embd
    Dd = dcf_big_ref.shape[0]        # decoder n_embd
    Dq = emb_ref.shape[-1]           # quantizer embedding_dim
    Kc = emb_ref.shape[0]            # codebook size
    F_half = yf_ref.shape[-1]
    F_full = yr_ref.shape[-1]

    mask = mask_ref[...]             # [B, N]  (1 = valid key)
    mask_col = maskc_ref[...]        # [M, 1]  (same mask, per-token column)

    # --- stand-in NeuralTransformer: patch embed + one pre-LN attn/MLP block ---
    # TODO(synk): the real NeuralTransformer (temporal conv embed, pos/time/chan
    # embeddings, multi-head, depth>1) lives outside this module; this stand-in
    # keeps the same I/O contract [M, Din] -> [M, D].
    def transformer(x2d, d_in, big_ref, w2_ref, vec_ref):
        Dm = big_ref.shape[0]
        big = big_ref[...]                               # [Dm, 10*Dm] packed weights
        vec = vec_ref[...]                               # [8, 4*Dm]   packed vectors
        w1 = big[:, 0:4 * Dm]                            # [Dm, 4Dm]
        wqkv = big[:, 4 * Dm:8 * Dm]                     # [Dm, 4Dm] (last Dm lanes zero)
        wpe = big[0:d_in, 8 * Dm:9 * Dm]                 # [d_in, Dm]
        wo = big[:, 9 * Dm:10 * Dm]                      # [Dm, Dm]
        bpe, ln1g, ln1b = vec[0:1, 0:Dm], vec[1:2, 0:Dm], vec[2:3, 0:Dm]
        ln2g, ln2b, b2 = vec[3:4, 0:Dm], vec[4:5, 0:Dm], vec[5:6, 0:Dm]
        b1 = vec[6:7, :]                                 # [1, 4Dm]

        # patch embed
        h = jnp.dot(x2d, wpe, preferred_element_type=jnp.float32) + bpe       # [M, Dm]

        # pre-LN single-head attention with key-padding mask, fused QKV
        hn = _ln(h, ln1g, ln1b)
        qkv = jnp.dot(hn, wqkv, preferred_element_type=jnp.float32)           # [M, 4Dm]
        q = qkv[:, 0:Dm].reshape(Bb, Nn, Dm)
        k = qkv[:, Dm:2 * Dm].reshape(Bb, Nn, Dm)
        v = qkv[:, 2 * Dm:3 * Dm].reshape(Bb, Nn, Dm)
        att = jnp.einsum('bne,bme->bnm', q, k,
                         preferred_element_type=jnp.float32) * (1.0 / jnp.sqrt(jnp.float32(Dm)))
        # TODO(synk): a fully-masked row would get uniform attention over padded
        # keys (latent edge case, not hit by the test mask).
        att = jnp.where(mask[:, None, :] > 0, att, -1e9)
        att = jax.nn.softmax(att, axis=-1)
        a = jnp.einsum('bnm,bme->bne', att, v, preferred_element_type=jnp.float32)
        h = h + jnp.dot(a.reshape(M, Dm), wo, preferred_element_type=jnp.float32)

        # pre-LN MLP
        hn2 = _ln(h, ln2g, ln2b)
        m = jnp.dot(hn2, w1, preferred_element_type=jnp.float32) + b1
        m = jax.nn.gelu(m, approximate=True)
        h = h + jnp.dot(m, w2_ref[...], preferred_element_type=jnp.float32) + b2
        return h                                                               # [M, Dm]

    # --------------------------------- encode ---------------------------------
    x2d = x_ref[...].reshape(M, Tt).astype(jnp.float32)
    enc_feat = transformer(x2d, Tt, enc_big_ref, enc_w2_ref, enc_vec_ref)      # [M, ENC_D]
    feat_ref[...] = enc_feat.reshape(Bb, Nn, De).astype(feat_ref.dtype)

    # packed task-layer parameters
    task_w = task_w_ref[...]                      # [32, 152]
    task_b = task_b_ref[...]                      # [8, 128]
    o1 = De; o2 = o1 + Dq; o3 = o2 + Dd; o4 = o3 + Dd; o5 = o4 + F_half
    et_w1, et_w2 = task_w[:, 0:o1], task_w[:, o1:o2]
    df_w1, dr_w1 = task_w[:, o2:o3], task_w[:, o3:o4]
    df_w2, dr_w2 = task_w[:, o4:o5], task_w[:, o5:o5 + F_full]
    et_b1, et_b2 = task_b[0:1, 0:De], task_b[1:2, 0:Dq]
    df_b1, df_b2 = task_b[2:3, 0:Dd], task_b[3:4, 0:F_half]
    dr_b1, dr_b2 = task_b[4:5, 0:Dd], task_b[5:6, 0:F_full]

    # encode_task_layer: Linear -> Tanh -> Linear
    t = jnp.tanh(jnp.dot(enc_feat, et_w1, preferred_element_type=jnp.float32) + et_b1)
    z = jnp.dot(t, et_w2, preferred_element_type=jnp.float32) + et_b2          # [M, Dq]

    # ----------------------- NormEMA vector quantizer -------------------------
    # TODO(synk): EMA codebook update & kmeans init are training-time buffer ops
    # (no effect on the forward value) and are not implemented here.
    zn = z * jax.lax.rsqrt(jnp.sum(z * z, axis=-1, keepdims=True) + 1e-12)
    e = emb_ref[...].astype(jnp.float32)                                       # [K, Dq]
    # ||zn||^2 == 1 per row after l2-norm -> omit from d; argmin is unchanged.
    d = (jnp.sum(e * e, axis=-1)[None, :]
         - 2.0 * jnp.einsum('md,kd->mk', zn, e, preferred_element_type=jnp.float32))
    iota = jax.lax.broadcasted_iota(jnp.int32, (M, Kc), 1)
    dmin = jnp.min(d, axis=-1, keepdims=True)
    idx = jnp.min(jnp.where(d <= dmin, iota, Kc), axis=-1)                     # first argmin [M]
    onehot = (iota == idx[:, None]).astype(jnp.float32)
    zq = jnp.dot(onehot, e, preferred_element_type=jnp.float32)                # codebook gather
    emb_loss = BETA * jnp.mean((zq - zn) ** 2, keepdims=True)                  # (1,1)
    idx_ref[...] = jnp.broadcast_to(idx[:, None], idx_ref.shape).astype(jnp.int32)

    # ---------------- decode (both decoders; quantize stays in VMEM) ----------
    dec_f = transformer(zq, Dq, dcf_big_ref, dcf_w2_ref, dcf_vec_ref)          # [M, DEC_D]
    dec_r = transformer(zq, Dq, dcr_big_ref, dcr_w2_ref, dcr_vec_ref)          # [M, DEC_D]

    tf_ = jnp.tanh(jnp.dot(dec_f, df_w1, preferred_element_type=jnp.float32) + df_b1)
    rec_f = jnp.dot(tf_, df_w2, preferred_element_type=jnp.float32) + df_b2    # [M, F_half]
    tr_ = jnp.tanh(jnp.dot(dec_r, dr_w1, preferred_element_type=jnp.float32) + dr_b1)
    rec_r = jnp.dot(tr_, dr_w2, preferred_element_type=jnp.float32) + dr_b2    # [M, F_full]

    # F.mse_loss(rec * mask, y): mean over ALL elements (exactly the torch module).
    ef = rec_f * mask_col - yf_ref[...].reshape(M, F_half).astype(jnp.float32)
    er = rec_r * mask_col - yr_ref[...].reshape(M, F_full).astype(jnp.float32)
    rec_freq_loss = jnp.mean(ef * ef, keepdims=True)                           # (1,1)
    rec_raw_loss = jnp.mean(er * er, keepdims=True)                            # (1,1)

    lane = jax.lax.broadcasted_iota(jnp.int32, loss_ref.shape, 1)              # (1,128)
    loss_ref[...] = (jnp.where(lane == 0, emb_loss, 0.0)
                     + jnp.where(lane == 1, rec_freq_loss, 0.0)
                     + jnp.where(lane == 2, rec_raw_loss, 0.0)).astype(loss_ref.dtype)


# --------------------------- parameter init ----------------------------------
def _w(key, din, dout, std=0.02):
    return jax.random.normal(key, (din, dout), jnp.float32) * std


def init_transformer_packed(key, d_in, d_model):
    """Pack one stand-in transformer: big=[D,10D]=(w1|wqkv_pad|wpe_pad|wo), w2, vec slab."""
    ks = jax.random.split(key, 7)
    D = d_model
    wpe = _w(ks[0], d_in, D)
    wq, wk, wv = _w(ks[1], D, D), _w(ks[2], D, D), _w(ks[3], D, D)
    wo = _w(ks[4], D, D)
    w1 = _w(ks[5], D, 4 * D)
    w2 = _w(ks[6], 4 * D, D)
    wqkv_pad = jnp.concatenate([wq, wk, wv, jnp.zeros((D, D), jnp.float32)], axis=1)   # [D, 4D]
    wpe_pad = jnp.zeros((D, D), jnp.float32).at[:d_in, :].set(wpe)                     # [D, D]
    big = jnp.concatenate([w1, wqkv_pad, wpe_pad, wo], axis=1)                         # [D, 10D]
    # vec rows: 0 bpe, 1 ln1g, 2 ln1b, 3 ln2g, 4 ln2b, 5 b2, 6 b1 (biases zero, gains one)
    vec = (jnp.zeros((8, 4 * D), jnp.float32)
           .at[1, :D].set(1.0)
           .at[3, :D].set(1.0))
    return dict(big=big, w2=w2, vec=vec)


def init_params(key):
    ks = jax.random.split(key, 10)
    enc = init_transformer_packed(ks[0], T, ENC_D)
    dcf = init_transformer_packed(ks[1], EMBED_DIM, DEC_D)
    dcr = init_transformer_packed(ks[2], EMBED_DIM, DEC_D)
    # task layers (Linear -> Tanh -> Linear), weights packed lane-dense, biases zero
    et_w1, et_w2 = _w(ks[3], ENC_D, ENC_D), _w(ks[4], ENC_D, EMBED_DIM)
    df_w1, df_w2 = _w(ks[5], DEC_D, DEC_D), _w(ks[6], DEC_D, DEC_OUT // 2)
    dr_w1, dr_w2 = _w(ks[7], DEC_D, DEC_D), _w(ks[8], DEC_D, DEC_OUT)
    task_w = jnp.concatenate([et_w1, et_w2, df_w1, dr_w1, df_w2, dr_w2], axis=1)  # [32, 152]
    task_b = jnp.zeros((8, 128), jnp.float32)
    cb = jax.random.normal(ks[9], (N_EMBED, EMBED_DIM), jnp.float32)
    cb = cb / jnp.linalg.norm(cb, axis=-1, keepdims=True)   # norm-EMA codebook is l2-normed
    return dict(enc=enc, dcf=dcf, dcr=dcr, task_w=task_w, task_b=task_b, codebook=cb)


# ------------------------------ forward --------------------------------------
@jax.jit
def vq_forward(params, x, y_freq, y_raw, input_mask):
    """x: [B,N,T]; y_freq: [B,N,DEC_OUT//2]; y_raw: [B,N,DEC_OUT]; input_mask: [B,N]."""
    Bb, Nn, _ = x.shape
    M = Bb * Nn
    mask_col = input_mask.reshape(M, 1).astype(jnp.float32)   # tiny per-token column view

    feat, idx, losses = pl.pallas_call(
        vq_fused_kernel,
        out_shape=(jax.ShapeDtypeStruct((Bb, Nn, ENC_D), jnp.float32),   # encoder features
                   jax.ShapeDtypeStruct((M, 128), jnp.int32),            # codebook indices (lane bcast)
                   jax.ShapeDtypeStruct((1, 128), jnp.float32)),         # packed losses row
        in_specs=[_VMEM()] * 17,
        out_specs=(_VMEM(), _VMEM(), _VMEM()),
        cost_estimate=_COST,
    )(x, input_mask, mask_col, y_freq, y_raw,
      params['enc']['big'], params['enc']['w2'], params['enc']['vec'],
      params['dcf']['big'], params['dcf']['w2'], params['dcf']['vec'],
      params['dcr']['big'], params['dcr']['w2'], params['dcr']['vec'],
      params['task_w'], params['task_b'], params['codebook'])

    emb_loss = losses[0, 0]
    rec_freq_loss = losses[0, 1]
    rec_raw_loss = losses[0, 2]
    loss = emb_loss + rec_freq_loss + rec_raw_loss
    embed_ind = idx[:, 0]

    log = {
        'train/quant_loss': emb_loss,
        'train/rec_freq_loss': rec_freq_loss,
        'train/rec_raw_loss': rec_raw_loss,
        'train/total_loss': loss,
    }
    # TODO(synk): forward-value only — no straight-through estimator / stop_grad,
    # so this is not intended for use under jax.grad.
    return loss, feat, log, embed_ind


# -------------------------------- main ----------------------------------------
if __name__ == "__main__":
    key = jax.random.PRNGKey(0)
    kp, kx, kf, kr = jax.random.split(key, 4)

    params = init_params(kp)
    x = jax.random.normal(kx, (B, N, T), jnp.float32)
    y_freq = jax.random.normal(kf, (B, N, DEC_OUT // 2), jnp.float32)
    y_raw = jax.random.normal(kr, (B, N, DEC_OUT), jnp.float32)
    input_mask = jnp.concatenate(
        [jnp.ones((B, N - 2), jnp.float32), jnp.zeros((B, 2), jnp.float32)], axis=-1)

    loss, enc_feat, log, embed_ind = vq_forward(params, x, y_freq, y_raw, input_mask)
    jax.block_until_ready((loss, enc_feat, log, embed_ind))

    assert enc_feat.shape == (B, N, ENC_D)
    assert embed_ind.shape == (B * N,)
    assert embed_ind.dtype == jnp.int32
    assert bool(jnp.all((embed_ind >= 0) & (embed_ind < N_EMBED)))
    assert jnp.isfinite(loss)
    print("KERNEL_OK")
</pallas_src>

<mosaic_0001>
module attributes {stable_mosaic.version = 11 : i64} {
  func.func @vq_fused_kernel(%arg0: memref<2x8x16xf32, #tpu.memory_space<vmem>>, %arg1: memref<2x8xf32, #tpu.memory_space<vmem>>, %arg2: memref<16x1xf32, #tpu.memory_space<vmem>>, %arg3: memref<2x8x8xf32, #tpu.memory_space<vmem>>, %arg4: memref<2x8x16xf32, #tpu.memory_space<vmem>>, %arg5: memref<32x320xf32, #tpu.memory_space<vmem>>, %arg6: memref<128x32xf32, #tpu.memory_space<vmem>>, %arg7: memref<8x128xf32, #tpu.memory_space<vmem>>, %arg8: memref<32x320xf32, #tpu.memory_space<vmem>>, %arg9: memref<128x32xf32, #tpu.memory_space<vmem>>, %arg10: memref<8x128xf32, #tpu.memory_space<vmem>>, %arg11: memref<32x320xf32, #tpu.memory_space<vmem>>, %arg12: memref<128x32xf32, #tpu.memory_space<vmem>>, %arg13: memref<8x128xf32, #tpu.memory_space<vmem>>, %arg14: memref<32x152xf32, #tpu.memory_space<vmem>>, %arg15: memref<8x128xf32, #tpu.memory_space<vmem>>, %arg16: memref<128x32xf32, #tpu.memory_space<vmem>>, %arg17: memref<2x8x32xf32, #tpu.memory_space<vmem>>, %arg18: memref<16x128xi32, #tpu.memory_space<vmem>>, %arg19: memref<1x128xf32, #tpu.memory_space<vmem>>) attributes {dimension_semantics = [], scalar_prefetch = 0 : i64, scratch_operands = 0 : i64, tpu.core_type = #tpu.core_type<tc>} {
    %c0 = arith.constant 0 : index
    %c0_0 = arith.constant 0 : index
    %0 = vector.load %arg1[%c0, %c0_0] : memref<2x8xf32, #tpu.memory_space<vmem>>, vector<2x8xf32>
    %c0_1 = arith.constant 0 : index
    %c0_2 = arith.constant 0 : index
    %1 = vector.load %arg2[%c0_1, %c0_2] : memref<16x1xf32, #tpu.memory_space<vmem>>, vector<16x1xf32>
    %c0_3 = arith.constant 0 : index
    %c0_4 = arith.constant 0 : index
    %c0_5 = arith.constant 0 : index
    %2 = vector.load %arg0[%c0_3, %c0_4, %c0_5] : memref<2x8x16xf32, #tpu.memory_space<vmem>>, vector<2x8x16xf32>
    %3 = vector.shape_cast %2 : vector<2x8x16xf32> to vector<16x16xf32>
    %c0_6 = arith.constant 0 : index
    %c0_7 = arith.constant 0 : index
    %4 = vector.load %arg5[%c0_6, %c0_7] : memref<32x320xf32, #tpu.memory_space<vmem>>, vector<32x320xf32>
    %c0_8 = arith.constant 0 : index
    %c0_9 = arith.constant 0 : index
    %5 = vector.load %arg7[%c0_8, %c0_9] : memref<8x128xf32, #tpu.memory_space<vmem>>, vector<8x128xf32>
    %6 = vector.extract_strided_slice %4 {offsets = [0, 0], sizes = [32, 128], strides = [1, 1]} : vector<32x320xf32> to vector<32x128xf32>
    %7 = vector.extract_strided_slice %4 {offsets = [0, 128], sizes = [32, 128], strides = [1, 1]} : vector<32x320xf32> to vector<32x128xf32>
    %8 = vector.extract_strided_slice %4 {offsets = [0, 256], sizes = [16, 32], strides = [1, 1]} : vector<32x320xf32> to vector<16x32xf32>
    %9 = vector.extract_strided_slice %4 {offsets = [0, 288], sizes = [32, 32], strides = [1, 1]} : vector<32x320xf32> to vector<32x32xf32>
    %10 = vector.extract_strided_slice %5 {offsets = [0, 0], sizes = [1, 32], strides = [1, 1]} : vector<8x128xf32> to vector<1x32xf32>
    %11 = vector.extract_strided_slice %5 {offsets = [1, 0], sizes = [1, 32], strides = [1, 1]} : vector<8x128xf32> to vector<1x32xf32>
    %12 = vector.extract_strided_slice %5 {offsets = [2, 0], sizes = [1, 32], strides = [1, 1]} : vector<8x128xf32> to vector<1x32xf32>
    %13 = vector.extract_strided_slice %5 {offsets = [3, 0], sizes = [1, 32], strides = [1, 1]} : vector<8x128xf32> to vector<1x32xf32>
    %14 = vector.extract_strided_slice %5 {offsets = [4, 0], sizes = [1, 32], strides = [1, 1]} : vector<8x128xf32> to vector<1x32xf32>
    %15 = vector.extract_strided_slice %5 {offsets = [5, 0], sizes = [1, 32], strides = [1, 1]} : vector<8x128xf32> to vector<1x32xf32>
    %16 = vector.extract_strided_slice %5 {offsets = [6, 0], sizes = [1, 128], strides = [1, 1]} : vector<8x128xf32> to vector<1x128xf32>
    %cst = arith.constant dense<0.000000e+00> : vector<16x32xf32>
    %17 = tpu.matmul %3, %8, %cst {dimension_numbers = #tpu.dot_dimension_numbers<[1], [0], [0], [1], [0, 0, 1, 1], [], []>} : vector<16x16xf32>, vector<16x32xf32>, vector<16x32xf32> -> vector<16x32xf32>
    %18 = vector.broadcast %10 : vector<1x32xf32> to vector<16x32xf32>
    %19 = arith.addf %17, %18 : vector<16x32xf32>
    %cst_10 = arith.constant dense<0.000000e+00> : vector<16xf32>
    %20 = vector.multi_reduction <add>, %19, %cst_10 [1] : vector<16x32xf32> to vector<16xf32>
    %21 = vector.shape_cast %20 : vector<16xf32> to vector<16x1xf32>
    %cst_11 = arith.constant 3.200000e+01 : f32
    %22 = vector.broadcast %cst_11 : f32 to vector<16x1xf32>
    %23 = arith.divf %21, %22 : vector<16x1xf32>
    %24 = vector.broadcast %23 : vector<16x1xf32> to vector<16x32xf32>
    %25 = arith.subf %19, %24 : vector<16x32xf32>
    %26 = arith.mulf %25, %25 : vector<16x32xf32>
    %cst_12 = arith.constant dense<0.000000e+00> : vector<16xf32>
    %27 = vector.multi_reduction <add>, %26, %cst_12 [1] : vector<16x32xf32> to vector<16xf32>
    %28 = vector.shape_cast %27 : vector<16xf32> to vector<16x1xf32>
    %cst_13 = arith.constant 3.200000e+01 : f32
    %29 = vector.broadcast %cst_13 : f32 to vector<16x1xf32>
    %30 = arith.divf %28, %29 : vector<16x1xf32>
    %31 = vector.broadcast %23 : vector<16x1xf32> to vector<16x32xf32>
    %32 = arith.subf %19, %31 : vector<16x32xf32>
    %cst_14 = arith.constant 9.99999974E-6 : f32
    %33 = vector.broadcast %cst_14 : f32 to vector<16x1xf32>
    %34 = arith.addf %30, %33 : vector<16x1xf32>
    %35 = math.rsqrt %34 : vector<16x1xf32>
    %36 = vector.broadcast %35 : vector<16x1xf32> to vector<16x32xf32>
    %37 = arith.mulf %32, %36 : vector<16x32xf32>
    %38 = vector.broadcast %11 : vector<1x32xf32> to vector<16x32xf32>
    %39 = arith.mulf %37, %38 : vector<16x32xf32>
    %40 = vector.broadcast %12 : vector<1x32xf32> to vector<16x32xf32>
    %41 = arith.addf %39, %40 : vector<16x32xf32>
    %cst_15 = arith.constant dense<0.000000e+00> : vector<16x128xf32>
    %42 = tpu.matmul %41, %7, %cst_15 {dimension_numbers = #tpu.dot_dimension_numbers<[1], [0], [0], [1], [0, 0, 1, 1], [], []>} : vector<16x32xf32>, vector<32x128xf32>, vector<16x128xf32> -> vector<16x128xf32>
    %43 = vector.extract_strided_slice %42 {offsets = [0, 0], sizes = [16, 32], strides = [1, 1]} : vector<16x128xf32> to vector<16x32xf32>
    %44 = vector.shape_cast %43 : vector<16x32xf32> to vector<2x8x32xf32>
    %45 = vector.extract_strided_slice %42 {offsets = [0, 32], sizes = [16, 32], strides = [1, 1]} : vector<16x128xf32> to vector<16x32xf32>
    %46 = vector.shape_cast %45 : vector<16x32xf32> to vector<2x8x32xf32>
    %47 = vector.extract_strided_slice %42 {offsets = [0, 64], sizes = [16, 32], strides = [1, 1]} : vector<16x128xf32> to vector<16x32xf32>
    %48 = vector.shape_cast %47 : vector<16x32xf32> to vector<2x8x32xf32>
    "tpu.trace_start"() <{level = 10 : i32, message = "bne,bme->bnm"}> : () -> ()
    %cst_16 = arith.constant dense<0.000000e+00> : vector<2x8x8xf32>
    %49 = tpu.matmul %44, %46, %cst_16 {dimension_numbers = #tpu.dot_dimension_numbers<[2], [2], [1], [1], [0, 0, 0, 1, 1, 1], [0], [0]>} : vector<2x8x32xf32>, vector<2x8x32xf32>, vector<2x8x8xf32> -> vector<2x8x8xf32>
    %cst_17 = arith.constant 3.200000e+01 : f32
    "tpu.trace_stop"() : () -> ()
    %50 = math.sqrt %cst_17 : f32
    %cst_18 = arith.constant 1.000000e+00 : f32
    %51 = arith.divf %cst_18, %50 : f32
    %52 = vector.broadcast %51 : f32 to vector<2x8x8xf32>
    %53 = arith.mulf %49, %52 : vector<2x8x8xf32>
    %54 = vector.shape_cast %0 : vector<2x8xf32> to vector<2x1x8xf32>
    %cst_19 = arith.constant 0.000000e+00 : f32
    %55 = vector.broadcast %cst_19 : f32 to vector<2x1x8xf32>
    %56 = arith.cmpf ogt, %54, %55 : vector<2x1x8xf32>
    %cst_20 = arith.constant -1.000000e+09 : f32
    %57 = vector.shape_cast %56 : vector<2x1x8xi1> to vector<2x1x8xi1>
    %58 = vector.broadcast %57 : vector<2x1x8xi1> to vector<2x8x8xi1>
    %59 = vector.broadcast %cst_20 : f32 to vector<2x8x8xf32>
    %60 = arith.select %58, %53, %59 : vector<2x8x8xi1>, vector<2x8x8xf32>
    %cst_21 = arith.constant dense<0xFF800000> : vector<2x8xf32>
    %61 = vector.multi_reduction <maximumf>, %60, %cst_21 [2] : vector<2x8x8xf32> to vector<2x8xf32>
    %cst_22 = arith.constant 0xFF800000 : f32
    %62 = vector.broadcast %cst_22 : f32 to vector<2x8xf32>
    %63 = arith.maximumf %62, %61 : vector<2x8xf32>
    %64 = vector.shape_cast %63 : vector<2x8xf32> to vector<2x8x1xf32>
    %65 = vector.broadcast %64 : vector<2x8x1xf32> to vector<2x8x8xf32>
    %66 = arith.subf %60, %65 : vector<2x8x8xf32>
    %67 = math.exp %66 : vector<2x8x8xf32>
    %cst_23 = arith.constant dense<0.000000e+00> : vector<2x8xf32>
    %68 = vector.multi_reduction <add>, %67, %cst_23 [2] : vector<2x8x8xf32> to vector<2x8xf32>
    %69 = vector.shape_cast %68 : vector<2x8xf32> to vector<2x8x1xf32>
    %70 = vector.broadcast %69 : vector<2x8x1xf32> to vector<2x8x8xf32>
    %71 = arith.divf %67, %70 : vector<2x8x8xf32>
    "tpu.trace_start"() <{level = 10 : i32, message = "bnm,bme->bne"}> : () -> ()
    %cst_24 = arith.constant dense<0.000000e+00> : vector<2x8x32xf32>
    %72 = tpu.matmul %71, %48, %cst_24 {dimension_numbers = #tpu.dot_dimension_numbers<[2], [1], [1], [2], [0, 0, 0, 1, 1, 2], [0], [0]>} : vector<2x8x8xf32>, vector<2x8x32xf32>, vector<2x8x32xf32> -> vector<2x8x32xf32>
    "tpu.trace_stop"() : () -> ()
    %73 = vector.shape_cast %72 : vector<2x8x32xf32> to vector<16x32xf32>
    %cst_25 = arith.constant dense<0.000000e+00> : vector<16x32xf32>
    %74 = tpu.matmul %73, %9, %cst_25 {dimension_numbers = #tpu.dot_dimension_numbers<[1], [0], [0], [1], [0, 0, 1, 1], [], []>} : vector<16x32xf32>, vector<32x32xf32>, vector<16x32xf32> -> vector<16x32xf32>
    %75 = arith.addf %19, %74 : vector<16x32xf32>
    %cst_26 = arith.constant dense<0.000000e+00> : vector<16xf32>
    %76 = vector.multi_reduction <add>, %75, %cst_26 [1] : vector<16x32xf32> to vector<16xf32>
    %77 = vector.shape_cast %76 : vector<16xf32> to vector<16x1xf32>
    %cst_27 = arith.constant 3.200000e+01 : f32
    %78 = vector.broadcast %cst_27 : f32 to vector<16x1xf32>
    %79 = arith.divf %77, %78 : vector<16x1xf32>
    %80 = vector.broadcast %79 : vector<16x1xf32> to vector<16x32xf32>
    %81 = arith.subf %75, %80 : vector<16x32xf32>
    %82 = arith.mulf %81, %81 : vector<16x32xf32>
    %cst_28 = arith.constant dense<0.000000e+00> : vector<16xf32>
    %83 = vector.multi_reduction <add>, %82, %cst_28 [1] : vector<16x32xf32> to vector<16xf32>
    %84 = vector.shape_cast %83 : vector<16xf32> to vector<16x1xf32>
    %cst_29 = arith.constant 3.200000e+01 : f32
    %85 = vector.broadcast %cst_29 : f32 to vector<16x1xf32>
    %86 = arith.divf %84, %85 : vector<16x1xf32>
    %87 = vector.broadcast %79 : vector<16x1xf32> to vector<16x32xf32>
    %88 = arith.subf %75, %87 : vector<16x32xf32>
    %cst_30 = arith.constant 9.99999974E-6 : f32
    %89 = vector.broadcast %cst_30 : f32 to vector<16x1xf32>
    %90 = arith.addf %86, %89 : vector<16x1xf32>
    %91 = math.rsqrt %90 : vector<16x1xf32>
    %92 = vector.broadcast %91 : vector<16x1xf32> to vector<16x32xf32>
    %93 = arith.mulf %88, %92 : vector<16x32xf32>
    %94 = vector.broadcast %13 : vector<1x32xf32> to vector<16x32xf32>
    %95 = arith.mulf %93, %94 : vector<16x32xf32>
    %96 = vector.broadcast %14 : vector<1x32xf32> to vector<16x32xf32>
    %97 = arith.addf %95, %96 : vector<16x32xf32>
    %cst_31 = arith.constant dense<0.000000e+00> : vector<16x128xf32>
    %98 = tpu.matmul %97, %6, %cst_31 {dimension_numbers = #tpu.dot_dimension_numbers<[1], [0], [0], [1], [0, 0, 1, 1], [], []>} : vector<16x32xf32>, vector<32x128xf32>, vector<16x128xf32> -> vector<16x128xf32>
    %99 = vector.broadcast %16 : vector<1x128xf32> to vector<16x128xf32>
    %100 = arith.addf %98, %99 : vector<16x128xf32>
    %101 = arith.mulf %100, %100 : vector<16x128xf32>
    %102 = arith.mulf %100, %101 : vector<16x128xf32>
    %cst_32 = arith.constant 4.471500e-02 : f32
    %103 = vector.broadcast %cst_32 : f32 to vector<16x128xf32>
    %104 = arith.mulf %103, %102 : vector<16x128xf32>
    %105 = arith.addf %100, %104 : vector<16x128xf32>
    %cst_33 = arith.constant 0.797884583 : f32
    %106 = vector.broadcast %cst_33 : f32 to vector<16x128xf32>
    %107 = arith.mulf %106, %105 : vector<16x128xf32>
    %108 = math.tanh %107 : vector<16x128xf32>
    %cst_34 = arith.constant 1.000000e+00 : f32
    %109 = vector.broadcast %cst_34 : f32 to vector<16x128xf32>
    %110 = arith.addf %109, %108 : vector<16x128xf32>
    %cst_35 = arith.constant 5.000000e-01 : f32
    %111 = vector.broadcast %cst_35 : f32 to vector<16x128xf32>
    %112 = arith.mulf %111, %110 : vector<16x128xf32>
    %113 = arith.mulf %100, %112 : vector<16x128xf32>
    %c0_36 = arith.constant 0 : index
    %c0_37 = arith.constant 0 : index
    %114 = vector.load %arg6[%c0_36, %c0_37] : memref<128x32xf32, #tpu.memory_space<vmem>>, vector<128x32xf32>
    %cst_38 = arith.constant dense<0.000000e+00> : vector<16x32xf32>
    %115 = tpu.matmul %113, %114, %cst_38 {dimension_numbers = #tpu.dot_dimension_numbers<[1], [0], [0], [1], [0, 0, 1, 1], [], []>} : vector<16x128xf32>, vector<128x32xf32>, vector<16x32xf32> -> vector<16x32xf32>
    %116 = arith.addf %75, %115 : vector<16x32xf32>
    %117 = vector.broadcast %15 : vector<1x32xf32> to vector<16x32xf32>
    %118 = arith.addf %116, %117 : vector<16x32xf32>
    %119 = vector.shape_cast %118 : vector<16x32xf32> to vector<2x8x32xf32>
    %c0_39 = arith.constant 0 : index
    %c0_40 = arith.constant 0 : index
    %c0_41 = arith.constant 0 : index
    %120 = vector.load %arg17[%c0_39, %c0_40, %c0_41] : memref<2x8x32xf32, #tpu.memory_space<vmem>>, vector<2x8x32xf32>
    tpu.vector_store %arg17[%c0_39, %c0_40, %c0_41], %119 {strides = array<i32>} : memref<2x8x32xf32, #tpu.memory_space<vmem>>, vector<2x8x32xf32>,
    %c0_42 = arith.constant 0 : index
    %c0_43 = arith.constant 0 : index
    %121 = vector.load %arg14[%c0_42, %c0_43] : memref<32x152xf32, #tpu.memory_space<vmem>>, vector<32x152xf32>
    %c0_44 = arith.constant 0 : index
    %c0_45 = arith.constant 0 : index
    %122 = vector.load %arg15[%c0_44, %c0_45] : memref<8x128xf32, #tpu.memory_space<vmem>>, vector<8x128xf32>
    %123 = vector.extract_strided_slice %121 {offsets = [0, 0], sizes = [32, 32], strides = [1, 1]} : vector<32x152xf32> to vector<32x32xf32>
    %124 = vector.extract_strided_slice %121 {offsets = [0, 32], sizes = [32, 32], strides = [1, 1]} : vector<32x152xf32> to vector<32x32xf32>
    %125 = vector.extract_strided_slice %121 {offsets = [0, 64], sizes = [32, 32], strides = [1, 1]} : vector<32x152xf32> to vector<32x32xf32>
    %126 = vector.extract_strided_slice %121 {offsets = [0, 96], sizes = [32, 32], strides = [1, 1]} : vector<32x152xf32> to vector<32x32xf32>
    %127 = vector.extract_strided_slice %121 {offsets = [0, 128], sizes = [32, 8], strides = [1, 1]} : vector<32x152xf32> to vector<32x8xf32>
    %128 = vector.extract_strided_slice %121 {offsets = [0, 136], sizes = [32, 16], strides = [1, 1]} : vector<32x152xf32> to vector<32x16xf32>
    %129 = vector.extract_strided_slice %122 {offsets = [0, 0], sizes = [1, 32], strides = [1, 1]} : vector<8x128xf32> to vector<1x32xf32>
    %130 = vector.extract_strided_slice %122 {offsets = [1, 0], sizes = [1, 32], strides = [1, 1]} : vector<8x128xf32> to vector<1x32xf32>
    %131 = vector.extract_strided_slice %122 {offsets = [2, 0], sizes = [1, 32], strides = [1, 1]} : vector<8x128xf32> to vector<1x32xf32>
    %132 = vector.extract_strided_slice %122 {offsets = [3, 0], sizes = [1, 8], strides = [1, 1]} : vector<8x128xf32> to vector<1x8xf32>
    %133 = vector.extract_strided_slice %122 {offsets = [4, 0], sizes = [1, 32], strides = [1, 1]} : vector<8x128xf32> to vector<1x32xf32>
    %134 = vector.extract_strided_slice %122 {offsets = [5, 0], sizes = [1, 16], strides = [1, 1]} : vector<8x128xf32> to vector<1x16xf32>
    %cst_46 = arith.constant dense<0.000000e+00> : vector<16x32xf32>
    %135 = tpu.matmul %118, %123, %cst_46 {dimension_numbers = #tpu.dot_dimension_numbers<[1], [0], [0], [1], [0, 0, 1, 1], [], []>} : vector<16x32xf32>, vector<32x32xf32>, vector<16x32xf32> -> vector<16x32xf32>
    %136 = vector.broadcast %129 : vector<1x32xf32> to vector<16x32xf32>
    %137 = arith.addf %135, %136 : vector<16x32xf32>
    %138 = math.tanh %137 : vector<16x32xf32>
    %cst_47 = arith.constant dense<0.000000e+00> : vector<16x32xf32>
    %139 = tpu.matmul %138, %124, %cst_47 {dimension_numbers = #tpu.dot_dimension_numbers<[1], [0], [0], [1], [0, 0, 1, 1], [], []>} : vector<16x32xf32>, vector<32x32xf32>, vector<16x32xf32> -> vector<16x32xf32>
    %140 = vector.broadcast %130 : vector<1x32xf32> to vector<16x32xf32>
    %141 = arith.addf %139, %140 : vector<16x32xf32>
    %142 = arith.mulf %141, %141 : vector<16x32xf32>
    %cst_48 = arith.constant dense<0.000000e+00> : vector<16xf32>
    %143 = vector.multi_reduction <add>, %142, %cst_48 [1] : vector<16x32xf32> to vector<16xf32>
    %144 = vector.shape_cast %143 : vector<16xf32> to vector<16x1xf32>
    %cst_49 = arith.constant 9.99999996E-13 : f32
    %145 = vector.broadcast %cst_49 : f32 to vector<16x1xf32>
    %146 = arith.addf %144, %145 : vector<16x1xf32>
    %147 = math.rsqrt %146 : vector<16x1xf32>
    %148 = vector.broadcast %147 : vector<16x1xf32> to vector<16x32xf32>
    %149 = arith.mulf %141, %148 : vector<16x32xf32>
    %c0_50 = arith.constant 0 : index
    %c0_51 = arith.constant 0 : index
    %150 = vector.load %arg16[%c0_50, %c0_51] : memref<128x32xf32, #tpu.memory_space<vmem>>, vector<128x32xf32>
    %151 = arith.mulf %150, %150 : vector<128x32xf32>
    %cst_52 = arith.constant dense<0.000000e+00> : vector<128xf32>
    %152 = vector.multi_reduction <add>, %151, %cst_52 [1] : vector<128x32xf32> to vector<128xf32>
    %153 = vector.shape_cast %152 : vector<128xf32> to vector<1x128xf32>
    "tpu.trace_start"() <{level = 10 : i32, message = "md,kd->mk"}> : () -> ()
    %cst_53 = arith.constant dense<0.000000e+00> : vector<16x128xf32>
    %154 = tpu.matmul %149, %150, %cst_53 {dimension_numbers = #tpu.dot_dimension_numbers<[1], [1], [0], [0], [0, 0, 1, 0], [], []>} : vector<16x32xf32>, vector<128x32xf32>, vector<16x128xf32> -> vector<16x128xf32>
    "tpu.trace_stop"() : () -> ()
    %cst_54 = arith.constant 2.000000e+00 : f32
    %155 = vector.broadcast %cst_54 : f32 to vector<16x128xf32>
    %156 = arith.mulf %155, %154 : vector<16x128xf32>
    %157 = vector.broadcast %153 : vector<1x128xf32> to vector<16x128xf32>
    %158 = arith.subf %157, %156 : vector<16x128xf32>
    %159 = tpu.iota {dimensions = array<i32: 1>} : vector<16x128xi32>
    %cst_55 = arith.constant dense<0x7F800000> : vector<16xf32>
    %160 = vector.multi_reduction <minimumf>, %158, %cst_55 [1] : vector<16x128xf32> to vector<16xf32>
    %161 = vector.shape_cast %160 : vector<16xf32> to vector<16x1xf32>
    %162 = vector.broadcast %161 : vector<16x1xf32> to vector<16x128xf32>
    %163 = arith.cmpf ole, %158, %162 : vector<16x128xf32>
    %c128_i32 = arith.constant 128 : i32
    %164 = vector.broadcast %c128_i32 : i32 to vector<16x128xi32>
    %165 = arith.select %163, %159, %164 : vector<16x128xi1>, vector<16x128xi32>
    %cst_56 = arith.constant dense<2147483647> : vector<16xi32>
    %166 = vector.multi_reduction <minsi>, %165, %cst_56 [1] : vector<16x128xi32> to vector<16xi32>
    %167 = vector.shape_cast %166 : vector<16xi32> to vector<16x1xi32>
    %168 = vector.broadcast %167 : vector<16x1xi32> to vector<16x128xi32>
    %169 = arith.cmpi eq, %159, %168 : vector<16x128xi32>
    %170 = arith.extui %169 : vector<16x128xi1> to vector<16x128xi32>
    %171 = arith.sitofp %170 : vector<16x128xi32> to vector<16x128xf32>
    %cst_57 = arith.constant dense<0.000000e+00> : vector<16x32xf32>
    %172 = tpu.matmul %171, %150, %cst_57 {dimension_numbers = #tpu.dot_dimension_numbers<[1], [0], [0], [1], [0, 0, 1, 1], [], []>} : vector<16x128xf32>, vector<128x32xf32>, vector<16x32xf32> -> vector<16x32xf32>
    %173 = arith.subf %172, %149 : vector<16x32xf32>
    %174 = arith.mulf %173, %173 : vector<16x32xf32>
    %175 = vector.shape_cast %174 : vector<16x32xf32> to vector<1x16x32xf32>
    %cst_58 = arith.constant dense<0.000000e+00> : vector<1xf32>
    %176 = vector.multi_reduction <add>, %175, %cst_58 [1, 2] : vector<1x16x32xf32> to vector<1xf32>
    %177 = vector.shape_cast %176 : vector<1xf32> to vector<1x1x1xf32>
    %178 = vector.extract %177[0, 0, 0] : f32 from vector<1x1x1xf32>
    %179 = vector.broadcast %178 : f32 to vector<1x1xf32>
    %cst_59 = arith.constant 5.120000e+02 : f32
    %180 = vector.broadcast %cst_59 : f32 to vector<1x1xf32>
    %181 = arith.divf %179, %180 : vector<1x1xf32>
    %cst_60 = arith.constant 1.000000e+00 : f32
    %182 = vector.broadcast %cst_60 : f32 to vector<1x1xf32>
    %183 = arith.mulf %182, %181 : vector<1x1xf32>
    %184 = vector.shape_cast %166 : vector<16xi32> to vector<16x1xi32>
    %185 = vector.shape_cast %184 : vector<16x1xi32> to vector<16x1xi32>
    %186 = vector.broadcast %185 : vector<16x1xi32> to vector<16x128xi32>
    %c0_61 = arith.constant 0 : index
    %c0_62 = arith.constant 0 : index
    %187 = vector.load %arg18[%c0_61, %c0_62] : memref<16x128xi32, #tpu.memory_space<vmem>>, vector<16x128xi32>
    tpu.vector_store %arg18[%c0_61, %c0_62], %186 {strides = array<i32>} : memref<16x128xi32, #tpu.memory_space<vmem>>, vector<16x128xi32>,
    %c0_63 = arith.constant 0 : index
    %c0_64 = arith.constant 0 : index
    %188 = vector.load %arg8[%c0_63, %c0_64] : memref<32x320xf32, #tpu.memory_space<vmem>>, vector<32x320xf32>
    %c0_65 = arith.constant 0 : index
    %c0_66 = arith.constant 0 : index
    %189 = vector.load %arg10[%c0_65, %c0_66] : memref<8x128xf32, #tpu.memory_space<vmem>>, vector<8x128xf32>
    %190 = vector.extract_strided_slice %188 {offsets = [0, 0], sizes = [32, 128], strides = [1, 1]} : vector<32x320xf32> to vector<32x128xf32>
    %191 = vector.extract_strided_slice %188 {offsets = [0, 128], sizes = [32, 128], strides = [1, 1]} : vector<32x320xf32> to vector<32x128xf32>
    %192 = vector.extract_strided_slice %188 {offsets = [0, 256], sizes = [32, 32], strides = [1, 1]} : vector<32x320xf32> to vector<32x32xf32>
    %193 = vector.extract_strided_slice %188 {offsets = [0, 288], sizes = [32, 32], strides = [1, 1]} : vector<32x320xf32> to vector<32x32xf32>
    %194 = vector.extract_strided_slice %189 {offsets = [0, 0], sizes = [1, 32], strides = [1, 1]} : vector<8x128xf32> to vector<1x32xf32>
    %195 = vector.extract_strided_slice %189 {offsets = [1, 0], sizes = [1, 32], strides = [1, 1]} : vector<8x128xf32> to vector<1x32xf32>
    %196 = vector.extract_strided_slice %189 {offsets = [2, 0], sizes = [1, 32], strides = [1, 1]} : vector<8x128xf32> to vector<1x32xf32>
    %197 = vector.extract_strided_slice %189 {offsets = [3, 0], sizes = [1, 32], strides = [1, 1]} : vector<8x128xf32> to vector<1x32xf32>
    %198 = vector.extract_strided_slice %189 {offsets = [4, 0], sizes = [1, 32], strides = [1, 1]} : vector<8x128xf32> to vector<1x32xf32>
    %199 = vector.extract_strided_slice %189 {offsets = [5, 0], sizes = [1, 32], strides = [1, 1]} : vector<8x128xf32> to vector<1x32xf32>
    %200 = vector.extract_strided_slice %189 {offsets = [6, 0], sizes = [1, 128], strides = [1, 1]} : vector<8x128xf32> to vector<1x128xf32>
    %cst_67 = arith.constant dense<0.000000e+00> : vector<16x32xf32>
    %201 = tpu.matmul %172, %192, %cst_67 {dimension_numbers = #tpu.dot_dimension_numbers<[1], [0], [0], [1], [0, 0, 1, 1], [], []>} : vector<16x32xf32>, vector<32x32xf32>, vector<16x32xf32> -> vector<16x32xf32>
    %202 = vector.broadcast %194 : vector<1x32xf32> to vector<16x32xf32>
    %203 = arith.addf %201, %202 : vector<16x32xf32>
    %cst_68 = arith.constant dense<0.000000e+00> : vector<16xf32>
    %204 = vector.multi_reduction <add>, %203, %cst_68 [1] : vector<16x32xf32> to vector<16xf32>
    %205 = vector.shape_cast %204 : vector<16xf32> to vector<16x1xf32>
    %cst_69 = arith.constant 3.200000e+01 : f32
    %206 = vector.broadcast %cst_69 : f32 to vector<16x1xf32>
    %207 = arith.divf %205, %206 : vector<16x1xf32>
    %208 = vector.broadcast %207 : vector<16x1xf32> to vector<16x32xf32>
    %209 = arith.subf %203, %208 : vector<16x32xf32>
    %210 = arith.mulf %209, %209 : vector<16x32xf32>
    %cst_70 = arith.constant dense<0.000000e+00> : vector<16xf32>
    %211 = vector.multi_reduction <add>, %210, %cst_70 [1] : vector<16x32xf32> to vector<16xf32>
    %212 = vector.shape_cast %211 : vector<16xf32> to vector<16x1xf32>
    %cst_71 = arith.constant 3.200000e+01 : f32
    %213 = vector.broadcast %cst_71 : f32 to vector<16x1xf32>
    %214 = arith.divf %212, %213 : vector<16x1xf32>
    %215 = vector.broadcast %207 : vector<16x1xf32> to vector<16x32xf32>
    %216 = arith.subf %203, %215 : vector<16x32xf32>
    %cst_72 = arith.constant 9.99999974E-6 : f32
    %217 = vector.broadcast %cst_72 : f32 to vector<16x1xf32>
    %218 = arith.addf %214, %217 : vector<16x1xf32>
    %219 = math.rsqrt %218 : vector<16x1xf32>
    %220 = vector.broadcast %219 : vector<16x1xf32> to vector<16x32xf32>
    %221 = arith.mulf %216, %220 : vector<16x32xf32>
    %222 = vector.broadcast %195 : vector<1x32xf32> to vector<16x32xf32>
    %223 = arith.mulf %221, %222 : vector<16x32xf32>
    %224 = vector.broadcast %196 : vector<1x32xf32> to vector<16x32xf32>
    %225 = arith.addf %223, %224 : vector<16x32xf32>
    %cst_73 = arith.constant dense<0.000000e+00> : vector<16x128xf32>
    %226 = tpu.matmul %225, %191, %cst_73 {dimension_numbers = #tpu.dot_dimension_numbers<[1], [0], [0], [1], [0, 0, 1, 1], [], []>} : vector<16x32xf32>, vector<32x128xf32>, vector<16x128xf32> -> vector<16x128xf32>
    %227 = vector.extract_strided_slice %226 {offsets = [0, 0], sizes = [16, 32], strides = [1, 1]} : vector<16x128xf32> to vector<16x32xf32>
    %228 = vector.shape_cast %227 : vector<16x32xf32> to vector<2x8x32xf32>
    %229 = vector.extract_strided_slice %226 {offsets = [0, 32], sizes = [16, 32], strides = [1, 1]} : vector<16x128xf32> to vector<16x32xf32>
    %230 = vector.shape_cast %229 : vector<16x32xf32> to vector<2x8x32xf32>
    %231 = vector.extract_strided_slice %226 {offsets = [0, 64], sizes = [16, 32], strides = [1, 1]} : vector<16x128xf32> to vector<16x32xf32>
    %232 = vector.shape_cast %231 : vector<16x32xf32> to vector<2x8x32xf32>
    "tpu.trace_start"() <{level = 10 : i32, message = "bne,bme->bnm"}> : () -> ()
    %cst_74 = arith.constant dense<0.000000e+00> : vector<2x8x8xf32>
    %233 = tpu.matmul %228, %230, %cst_74 {dimension_numbers = #tpu.dot_dimension_numbers<[2], [2], [1], [1], [0, 0, 0, 1, 1, 1], [0], [0]>} : vector<2x8x32xf32>, vector<2x8x32xf32>, vector<2x8x8xf32> -> vector<2x8x8xf32>
    %cst_75 = arith.constant 3.200000e+01 : f32
    "tpu.trace_stop"() : () -> ()
    %234 = math.sqrt %cst_75 : f32
    %cst_76 = arith.constant 1.000000e+00 : f32
    %235 = arith.divf %cst_76, %234 : f32
    %236 = vector.broadcast %235 : f32 to vector<2x8x8xf32>
    %237 = arith.mulf %233, %236 : vector<2x8x8xf32>
    %238 = vector.shape_cast %0 : vector<2x8xf32> to vector<2x1x8xf32>
    %cst_77 = arith.constant 0.000000e+00 : f32
    %239 = vector.broadcast %cst_77 : f32 to vector<2x1x8xf32>
    %240 = arith.cmpf ogt, %238, %239 : vector<2x1x8xf32>
    %cst_78 = arith.constant -1.000000e+09 : f32
    %241 = vector.shape_cast %240 : vector<2x1x8xi1> to vector<2x1x8xi1>
    %242 = vector.broadcast %241 : vector<2x1x8xi1> to vector<2x8x8xi1>
    %243 = vector.broadcast %cst_78 : f32 to vector<2x8x8xf32>
    %244 = arith.select %242, %237, %243 : vector<2x8x8xi1>, vector<2x8x8xf32>
    %cst_79 = arith.constant dense<0xFF800000> : vector<2x8xf32>
    %245 = vector.multi_reduction <maximumf>, %244, %cst_79 [2] : vector<2x8x8xf32> to vector<2x8xf32>
    %cst_80 = arith.constant 0xFF800000 : f32
    %246 = vector.broadcast %cst_80 : f32 to vector<2x8xf32>
    %247 = arith.maximumf %246, %245 : vector<2x8xf32>
    %248 = vector.shape_cast %247 : vector<2x8xf32> to vector<2x8x1xf32>
    %249 = vector.broadcast %248 : vector<2x8x1xf32> to vector<2x8x8xf32>
    %250 = arith.subf %244, %249 : vector<2x8x8xf32>
    %251 = math.exp %250 : vector<2x8x8xf32>
    %cst_81 = arith.constant dense<0.000000e+00> : vector<2x8xf32>
    %252 = vector.multi_reduction <add>, %251, %cst_81 [2] : vector<2x8x8xf32> to vector<2x8xf32>
    %253 = vector.shape_cast %252 : vector<2x8xf32> to vector<2x8x1xf32>
    %254 = vector.broadcast %253 : vector<2x8x1xf32> to vector<2x8x8xf32>
    %255 = arith.divf %251, %254 : vector<2x8x8xf32>
    "tpu.trace_start"() <{level = 10 : i32, message = "bnm,bme->bne"}> : () -> ()
    %cst_82 = arith.constant dense<0.000000e+00> : vector<2x8x32xf32>
    %256 = tpu.matmul %255, %232, %cst_82 {dimension_numbers = #tpu.dot_dimension_numbers<[2], [1], [1], [2], [0, 0, 0, 1, 1, 2], [0], [0]>} : vector<2x8x8xf32>, vector<2x8x32xf32>, vector<2x8x32xf32> -> vector<2x8x32xf32>
    "tpu.trace_stop"() : () -> ()
    %257 = vector.shape_cast %256 : vector<2x8x32xf32> to vector<16x32xf32>
    %cst_83 = arith.constant dense<0.000000e+00> : vector<16x32xf32>
    %258 = tpu.matmul %257, %193, %cst_83 {dimension_numbers = #tpu.dot_dimension_numbers<[1], [0], [0], [1], [0, 0, 1, 1], [], []>} : vector<16x32xf32>, vector<32x32xf32>, vector<16x32xf32> -> vector<16x32xf32>
    %259 = arith.addf %203, %258 : vector<16x32xf32>
    %cst_84 = arith.constant dense<0.000000e+00> : vector<16xf32>
    %260 = vector.multi_reduction <add>, %259, %cst_84 [1] : vector<16x32xf32> to vector<16xf32>
    %261 = vector.shape_cast %260 : vector<16xf32> to vector<16x1xf32>
    %cst_85 = arith.constant 3.200000e+01 : f32
    %262 = vector.broadcast %cst_85 : f32 to vector<16x1xf32>
    %263 = arith.divf %261, %262 : vector<16x1xf32>
    %264 = vector.broadcast %263 : vector<16x1xf32> to vector<16x32xf32>
    %265 = arith.subf %259, %264 : vector<16x32xf32>
    %266 = arith.mulf %265, %265 : vector<16x32xf32>
    %cst_86 = arith.constant dense<0.000000e+00> : vector<16xf32>
    %267 = vector.multi_reduction <add>, %266, %cst_86 [1] : vector<16x32xf32> to vector<16xf32>
    %268 = vector.shape_cast %267 : vector<16xf32> to vector<16x1xf32>
    %cst_87 = arith.constant 3.200000e+01 : f32
    %269 = vector.broadcast %cst_87 : f32 to vector<16x1xf32>
    %270 = arith.divf %268, %269 : vector<16x1xf32>
    %271 = vector.broadcast %263 : vector<16x1xf32> to vector<16x32xf32>
    %272 = arith.subf %259, %271 : vector<16x32xf32>
    %cst_88 = arith.constant 9.99999974E-6 : f32
    %273 = vector.broadcast %cst_88 : f32 to vector<16x1xf32>
    %274 = arith.addf %270, %273 : vector<16x1xf32>
    %275 = math.rsqrt %274 : vector<16x1xf32>
    %276 = vector.broadcast %275 : vector<16x1xf32> to vector<16x32xf32>
    %277 = arith.mulf %272, %276 : vector<16x32xf32>
    %278 = vector.broadcast %197 : vector<1x32xf32> to vector<16x32xf32>
    %279 = arith.mulf %277, %278 : vector<16x32xf32>
    %280 = vector.broadcast %198 : vector<1x32xf32> to vector<16x32xf32>
    %281 = arith.addf %279, %280 : vector<16x32xf32>
    %cst_89 = arith.constant dense<0.000000e+00> : vector<16x128xf32>
    %282 = tpu.matmul %281, %190, %cst_89 {dimension_numbers = #tpu.dot_dimension_numbers<[1], [0], [0], [1], [0, 0, 1, 1], [], []>} : vector<16x32xf32>, vector<32x128xf32>, vector<16x128xf32> -> vector<16x128xf32>
    %283 = vector.broadcast %200 : vector<1x128xf32> to vector<16x128xf32>
    %284 = arith.addf %282, %283 : vector<16x128xf32>
    %285 = arith.mulf %284, %284 : vector<16x128xf32>
    %286 = arith.mulf %284, %285 : vector<16x128xf32>
    %cst_90 = arith.constant 4.471500e-02 : f32
    %287 = vector.broadcast %cst_90 : f32 to vector<16x128xf32>
    %288 = arith.mulf %287, %286 : vector<16x128xf32>
    %289 = arith.addf %284, %288 : vector<16x128xf32>
    %cst_91 = arith.constant 0.797884583 : f32
    %290 = vector.broadcast %cst_91 : f32 to vector<16x128xf32>
    %291 = arith.mulf %290, %289 : vector<16x128xf32>
    %292 = math.tanh %291 : vector<16x128xf32>
    %cst_92 = arith.constant 1.000000e+00 : f32
    %293 = vector.broadcast %cst_92 : f32 to vector<16x128xf32>
    %294 = arith.addf %293, %292 : vector<16x128xf32>
    %cst_93 = arith.constant 5.000000e-01 : f32
    %295 = vector.broadcast %cst_93 : f32 to vector<16x128xf32>
    %296 = arith.mulf %295, %294 : vector<16x128xf32>
    %297 = arith.mulf %284, %296 : vector<16x128xf32>
    %c0_94 = arith.constant 0 : index
    %c0_95 = arith.constant 0 : index
    %298 = vector.load %arg9[%c0_94, %c0_95] : memref<128x32xf32, #tpu.memory_space<vmem>>, vector<128x32xf32>
    %cst_96 = arith.constant dense<0.000000e+00> : vector<16x32xf32>
    %299 = tpu.matmul %297, %298, %cst_96 {dimension_numbers = #tpu.dot_dimension_numbers<[1], [0], [0], [1], [0, 0, 1, 1], [], []>} : vector<16x128xf32>, vector<128x32xf32>, vector<16x32xf32> -> vector<16x32xf32>
    %300 = arith.addf %259, %299 : vector<16x32xf32>
    %301 = vector.broadcast %199 : vector<1x32xf32> to vector<16x32xf32>
    %302 = arith.addf %300, %301 : vector<16x32xf32>
    %c0_97 = arith.constant 0 : index
    %c0_98 = arith.constant 0 : index
    %303 = vector.load %arg11[%c0_97, %c0_98] : memref<32x320xf32, #tpu.memory_space<vmem>>, vector<32x320xf32>
    %c0_99 = arith.constant 0 : index
    %c0_100 = arith.constant 0 : index
    %304 = vector.load %arg13[%c0_99, %c0_100] : memref<8x128xf32, #tpu.memory_space<vmem>>, vector<8x128xf32>
    %305 = vector.extract_strided_slice %303 {offsets = [0, 0], sizes = [32, 128], strides = [1, 1]} : vector<32x320xf32> to vector<32x128xf32>
    %306 = vector.extract_strided_slice %303 {offsets = [0, 128], sizes = [32, 128], strides = [1, 1]} : vector<32x320xf32> to vector<32x128xf32>
    %307 = vector.extract_strided_slice %303 {offsets = [0, 256], sizes = [32, 32], strides = [1, 1]} : vector<32x320xf32> to vector<32x32xf32>
    %308 = vector.extract_strided_slice %303 {offsets = [0, 288], sizes = [32, 32], strides = [1, 1]} : vector<32x320xf32> to vector<32x32xf32>
    %309 = vector.extract_strided_slice %304 {offsets = [0, 0], sizes = [1, 32], strides = [1, 1]} : vector<8x128xf32> to vector<1x32xf32>
    %310 = vector.extract_strided_slice %304 {offsets = [1, 0], sizes = [1, 32], strides = [1, 1]} : vector<8x128xf32> to vector<1x32xf32>
    %311 = vector.extract_strided_slice %304 {offsets = [2, 0], sizes = [1, 32], strides = [1, 1]} : vector<8x128xf32> to vector<1x32xf32>
    %312 = vector.extract_strided_slice %304 {offsets = [3, 0], sizes = [1, 32], strides = [1, 1]} : vector<8x128xf32> to vector<1x32xf32>
    %313 = vector.extract_strided_slice %304 {offsets = [4, 0], sizes = [1, 32], strides = [1, 1]} : vector<8x128xf32> to vector<1x32xf32>
    %314 = vector.extract_strided_slice %304 {offsets = [5, 0], sizes = [1, 32], strides = [1, 1]} : vector<8x128xf32> to vector<1x32xf32>
    %315 = vector.extract_strided_slice %304 {offsets = [6, 0], sizes = [1, 128], strides = [1, 1]} : vector<8x128xf32> to vector<1x128xf32>
    %cst_101 = arith.constant dense<0.000000e+00> : vector<16x32xf32>
    %316 = tpu.matmul %172, %307, %cst_101 {dimension_numbers = #tpu.dot_dimension_numbers<[1], [0], [0], [1], [0, 0, 1, 1], [], []>} : vector<16x32xf32>, vector<32x32xf32>, vector<16x32xf32> -> vector<16x32xf32>
    %317 = vector.broadcast %309 : vector<1x32xf32> to vector<16x32xf32>
    %318 = arith.addf %316, %317 : vector<16x32xf32>
    %cst_102 = arith.constant dense<0.000000e+00> : vector<16xf32>
    %319 = vector.multi_reduction <add>, %318, %cst_102 [1] : vector<16x32xf32> to vector<16xf32>
    %320 = vector.shape_cast %319 : vector<16xf32> to vector<16x1xf32>
    %cst_103 = arith.constant 3.200000e+01 : f32
    %321 = vector.broadcast %cst_103 : f32 to vector<16x1xf32>
    %322 = arith.divf %320, %321 : vector<16x1xf32>
    %323 = vector.broadcast %322 : vector<16x1xf32> to vector<16x32xf32>
    %324 = arith.subf %318, %323 : vector<16x32xf32>
    %325 = arith.mulf %324, %324 : vector<16x32xf32>
    %cst_104 = arith.constant dense<0.000000e+00> : vector<16xf32>
    %326 = vector.multi_reduction <add>, %325, %cst_104 [1] : vector<16x32xf32> to vector<16xf32>
    %327 = vector.shape_cast %326 : vector<16xf32> to vector<16x1xf32>
    %cst_105 = arith.constant 3.200000e+01 : f32
    %328 = vector.broadcast %cst_105 : f32 to vector<16x1xf32>
    %329 = arith.divf %327, %328 : vector<16x1xf32>
    %330 = vector.broadcast %322 : vector<16x1xf32> to vector<16x32xf32>
    %331 = arith.subf %318, %330 : vector<16x32xf32>
    %cst_106 = arith.constant 9.99999974E-6 : f32
    %332 = vector.broadcast %cst_106 : f32 to vector<16x1xf32>
    %333 = arith.addf %329, %332 : vector<16x1xf32>
    %334 = math.rsqrt %333 : vector<16x1xf32>
    %335 = vector.broadcast %334 : vector<16x1xf32> to vector<16x32xf32>
    %336 = arith.mulf %331, %335 : vector<16x32xf32>
    %337 = vector.broadcast %310 : vector<1x32xf32> to vector<16x32xf32>
    %338 = arith.mulf %336, %337 : vector<16x32xf32>
    %339 = vector.broadcast %311 : vector<1x32xf32> to vector<16x32xf32>
    %340 = arith.addf %338, %339 : vector<16x32xf32>
    %cst_107 = arith.constant dense<0.000000e+00> : vector<16x128xf32>
    %341 = tpu.matmul %340, %306, %cst_107 {dimension_numbers = #tpu.dot_dimension_numbers<[1], [0], [0], [1], [0, 0, 1, 1], [], []>} : vector<16x32xf32>, vector<32x128xf32>, vector<16x128xf32> -> vector<16x128xf32>
    %342 = vector.extract_strided_slice %341 {offsets = [0, 0], sizes = [16, 32], strides = [1, 1]} : vector<16x128xf32> to vector<16x32xf32>
    %343 = vector.shape_cast %342 : vector<16x32xf32> to vector<2x8x32xf32>
    %344 = vector.extract_strided_slice %341 {offsets = [0, 32], sizes = [16, 32], strides = [1, 1]} : vector<16x128xf32> to vector<16x32xf32>
    %345 = vector.shape_cast %344 : vector<16x32xf32> to vector<2x8x32xf32>
    %346 = vector.extract_strided_slice %341 {offsets = [0, 64], sizes = [16, 32], strides = [1, 1]} : vector<16x128xf32> to vector<16x32xf32>
    %347 = vector.shape_cast %346 : vector<16x32xf32> to vector<2x8x32xf32>
    "tpu.trace_start"() <{level = 10 : i32, message = "bne,bme->bnm"}> : () -> ()
    %cst_108 = arith.constant dense<0.000000e+00> : vector<2x8x8xf32>
    %348 = tpu.matmul %343, %345, %cst_108 {dimension_numbers = #tpu.dot_dimension_numbers<[2], [2], [1], [1], [0, 0, 0, 1, 1, 1], [0], [0]>} : vector<2x8x32xf32>, vector<2x8x32xf32>, vector<2x8x8xf32> -> vector<2x8x8xf32>
    %cst_109 = arith.constant 3.200000e+01 : f32
    "tpu.trace_stop"() : () -> ()
    %349 = math.sqrt %cst_109 : f32
    %cst_110 = arith.constant 1.000000e+00 : f32
    %350 = arith.divf %cst_110, %349 : f32
    %351 = vector.broadcast %350 : f32 to vector<2x8x8xf32>
    %352 = arith.mulf %348, %351 : vector<2x8x8xf32>
    %353 = vector.shape_cast %0 : vector<2x8xf32> to vector<2x1x8xf32>
    %cst_111 = arith.constant 0.000000e+00 : f32
    %354 = vector.broadcast %cst_111 : f32 to vector<2x1x8xf32>
    %355 = arith.cmpf ogt, %353, %354 : vector<2x1x8xf32>
    %cst_112 = arith.constant -1.000000e+09 : f32
    %356 = vector.shape_cast %355 : vector<2x1x8xi1> to vector<2x1x8xi1>
    %357 = vector.broadcast %356 : vector<2x1x8xi1> to vector<2x8x8xi1>
    %358 = vector.broadcast %cst_112 : f32 to vector<2x8x8xf32>
    %359 = arith.select %357, %352, %358 : vector<2x8x8xi1>, vector<2x8x8xf32>
    %cst_113 = arith.constant dense<0xFF800000> : vector<2x8xf32>
    %360 = vector.multi_reduction <maximumf>, %359, %cst_113 [2] : vector<2x8x8xf32> to vector<2x8xf32>
    %cst_114 = arith.constant 0xFF800000 : f32
    %361 = vector.broadcast %cst_114 : f32 to vector<2x8xf32>
    %362 = arith.maximumf %361, %360 : vector<2x8xf32>
    %363 = vector.shape_cast %362 : vector<2x8xf32> to vector<2x8x1xf32>
    %364 = vector.broadcast %363 : vector<2x8x1xf32> to vector<2x8x8xf32>
    %365 = arith.subf %359, %364 : vector<2x8x8xf32>
    %366 = math.exp %365 : vector<2x8x8xf32>
    %cst_115 = arith.constant dense<0.000000e+00> : vector<2x8xf32>
    %367 = vector.multi_reduction <add>, %366, %cst_115 [2] : vector<2x8x8xf32> to vector<2x8xf32>
    %368 = vector.shape_cast %367 : vector<2x8xf32> to vector<2x8x1xf32>
    %369 = vector.broadcast %368 : vector<2x8x1xf32> to vector<2x8x8xf32>
    %370 = arith.divf %366, %369 : vector<2x8x8xf32>
    "tpu.trace_start"() <{level = 10 : i32, message = "bnm,bme->bne"}> : () -> ()
    %cst_116 = arith.constant dense<0.000000e+00> : vector<2x8x32xf32>
    %371 = tpu.matmul %370, %347, %cst_116 {dimension_numbers = #tpu.dot_dimension_numbers<[2], [1], [1], [2], [0, 0, 0, 1, 1, 2], [0], [0]>} : vector<2x8x8xf32>, vector<2x8x32xf32>, vector<2x8x32xf32> -> vector<2x8x32xf32>
    "tpu.trace_stop"() : () -> ()
    %372 = vector.shape_cast %371 : vector<2x8x32xf32> to vector<16x32xf32>
    %cst_117 = arith.constant dense<0.000000e+00> : vector<16x32xf32>
    %373 = tpu.matmul %372, %308, %cst_117 {dimension_numbers = #tpu.dot_dimension_numbers<[1], [0], [0], [1], [0, 0, 1, 1], [], []>} : vector<16x32xf32>, vector<32x32xf32>, vector<16x32xf32> -> vector<16x32xf32>
    %374 = arith.addf %318, %373 : vector<16x32xf32>
    %cst_118 = arith.constant dense<0.000000e+00> : vector<16xf32>
    %375 = vector.multi_reduction <add>, %374, %cst_118 [1] : vector<16x32xf32> to vector<16xf32>
    %376 = vector.shape_cast %375 : vector<16xf32> to vector<16x1xf32>
    %cst_119 = arith.constant 3.200000e+01 : f32
    %377 = vector.broadcast %cst_119 : f32 to vector<16x1xf32>
    %378 = arith.divf %376, %377 : vector<16x1xf32>
    %379 = vector.broadcast %378 : vector<16x1xf32> to vector<16x32xf32>
    %380 = arith.subf %374, %379 : vector<16x32xf32>
    %381 = arith.mulf %380, %380 : vector<16x32xf32>
    %cst_120 = arith.constant dense<0.000000e+00> : vector<16xf32>
    %382 = vector.multi_reduction <add>, %381, %cst_120 [1] : vector<16x32xf32> to vector<16xf32>
    %383 = vector.shape_cast %382 : vector<16xf32> to vector<16x1xf32>
    %cst_121 = arith.constant 3.200000e+01 : f32
    %384 = vector.broadcast %cst_121 : f32 to vector<16x1xf32>
    %385 = arith.divf %383, %384 : vector<16x1xf32>
    %386 = vector.broadcast %378 : vector<16x1xf32> to vector<16x32xf32>
    %387 = arith.subf %374, %386 : vector<16x32xf32>
    %cst_122 = arith.constant 9.99999974E-6 : f32
    %388 = vector.broadcast %cst_122 : f32 to vector<16x1xf32>
    %389 = arith.addf %385, %388 : vector<16x1xf32>
    %390 = math.rsqrt %389 : vector<16x1xf32>
    %391 = vector.broadcast %390 : vector<16x1xf32> to vector<16x32xf32>
    %392 = arith.mulf %387, %391 : vector<16x32xf32>
    %393 = vector.broadcast %312 : vector<1x32xf32> to vector<16x32xf32>
    %394 = arith.mulf %392, %393 : vector<16x32xf32>
    %395 = vector.broadcast %313 : vector<1x32xf32> to vector<16x32xf32>
    %396 = arith.addf %394, %395 : vector<16x32xf32>
    %cst_123 = arith.constant dense<0.000000e+00> : vector<16x128xf32>
    %397 = tpu.matmul %396, %305, %cst_123 {dimension_numbers = #tpu.dot_dimension_numbers<[1], [0], [0], [1], [0, 0, 1, 1], [], []>} : vector<16x32xf32>, vector<32x128xf32>, vector<16x128xf32> -> vector<16x128xf32>
    %398 = vector.broadcast %315 : vector<1x128xf32> to vector<16x128xf32>
    %399 = arith.addf %397, %398 : vector<16x128xf32>
    %400 = arith.mulf %399, %399 : vector<16x128xf32>
    %401 = arith.mulf %399, %400 : vector<16x128xf32>
    %cst_124 = arith.constant 4.471500e-02 : f32
    %402 = vector.broadcast %cst_124 : f32 to vector<16x128xf32>
    %403 = arith.mulf %402, %401 : vector<16x128xf32>
    %404 = arith.addf %399, %403 : vector<16x128xf32>
    %cst_125 = arith.constant 0.797884583 : f32
    %405 = vector.broadcast %cst_125 : f32 to vector<16x128xf32>
    %406 = arith.mulf %405, %404 : vector<16x128xf32>
    %407 = math.tanh %406 : vector<16x128xf32>
    %cst_126 = arith.constant 1.000000e+00 : f32
    %408 = vector.broadcast %cst_126 : f32 to vector<16x128xf32>
    %409 = arith.addf %408, %407 : vector<16x128xf32>
    %cst_127 = arith.constant 5.000000e-01 : f32
    %410 = vector.broadcast %cst_127 : f32 to vector<16x128xf32>
    %411 = arith.mulf %410, %409 : vector<16x128xf32>
    %412 = arith.mulf %399, %411 : vector<16x128xf32>
    %c0_128 = arith.constant 0 : index
    %c0_129 = arith.constant 0 : index
    %413 = vector.load %arg12[%c0_128, %c0_129] : memref<128x32xf32, #tpu.memory_space<vmem>>, vector<128x32xf32>
    %cst_130 = arith.constant dense<0.000000e+00> : vector<16x32xf32>
    %414 = tpu.matmul %412, %413, %cst_130 {dimension_numbers = #tpu.dot_dimension_numbers<[1], [0], [0], [1], [0, 0, 1, 1], [], []>} : vector<16x128xf32>, vector<128x32xf32>, vector<16x32xf32> -> vector<16x32xf32>
    %415 = arith.addf %374, %414 : vector<16x32xf32>
    %416 = vector.broadcast %314 : vector<1x32xf32> to vector<16x32xf32>
    %417 = arith.addf %415, %416 : vector<16x32xf32>
    %cst_131 = arith.constant dense<0.000000e+00> : vector<16x32xf32>
    %418 = tpu.matmul %302, %125, %cst_131 {dimension_numbers = #tpu.dot_dimension_numbers<[1], [0], [0], [1], [0, 0, 1, 1], [], []>} : vector<16x32xf32>, vector<32x32xf32>, vector<16x32xf32> -> vector<16x32xf32>
    %419 = vector.broadcast %131 : vector<1x32xf32> to vector<16x32xf32>
    %420 = arith.addf %418, %419 : vector<16x32xf32>
    %421 = math.tanh %420 : vector<16x32xf32>
    %cst_132 = arith.constant dense<0.000000e+00> : vector<16x8xf32>
    %422 = tpu.matmul %421, %127, %cst_132 {dimension_numbers = #tpu.dot_dimension_numbers<[1], [0], [0], [1], [0, 0, 1, 1], [], []>} : vector<16x32xf32>, vector<32x8xf32>, vector<16x8xf32> -> vector<16x8xf32>
    %423 = vector.broadcast %132 : vector<1x8xf32> to vector<16x8xf32>
    %424 = arith.addf %422, %423 : vector<16x8xf32>
    %cst_133 = arith.constant dense<0.000000e+00> : vector<16x32xf32>
    %425 = tpu.matmul %417, %126, %cst_133 {dimension_numbers = #tpu.dot_dimension_numbers<[1], [0], [0], [1], [0, 0, 1, 1], [], []>} : vector<16x32xf32>, vector<32x32xf32>, vector<16x32xf32> -> vector<16x32xf32>
    %426 = vector.broadcast %133 : vector<1x32xf32> to vector<16x32xf32>
    %427 = arith.addf %425, %426 : vector<16x32xf32>
    %428 = math.tanh %427 : vector<16x32xf32>
    %cst_134 = arith.constant dense<0.000000e+00> : vector<16x16xf32>
    %429 = tpu.matmul %428, %128, %cst_134 {dimension_numbers = #tpu.dot_dimension_numbers<[1], [0], [0], [1], [0, 0, 1, 1], [], []>} : vector<16x32xf32>, vector<32x16xf32>, vector<16x16xf32> -> vector<16x16xf32>
    %430 = vector.broadcast %134 : vector<1x16xf32> to vector<16x16xf32>
    %431 = arith.addf %429, %430 : vector<16x16xf32>
    %432 = vector.broadcast %1 : vector<16x1xf32> to vector<16x8xf32>
    %433 = arith.mulf %424, %432 : vector<16x8xf32>
    %c0_135 = arith.constant 0 : index
    %c0_136 = arith.constant 0 : index
    %c0_137 = arith.constant 0 : index
    %434 = vector.load %arg3[%c0_135, %c0_136, %c0_137] : memref<2x8x8xf32, #tpu.memory_space<vmem>>, vector<2x8x8xf32>
    %435 = vector.shape_cast %434 : vector<2x8x8xf32> to vector<16x8xf32>
    %436 = arith.subf %433, %435 : vector<16x8xf32>
    %437 = vector.broadcast %1 : vector<16x1xf32> to vector<16x16xf32>
    %438 = arith.mulf %431, %437 : vector<16x16xf32>
    %c0_138 = arith.constant 0 : index
    %c0_139 = arith.constant 0 : index
    %c0_140 = arith.constant 0 : index
    %439 = vector.load %arg4[%c0_138, %c0_139, %c0_140] : memref<2x8x16xf32, #tpu.memory_space<vmem>>, vector<2x8x16xf32>
    %440 = vector.shape_cast %439 : vector<2x8x16xf32> to vector<16x16xf32>
    %441 = arith.subf %438, %440 : vector<16x16xf32>
    %442 = arith.mulf %436, %436 : vector<16x8xf32>
    %443 = vector.shape_cast %442 : vector<16x8xf32> to vector<1x16x8xf32>
    %cst_141 = arith.constant dense<0.000000e+00> : vector<1xf32>
    %444 = vector.multi_reduction <add>, %443, %cst_141 [1, 2] : vector<1x16x8xf32> to vector<1xf32>
    %445 = vector.shape_cast %444 : vector<1xf32> to vector<1x1x1xf32>
    %446 = vector.extract %445[0, 0, 0] : f32 from vector<1x1x1xf32>
    %447 = vector.broadcast %446 : f32 to vector<1x1xf32>
    %cst_142 = arith.constant 1.280000e+02 : f32
    %448 = vector.broadcast %cst_142 : f32 to vector<1x1xf32>
    %449 = arith.divf %447, %448 : vector<1x1xf32>
    %450 = arith.mulf %441, %441 : vector<16x16xf32>
    %451 = vector.shape_cast %450 : vector<16x16xf32> to vector<1x16x16xf32>
    %cst_143 = arith.constant dense<0.000000e+00> : vector<1xf32>
    %452 = vector.multi_reduction <add>, %451, %cst_143 [1, 2] : vector<1x16x16xf32> to vector<1xf32>
    %453 = vector.shape_cast %452 : vector<1xf32> to vector<1x1x1xf32>
    %454 = vector.extract %453[0, 0, 0] : f32 from vector<1x1x1xf32>
    %455 = vector.broadcast %454 : f32 to vector<1x1xf32>
    %cst_144 = arith.constant 2.560000e+02 : f32
    %456 = vector.broadcast %cst_144 : f32 to vector<1x1xf32>
    %457 = arith.divf %455, %456 : vector<1x1xf32>
    %458 = tpu.iota {dimensions = array<i32: 1>} : vector<1x128xi32>
    %c0_i32 = arith.constant 0 : i32
    %459 = vector.broadcast %c0_i32 : i32 to vector<1x128xi32>
    %460 = arith.cmpi eq, %458, %459 : vector<1x128xi32>
    %cst_145 = arith.constant 0.000000e+00 : f32
    %461 = vector.shape_cast %183 : vector<1x1xf32> to vector<1x1xf32>
    %462 = vector.broadcast %461 : vector<1x1xf32> to vector<1x128xf32>
    %463 = vector.broadcast %cst_145 : f32 to vector<1x128xf32>
    %464 = arith.select %460, %462, %463 : vector<1x128xi1>, vector<1x128xf32>
    %c1_i32 = arith.constant 1 : i32
    %465 = vector.broadcast %c1_i32 : i32 to vector<1x128xi32>
    %466 = arith.cmpi eq, %458, %465 : vector<1x128xi32>
    %cst_146 = arith.constant 0.000000e+00 : f32
    %467 = vector.shape_cast %449 : vector<1x1xf32> to vector<1x1xf32>
    %468 = vector.broadcast %467 : vector<1x1xf32> to vector<1x128xf32>
    %469 = vector.broadcast %cst_146 : f32 to vector<1x128xf32>
    %470 = arith.select %466, %468, %469 : vector<1x128xi1>, vector<1x128xf32>
    %471 = arith.addf %464, %470 : vector<1x128xf32>
    %c2_i32 = arith.constant 2 : i32
    %472 = vector.broadcast %c2_i32 : i32 to vector<1x128xi32>
    %473 = arith.cmpi eq, %458, %472 : vector<1x128xi32>
    %cst_147 = arith.constant 0.000000e+00 : f32
    %474 = vector.shape_cast %457 : vector<1x1xf32> to vector<1x1xf32>
    %475 = vector.broadcast %474 : vector<1x1xf32> to vector<1x128xf32>
    %476 = vector.broadcast %cst_147 : f32 to vector<1x128xf32>
    %477 = arith.select %473, %475, %476 : vector<1x128xi1>, vector<1x128xf32>
    %478 = arith.addf %471, %477 : vector<1x128xf32>
    %c0_148 = arith.constant 0 : index
    %c0_149 = arith.constant 0 : index
    %479 = vector.load %arg19[%c0_148, %c0_149] : memref<1x128xf32, #tpu.memory_space<vmem>>, vector<1x128xf32>
    tpu.vector_store %arg19[%c0_148, %c0_149], %478 {strides = array<i32>} : memref<1x128xf32, #tpu.memory_space<vmem>>, vector<1x128xf32>,
    return
  }
}

</mosaic_0001>

<llo_original>
// kernel: vq_forward.1
$region0: #{vq_forward.1}
  #allocation0 [shape = 'u32[]', space=smem, size = 0x4, offset = 0x4, fixed_abs, tag = 'smem constant byte address 0x4 - core index']
  #allocation1 [shape = 'u32[144,128]{1,0:T(1,128)}', space=vmem, size = 0x12000, scoped, tag = 'internal scratch']
  %s0 = inlined_call_operand.vmem [shape: f32[2,8,16], index: 0, kind: input, shape index: {}]
  %s1 = inlined_call_operand.vmem [shape: f32[2,8], index: 1, kind: input, shape index: {}]
  %s2 = inlined_call_operand.vmem [shape: f32[16,1], index: 2, kind: input, shape index: {}]
  %s3 = inlined_call_operand.vmem [shape: f32[2,8,8], index: 3, kind: input, shape index: {}]
  %s4 = inlined_call_operand.vmem [shape: f32[2,8,16], index: 4, kind: input, shape index: {}]
  %s5 = inlined_call_operand.vmem [shape: f32[32,320], index: 5, kind: input, shape index: {}]
  %s6 = inlined_call_operand.vmem [shape: f32[128,32], index: 6, kind: input, shape index: {}]
  %s7 = inlined_call_operand.vmem [shape: f32[8,128], index: 7, kind: input, shape index: {}]
  %s8 = inlined_call_operand.vmem [shape: f32[32,320], index: 8, kind: input, shape index: {}]
  %s9 = inlined_call_operand.vmem [shape: f32[128,32], index: 9, kind: input, shape index: {}]
  %s10 = inlined_call_operand.vmem [shape: f32[8,128], index: 10, kind: input, shape index: {}]
  %s11 = inlined_call_operand.vmem [shape: f32[32,320], index: 11, kind: input, shape index: {}]
  %s12 = inlined_call_operand.vmem [shape: f32[128,32], index: 12, kind: input, shape index: {}]
  %s13 = inlined_call_operand.vmem [shape: f32[8,128], index: 13, kind: input, shape index: {}]
  %s14 = inlined_call_operand.vmem [shape: f32[32,152], index: 14, kind: input, shape index: {}]
  %s15 = inlined_call_operand.vmem [shape: f32[8,128], index: 15, kind: input, shape index: {}]
  %s16 = inlined_call_operand.vmem [shape: f32[128,32], index: 16, kind: input, shape index: {}]
  %s17 = inlined_call_operand.hbm [shape: f32[2,8,32], index: 17, kind: output, shape index: {0}]
  %s18 = inlined_call_operand.vmem [shape: s32[16,128], index: 18, kind: output, shape index: {1}]
  %s19 = inlined_call_operand.vmem [shape: f32[1,128], index: 19, kind: output, shape index: {2}]
  %20 = xla_tuple %s17, %s18, %s19
  %s21 = sld [smem:[#allocation0]]
  $region94: #{vq_forward.1} parent=0
    _
  %s23 = ssub.s32 1, %s21
  %s24 = scalar_select 0, %s23, %s21
  $region1: #{vq_forward.1} parent=0
    #allocation2 [shape = 'u8[8192]{0}', space=vmem, size = 0x2000, scoped, tag = 'output window, operand 0, single buffered']
    #allocation3 [shape = 's32[1]{0}', space=sflag, size = 0x4, scoped, tag = 'scoped memory for vq_forward.1']
    %25 = vsyncpa [#allocation3], 0
    // Predicated region
    $region2: #{vq_forward.1} parent=1 // pred_check
      _
    $region3: #{vq_forward.1} parent=1 // pred_check_branch
      %27 = sbr.rel (0) target = $region5
    $region4: #{vq_forward.1} parent=1 // pred_region
      _
    $region5: #{vq_forward.1} parent=1 // pred_fallthru
      _
    // Predicated region
    $region6: #{vq_forward.1} parent=1 // pred_check
      _
    $region7: #{vq_forward.1} parent=1 // pred_check_branch
      %29 = sbr.rel (0) target = $region9
    $region8: #{vq_forward.1} parent=1 // pred_region
      _
    $region9: #{vq_forward.1} parent=1 // pred_fallthru
      _
    // Predicated region
    $region10: #{vq_forward.1} parent=1 // pred_check
      _
    $region11: #{vq_forward.1} parent=1 // pred_check_branch
      %31 = sbr.rel (0) target = $region13
    $region12: #{vq_forward.1} parent=1 // pred_region
      _
    $region13: #{vq_forward.1} parent=1 // pred_fallthru
      _
    // Predicated region
    $region14: #{vq_forward.1} parent=1 // pred_check
      _
    $region15: #{vq_forward.1} parent=1 // pred_check_branch
      %33 = sbr.rel (0) target = $region17
    $region16: #{vq_forward.1} parent=1 // pred_region
      _
    $region17: #{vq_forward.1} parent=1 // pred_fallthru
      _
    // Predicated region
    $region18: #{vq_forward.1} parent=1 // pred_check
      _
    $region19: #{vq_forward.1} parent=1 // pred_check_branch
      %35 = sbr.rel (0) target = $region21
    $region20: #{vq_forward.1} parent=1 // pred_region
      _
    $region21: #{vq_forward.1} parent=1 // pred_fallthru
      _
    // Predicated region
    $region22: #{vq_forward.1} parent=1 // pred_check
      _
    $region23: #{vq_forward.1} parent=1 // pred_check_branch
      %37 = sbr.rel (0) target = $region25
    $region24: #{vq_forward.1} parent=1 // pred_region
      _
    $region25: #{vq_forward.1} parent=1 // pred_fallthru
      _
    // Predicated region
    $region26: #{vq_forward.1} parent=1 // pred_check
      _
    $region27: #{vq_forward.1} parent=1 // pred_check_branch
      %39 = sbr.rel (0) target = $region29
    $region28: #{vq_forward.1} parent=1 // pred_region
      _
    $region29: #{vq_forward.1} parent=1 // pred_fallthru
      _
    // Predicated region
    $region30: #{vq_forward.1} parent=1 // pred_check
      _
    $region31: #{vq_forward.1} parent=1 // pred_check_branch
      %41 = sbr.rel (0) target = $region33
    $region32: #{vq_forward.1} parent=1 // pred_region
      _
    $region33: #{vq_forward.1} parent=1 // pred_fallthru
      _
    // Predicated region
    $region34: #{vq_forward.1} parent=1 // pred_check
      _
    $region35: #{vq_forward.1} parent=1 // pred_check_branch
      %43 = sbr.rel (0) target = $region37
    $region36: #{vq_forward.1} parent=1 // pred_region
      _
    $region37: #{vq_forward.1} parent=1 // pred_fallthru
      _
    // Predicated region
    $region38: #{vq_forward.1} parent=1 // pred_check
      _
    $region39: #{vq_forward.1} parent=1 // pred_check_branch
      %45 = sbr.rel (0) target = $region41
    $region40: #{vq_forward.1} parent=1 // pred_region
      _
    $region41: #{vq_forward.1} parent=1 // pred_fallthru
      _
    // Predicated region
    $region42: #{vq_forward.1} parent=1 // pred_check
      _
    $region43: #{vq_forward.1} parent=1 // pred_check_branch
      %47 = sbr.rel (0) target = $region45
    $region44: #{vq_forward.1} parent=1 // pred_region
      _
    $region45: #{vq_forward.1} parent=1 // pred_fallthru
      _
    // Predicated region
    $region46: #{vq_forward.1} parent=1 // pred_check
      _
    $region47: #{vq_forward.1} parent=1 // pred_check_branch
      %49 = sbr.rel (0) target = $region49
    $region48: #{vq_forward.1} parent=1 // pred_region
      _
    $region49: #{vq_forward.1} parent=1 // pred_fallthru
      _
    // Predicated region
    $region50: #{vq_forward.1} parent=1 // pred_check
      _
    $region51: #{vq_forward.1} parent=1 // pred_check_branch
      %51 = sbr.rel (0) target = $region53
    $region52: #{vq_forward.1} parent=1 // pred_region
      _
    $region53: #{vq_forward.1} parent=1 // pred_fallthru
      _
    // Predicated region
    $region54: #{vq_forward.1} parent=1 // pred_check
      _
    $region55: #{vq_forward.1} parent=1 // pred_check_branch
      %53 = sbr.rel (0) target = $region57
    $region56: #{vq_forward.1} parent=1 // pred_region
      _
    $region57: #{vq_forward.1} parent=1 // pred_fallthru
      _
    // Predicated region
    $region58: #{vq_forward.1} parent=1 // pred_check
      _
    $region59: #{vq_forward.1} parent=1 // pred_check_branch
      %55 = sbr.rel (0) target = $region61
    $region60: #{vq_forward.1} parent=1 // pred_region
      _
    $region61: #{vq_forward.1} parent=1 // pred_fallthru
      _
    // Predicated region
    $region62: #{vq_forward.1} parent=1 // pred_check
      _
    $region63: #{vq_forward.1} parent=1 // pred_check_branch
      %57 = sbr.rel (0) target = $region65
    $region64: #{vq_forward.1} parent=1 // pred_region
      _
    $region65: #{vq_forward.1} parent=1 // pred_fallthru
      _
    // Predicated region
    $region66: #{vq_forward.1} parent=1 // pred_check
      _
    $region67: #{vq_forward.1} parent=1 // pred_check_branch
      %59 = sbr.rel (0) target = $region69
    $region68: #{vq_forward.1} parent=1 // pred_region
      _
    $region69: #{vq_forward.1} parent=1 // pred_fallthru
      _
    %v60 = vld [vmem:[%s1] sm:$0x3]
    %v61 = vld [vmem:[%s2] sm:$0xff]
    %v62 = vld [vmem:[%s2 + $0x8] sm:$0xff]
    %v63 = vld [vmem:[%s0] sm:$0xff]
    %v64 = vld [vmem:[%s0 + $0x8] sm:$0xff]
    %v65 = vld [vmem:[%s5] sm:$0xff]
    %v66 = vld [vmem:[%s5 + $0x8] sm:$0xff]
    %v67 = vld [vmem:[%s5 + $0x10] sm:$0xff]
    %v68 = vld [vmem:[%s5 + $0x18] sm:$0xff]
    %v69 = vld [vmem:[%s5 + $0x20] sm:$0xff]
    %v70 = vld [vmem:[%s5 + $0x28] sm:$0xff]
    %v71 = vld [vmem:[%s5 + $0x30] sm:$0xff]
    %v72 = vld [vmem:[%s5 + $0x38] sm:$0xff]
    %v73 = vld [vmem:[%s5 + $0x40] sm:$0xff]
    %v74 = vld [vmem:[%s5 + $0x48] sm:$0xff]
    %v75 = vld [vmem:[%s5 + $0x50] sm:$0xff]
    %v76 = vld [vmem:[%s5 + $0x58] sm:$0xff]
    %v77 = vld [vmem:[%s7] sm:$0xff]
    %v78 = vlaneseq
    %v79 = vshrl.u32 %v78, 7
    %v80 = vsub.s32 0, %v79
    %v81 = vrot.slane %v77, %v80
    %vm82 = vcmask 130048
    %v84 = vsel %vm82, %v63, 0
    %v87 = vsel %vm82, %v64, 0
    %89 = vmatprep.subr.mxu0 0.0
    %90 = vmatpush1.msra.mxu0 %v67
    %91 = vmatprep.subr.mxu0 0.0
    %92 = vmatpush1.msra.mxu0 %v70
    %93 = vmatprep.subr.mxu0 0.0
    %94 = vmatpush1.msra.mxu0 0.0
    %95 = vmatprep.subr.mxu0 0.0
    %96 = vmatpush1.msra.mxu0 0.0
    %97 = vmatprep.subr.mxu0 0.0
    %98 = vmatpush1.msra.mxu0 0.0
    %99 = vmatprep.subr.mxu0 0.0
    %100 = vmatpush1.msra.mxu0 0.0
    %101 = vmatprep.subr.mxu0 0.0
    %102 = vmatpush1.msra.mxu0 0.0
    %103 = vmatprep.subr.mxu0 0.0
    %104 = vmatpush1.msra.mxu0 0.0
    %105 = vmatprep.subr.mxu0 0.0
    %106 = vmatpush1.msra.mxu0 0.0
    %107 = vmatprep.subr.mxu0 0.0
    %108 = vmatpush1.msra.mxu0 0.0
    %109 = vmatprep.subr.mxu0 0.0
    %110 = vmatpush1.msra.mxu0 0.0
    %111 = vmatprep.subr.mxu0 0.0
    %112 = vmatpush1.msra.mxu0 0.0
    %113 = vmatprep.subr.mxu0 0.0
    %114 = vmatpush1.msra.mxu0 0.0
    %115 = vmatprep.subr.mxu0 0.0
    %116 = vmatpush1.msra.mxu0 0.0
    %117 = vmatprep.subr.mxu0 0.0
    %118 = vmatpush1.msra.mxu0 0.0
    %119 = vmatprep.subr.mxu0 0.0
    %120 = vmatpush1.msra.mxu0 0.0
    %121 = vmatprep.subr.mxu0 0.0
    %122 = vmatpush1.msra.mxu0 0.0
    %123 = vmatprep.subr.mxu0 0.0
    %124 = vmatpush1.msra.mxu0 0.0
    %125 = vmatprep.subr.mxu0 0.0
    %126 = vmatpush1.msra.mxu0 0.0
    %127 = vmatprep.subr.mxu0 0.0
    %128 = vmatpush1.msra.mxu0 0.0
    %129 = vmatprep.subr.mxu0 0.0
    %130 = vmatpush1.msra.mxu0 0.0
    %131 = vmatprep.subr.mxu0 0.0
    %132 = vmatpush1.msra.mxu0 0.0
    %133 = vmatprep.subr.mxu0 0.0
    %134 = vmatpush1.msra.mxu0 0.0
    %135 = vmatprep.subr.mxu0 0.0
    %136 = vmatpush1.msra.mxu0 0.0
    %137 = vmatprep.subr.mxu0 0.0
    %138 = vmatpush1.msra.mxu0 0.0
    %139 = vmatprep.subr.mxu0 0.0
    %140 = vmatpush1.msra.mxu0 0.0
    %141 = vmatprep.subr.mxu0 0.0
    %142 = vmatpush1.msra.mxu0 0.0
    %143 = vmatprep.subr.mxu0 0.0
    %144 = vmatpush1.msra.mxu0 0.0
    %145 = vmatprep.subr.mxu0 0.0
    %146 = vmatpush1.msra.mxu0 0.0
    %147 = vmatprep.subr.mxu0 0.0
    %148 = vmatpush1.msra.mxu0 0.0
    %149 = vmatprep.subr.mxu0 0.0
    %150 = vmatpush1.msra.mxu0 0.0
    %151 = vmatprep.subr.mxu0 0.0
    %152 = vmatpush1.msra.mxu0 0.0
    %153 = vmatprep.mubr.f32.mxu0 0.0
    %154 = vmatmul.mubr.f32.gmra.mrb[0].mxu0 %v84
    %v155 = vpop.f32.mrb[0].mxu0
    %v156 = vadd.f32 %v81, %v155
    %v157 = vpop.f32.mrb[0].mxu0
    %158 = vmatprep.mubr.f32.mxu0 0.0
    %159 = vmatmul.mubr.f32.gmra.mrb[0].mxu0 %v87
    %v160 = vpop.f32.mrb[0].mxu0
    %v161 = vadd.f32 %v81, %v160
    %v162 = vpop.f32.mrb[0].mxu0
    %163 = vdwg.mxu0
    %vm164 = vcmask 261120
    %v165 = vsel %vm164, %v156, 0.0
    %166 = vadd.xlane.f32.xlu0 %v165
    %v167 = vpop.xlane.xlu0 %166
    %v168 = vsel %vm164, %v161, 0.0
    %169 = vadd.xlane.f32.xlu0 %v168
    %v170 = vpop.xlane.xlu0 %169
    %v171 = vrcp.pop 32.0
    %v172 = vmul.f32 %v167, %v171
    %v173 = vmul.f32 %v170, %v171
    %v174 = vsub.f32 %v156, %v172
    %v175 = vsub.f32 %v161, %v173
    %v176 = vmul.f32 %v174, %v174
    %v177 = vmul.f32 %v175, %v175
    %v178 = vsel %vm164, %v176, 0.0
    %179 = vadd.xlane.f32.xlu0 %v178
    %v180 = vpop.xlane.xlu0 %179
    %v181 = vsel %vm164, %v177, 0.0
    %182 = vadd.xlane.f32.xlu0 %v181
    %v183 = vpop.xlane.xlu0 %182
    %v184 = vmul.f32 %v180, %v171
    %v185 = vmul.f32 %v183, %v171
    %v186 = vadd.f32 %v184, 1e-05
    %v187 = vadd.f32 %v185, 1e-05
    %v188 = vrsqrt.pop %v186
    %v189 = vrsqrt.pop %v187
    %v190 = vmul.f32 %v174, %v188
    %v191 = vmul.f32 %v175, %v189
    %v192 = vlaneseq
    %v193 = vshrl.u32 %v192, 7
    %v194 = vsub.s32 1, %v193
    %v195 = vrot.slane %v77, %v194
    %v196 = vmul.f32 %v190, %v195
    %v197 = vmul.f32 %v191, %v195
    %v198 = vlaneseq
    %v199 = vshrl.u32 %v198, 7
    %v200 = vsub.s32 2, %v199
    %v201 = vrot.slane %v77, %v200
    %v202 = vadd.f32 %v196, %v201
    %v203 = vadd.f32 %v197, %v201
    %v205 = vsel %vm164, %v202, 0
    %v208 = vsel %vm164, %v203, 0
    %210 = vmatprep.subr.mxu0 0.0
    %211 = vmatpush1.msra.mxu0 %v66
    %212 = vmatprep.subr.mxu0 0.0
    %213 = vmatpush1.msra.mxu0 %v69
    %214 = vmatprep.subr.mxu0 0.0
    %215 = vmatpush1.msra.mxu0 %v72
    %216 = vmatprep.subr.mxu0 0.0
    %217 = vmatpush1.msra.mxu0 %v75
    %218 = vmatprep.subr.mxu0 0.0
    %219 = vmatpush1.msra.mxu0 0.0
    %220 = vmatprep.subr.mxu0 0.0
    %221 = vmatpush1.msra.mxu0 0.0
    %222 = vmatprep.subr.mxu0 0.0
    %223 = vmatpush1.msra.mxu0 0.0
    %224 = vmatprep.subr.mxu0 0.0
    %225 = vmatpush1.msra.mxu0 0.0
    %226 = vmatprep.subr.mxu0 0.0
    %227 = vmatpush1.msra.mxu0 0.0
    %228 = vmatprep.subr.mxu0 0.0
    %229 = vmatpush1.msra.mxu0 0.0
    %230 = vmatprep.subr.mxu0 0.0
    %231 = vmatpush1.msra.mxu0 0.0
    %232 = vmatprep.subr.mxu0 0.0
    %233 = vmatpush1.msra.mxu0 0.0
    %234 = vmatprep.subr.mxu0 0.0
    %235 = vmatpush1.msra.mxu0 0.0
    %236 = vmatprep.subr.mxu0 0.0
    %237 = vmatpush1.msra.mxu0 0.0
    %238 = vmatprep.subr.mxu0 0.0
    %239 = vmatpush1.msra.mxu0 0.0
    %240 = vmatprep.subr.mxu0 0.0
    %241 = vmatpush1.msra.mxu0 0.0
    %242 = vmatprep.subr.mxu0 0.0
    %243 = vmatpush1.msra.mxu0 0.0
    %244 = vmatprep.subr.mxu0 0.0
    %245 = vmatpush1.msra.mxu0 0.0
    %246 = vmatprep.subr.mxu0 0.0
    %247 = vmatpush1.msra.mxu0 0.0
    %248 = vmatprep.subr.mxu0 0.0
    %249 = vmatpush1.msra.mxu0 0.0
    %250 = vmatprep.subr.mxu0 0.0
    %251 = vmatpush1.msra.mxu0 0.0
    %252 = vmatprep.subr.mxu0 0.0
    %253 = vmatpush1.msra.mxu0 0.0
    %254 = vmatprep.subr.mxu0 0.0
    %255 = vmatpush1.msra.mxu0 0.0
    %256 = vmatprep.subr.mxu0 0.0
    %257 = vmatpush1.msra.mxu0 0.0
    %258 = vmatprep.subr.mxu0 0.0
    %259 = vmatpush1.msra.mxu0 0.0
    %260 = vmatprep.subr.mxu0 0.0
    %261 = vmatpush1.msra.mxu0 0.0
    %262 = vmatprep.subr.mxu0 0.0
    %263 = vmatpush1.msra.mxu0 0.0
    %264 = vmatprep.subr.mxu0 0.0
    %265 = vmatpush1.msra.mxu0 0.0
    %266 = vmatprep.subr.mxu0 0.0
    %267 = vmatpush1.msra.mxu0 0.0
    %268 = vmatprep.subr.mxu0 0.0
    %269 = vmatpush1.msra.mxu0 0.0
    %270 = vmatprep.subr.mxu0 0.0
    %271 = vmatpush1.msra.mxu0 0.0
    %272 = vmatprep.subr.mxu0 0.0
    %273 = vmatpush1.msra.mxu0 0.0
    %274 = vmatprep.mubr.f32.mxu0 0.0
    %275 = vmatmul.mubr.f32.gmra.mrb[0].mxu0 %v205
    %v276 = vpop.f32.mrb[0].mxu0
    %v277 = vadd.f32 0.0, %v276
    %v278 = vpop.f32.mrb[0].mxu0
    %279 = vmatprep.mubr.f32.mxu0 0.0
    %280 = vmatmul.mubr.f32.gmra.mrb[0].mxu0 %v208
    %v281 = vpop.f32.mrb[0].mxu0
    %v282 = vadd.f32 0.0, %v281
    %v283 = vpop.f32.mrb[0].mxu0
    %284 = vdwg.mxu0
    %286 = vrot.lane.b32.xlu0 %v277, 96
    %v287 = vpop.permute.xlu0 %286
    %v288 = vsel %vm164, %v277, 0
    %v290 = vsel %vm164, %v287, 0
    %292 = vmatprep.subr.mxu0 0.0
    %293 = vmatpush1.xpose.msra.mxu0 %v290
    %294 = vmatprep.subr.mxu0 0.0
    %295 = vmatpush1.xpose.msra.mxu0 0.0
    %296 = vmatprep.subr.mxu0 0.0
    %297 = vmatpush1.xpose.msra.mxu0 0.0
    %298 = vmatprep.subr.mxu0 0.0
    %299 = vmatpush1.xpose.msra.mxu0 0.0
    %300 = vmatprep.subr.mxu0 0.0
    %301 = vmatpush1.xpose.msra.mxu0 0.0
    %302 = vmatprep.subr.mxu0 0.0
    %303 = vmatpush1.xpose.msra.mxu0 0.0
    %304 = vmatprep.subr.mxu0 0.0
    %305 = vmatpush1.xpose.msra.mxu0 0.0
    %306 = vmatprep.subr.mxu0 0.0
    %307 = vmatpush1.xpose.msra.mxu0 0.0
    %308 = vmatprep.subr.mxu0 0.0
    %309 = vmatpush1.xpose.msra.mxu0 0.0
    %310 = vmatprep.subr.mxu0 0.0
    %311 = vmatpush1.xpose.msra.mxu0 0.0
    %312 = vmatprep.subr.mxu0 0.0
    %313 = vmatpush1.xpose.msra.mxu0 0.0
    %314 = vmatprep.subr.mxu0 0.0
    %315 = vmatpush1.xpose.msra.mxu0 0.0
    %316 = vmatprep.subr.mxu0 0.0
    %317 = vmatpush1.xpose.msra.mxu0 0.0
    %318 = vmatprep.subr.mxu0 0.0
    %319 = vmatpush1.xpose.msra.mxu0 0.0
    %320 = vmatprep.subr.mxu0 0.0
    %321 = vmatpush1.xpose.msra.mxu0 0.0
    %322 = vmatprep.subr.mxu0 0.0
    %323 = vmatpush1.xpose.msra.mxu0 0.0
    %324 = vmatprep.subr.mxu0 0.0
    %325 = vmatpush1.xpose.msra.mxu0 0.0
    %326 = vmatprep.subr.mxu0 0.0
    %327 = vmatpush1.xpose.msra.mxu0 0.0
    %328 = vmatprep.subr.mxu0 0.0
    %329 = vmatpush1.xpose.msra.mxu0 0.0
    %330 = vmatprep.subr.mxu0 0.0
    %331 = vmatpush1.xpose.msra.mxu0 0.0
    %332 = vmatprep.subr.mxu0 0.0
    %333 = vmatpush1.xpose.msra.mxu0 0.0
    %334 = vmatprep.subr.mxu0 0.0
    %335 = vmatpush1.xpose.msra.mxu0 0.0
    %336 = vmatprep.subr.mxu0 0.0
    %337 = vmatpush1.xpose.msra.mxu0 0.0
    %338 = vmatprep.subr.mxu0 0.0
    %339 = vmatpush1.xpose.msra.mxu0 0.0
    %340 = vmatprep.subr.mxu0 0.0
    %341 = vmatpush1.xpose.msra.mxu0 0.0
    %342 = vmatprep.subr.mxu0 0.0
    %343 = vmatpush1.xpose.msra.mxu0 0.0
    %344 = vmatprep.subr.mxu0 0.0
    %345 = vmatpush1.xpose.msra.mxu0 0.0
    %346 = vmatprep.subr.mxu0 0.0
    %347 = vmatpush1.xpose.msra.mxu0 0.0
    %348 = vmatprep.subr.mxu0 0.0
    %349 = vmatpush1.xpose.msra.mxu0 0.0
    %350 = vmatprep.subr.mxu0 0.0
    %351 = vmatpush1.xpose.msra.mxu0 0.0
    %352 = vmatprep.subr.mxu0 0.0
    %353 = vmatpush1.xpose.msra.mxu0 0.0
    %354 = vmatprep.subr.mxu0 0.0
    %355 = vmatpush1.xpose.msra.mxu0 0.0
    %356 = vmatprep.mubr.f32.mxu0 0.0
    %357 = vmatmul.mubr.f32.gmra.mrb[0].mxu0 %v288
    %v358 = vpop.f32.mrb[0].mxu0
    %v359 = vadd.f32 0.0, %v358
    %v360 = vpop.f32.mrb[0].mxu0
    %361 = vdwg.mxu0
    %363 = vrot.lane.b32.xlu0 %v282, 96
    %v364 = vpop.permute.xlu0 %363
    %v365 = vsel %vm164, %v282, 0
    %v367 = vsel %vm164, %v364, 0
    %369 = vmatprep.subr.mxu0 0.0
    %370 = vmatpush1.xpose.msra.mxu0 %v367
    %371 = vmatprep.subr.mxu0 0.0
    %372 = vmatpush1.xpose.msra.mxu0 0.0
    %373 = vmatprep.subr.mxu0 0.0
    %374 = vmatpush1.xpose.msra.mxu0 0.0
    %375 = vmatprep.subr.mxu0 0.0
    %376 = vmatpush1.xpose.msra.mxu0 0.0
    %377 = vmatprep.subr.mxu0 0.0
    %378 = vmatpush1.xpose.msra.mxu0 0.0
    %379 = vmatprep.subr.mxu0 0.0
    %380 = vmatpush1.xpose.msra.mxu0 0.0
    %381 = vmatprep.subr.mxu0 0.0
    %382 = vmatpush1.xpose.msra.mxu0 0.0
    %383 = vmatprep.subr.mxu0 0.0
    %384 = vmatpush1.xpose.msra.mxu0 0.0
    %385 = vmatprep.subr.mxu0 0.0
    %386 = vmatpush1.xpose.msra.mxu0 0.0
    %387 = vmatprep.subr.mxu0 0.0
    %388 = vmatpush1.xpose.msra.mxu0 0.0
    %389 = vmatprep.subr.mxu0 0.0
    %390 = vmatpush1.xpose.msra.mxu0 0.0
    %391 = vmatprep.subr.mxu0 0.0
    %392 = vmatpush1.xpose.msra.mxu0 0.0
    %393 = vmatprep.subr.mxu0 0.0
    %394 = vmatpush1.xpose.msra.mxu0 0.0
    %395 = vmatprep.subr.mxu0 0.0
    %396 = vmatpush1.xpose.msra.mxu0 0.0
    %397 = vmatprep.subr.mxu0 0.0
    %398 = vmatpush1.xpose.msra.mxu0 0.0
    %399 = vmatprep.subr.mxu0 0.0
    %400 = vmatpush1.xpose.msra.mxu0 0.0
    %401 = vmatprep.subr.mxu0 0.0
    %402 = vmatpush1.xpose.msra.mxu0 0.0
    %403 = vmatprep.subr.mxu0 0.0
    %404 = vmatpush1.xpose.msra.mxu0 0.0
    %405 = vmatprep.subr.mxu0 0.0
    %406 = vmatpush1.xpose.msra.mxu0 0.0
    %407 = vmatprep.subr.mxu0 0.0
    %408 = vmatpush1.xpose.msra.mxu0 0.0
    %409 = vmatprep.subr.mxu0 0.0
    %410 = vmatpush1.xpose.msra.mxu0 0.0
    %411 = vmatprep.subr.mxu0 0.0
    %412 = vmatpush1.xpose.msra.mxu0 0.0
    %413 = vmatprep.subr.mxu0 0.0
    %414 = vmatpush1.xpose.msra.mxu0 0.0
    %415 = vmatprep.subr.mxu0 0.0
    %416 = vmatpush1.xpose.msra.mxu0 0.0
    %417 = vmatprep.subr.mxu0 0.0
    %418 = vmatpush1.xpose.msra.mxu0 0.0
    %419 = vmatprep.subr.mxu0 0.0
    %420 = vmatpush1.xpose.msra.mxu0 0.0
    %421 = vmatprep.subr.mxu0 0.0
    %422 = vmatpush1.xpose.msra.mxu0 0.0
    %423 = vmatprep.subr.mxu0 0.0
    %424 = vmatpush1.xpose.msra.mxu0 0.0
    %425 = vmatprep.subr.mxu0 0.0
    %426 = vmatpush1.xpose.msra.mxu0 0.0
    %427 = vmatprep.subr.mxu0 0.0
    %428 = vmatpush1.xpose.msra.mxu0 0.0
    %429 = vmatprep.subr.mxu0 0.0
    %430 = vmatpush1.xpose.msra.mxu0 0.0
    %431 = vmatprep.subr.mxu0 0.0
    %432 = vmatpush1.xpose.msra.mxu0 0.0
    %433 = vmatprep.mubr.f32.mxu0 0.0
    %434 = vmatmul.mubr.f32.gmra.mrb[0].mxu0 %v365
    %v435 = vpop.f32.mrb[0].mxu0
    %v436 = vadd.f32 0.0, %v435
    %v437 = vpop.f32.mrb[0].mxu0
    %438 = vdwg.mxu0
    %v439 = vmul.f32 %v359, 0.17677669
    %v440 = vmul.f32 %v436, 0.17677669
    %v443 = vunpack.c.l.s4 1966171168
    %v444 = vunpack.c.0.s8 %v443
    %v445 = vlaneseq
    %v446 = vshrl.u32 %v445, 7
    %v447 = vsub.s32 %v444, %v446
    %v448 = vrot.slane %v60, %v447
    %v449 = vcombine.high %v448, %v448
    %v451 = vunpack.c.l.s4 1966171168
    %v452 = vunpack.c.0.s8 %v451
    %v453 = vlaneseq
    %v454 = vshrl.u32 %v453, 7
    %v455 = vsub.s32 %v452, %v454
    %v456 = vrot.slane %v448, %v455
    %v458 = vunpack.c.l.s4 1966171168
    %v459 = vunpack.c.0.s8 %v458
    %v460 = vlaneseq
    %v461 = vshrl.u32 %v460, 7
    %v462 = vsub.s32 %v459, %v461
    %v463 = vrot.slane %v449, %v462
    %vm466 = vcmp.gt.f32.partialorder %v456, 0.0
    %vm467 = vcmp.gt.f32.partialorder %v463, 0.0
    %v468 = vsel %vm466, 1, 0
    %v469 = vsel %vm467, 1, 0
    %v470 = vlaneseq
    %v471 = vshrl.u32 %v470, 7
    %v472 = vsub.s32 0, %v471
    %v473 = vrot.slane %v468, %v472
    %v474 = vlaneseq
    %v475 = vshrl.u32 %v474, 7
    %v476 = vsub.s32 0, %v475
    %v477 = vrot.slane %v469, %v476
    %vm478 = vcmp.eq.s32.totalorder %v473, 1
    %vm479 = vcmp.eq.s32.totalorder %v477, 1
    %v480 = vsel %vm478, %v439, -1e+09
    %v481 = vsel %vm479, %v440, -1e+09
    %vm482 = vcmask 64512
    %v483 = vsel %vm482, %v480, -inf
    %484 = vmax.xlane.f32.xlu0 %v483
    %v485 = vpop.xlane.xlu0 %484
    %v486 = vsel %vm482, %v481, -inf
    %487 = vmax.xlane.f32.xlu0 %v486
    %v488 = vpop.xlane.xlu0 %487
    %v489 = vsub.f32 %v480, %v485
    %v490 = vsub.f32 %v481, %v488
    %v491 = vmul.f32 %v489, 1.442695
    %v492 = vpow.pop %v491
    %v493 = vmul.f32 %v490, 1.442695
    %v494 = vpow.pop %v493
    %v495 = vsel %vm482, %v492, 0.0
    %496 = vadd.xlane.f32.xlu0 %v495
    %v497 = vpop.xlane.xlu0 %496
    %v498 = vsel %vm482, %v494, 0.0
    %499 = vadd.xlane.f32.xlu0 %v498
    %v500 = vpop.xlane.xlu0 %499
    %v501 = vrcp.pop %v497
    %v502 = vmul.f32 %v492, %v501
    %v503 = vrcp.pop %v500
    %v504 = vmul.f32 %v494, %v503
    %505 = vrot.lane.b32.xlu0 %v277, 64
    %v506 = vpop.permute.xlu0 %505
    %v509 = vsel %vm482, %v502, 0
    %511 = vmatprep.subr.mxu0 0.0
    %512 = vmatpush1.msra.mxu0 %v506
    %513 = vmatprep.subr.mxu0 0.0
    %514 = vmatpush1.msra.mxu0 0.0
    %515 = vmatprep.subr.mxu0 0.0
    %516 = vmatpush1.msra.mxu0 0.0
    %517 = vmatprep.subr.mxu0 0.0
    %518 = vmatpush1.msra.mxu0 0.0
    %519 = vmatprep.subr.mxu0 0.0
    %520 = vmatpush1.msra.mxu0 0.0
    %521 = vmatprep.subr.mxu0 0.0
    %522 = vmatpush1.msra.mxu0 0.0
    %523 = vmatprep.subr.mxu0 0.0
    %524 = vmatpush1.msra.mxu0 0.0
    %525 = vmatprep.subr.mxu0 0.0
    %526 = vmatpush1.msra.mxu0 0.0
    %527 = vmatprep.subr.mxu0 0.0
    %528 = vmatpush1.msra.mxu0 0.0
    %529 = vmatprep.subr.mxu0 0.0
    %530 = vmatpush1.msra.mxu0 0.0
    %531 = vmatprep.subr.mxu0 0.0
    %532 = vmatpush1.msra.mxu0 0.0
    %533 = vmatprep.subr.mxu0 0.0
    %534 = vmatpush1.msra.mxu0 0.0
    %535 = vmatprep.subr.mxu0 0.0
    %536 = vmatpush1.msra.mxu0 0.0
    %537 = vmatprep.subr.mxu0 0.0
    %538 = vmatpush1.msra.mxu0 0.0
    %539 = vmatprep.subr.mxu0 0.0
    %540 = vmatpush1.msra.mxu0 0.0
    %541 = vmatprep.subr.mxu0 0.0
    %542 = vmatpush1.msra.mxu0 0.0
    %543 = vmatprep.subr.mxu0 0.0
    %544 = vmatpush1.msra.mxu0 0.0
    %545 = vmatprep.subr.mxu0 0.0
    %546 = vmatpush1.msra.mxu0 0.0
    %547 = vmatprep.subr.mxu0 0.0
    %548 = vmatpush1.msra.mxu0 0.0
    %549 = vmatprep.subr.mxu0 0.0
    %550 = vmatpush1.msra.mxu0 0.0
    %551 = vmatprep.subr.mxu0 0.0
    %552 = vmatpush1.msra.mxu0 0.0
    %553 = vmatprep.subr.mxu0 0.0
    %554 = vmatpush1.msra.mxu0 0.0
    %555 = vmatprep.subr.mxu0 0.0
    %556 = vmatpush1.msra.mxu0 0.0
    %557 = vmatprep.subr.mxu0 0.0
    %558 = vmatpush1.msra.mxu0 0.0
    %559 = vmatprep.subr.mxu0 0.0
    %560 = vmatpush1.msra.mxu0 0.0
    %561 = vmatprep.subr.mxu0 0.0
    %562 = vmatpush1.msra.mxu0 0.0
    %563 = vmatprep.subr.mxu0 0.0
    %564 = vmatpush1.msra.mxu0 0.0
    %565 = vmatprep.subr.mxu0 0.0
    %566 = vmatpush1.msra.mxu0 0.0
    %567 = vmatprep.subr.mxu0 0.0
    %568 = vmatpush1.msra.mxu0 0.0
    %569 = vmatprep.subr.mxu0 0.0
    %570 = vmatpush1.msra.mxu0 0.0
    %571 = vmatprep.subr.mxu0 0.0
    %572 = vmatpush1.msra.mxu0 0.0
    %573 = vmatprep.subr.mxu0 0.0
    %574 = vmatpush1.msra.mxu0 0.0
    %575 = vmatprep.mubr.f32.mxu0 0.0
    %576 = vmatmul.mubr.f32.gmra.mrb[0].mxu0 %v509
    %v577 = vpop.f32.mrb[0].mxu0
    %v578 = vadd.f32 0.0, %v577
    %v579 = vpop.f32.mrb[0].mxu0
    %580 = vdwg.mxu0
    %581 = vrot.lane.b32.xlu0 %v282, 64
    %v582 = vpop.permute.xlu0 %581
    %v585 = vsel %vm482, %v504, 0
    %587 = vmatprep.subr.mxu0 0.0
    %588 = vmatpush1.msra.mxu0 %v582
    %589 = vmatprep.subr.mxu0 0.0
    %590 = vmatpush1.msra.mxu0 0.0
    %591 = vmatprep.subr.mxu0 0.0
    %592 = vmatpush1.msra.mxu0 0.0
    %593 = vmatprep.subr.mxu0 0.0
    %594 = vmatpush1.msra.mxu0 0.0
    %595 = vmatprep.subr.mxu0 0.0
    %596 = vmatpush1.msra.mxu0 0.0
    %597 = vmatprep.subr.mxu0 0.0
    %598 = vmatpush1.msra.mxu0 0.0
    %599 = vmatprep.subr.mxu0 0.0
    %600 = vmatpush1.msra.mxu0 0.0
    %601 = vmatprep.subr.mxu0 0.0
    %602 = vmatpush1.msra.mxu0 0.0
    %603 = vmatprep.subr.mxu0 0.0
    %604 = vmatpush1.msra.mxu0 0.0
    %605 = vmatprep.subr.mxu0 0.0
    %606 = vmatpush1.msra.mxu0 0.0
    %607 = vmatprep.subr.mxu0 0.0
    %608 = vmatpush1.msra.mxu0 0.0
    %609 = vmatprep.subr.mxu0 0.0
    %610 = vmatpush1.msra.mxu0 0.0
    %611 = vmatprep.subr.mxu0 0.0
    %612 = vmatpush1.msra.mxu0 0.0
    %613 = vmatprep.subr.mxu0 0.0
    %614 = vmatpush1.msra.mxu0 0.0
    %615 = vmatprep.subr.mxu0 0.0
    %616 = vmatpush1.msra.mxu0 0.0
    %617 = vmatprep.subr.mxu0 0.0
    %618 = vmatpush1.msra.mxu0 0.0
    %619 = vmatprep.subr.mxu0 0.0
    %620 = vmatpush1.msra.mxu0 0.0
    %621 = vmatprep.subr.mxu0 0.0
    %622 = vmatpush1.msra.mxu0 0.0
    %623 = vmatprep.subr.mxu0 0.0
    %624 = vmatpush1.msra.mxu0 0.0
    %625 = vmatprep.subr.mxu0 0.0
    %626 = vmatpush1.msra.mxu0 0.0
    %627 = vmatprep.subr.mxu0 0.0
    %628 = vmatpush1.msra.mxu0 0.0
    %629 = vmatprep.subr.mxu0 0.0
    %630 = vmatpush1.msra.mxu0 0.0
    %631 = vmatprep.subr.mxu0 0.0
    %632 = vmatpush1.msra.mxu0 0.0
    %633 = vmatprep.subr.mxu0 0.0
    %634 = vmatpush1.msra.mxu0 0.0
    %635 = vmatprep.subr.mxu0 0.0
    %636 = vmatpush1.msra.mxu0 0.0
    %637 = vmatprep.subr.mxu0 0.0
    %638 = vmatpush1.msra.mxu0 0.0
    %639 = vmatprep.subr.mxu0 0.0
    %640 = vmatpush1.msra.mxu0 0.0
    %641 = vmatprep.subr.mxu0 0.0
    %642 = vmatpush1.msra.mxu0 0.0
    %643 = vmatprep.subr.mxu0 0.0
    %644 = vmatpush1.msra.mxu0 0.0
    %645 = vmatprep.subr.mxu0 0.0
    %646 = vmatpush1.msra.mxu0 0.0
    %647 = vmatprep.subr.mxu0 0.0
    %648 = vmatpush1.msra.mxu0 0.0
    %649 = vmatprep.subr.mxu0 0.0
    %650 = vmatpush1.msra.mxu0 0.0
    %651 = vmatprep.mubr.f32.mxu0 0.0
    %652 = vmatmul.mubr.f32.gmra.mrb[0].mxu0 %v585
    %v653 = vpop.f32.mrb[0].mxu0
    %v654 = vadd.f32 0.0, %v653
    %v655 = vpop.f32.mrb[0].mxu0
    %656 = vdwg.mxu0
    %661 = vrot.lane.b32.xlu0 %v67, 96
    %v662 = vpop.permute.xlu0 %661
    %663 = vrot.lane.b32.xlu0 %v70, 96
    %v664 = vpop.permute.xlu0 %663
    %665 = vrot.lane.b32.xlu0 %v73, 96
    %v666 = vpop.permute.xlu0 %665
    %667 = vrot.lane.b32.xlu0 %v76, 96
    %v668 = vpop.permute.xlu0 %667
    %v674 = vsel %vm164, %v578, 0
    %v677 = vsel %vm164, %v654, 0
    %679 = vmatprep.subr.mxu0 0.0
    %680 = vmatpush1.msra.mxu0 %v662
    %681 = vmatprep.subr.mxu0 0.0
    %682 = vmatpush1.msra.mxu0 %v664
    %683 = vmatprep.subr.mxu0 0.0
    %684 = vmatpush1.msra.mxu0 %v666
    %685 = vmatprep.subr.mxu0 0.0
    %686 = vmatpush1.msra.mxu0 %v668
    %687 = vmatprep.subr.mxu0 0.0
    %688 = vmatpush1.msra.mxu0 0.0
    %689 = vmatprep.subr.mxu0 0.0
    %690 = vmatpush1.msra.mxu0 0.0
    %691 = vmatprep.subr.mxu0 0.0
    %692 = vmatpush1.msra.mxu0 0.0
    %693 = vmatprep.subr.mxu0 0.0
    %694 = vmatpush1.msra.mxu0 0.0
    %695 = vmatprep.subr.mxu0 0.0
    %696 = vmatpush1.msra.mxu0 0.0
    %697 = vmatprep.subr.mxu0 0.0
    %698 = vmatpush1.msra.mxu0 0.0
    %699 = vmatprep.subr.mxu0 0.0
    %700 = vmatpush1.msra.mxu0 0.0
    %701 = vmatprep.subr.mxu0 0.0
    %702 = vmatpush1.msra.mxu0 0.0
    %703 = vmatprep.subr.mxu0 0.0
    %704 = vmatpush1.msra.mxu0 0.0
    %705 = vmatprep.subr.mxu0 0.0
    %706 = vmatpush1.msra.mxu0 0.0
    %707 = vmatprep.subr.mxu0 0.0
    %708 = vmatpush1.msra.mxu0 0.0
    %709 = vmatprep.subr.mxu0 0.0
    %710 = vmatpush1.msra.mxu0 0.0
    %711 = vmatprep.subr.mxu0 0.0
    %712 = vmatpush1.msra.mxu0 0.0
    %713 = vmatprep.subr.mxu0 0.0
    %714 = vmatpush1.msra.mxu0 0.0
    %715 = vmatprep.subr.mxu0 0.0
    %716 = vmatpush1.msra.mxu0 0.0
    %717 = vmatprep.subr.mxu0 0.0
    %718 = vmatpush1.msra.mxu0 0.0
    %719 = vmatprep.subr.mxu0 0.0
    %720 = vmatpush1.msra.mxu0 0.0
    %721 = vmatprep.subr.mxu0 0.0
    %722 = vmatpush1.msra.mxu0 0.0
    %723 = vmatprep.subr.mxu0 0.0
    %724 = vmatpush1.msra.mxu0 0.0
    %725 = vmatprep.subr.mxu0 0.0
    %726 = vmatpush1.msra.mxu0 0.0
    %727 = vmatprep.subr.mxu0 0.0
    %728 = vmatpush1.msra.mxu0 0.0
    %729 = vmatprep.subr.mxu0 0.0
    %730 = vmatpush1.msra.mxu0 0.0
    %731 = vmatprep.subr.mxu0 0.0
    %732 = vmatpush1.msra.mxu0 0.0
    %733 = vmatprep.subr.mxu0 0.0
    %734 = vmatpush1.msra.mxu0 0.0
    %735 = vmatprep.subr.mxu0 0.0
    %736 = vmatpush1.msra.mxu0 0.0
    %737 = vmatprep.subr.mxu0 0.0
    %738 = vmatpush1.msra.mxu0 0.0
    %739 = vmatprep.subr.mxu0 0.0
    %740 = vmatpush1.msra.mxu0 0.0
    %741 = vmatprep.subr.mxu0 0.0
    %742 = vmatpush1.msra.mxu0 0.0
    %743 = vmatprep.mubr.f32.mxu0 0.0
    %744 = vmatmul.mubr.f32.gmra.mrb[0].mxu0 %v674
    %v745 = vpop.f32.mrb[0].mxu0
    %v746 = vadd.f32 0.0, %v745
    %v747 = vpop.f32.mrb[0].mxu0
    %748 = vmatprep.mubr.f32.mxu0 0.0
    %749 = vmatmul.mubr.f32.gmra.mrb[0].mxu0 %v677
    %v750 = vpop.f32.mrb[0].mxu0
    %v751 = vadd.f32 0.0, %v750
    %v752 = vpop.f32.mrb[0].mxu0
    %753 = vdwg.mxu0
    %v754 = vadd.f32 %v156, %v746
    %v755 = vadd.f32 %v161, %v751
    %v756 = vsel %vm164, %v754, 0.0
    %757 = vadd.xlane.f32.xlu0 %v756
    %v758 = vpop.xlane.xlu0 %757
    %v759 = vsel %vm164, %v755, 0.0
    %760 = vadd.xlane.f32.xlu0 %v759
    %v761 = vpop.xlane.xlu0 %760
    %v762 = vmul.f32 %v758, %v171
    %v763 = vmul.f32 %v761, %v171
    %v764 = vsub.f32 %v754, %v762
    %v765 = vsub.f32 %v755, %v763
    %v766 = vmul.f32 %v764, %v764
    %v767 = vmul.f32 %v765, %v765
    %v768 = vsel %vm164, %v766, 0.0
    %769 = vadd.xlane.f32.xlu0 %v768
    %v770 = vpop.xlane.xlu0 %769
    %v771 = vsel %vm164, %v767, 0.0
    %772 = vadd.xlane.f32.xlu0 %v771
    %v773 = vpop.xlane.xlu0 %772
    %v774 = vmul.f32 %v770, %v171
    %v775 = vmul.f32 %v773, %v171
    %v776 = vadd.f32 %v774, 1e-05
    %v777 = vadd.f32 %v775, 1e-05
    %v778 = vrsqrt.pop %v776
    %v779 = vrsqrt.pop %v777
    %v780 = vmul.f32 %v764, %v778
    %v781 = vmul.f32 %v765, %v779
    %v782 = vlaneseq
    %v783 = vshrl.u32 %v782, 7
    %v784 = vsub.s32 3, %v783
    %v785 = vrot.slane %v77, %v784
    %v786 = vmul.f32 %v780, %v785
    %v787 = vmul.f32 %v781, %v785
    %v788 = vlaneseq
    %v789 = vshrl.u32 %v788, 7
    %v790 = vsub.s32 4, %v789
    %v791 = vrot.slane %v77, %v790
    %v792 = vadd.f32 %v786, %v791
    %v793 = vadd.f32 %v787, %v791
    %v794 = vlaneseq
    %v795 = vshrl.u32 %v794, 7
    %v796 = vsub.s32 6, %v795
    %v797 = vrot.slane %v77, %v796
    %v799 = vsel %vm164, %v792, 0
    %v802 = vsel %vm164, %v793, 0
    %804 = vmatprep.subr.mxu0 0.0
    %805 = vmatpush1.msra.mxu0 %v65
    %806 = vmatprep.subr.mxu0 0.0
    %807 = vmatpush1.msra.mxu0 %v68
    %808 = vmatprep.subr.mxu0 0.0
    %809 = vmatpush1.msra.mxu0 %v71
    %810 = vmatprep.subr.mxu0 0.0
    %811 = vmatpush1.msra.mxu0 %v74
    %812 = vmatprep.subr.mxu0 0.0
    %813 = vmatpush1.msra.mxu0 0.0
    %814 = vmatprep.subr.mxu0 0.0
    %815 = vmatpush1.msra.mxu0 0.0
    %816 = vmatprep.subr.mxu0 0.0
    %817 = vmatpush1.msra.mxu0 0.0
    %818 = vmatprep.subr.mxu0 0.0
    %819 = vmatpush1.msra.mxu0 0.0
    %820 = vmatprep.subr.mxu0 0.0
    %821 = vmatpush1.msra.mxu0 0.0
    %822 = vmatprep.subr.mxu0 0.0
    %823 = vmatpush1.msra.mxu0 0.0
    %824 = vmatprep.subr.mxu0 0.0
    %825 = vmatpush1.msra.mxu0 0.0
    %826 = vmatprep.subr.mxu0 0.0
    %827 = vmatpush1.msra.mxu0 0.0
    %828 = vmatprep.subr.mxu0 0.0
    %829 = vmatpush1.msra.mxu0 0.0
    %830 = vmatprep.subr.mxu0 0.0
    %831 = vmatpush1.msra.mxu0 0.0
    %832 = vmatprep.subr.mxu0 0.0
    %833 = vmatpush1.msra.mxu0 0.0
    %834 = vmatprep.subr.mxu0 0.0
    %835 = vmatpush1.msra.mxu0 0.0
    %836 = vmatprep.subr.mxu0 0.0
    %837 = vmatpush1.msra.mxu0 0.0
    %838 = vmatprep.subr.mxu0 0.0
    %839 = vmatpush1.msra.mxu0 0.0
    %840 = vmatprep.subr.mxu0 0.0
    %841 = vmatpush1.msra.mxu0 0.0
    %842 = vmatprep.subr.mxu0 0.0
    %843 = vmatpush1.msra.mxu0 0.0
    %844 = vmatprep.subr.mxu0 0.0
    %845 = vmatpush1.msra.mxu0 0.0
    %846 = vmatprep.subr.mxu0 0.0
    %847 = vmatpush1.msra.mxu0 0.0
    %848 = vmatprep.subr.mxu0 0.0
    %849 = vmatpush1.msra.mxu0 0.0
    %850 = vmatprep.subr.mxu0 0.0
    %851 = vmatpush1.msra.mxu0 0.0
    %852 = vmatprep.subr.mxu0 0.0
    %853 = vmatpush1.msra.mxu0 0.0
    %854 = vmatprep.subr.mxu0 0.0
    %855 = vmatpush1.msra.mxu0 0.0
    %856 = vmatprep.subr.mxu0 0.0
    %857 = vmatpush1.msra.mxu0 0.0
    %858 = vmatprep.subr.mxu0 0.0
    %859 = vmatpush1.msra.mxu0 0.0
    %860 = vmatprep.subr.mxu0 0.0
    %861 = vmatpush1.msra.mxu0 0.0
    %862 = vmatprep.subr.mxu0 0.0
    %863 = vmatpush1.msra.mxu0 0.0
    %864 = vmatprep.subr.mxu0 0.0
    %865 = vmatpush1.msra.mxu0 0.0
    %866 = vmatprep.subr.mxu0 0.0
    %867 = vmatpush1.msra.mxu0 0.0
    %868 = vmatprep.mubr.f32.mxu0 0.0
    %869 = vmatmul.mubr.f32.gmra.mrb[0].mxu0 %v799
    %v870 = vpop.f32.mrb[0].mxu0
    %v871 = vadd.f32 %v797, %v870
    %v872 = vpop.f32.mrb[0].mxu0
    %873 = vmatprep.mubr.f32.mxu0 0.0
    %874 = vmatmul.mubr.f32.gmra.mrb[0].mxu0 %v802
    %v875 = vpop.f32.mrb[0].mxu0
    %v876 = vadd.f32 %v797, %v875
    %v877 = vpop.f32.mrb[0].mxu0
    %878 = vdwg.mxu0
    %v879 = vmul.f32 %v871, %v871
    %v880 = vmul.f32 %v876, %v876
    %v881 = vmul.f32 %v871, %v879
    %v882 = vmul.f32 %v876, %v880
    %v883 = vmul.f32 %v881, 0.044715
    %v884 = vmul.f32 %v882, 0.044715
    %v885 = vadd.f32 %v871, %v883
    %v886 = vadd.f32 %v876, %v884
    %v887 = vmul.f32 %v885, 0.7978846
    %v888 = vmul.f32 %v886, 0.7978846
    %v889 = vtanh.pop %v887
    %v890 = vtanh.pop %v888
    %v891 = vadd.f32 %v889, 1.0
    %v892 = vadd.f32 %v890, 1.0
    %v893 = vmul.f32 %v891, 0.5
    %v894 = vmul.f32 %v892, 0.5
    %v895 = vmul.f32 %v871, %v893
    %v896 = vmul.f32 %v876, %v894
    %v897 = vld [vmem:[%s6] sm:$0xff]
    %v898 = vld [vmem:[%s6 + $0x8] sm:$0xff]
    %v899 = vld [vmem:[%s6 + $0x10] sm:$0xff]
    %v900 = vld [vmem:[%s6 + $0x18] sm:$0xff]
    %v901 = vld [vmem:[%s6 + $0x20] sm:$0xff]
    %v902 = vld [vmem:[%s6 + $0x28] sm:$0xff]
    %v903 = vld [vmem:[%s6 + $0x30] sm:$0xff]
    %v904 = vld [vmem:[%s6 + $0x38] sm:$0xff]
    %v905 = vld [vmem:[%s6 + $0x40] sm:$0xff]
    %v906 = vld [vmem:[%s6 + $0x48] sm:$0xff]
    %v907 = vld [vmem:[%s6 + $0x50] sm:$0xff]
    %v908 = vld [vmem:[%s6 + $0x58] sm:$0xff]
    %v909 = vld [vmem:[%s6 + $0x60] sm:$0xff]
    %v910 = vld [vmem:[%s6 + $0x68] sm:$0xff]
    %v911 = vld [vmem:[%s6 + $0x70] sm:$0xff]
    %v912 = vld [vmem:[%s6 + $0x78] sm:$0xff]
    %913 = vmatprep.subr.mxu0 0.0
    %914 = vmatpush1.msra.mxu0 %v897
    %915 = vmatprep.subr.mxu0 0.0
    %916 = vmatpush1.msra.mxu0 %v898
    %917 = vmatprep.subr.mxu0 0.0
    %918 = vmatpush1.msra.mxu0 %v899
    %919 = vmatprep.subr.mxu0 0.0
    %920 = vmatpush1.msra.mxu0 %v900
    %921 = vmatprep.subr.mxu0 0.0
    %922 = vmatpush1.msra.mxu0 %v901
    %923 = vmatprep.subr.mxu0 0.0
    %924 = vmatpush1.msra.mxu0 %v902
    %925 = vmatprep.subr.mxu0 0.0
    %926 = vmatpush1.msra.mxu0 %v903
    %927 = vmatprep.subr.mxu0 0.0
    %928 = vmatpush1.msra.mxu0 %v904
    %929 = vmatprep.subr.mxu0 0.0
    %930 = vmatpush1.msra.mxu0 %v905
    %931 = vmatprep.subr.mxu0 0.0
    %932 = vmatpush1.msra.mxu0 %v906
    %933 = vmatprep.subr.mxu0 0.0
    %934 = vmatpush1.msra.mxu0 %v907
    %935 = vmatprep.subr.mxu0 0.0
    %936 = vmatpush1.msra.mxu0 %v908
    %937 = vmatprep.subr.mxu0 0.0
    %938 = vmatpush1.msra.mxu0 %v909
    %939 = vmatprep.subr.mxu0 0.0
    %940 = vmatpush1.msra.mxu0 %v910
    %941 = vmatprep.subr.mxu0 0.0
    %942 = vmatpush1.msra.mxu0 %v911
    %943 = vmatprep.subr.mxu0 0.0
    %944 = vmatpush1.msra.mxu0 %v912
    %945 = vmatprep.subr.mxu0 0.0
    %946 = vmatpush1.msra.mxu0 0.0
    %947 = vmatprep.subr.mxu0 0.0
    %948 = vmatpush1.msra.mxu0 0.0
    %949 = vmatprep.subr.mxu0 0.0
    %950 = vmatpush1.msra.mxu0 0.0
    %951 = vmatprep.subr.mxu0 0.0
    %952 = vmatpush1.msra.mxu0 0.0
    %953 = vmatprep.subr.mxu0 0.0
    %954 = vmatpush1.msra.mxu0 0.0
    %955 = vmatprep.subr.mxu0 0.0
    %956 = vmatpush1.msra.mxu0 0.0
    %957 = vmatprep.subr.mxu0 0.0
    %958 = vmatpush1.msra.mxu0 0.0
    %959 = vmatprep.subr.mxu0 0.0
    %960 = vmatpush1.msra.mxu0 0.0
    %961 = vmatprep.subr.mxu0 0.0
    %962 = vmatpush1.msra.mxu0 0.0
    %963 = vmatprep.subr.mxu0 0.0
    %964 = vmatpush1.msra.mxu0 0.0
    %965 = vmatprep.subr.mxu0 0.0
    %966 = vmatpush1.msra.mxu0 0.0
    %967 = vmatprep.subr.mxu0 0.0
    %968 = vmatpush1.msra.mxu0 0.0
    %969 = vmatprep.subr.mxu0 0.0
    %970 = vmatpush1.msra.mxu0 0.0
    %971 = vmatprep.subr.mxu0 0.0
    %972 = vmatpush1.msra.mxu0 0.0
    %973 = vmatprep.subr.mxu0 0.0
    %974 = vmatpush1.msra.mxu0 0.0
    %975 = vmatprep.subr.mxu0 0.0
    %976 = vmatpush1.msra.mxu0 0.0
    %977 = vmatprep.mubr.f32.mxu0 0.0
    %978 = vmatmul.mubr.f32.gmra.mrb[0].mxu0 %v895
    %v979 = vpop.f32.mrb[0].mxu0
    %v980 = vadd.f32 0.0, %v979
    %v981 = vpop.f32.mrb[0].mxu0
    %982 = vmatprep.mubr.f32.mxu0 0.0
    %983 = vmatmul.mubr.f32.gmra.mrb[0].mxu0 %v896
    %v984 = vpop.f32.mrb[0].mxu0
    %v985 = vadd.f32 0.0, %v984
    %v986 = vpop.f32.mrb[0].mxu0
    %987 = vdwg.mxu0
    %v988 = vadd.f32 %v754, %v980
    %v989 = vadd.f32 %v755, %v985
    %v990 = vlaneseq
    %v991 = vshrl.u32 %v990, 7
    %v992 = vsub.s32 5, %v991
    %v993 = vrot.slane %v77, %v992
    %v994 = vadd.f32 %v988, %v993
    %v995 = vadd.f32 %v989, %v993
    %996 = vst.msk [vmem:[#allocation2] sm:$0xff] %vm164, %v994
    %997 = vst.msk [vmem:[#allocation2 + $0x8] sm:$0xff] %vm164, %v995
    %v998 = vld [vmem:[%s14] sm:$0xff]
    %v999 = vld [vmem:[%s14 + $0x8] sm:$0xff]
    %v1000 = vld [vmem:[%s14 + $0x10] sm:$0xff]
    %v1001 = vld [vmem:[%s14 + $0x18] sm:$0xff]
    %v1002 = vld [vmem:[%s14 + $0x20] sm:$0xff]
    %v1003 = vld [vmem:[%s14 + $0x28] sm:$0xff]
    %v1004 = vld [vmem:[%s14 + $0x30] sm:$0xff]
    %v1005 = vld [vmem:[%s14 + $0x38] sm:$0xff]
    %v1006 = vld [vmem:[%s15] sm:$0xff]
    %v1007 = vlaneseq
    %v1008 = vshrl.u32 %v1007, 7
    %v1009 = vsub.s32 0, %v1008
    %v1010 = vrot.slane %v1006, %v1009
    %v1012 = vsel %vm164, %v994, 0
    %v1015 = vsel %vm164, %v995, 0
    %1017 = vmatprep.subr.mxu0 0.0
    %1018 = vmatpush1.msra.mxu0 %v998
    %1019 = vmatprep.subr.mxu0 0.0
    %1020 = vmatpush1.msra.mxu0 %v1000
    %1021 = vmatprep.subr.mxu0 0.0
    %1022 = vmatpush1.msra.mxu0 %v1002
    %1023 = vmatprep.subr.mxu0 0.0
    %1024 = vmatpush1.msra.mxu0 %v1004
    %1025 = vmatprep.subr.mxu0 0.0
    %1026 = vmatpush1.msra.mxu0 0.0
    %1027 = vmatprep.subr.mxu0 0.0
    %1028 = vmatpush1.msra.mxu0 0.0
    %1029 = vmatprep.subr.mxu0 0.0
    %1030 = vmatpush1.msra.mxu0 0.0
    %1031 = vmatprep.subr.mxu0 0.0
    %1032 = vmatpush1.msra.mxu0 0.0
    %1033 = vmatprep.subr.mxu0 0.0
    %1034 = vmatpush1.msra.mxu0 0.0
    %1035 = vmatprep.subr.mxu0 0.0
    %1036 = vmatpush1.msra.mxu0 0.0
    %1037 = vmatprep.subr.mxu0 0.0
    %1038 = vmatpush1.msra.mxu0 0.0
    %1039 = vmatprep.subr.mxu0 0.0
    %1040 = vmatpush1.msra.mxu0 0.0
    %1041 = vmatprep.subr.mxu0 0.0
    %1042 = vmatpush1.msra.mxu0 0.0
    %1043 = vmatprep.subr.mxu0 0.0
    %1044 = vmatpush1.msra.mxu0 0.0
    %1045 = vmatprep.subr.mxu0 0.0
    %1046 = vmatpush1.msra.mxu0 0.0
    %1047 = vmatprep.subr.mxu0 0.0
    %1048 = vmatpush1.msra.mxu0 0.0
    %1049 = vmatprep.subr.mxu0 0.0
    %1050 = vmatpush1.msra.mxu0 0.0
    %1051 = vmatprep.subr.mxu0 0.0
    %1052 = vmatpush1.msra.mxu0 0.0
    %1053 = vmatprep.subr.mxu0 0.0
    %1054 = vmatpush1.msra.mxu0 0.0
    %1055 = vmatprep.subr.mxu0 0.0
    %1056 = vmatpush1.msra.mxu0 0.0
    %1057 = vmatprep.subr.mxu0 0.0
    %1058 = vmatpush1.msra.mxu0 0.0
    %1059 = vmatprep.subr.mxu0 0.0
    %1060 = vmatpush1.msra.mxu0 0.0
    %1061 = vmatprep.subr.mxu0 0.0
    %1062 = vmatpush1.msra.mxu0 0.0
    %1063 = vmatprep.subr.mxu0 0.0
    %1064 = vmatpush1.msra.mxu0 0.0
    %1065 = vmatprep.subr.mxu0 0.0
    %1066 = vmatpush1.msra.mxu0 0.0
    %1067 = vmatprep.subr.mxu0 0.0
    %1068 = vmatpush1.msra.mxu0 0.0
    %1069 = vmatprep.subr.mxu0 0.0
    %1070 = vmatpush1.msra.mxu0 0.0
    %1071 = vmatprep.subr.mxu0 0.0
    %1072 = vmatpush1.msra.mxu0 0.0
    %1073 = vmatprep.subr.mxu0 0.0
    %1074 = vmatpush1.msra.mxu0 0.0
    %1075 = vmatprep.subr.mxu0 0.0
    %1076 = vmatpush1.msra.mxu0 0.0
    %1077 = vmatprep.subr.mxu0 0.0
    %1078 = vmatpush1.msra.mxu0 0.0
    %1079 = vmatprep.subr.mxu0 0.0
    %1080 = vmatpush1.msra.mxu0 0.0
    %1081 = vmatprep.mubr.f32.mxu0 0.0
    %1082 = vmatmul.mubr.f32.gmra.mrb[0].mxu0 %v1012
    %v1083 = vpop.f32.mrb[0].mxu0
    %v1084 = vadd.f32 %v1010, %v1083
    %v1085 = vpop.f32.mrb[0].mxu0
    %1086 = vmatprep.mubr.f32.mxu0 0.0
    %1087 = vmatmul.mubr.f32.gmra.mrb[0].mxu0 %v1015
    %v1088 = vpop.f32.mrb[0].mxu0
    %v1089 = vadd.f32 %v1010, %v1088
    %v1090 = vpop.f32.mrb[0].mxu0
    %1091 = vdwg.mxu0
    %v1092 = vtanh.pop %v1084
    %v1093 = vtanh.pop %v1089
    %v1094 = vlaneseq
    %v1095 = vshrl.u32 %v1094, 7
    %v1096 = vsub.s32 1, %v1095
    %v1097 = vrot.slane %v1006, %v1096
    %1102 = vrot.lane.b32.xlu0 %v998, 96
    %v1103 = vpop.permute.xlu0 %1102
    %1104 = vrot.lane.b32.xlu0 %v1000, 96
    %v1105 = vpop.permute.xlu0 %1104
    %1106 = vrot.lane.b32.xlu0 %v1002, 96
    %v1107 = vpop.permute.xlu0 %1106
    %1108 = vrot.lane.b32.xlu0 %v1004, 96
    %v1109 = vpop.permute.xlu0 %1108
    %v1115 = vsel %vm164, %v1092, 0
    %v1118 = vsel %vm164, %v1093, 0
    %1120 = vmatprep.subr.mxu0 0.0
    %1121 = vmatpush1.msra.mxu0 %v1103
    %1122 = vmatprep.subr.mxu0 0.0
    %1123 = vmatpush1.msra.mxu0 %v1105
    %1124 = vmatprep.subr.mxu0 0.0
    %1125 = vmatpush1.msra.mxu0 %v1107
    %1126 = vmatprep.subr.mxu0 0.0
    %1127 = vmatpush1.msra.mxu0 %v1109
    %1128 = vmatprep.subr.mxu0 0.0
    %1129 = vmatpush1.msra.mxu0 0.0
    %1130 = vmatprep.subr.mxu0 0.0
    %1131 = vmatpush1.msra.mxu0 0.0
    %1132 = vmatprep.subr.mxu0 0.0
    %1133 = vmatpush1.msra.mxu0 0.0
    %1134 = vmatprep.subr.mxu0 0.0
    %1135 = vmatpush1.msra.mxu0 0.0
    %1136 = vmatprep.subr.mxu0 0.0
    %1137 = vmatpush1.msra.mxu0 0.0
    %1138 = vmatprep.subr.mxu0 0.0
    %1139 = vmatpush1.msra.mxu0 0.0
    %1140 = vmatprep.subr.mxu0 0.0
    %1141 = vmatpush1.msra.mxu0 0.0
    %1142 = vmatprep.subr.mxu0 0.0
    %1143 = vmatpush1.msra.mxu0 0.0
    %1144 = vmatprep.subr.mxu0 0.0
    %1145 = vmatpush1.msra.mxu0 0.0
    %1146 = vmatprep.subr.mxu0 0.0
    %1147 = vmatpush1.msra.mxu0 0.0
    %1148 = vmatprep.subr.mxu0 0.0
    %1149 = vmatpush1.msra.mxu0 0.0
    %1150 = vmatprep.subr.mxu0 0.0
    %1151 = vmatpush1.msra.mxu0 0.0
    %1152 = vmatprep.subr.mxu0 0.0
    %1153 = vmatpush1.msra.mxu0 0.0
    %1154 = vmatprep.subr.mxu0 0.0
    %1155 = vmatpush1.msra.mxu0 0.0
    %1156 = vmatprep.subr.mxu0 0.0
    %1157 = vmatpush1.msra.mxu0 0.0
    %1158 = vmatprep.subr.mxu0 0.0
    %1159 = vmatpush1.msra.mxu0 0.0
    %1160 = vmatprep.subr.mxu0 0.0
    %1161 = vmatpush1.msra.mxu0 0.0
    %1162 = vmatprep.subr.mxu0 0.0
    %1163 = vmatpush1.msra.mxu0 0.0
    %1164 = vmatprep.subr.mxu0 0.0
    %1165 = vmatpush1.msra.mxu0 0.0
    %1166 = vmatprep.subr.mxu0 0.0
    %1167 = vmatpush1.msra.mxu0 0.0
    %1168 = vmatprep.subr.mxu0 0.0
    %1169 = vmatpush1.msra.mxu0 0.0
    %1170 = vmatprep.subr.mxu0 0.0
    %1171 = vmatpush1.msra.mxu0 0.0
    %1172 = vmatprep.subr.mxu0 0.0
    %1173 = vmatpush1.msra.mxu0 0.0
    %1174 = vmatprep.subr.mxu0 0.0
    %1175 = vmatpush1.msra.mxu0 0.0
    %1176 = vmatprep.subr.mxu0 0.0
    %1177 = vmatpush1.msra.mxu0 0.0
    %1178 = vmatprep.subr.mxu0 0.0
    %1179 = vmatpush1.msra.mxu0 0.0
    %1180 = vmatprep.subr.mxu0 0.0
    %1181 = vmatpush1.msra.mxu0 0.0
    %1182 = vmatprep.subr.mxu0 0.0
    %1183 = vmatpush1.msra.mxu0 0.0
    %1184 = vmatprep.mubr.f32.mxu0 0.0
    %1185 = vmatmul.mubr.f32.gmra.mrb[0].mxu0 %v1115
    %v1186 = vpop.f32.mrb[0].mxu0
    %v1187 = vadd.f32 %v1097, %v1186
    %v1188 = vpop.f32.mrb[0].mxu0
    %1189 = vmatprep.mubr.f32.mxu0 0.0
    %1190 = vmatmul.mubr.f32.gmra.mrb[0].mxu0 %v1118
    %v1191 = vpop.f32.mrb[0].mxu0
    %v1192 = vadd.f32 %v1097, %v1191
    %v1193 = vpop.f32.mrb[0].mxu0
    %1194 = vdwg.mxu0
    %v1195 = vmul.f32 %v1187, %v1187
    %v1196 = vmul.f32 %v1192, %v1192
    %v1197 = vsel %vm164, %v1195, 0.0
    %1198 = vadd.xlane.f32.xlu0 %v1197
    %v1199 = vpop.xlane.xlu0 %1198
    %v1200 = vsel %vm164, %v1196, 0.0
    %1201 = vadd.xlane.f32.xlu0 %v1200
    %v1202 = vpop.xlane.xlu0 %1201
    %v1203 = vadd.f32 %v1199, 1e-12
    %v1204 = vadd.f32 %v1202, 1e-12
    %v1205 = vrsqrt.pop %v1203
    %v1206 = vrsqrt.pop %v1204
    %v1207 = vmul.f32 %v1187, %v1205
    %v1208 = vmul.f32 %v1192, %v1206
    %v1209 = vld [vmem:[%s16] sm:$0xff]
    %v1210 = vld [vmem:[%s16 + $0x8] sm:$0xff]
    %v1211 = vld [vmem:[%s16 + $0x10] sm:$0xff]
    %v1212 = vld [vmem:[%s16 + $0x18] sm:$0xff]
    %v1213 = vld [vmem:[%s16 + $0x20] sm:$0xff]
    %v1214 = vld [vmem:[%s16 + $0x28] sm:$0xff]
    %v1215 = vld [vmem:[%s16 + $0x30] sm:$0xff]
    %v1216 = vld [vmem:[%s16 + $0x38] sm:$0xff]
    %v1217 = vld [vmem:[%s16 + $0x40] sm:$0xff]
    %v1218 = vld [vmem:[%s16 + $0x48] sm:$0xff]
    %v1219 = vld [vmem:[%s16 + $0x50] sm:$0xff]
    %v1220 = vld [vmem:[%s16 + $0x58] sm:$0xff]
    %v1221 = vld [vmem:[%s16 + $0x60] sm:$0xff]
    %v1222 = vld [vmem:[%s16 + $0x68] sm:$0xff]
    %v1223 = vld [vmem:[%s16 + $0x70] sm:$0xff]
    %v1224 = vld [vmem:[%s16 + $0x78] sm:$0xff]
    %v1225 = vmul.f32 %v1209, %v1209
    %v1226 = vmul.f32 %v1210, %v1210
    %v1227 = vmul.f32 %v1211, %v1211
    %v1228 = vmul.f32 %v1212, %v1212
    %v1229 = vmul.f32 %v1213, %v1213
    %v1230 = vmul.f32 %v1214, %v1214
    %v1231 = vmul.f32 %v1215, %v1215
    %v1232 = vmul.f32 %v1216, %v1216
    %v1233 = vmul.f32 %v1217, %v1217
    %v1234 = vmul.f32 %v1218, %v1218
    %v1235 = vmul.f32 %v1219, %v1219
    %v1236 = vmul.f32 %v1220, %v1220
    %v1237 = vmul.f32 %v1221, %v1221
    %v1238 = vmul.f32 %v1222, %v1222
    %v1239 = vmul.f32 %v1223, %v1223
    %v1240 = vmul.f32 %v1224, %v1224
    %v1241 = vsel %vm164, %v1225, 0.0
    %1242 = vadd.xlane.f32.xlu0 %v1241
    %v1243 = vpop.xlane.xlu0 %1242
    %v1244 = vsel %vm164, %v1226, 0.0
    %1245 = vadd.xlane.f32.xlu0 %v1244
    %v1246 = vpop.xlane.xlu0 %1245
    %v1247 = vsel %vm164, %v1227, 0.0
    %1248 = vadd.xlane.f32.xlu0 %v1247
    %v1249 = vpop.xlane.xlu0 %1248
    %v1250 = vsel %vm164, %v1228, 0.0
    %1251 = vadd.xlane.f32.xlu0 %v1250
    %v1252 = vpop.xlane.xlu0 %1251
    %v1253 = vsel %vm164, %v1229, 0.0
    %1254 = vadd.xlane.f32.xlu0 %v1253
    %v1255 = vpop.xlane.xlu0 %1254
    %v1256 = vsel %vm164, %v1230, 0.0
    %1257 = vadd.xlane.f32.xlu0 %v1256
    %v1258 = vpop.xlane.xlu0 %1257
    %v1259 = vsel %vm164, %v1231, 0.0
    %1260 = vadd.xlane.f32.xlu0 %v1259
    %v1261 = vpop.xlane.xlu0 %1260
    %v1262 = vsel %vm164, %v1232, 0.0
    %1263 = vadd.xlane.f32.xlu0 %v1262
    %v1264 = vpop.xlane.xlu0 %1263
    %v1265 = vsel %vm164, %v1233, 0.0
    %1266 = vadd.xlane.f32.xlu0 %v1265
    %v1267 = vpop.xlane.xlu0 %1266
    %v1268 = vsel %vm164, %v1234, 0.0
    %1269 = vadd.xlane.f32.xlu0 %v1268
    %v1270 = vpop.xlane.xlu0 %1269
    %v1271 = vsel %vm164, %v1235, 0.0
    %1272 = vadd.xlane.f32.xlu0 %v1271
    %v1273 = vpop.xlane.xlu0 %1272
    %v1274 = vsel %vm164, %v1236, 0.0
    %1275 = vadd.xlane.f32.xlu0 %v1274
    %v1276 = vpop.xlane.xlu0 %1275
    %v1277 = vsel %vm164, %v1237, 0.0
    %1278 = vadd.xlane.f32.xlu0 %v1277
    %v1279 = vpop.xlane.xlu0 %1278
    %v1280 = vsel %vm164, %v1238, 0.0
    %1281 = vadd.xlane.f32.xlu0 %v1280
    %v1282 = vpop.xlane.xlu0 %1281
    %v1283 = vsel %vm164, %v1239, 0.0
    %1284 = vadd.xlane.f32.xlu0 %v1283
    %v1285 = vpop.xlane.xlu0 %1284
    %v1286 = vsel %vm164, %v1240, 0.0
    %1287 = vadd.xlane.f32.xlu0 %v1286
    %v1288 = vpop.xlane.xlu0 %1287
    %v1290 = vsel %vm164, %v1207, 0
    %v1293 = vsel %vm164, %v1208, 0
    %v1296 = vsel %vm164, %v1209, 0
    %v1299 = vsel %vm164, %v1210, 0
    %v1302 = vsel %vm164, %v1211, 0
    %v1305 = vsel %vm164, %v1212, 0
    %v1308 = vsel %vm164, %v1213, 0
    %v1311 = vsel %vm164, %v1214, 0
    %v1314 = vsel %vm164, %v1215, 0
    %v1317 = vsel %vm164, %v1216, 0
    %v1320 = vsel %vm164, %v1217, 0
    %v1323 = vsel %vm164, %v1218, 0
    %v1326 = vsel %vm164, %v1219, 0
    %v1329 = vsel %vm164, %v1220, 0
    %v1332 = vsel %vm164, %v1221, 0
    %v1335 = vsel %vm164, %v1222, 0
    %v1338 = vsel %vm164, %v1223, 0
    %v1341 = vsel %vm164, %v1224, 0
    %1343 = vmatprep.subr.mxu0 0.0
    %1344 = vmatpush1.xpose.msra.mxu0 %v1296
    %1345 = vmatprep.subr.mxu0 0.0
    %1346 = vmatpush1.xpose.msra.mxu0 %v1299
    %1347 = vmatprep.subr.mxu0 0.0
    %1348 = vmatpush1.xpose.msra.mxu0 %v1302
    %1349 = vmatprep.subr.mxu0 0.0
    %1350 = vmatpush1.xpose.msra.mxu0 %v1305
    %1351 = vmatprep.subr.mxu0 0.0
    %1352 = vmatpush1.xpose.msra.mxu0 %v1308
    %1353 = vmatprep.subr.mxu0 0.0
    %1354 = vmatpush1.xpose.msra.mxu0 %v1311
    %1355 = vmatprep.subr.mxu0 0.0
    %1356 = vmatpush1.xpose.msra.mxu0 %v1314
    %1357 = vmatprep.subr.mxu0 0.0
    %1358 = vmatpush1.xpose.msra.mxu0 %v1317
    %1359 = vmatprep.subr.mxu0 0.0
    %1360 = vmatpush1.xpose.msra.mxu0 %v1320
    %1361 = vmatprep.subr.mxu0 0.0
    %1362 = vmatpush1.xpose.msra.mxu0 %v1323
    %1363 = vmatprep.subr.mxu0 0.0
    %1364 = vmatpush1.xpose.msra.mxu0 %v1326
    %1365 = vmatprep.subr.mxu0 0.0
    %1366 = vmatpush1.xpose.msra.mxu0 %v1329
    %1367 = vmatprep.subr.mxu0 0.0
    %1368 = vmatpush1.xpose.msra.mxu0 %v1332
    %1369 = vmatprep.subr.mxu0 0.0
    %1370 = vmatpush1.xpose.msra.mxu0 %v1335
    %1371 = vmatprep.subr.mxu0 0.0
    %1372 = vmatpush1.xpose.msra.mxu0 %v1338
    %1373 = vmatprep.subr.mxu0 0.0
    %1374 = vmatpush1.xpose.msra.mxu0 %v1341
    %1375 = vmatprep.subr.mxu0 0.0
    %1376 = vmatpush1.xpose.msra.mxu0 0.0
    %1377 = vmatprep.subr.mxu0 0.0
    %1378 = vmatpush1.xpose.msra.mxu0 0.0
    %1379 = vmatprep.subr.mxu0 0.0
    %1380 = vmatpush1.xpose.msra.mxu0 0.0
    %1381 = vmatprep.subr.mxu0 0.0
    %1382 = vmatpush1.xpose.msra.mxu0 0.0
    %1383 = vmatprep.subr.mxu0 0.0
    %1384 = vmatpush1.xpose.msra.mxu0 0.0
    %1385 = vmatprep.subr.mxu0 0.0
    %1386 = vmatpush1.xpose.msra.mxu0 0.0
    %1387 = vmatprep.subr.mxu0 0.0
    %1388 = vmatpush1.xpose.msra.mxu0 0.0
    %1389 = vmatprep.subr.mxu0 0.0
    %1390 = vmatpush1.xpose.msra.mxu0 0.0
    %1391 = vmatprep.subr.mxu0 0.0
    %1392 = vmatpush1.xpose.msra.mxu0 0.0
    %1393 = vmatprep.subr.mxu0 0.0
    %1394 = vmatpush1.xpose.msra.mxu0 0.0
    %1395 = vmatprep.subr.mxu0 0.0
    %1396 = vmatpush1.xpose.msra.mxu0 0.0
    %1397 = vmatprep.subr.mxu0 0.0
    %1398 = vmatpush1.xpose.msra.mxu0 0.0
    %1399 = vmatprep.subr.mxu0 0.0
    %1400 = vmatpush1.xpose.msra.mxu0 0.0
    %1401 = vmatprep.subr.mxu0 0.0
    %1402 = vmatpush1.xpose.msra.mxu0 0.0
    %1403 = vmatprep.subr.mxu0 0.0
    %1404 = vmatpush1.xpose.msra.mxu0 0.0
    %1405 = vmatprep.subr.mxu0 0.0
    %1406 = vmatpush1.xpose.msra.mxu0 0.0
    %1407 = vmatprep.mubr.f32.mxu0 0.0
    %1408 = vmatmul.mubr.f32.gmra.mrb[0].mxu0 %v1290
    %v1409 = vpop.f32.mrb[0].mxu0
    %v1410 = vadd.f32 0.0, %v1409
    %v1411 = vpop.f32.mrb[0].mxu0
    %1412 = vmatprep.mubr.f32.mxu0 0.0
    %1413 = vmatmul.mubr.f32.gmra.mrb[0].mxu0 %v1293
    %v1414 = vpop.f32.mrb[0].mxu0
    %v1415 = vadd.f32 0.0, %v1414
    %v1416 = vpop.f32.mrb[0].mxu0
    %1417 = vdwg.mxu0
    %v1418 = vmul.f32 %v1410, 2.0
    %v1419 = vmul.f32 %v1415, 2.0
    %v1422 = vlaneseq
    %v1423 = vshrl.u32 %v1422, 7
    %v1424 = vsub.s32 0, %v1423
    %v1425 = vrot.slane %v1418, %v1424
    %1427 = vbcast.lane.b32.xlu0 %v1425, 256
    %v1428 = vpop.permute.xlu0 %1427
    %s1430 = sor.u32 256, 8
    %1431 = vbcast.lane.b32.xlu0 %v1425, %s1430
    %v1432 = vpop.permute.xlu0 %1431
    %s1434 = sor.u32 256, 16
    %1435 = vbcast.lane.b32.xlu0 %v1425, %s1434
    %v1436 = vpop.permute.xlu0 %1435
    %s1438 = sor.u32 256, 24
    %1439 = vbcast.lane.b32.xlu0 %v1425, %s1438
    %v1440 = vpop.permute.xlu0 %1439
    %s1442 = sor.u32 256, 32
    %1443 = vbcast.lane.b32.xlu0 %v1425, %s1442
    %v1444 = vpop.permute.xlu0 %1443
    %s1446 = sor.u32 256, 40
    %1447 = vbcast.lane.b32.xlu0 %v1425, %s1446
    %v1448 = vpop.permute.xlu0 %1447
    %s1450 = sor.u32 256, 48
    %1451 = vbcast.lane.b32.xlu0 %v1425, %s1450
    %v1452 = vpop.permute.xlu0 %1451
    %s1454 = sor.u32 256, 56
    %1455 = vbcast.lane.b32.xlu0 %v1425, %s1454
    %v1456 = vpop.permute.xlu0 %1455
    %s1458 = sor.u32 256, 64
    %1459 = vbcast.lane.b32.xlu0 %v1425, %s1458
    %v1460 = vpop.permute.xlu0 %1459
    %s1462 = sor.u32 256, 72
    %1463 = vbcast.lane.b32.xlu0 %v1425, %s1462
    %v1464 = vpop.permute.xlu0 %1463
    %s1466 = sor.u32 256, 80
    %1467 = vbcast.lane.b32.xlu0 %v1425, %s1466
    %v1468 = vpop.permute.xlu0 %1467
    %s1470 = sor.u32 256, 88
    %1471 = vbcast.lane.b32.xlu0 %v1425, %s1470
    %v1472 = vpop.permute.xlu0 %1471
    %s1474 = sor.u32 256, 96
    %1475 = vbcast.lane.b32.xlu0 %v1425, %s1474
    %v1476 = vpop.permute.xlu0 %1475
    %s1478 = sor.u32 256, 104
    %1479 = vbcast.lane.b32.xlu0 %v1425, %s1478
    %v1480 = vpop.permute.xlu0 %1479
    %s1482 = sor.u32 256, 112
    %1483 = vbcast.lane.b32.xlu0 %v1425, %s1482
    %v1484 = vpop.permute.xlu0 %1483
    %s1486 = sor.u32 256, 120
    %1487 = vbcast.lane.b32.xlu0 %v1425, %s1486
    %v1488 = vpop.permute.xlu0 %1487
    %v1489 = vlaneseq
    %v1490 = vshrl.u32 %v1489, 7
    %v1491 = vsub.s32 1, %v1490
    %v1492 = vrot.slane %v1418, %v1491
    %1494 = vbcast.lane.b32.xlu0 %v1492, 256
    %v1495 = vpop.permute.xlu0 %1494
    %s1497 = sor.u32 256, 8
    %1498 = vbcast.lane.b32.xlu0 %v1492, %s1497
    %v1499 = vpop.permute.xlu0 %1498
    %s1501 = sor.u32 256, 16
    %1502 = vbcast.lane.b32.xlu0 %v1492, %s1501
    %v1503 = vpop.permute.xlu0 %1502
    %s1505 = sor.u32 256, 24
    %1506 = vbcast.lane.b32.xlu0 %v1492, %s1505
    %v1507 = vpop.permute.xlu0 %1506
    %s1509 = sor.u32 256, 32
    %1510 = vbcast.lane.b32.xlu0 %v1492, %s1509
    %v1511 = vpop.permute.xlu0 %1510
    %s1513 = sor.u32 256, 40
    %1514 = vbcast.lane.b32.xlu0 %v1492, %s1513
    %v1515 = vpop.permute.xlu0 %1514
    %s1517 = sor.u32 256, 48
    %1518 = vbcast.lane.b32.xlu0 %v1492, %s1517
    %v1519 = vpop.permute.xlu0 %1518
    %s1521 = sor.u32 256, 56
    %1522 = vbcast.lane.b32.xlu0 %v1492, %s1521
    %v1523 = vpop.permute.xlu0 %1522
    %s1525 = sor.u32 256, 64
    %1526 = vbcast.lane.b32.xlu0 %v1492, %s1525
    %v1527 = vpop.permute.xlu0 %1526
    %s1529 = sor.u32 256, 72
    %1530 = vbcast.lane.b32.xlu0 %v1492, %s1529
    %v1531 = vpop.permute.xlu0 %1530
    %s1533 = sor.u32 256, 80
    %1534 = vbcast.lane.b32.xlu0 %v1492, %s1533
    %v1535 = vpop.permute.xlu0 %1534
    %s1537 = sor.u32 256, 88
    %1538 = vbcast.lane.b32.xlu0 %v1492, %s1537
    %v1539 = vpop.permute.xlu0 %1538
    %s1541 = sor.u32 256, 96
    %1542 = vbcast.lane.b32.xlu0 %v1492, %s1541
    %v1543 = vpop.permute.xlu0 %1542
    %s1545 = sor.u32 256, 104
    %1546 = vbcast.lane.b32.xlu0 %v1492, %s1545
    %v1547 = vpop.permute.xlu0 %1546
    %s1549 = sor.u32 256, 112
    %1550 = vbcast.lane.b32.xlu0 %v1492, %s1549
    %v1551 = vpop.permute.xlu0 %1550
    %s1553 = sor.u32 256, 120
    %1554 = vbcast.lane.b32.xlu0 %v1492, %s1553
    %v1555 = vpop.permute.xlu0 %1554
    %v1556 = vlaneseq
    %v1557 = vshrl.u32 %v1556, 7
    %v1558 = vsub.s32 2, %v1557
    %v1559 = vrot.slane %v1418, %v1558
    %1561 = vbcast.lane.b32.xlu0 %v1559, 256
    %v1562 = vpop.permute.xlu0 %1561
    %s1564 = sor.u32 256, 8
    %1565 = vbcast.lane.b32.xlu0 %v1559, %s1564
    %v1566 = vpop.permute.xlu0 %1565
    %s1568 = sor.u32 256, 16
    %1569 = vbcast.lane.b32.xlu0 %v1559, %s1568
    %v1570 = vpop.permute.xlu0 %1569
    %s1572 = sor.u32 256, 24
    %1573 = vbcast.lane.b32.xlu0 %v1559, %s1572
    %v1574 = vpop.permute.xlu0 %1573
    %s1576 = sor.u32 256, 32
    %1577 = vbcast.lane.b32.xlu0 %v1559, %s1576
    %v1578 = vpop.permute.xlu0 %1577
    %s1580 = sor.u32 256, 40
    %1581 = vbcast.lane.b32.xlu0 %v1559, %s1580
    %v1582 = vpop.permute.xlu0 %1581
    %s1584 = sor.u32 256, 48
    %1585 = vbcast.lane.b32.xlu0 %v1559, %s1584
    %v1586 = vpop.permute.xlu0 %1585
    %s1588 = sor.u32 256, 56
    %1589 = vbcast.lane.b32.xlu0 %v1559, %s1588
    %v1590 = vpop.permute.xlu0 %1589
    %s1592 = sor.u32 256, 64
    %1593 = vbcast.lane.b32.xlu0 %v1559, %s1592
    %v1594 = vpop.permute.xlu0 %1593
    %s1596 = sor.u32 256, 72
    %1597 = vbcast.lane.b32.xlu0 %v1559, %s1596
    %v1598 = vpop.permute.xlu0 %1597
    %s1600 = sor.u32 256, 80
    %1601 = vbcast.lane.b32.xlu0 %v1559, %s1600
    %v1602 = vpop.permute.xlu0 %1601
    %s1604 = sor.u32 256, 88
    %1605 = vbcast.lane.b32.xlu0 %v1559, %s1604
    %v1606 = vpop.permute.xlu0 %1605
    %s1608 = sor.u32 256, 96
    %1609 = vbcast.lane.b32.xlu0 %v1559, %s1608
    %v1610 = vpop.permute.xlu0 %1609
    %s1612 = sor.u32 256, 104
    %1613 = vbcast.lane.b32.xlu0 %v1559, %s1612
    %v1614 = vpop.permute.xlu0 %1613
    %s1616 = sor.u32 256, 112
    %1617 = vbcast.lane.b32.xlu0 %v1559, %s1616
    %v1618 = vpop.permute.xlu0 %1617
    %s1620 = sor.u32 256, 120
    %1621 = vbcast.lane.b32.xlu0 %v1559, %s1620
    %v1622 = vpop.permute.xlu0 %1621
    %v1623 = vlaneseq
    %v1624 = vshrl.u32 %v1623, 7
    %v1625 = vsub.s32 3, %v1624
    %v1626 = vrot.slane %v1418, %v1625
    %1628 = vbcast.lane.b32.xlu0 %v1626, 256
    %v1629 = vpop.permute.xlu0 %1628
    %s1631 = sor.u32 256, 8
    %1632 = vbcast.lane.b32.xlu0 %v1626, %s1631
    %v1633 = vpop.permute.xlu0 %1632
    %s1635 = sor.u32 256, 16
    %1636 = vbcast.lane.b32.xlu0 %v1626, %s1635
    %v1637 = vpop.permute.xlu0 %1636
    %s1639 = sor.u32 256, 24
    %1640 = vbcast.lane.b32.xlu0 %v1626, %s1639
    %v1641 = vpop.permute.xlu0 %1640
    %s1643 = sor.u32 256, 32
    %1644 = vbcast.lane.b32.xlu0 %v1626, %s1643
    %v1645 = vpop.permute.xlu0 %1644
    %s1647 = sor.u32 256, 40
    %1648 = vbcast.lane.b32.xlu0 %v1626, %s1647
    %v1649 = vpop.permute.xlu0 %1648
    %s1651 = sor.u32 256, 48
    %1652 = vbcast.lane.b32.xlu0 %v1626, %s1651
    %v1653 = vpop.permute.xlu0 %1652
    %s1655 = sor.u32 256, 56
    %1656 = vbcast.lane.b32.xlu0 %v1626, %s1655
    %v1657 = vpop.permute.xlu0 %1656
    %s1659 = sor.u32 256, 64
    %1660 = vbcast.lane.b32.xlu0 %v1626, %s1659
    %v1661 = vpop.permute.xlu0 %1660
    %s1663 = sor.u32 256, 72
    %1664 = vbcast.lane.b32.xlu0 %v1626, %s1663
    %v1665 = vpop.permute.xlu0 %1664
    %s1667 = sor.u32 256, 80
    %1668 = vbcast.lane.b32.xlu0 %v1626, %s1667
    %v1669 = vpop.permute.xlu0 %1668
    %s1671 = sor.u32 256, 88
    %1672 = vbcast.lane.b32.xlu0 %v1626, %s1671
    %v1673 = vpop.permute.xlu0 %1672
    %s1675 = sor.u32 256, 96
    %1676 = vbcast.lane.b32.xlu0 %v1626, %s1675
    %v1677 = vpop.permute.xlu0 %1676
    %s1679 = sor.u32 256, 104
    %1680 = vbcast.lane.b32.xlu0 %v1626, %s1679
    %v1681 = vpop.permute.xlu0 %1680
    %s1683 = sor.u32 256, 112
    %1684 = vbcast.lane.b32.xlu0 %v1626, %s1683
    %v1685 = vpop.permute.xlu0 %1684
    %s1687 = sor.u32 256, 120
    %1688 = vbcast.lane.b32.xlu0 %v1626, %s1687
    %v1689 = vpop.permute.xlu0 %1688
    %v1690 = vlaneseq
    %v1691 = vshrl.u32 %v1690, 7
    %v1692 = vsub.s32 4, %v1691
    %v1693 = vrot.slane %v1418, %v1692
    %1695 = vbcast.lane.b32.xlu0 %v1693, 256
    %v1696 = vpop.permute.xlu0 %1695
    %s1698 = sor.u32 256, 8
    %1699 = vbcast.lane.b32.xlu0 %v1693, %s1698
    %v1700 = vpop.permute.xlu0 %1699
    %s1702 = sor.u32 256, 16
    %1703 = vbcast.lane.b32.xlu0 %v1693, %s1702
    %v1704 = vpop.permute.xlu0 %1703
    %s1706 = sor.u32 256, 24
    %1707 = vbcast.lane.b32.xlu0 %v1693, %s1706
    %v1708 = vpop.permute.xlu0 %1707
    %s1710 = sor.u32 256, 32
    %1711 = vbcast.lane.b32.xlu0 %v1693, %s1710
    %v1712 = vpop.permute.xlu0 %1711
    %s1714 = sor.u32 256, 40
    %1715 = vbcast.lane.b32.xlu0 %v1693, %s1714
    %v1716 = vpop.permute.xlu0 %1715
    %s1718 = sor.u32 256, 48
    %1719 = vbcast.lane.b32.xlu0 %v1693, %s1718
    %v1720 = vpop.permute.xlu0 %1719
    %s1722 = sor.u32 256, 56
    %1723 = vbcast.lane.b32.xlu0 %v1693, %s1722
    %v1724 = vpop.permute.xlu0 %1723
    %s1726 = sor.u32 256, 64
    %1727 = vbcast.lane.b32.xlu0 %v1693, %s1726
    %v1728 = vpop.permute.xlu0 %1727
    %s1730 = sor.u32 256, 72
    %1731 = vbcast.lane.b32.xlu0 %v1693, %s1730
    %v1732 = vpop.permute.xlu0 %1731
    %s1734 = sor.u32 256, 80
    %1735 = vbcast.lane.b32.xlu0 %v1693, %s1734
    %v1736 = vpop.permute.xlu0 %1735
    %s1738 = sor.u32 256, 88
    %1739 = vbcast.lane.b32.xlu0 %v1693, %s1738
    %v1740 = vpop.permute.xlu0 %1739
    %s1742 = sor.u32 256, 96
    %1743 = vbcast.lane.b32.xlu0 %v1693, %s1742
    %v1744 = vpop.permute.xlu0 %1743
    %s1746 = sor.u32 256, 104
    %1747 = vbcast.lane.b32.xlu0 %v1693, %s1746
    %v1748 = vpop.permute.xlu0 %1747
    %s1750 = sor.u32 256, 112
    %1751 = vbcast.lane.b32.xlu0 %v1693, %s1750
    %v1752 = vpop.permute.xlu0 %1751
    %s1754 = sor.u32 256, 120
    %1755 = vbcast.lane.b32.xlu0 %v1693, %s1754
    %v1756 = vpop.permute.xlu0 %1755
    %v1757 = vlaneseq
    %v1758 = vshrl.u32 %v1757, 7
    %v1759 = vsub.s32 5, %v1758
    %v1760 = vrot.slane %v1418, %v1759
    %1762 = vbcast.lane.b32.xlu0 %v1760, 256
    %v1763 = vpop.permute.xlu0 %1762
    %s1765 = sor.u32 256, 8
    %1766 = vbcast.lane.b32.xlu0 %v1760, %s1765
    %v1767 = vpop.permute.xlu0 %1766
    %s1769 = sor.u32 256, 16
    %1770 = vbcast.lane.b32.xlu0 %v1760, %s1769
    %v1771 = vpop.permute.xlu0 %1770
    %s1773 = sor.u32 256, 24
    %1774 = vbcast.lane.b32.xlu0 %v1760, %s1773
    %v1775 = vpop.permute.xlu0 %1774
    %s1777 = sor.u32 256, 32
    %1778 = vbcast.lane.b32.xlu0 %v1760, %s1777
    %v1779 = vpop.permute.xlu0 %1778
    %s1781 = sor.u32 256, 40
    %1782 = vbcast.lane.b32.xlu0 %v1760, %s1781
    %v1783 = vpop.permute.xlu0 %1782
    %s1785 = sor.u32 256, 48
    %1786 = vbcast.lane.b32.xlu0 %v1760, %s1785
    %v1787 = vpop.permute.xlu0 %1786
    %s1789 = sor.u32 256, 56
    %1790 = vbcast.lane.b32.xlu0 %v1760, %s1789
    %v1791 = vpop.permute.xlu0 %1790
    %s1793 = sor.u32 256, 64
    %1794 = vbcast.lane.b32.xlu0 %v1760, %s1793
    %v1795 = vpop.permute.xlu0 %1794
    %s1797 = sor.u32 256, 72
    %1798 = vbcast.lane.b32.xlu0 %v1760, %s1797
    %v1799 = vpop.permute.xlu0 %1798
    %s1801 = sor.u32 256, 80
    %1802 = vbcast.lane.b32.xlu0 %v1760, %s1801
    %v1803 = vpop.permute.xlu0 %1802
    %s1805 = sor.u32 256, 88
    %1806 = vbcast.lane.b32.xlu0 %v1760, %s1805
    %v1807 = vpop.permute.xlu0 %1806
    %s1809 = sor.u32 256, 96
    %1810 = vbcast.lane.b32.xlu0 %v1760, %s1809
    %v1811 = vpop.permute.xlu0 %1810
    %s1813 = sor.u32 256, 104
    %1814 = vbcast.lane.b32.xlu0 %v1760, %s1813
    %v1815 = vpop.permute.xlu0 %1814
    %s1817 = sor.u32 256, 112
    %1818 = vbcast.lane.b32.xlu0 %v1760, %s1817
    %v1819 = vpop.permute.xlu0 %1818
    %s1821 = sor.u32 256, 120
    %1822 = vbcast.lane.b32.xlu0 %v1760, %s1821
    %v1823 = vpop.permute.xlu0 %1822
    %v1824 = vlaneseq
    %v1825 = vshrl.u32 %v1824, 7
    %v1826 = vsub.s32 6, %v1825
    %v1827 = vrot.slane %v1418, %v1826
    %1829 = vbcast.lane.b32.xlu0 %v1827, 256
    %v1830 = vpop.permute.xlu0 %1829
    %s1832 = sor.u32 256, 8
    %1833 = vbcast.lane.b32.xlu0 %v1827, %s1832
    %v1834 = vpop.permute.xlu0 %1833
    %s1836 = sor.u32 256, 16
    %1837 = vbcast.lane.b32.xlu0 %v1827, %s1836
    %v1838 = vpop.permute.xlu0 %1837
    %s1840 = sor.u32 256, 24
    %1841 = vbcast.lane.b32.xlu0 %v1827, %s1840
    %v1842 = vpop.permute.xlu0 %1841
    %s1844 = sor.u32 256, 32
    %1845 = vbcast.lane.b32.xlu0 %v1827, %s1844
    %v1846 = vpop.permute.xlu0 %1845
    %s1848 = sor.u32 256, 40
    %1849 = vbcast.lane.b32.xlu0 %v1827, %s1848
    %v1850 = vpop.permute.xlu0 %1849
    %s1852 = sor.u32 256, 48
    %1853 = vbcast.lane.b32.xlu0 %v1827, %s1852
    %v1854 = vpop.permute.xlu0 %1853
    %s1856 = sor.u32 256, 56
    %1857 = vbcast.lane.b32.xlu0 %v1827, %s1856
    %v1858 = vpop.permute.xlu0 %1857
    %s1860 = sor.u32 256, 64
    %1861 = vbcast.lane.b32.xlu0 %v1827, %s1860
    %v1862 = vpop.permute.xlu0 %1861
    %s1864 = sor.u32 256, 72
    %1865 = vbcast.lane.b32.xlu0 %v1827, %s1864
    %v1866 = vpop.permute.xlu0 %1865
    %s1868 = sor.u32 256, 80
    %1869 = vbcast.lane.b32.xlu0 %v1827, %s1868
    %v1870 = vpop.permute.xlu0 %1869
    %s1872 = sor.u32 256, 88
    %1873 = vbcast.lane.b32.xlu0 %v1827, %s1872
    %v1874 = vpop.permute.xlu0 %1873
    %s1876 = sor.u32 256, 96
    %1877 = vbcast.lane.b32.xlu0 %v1827, %s1876
    %v1878 = vpop.permute.xlu0 %1877
    %s1880 = sor.u32 256, 104
    %1881 = vbcast.lane.b32.xlu0 %v1827, %s1880
    %v1882 = vpop.permute.xlu0 %1881
    %s1884 = sor.u32 256, 112
    %1885 = vbcast.lane.b32.xlu0 %v1827, %s1884
    %v1886 = vpop.permute.xlu0 %1885
    %s1888 = sor.u32 256, 120
    %1889 = vbcast.lane.b32.xlu0 %v1827, %s1888
    %v1890 = vpop.permute.xlu0 %1889
    %v1891 = vlaneseq
    %v1892 = vshrl.u32 %v1891, 7
    %v1893 = vsub.s32 7, %v1892
    %v1894 = vrot.slane %v1418, %v1893
    %1896 = vbcast.lane.b32.xlu0 %v1894, 256
    %v1897 = vpop.permute.xlu0 %1896
    %s1899 = sor.u32 256, 8
    %1900 = vbcast.lane.b32.xlu0 %v1894, %s1899
    %v1901 = vpop.permute.xlu0 %1900
    %s1903 = sor.u32 256, 16
    %1904 = vbcast.lane.b32.xlu0 %v1894, %s1903
    %v1905 = vpop.permute.xlu0 %1904
    %s1907 = sor.u32 256, 24
    %1908 = vbcast.lane.b32.xlu0 %v1894, %s1907
    %v1909 = vpop.permute.xlu0 %1908
    %s1911 = sor.u32 256, 32
    %1912 = vbcast.lane.b32.xlu0 %v1894, %s1911
    %v1913 = vpop.permute.xlu0 %1912
    %s1915 = sor.u32 256, 40
    %1916 = vbcast.lane.b32.xlu0 %v1894, %s1915
    %v1917 = vpop.permute.xlu0 %1916
    %s1919 = sor.u32 256, 48
    %1920 = vbcast.lane.b32.xlu0 %v1894, %s1919
    %v1921 = vpop.permute.xlu0 %1920
    %s1923 = sor.u32 256, 56
    %1924 = vbcast.lane.b32.xlu0 %v1894, %s1923
    %v1925 = vpop.permute.xlu0 %1924
    %s1927 = sor.u32 256, 64
    %1928 = vbcast.lane.b32.xlu0 %v1894, %s1927
    %v1929 = vpop.permute.xlu0 %1928
    %s1931 = sor.u32 256, 72
    %1932 = vbcast.lane.b32.xlu0 %v1894, %s1931
    %v1933 = vpop.permute.xlu0 %1932
    %s1935 = sor.u32 256, 80
    %1936 = vbcast.lane.b32.xlu0 %v1894, %s1935
    %v1937 = vpop.permute.xlu0 %1936
    %s1939 = sor.u32 256, 88
    %1940 = vbcast.lane.b32.xlu0 %v1894, %s1939
    %v1941 = vpop.permute.xlu0 %1940
    %s1943 = sor.u32 256, 96
    %1944 = vbcast.lane.b32.xlu0 %v1894, %s1943
    %v1945 = vpop.permute.xlu0 %1944
    %s1947 = sor.u32 256, 104
    %1948 = vbcast.lane.b32.xlu0 %v1894, %s1947
    %v1949 = vpop.permute.xlu0 %1948
    %s1951 = sor.u32 256, 112
    %1952 = vbcast.lane.b32.xlu0 %v1894, %s1951
    %v1953 = vpop.permute.xlu0 %1952
    %s1955 = sor.u32 256, 120
    %1956 = vbcast.lane.b32.xlu0 %v1894, %s1955
    %v1957 = vpop.permute.xlu0 %1956
    %v1958 = vlaneseq
    %v1959 = vshrl.u32 %v1958, 7
    %v1960 = vsub.s32 0, %v1959
    %v1961 = vrot.slane %v1419, %v1960
    %1963 = vbcast.lane.b32.xlu0 %v1961, 256
    %v1964 = vpop.permute.xlu0 %1963
    %s1966 = sor.u32 256, 8
    %1967 = vbcast.lane.b32.xlu0 %v1961, %s1966
    %v1968 = vpop.permute.xlu0 %1967
    %s1970 = sor.u32 256, 16
    %1971 = vbcast.lane.b32.xlu0 %v1961, %s1970
    %v1972 = vpop.permute.xlu0 %1971
    %s1974 = sor.u32 256, 24
    %1975 = vbcast.lane.b32.xlu0 %v1961, %s1974
    %v1976 = vpop.permute.xlu0 %1975
    %s1978 = sor.u32 256, 32
    %1979 = vbcast.lane.b32.xlu0 %v1961, %s1978
    %v1980 = vpop.permute.xlu0 %1979
    %s1982 = sor.u32 256, 40
    %1983 = vbcast.lane.b32.xlu0 %v1961, %s1982
    %v1984 = vpop.permute.xlu0 %1983
    %s1986 = sor.u32 256, 48
    %1987 = vbcast.lane.b32.xlu0 %v1961, %s1986
    %v1988 = vpop.permute.xlu0 %1987
    %s1990 = sor.u32 256, 56
    %1991 = vbcast.lane.b32.xlu0 %v1961, %s1990
    %v1992 = vpop.permute.xlu0 %1991
    %s1994 = sor.u32 256, 64
    %1995 = vbcast.lane.b32.xlu0 %v1961, %s1994
    %v1996 = vpop.permute.xlu0 %1995
    %s1998 = sor.u32 256, 72
    %1999 = vbcast.lane.b32.xlu0 %v1961, %s1998
    %v2000 = vpop.permute.xlu0 %1999
    %s2002 = sor.u32 256, 80
    %2003 = vbcast.lane.b32.xlu0 %v1961, %s2002
    %v2004 = vpop.permute.xlu0 %2003
    %s2006 = sor.u32 256, 88
    %2007 = vbcast.lane.b32.xlu0 %v1961, %s2006
    %v2008 = vpop.permute.xlu0 %2007
    %s2010 = sor.u32 256, 96
    %2011 = vbcast.lane.b32.xlu0 %v1961, %s2010
    %v2012 = vpop.permute.xlu0 %2011
    %s2014 = sor.u32 256, 104
    %2015 = vbcast.lane.b32.xlu0 %v1961, %s2014
    %v2016 = vpop.permute.xlu0 %2015
    %s2018 = sor.u32 256, 112
    %2019 = vbcast.lane.b32.xlu0 %v1961, %s2018
    %v2020 = vpop.permute.xlu0 %2019
    %s2022 = sor.u32 256, 120
    %2023 = vbcast.lane.b32.xlu0 %v1961, %s2022
    %v2024 = vpop.permute.xlu0 %2023
    %v2025 = vlaneseq
    %v2026 = vshrl.u32 %v2025, 7
    %v2027 = vsub.s32 1, %v2026
    %v2028 = vrot.slane %v1419, %v2027
    %2030 = vbcast.lane.b32.xlu0 %v2028, 256
    %v2031 = vpop.permute.xlu0 %2030
    %s2033 = sor.u32 256, 8
    %2034 = vbcast.lane.b32.xlu0 %v2028, %s2033
    %v2035 = vpop.permute.xlu0 %2034
    %s2037 = sor.u32 256, 16
    %2038 = vbcast.lane.b32.xlu0 %v2028, %s2037
    %v2039 = vpop.permute.xlu0 %2038
    %s2041 = sor.u32 256, 24
    %2042 = vbcast.lane.b32.xlu0 %v2028, %s2041
    %v2043 = vpop.permute.xlu0 %2042
    %s2045 = sor.u32 256, 32
    %2046 = vbcast.lane.b32.xlu0 %v2028, %s2045
    %v2047 = vpop.permute.xlu0 %2046
    %s2049 = sor.u32 256, 40
    %2050 = vbcast.lane.b32.xlu0 %v2028, %s2049
    %v2051 = vpop.permute.xlu0 %2050
    %s2053 = sor.u32 256, 48
    %2054 = vbcast.lane.b32.xlu0 %v2028, %s2053
    %v2055 = vpop.permute.xlu0 %2054
    %s2057 = sor.u32 256, 56
    %2058 = vbcast.lane.b32.xlu0 %v2028, %s2057
    %v2059 = vpop.permute.xlu0 %2058
    %s2061 = sor.u32 256, 64
    %2062 = vbcast.lane.b32.xlu0 %v2028, %s2061
    %v2063 = vpop.permute.xlu0 %2062
    %s2065 = sor.u32 256, 72
    %2066 = vbcast.lane.b32.xlu0 %v2028, %s2065
    %v2067 = vpop.permute.xlu0 %2066
    %s2069 = sor.u32 256, 80
    %2070 = vbcast.lane.b32.xlu0 %v2028, %s2069
    %v2071 = vpop.permute.xlu0 %2070
    %s2073 = sor.u32 256, 88
    %2074 = vbcast.lane.b32.xlu0 %v2028, %s2073
    %v2075 = vpop.permute.xlu0 %2074
    %s2077 = sor.u32 256, 96
    %2078 = vbcast.lane.b32.xlu0 %v2028, %s2077
    %v2079 = vpop.permute.xlu0 %2078
    %s2081 = sor.u32 256, 104
    %2082 = vbcast.lane.b32.xlu0 %v2028, %s2081
    %v2083 = vpop.permute.xlu0 %2082
    %s2085 = sor.u32 256, 112
    %2086 = vbcast.lane.b32.xlu0 %v2028, %s2085
    %v2087 = vpop.permute.xlu0 %2086
    %s2089 = sor.u32 256, 120
    %2090 = vbcast.lane.b32.xlu0 %v2028, %s2089
    %v2091 = vpop.permute.xlu0 %2090
    %v2092 = vlaneseq
    %v2093 = vshrl.u32 %v2092, 7
    %v2094 = vsub.s32 2, %v2093
    %v2095 = vrot.slane %v1419, %v2094
    %2097 = vbcast.lane.b32.xlu0 %v2095, 256
    %v2098 = vpop.permute.xlu0 %2097
    %s2100 = sor.u32 256, 8
    %2101 = vbcast.lane.b32.xlu0 %v2095, %s2100
    %v2102 = vpop.permute.xlu0 %2101
    %s2104 = sor.u32 256, 16
    %2105 = vbcast.lane.b32.xlu0 %v2095, %s2104
    %v2106 = vpop.permute.xlu0 %2105
    %s2108 = sor.u32 256, 24
    %2109 = vbcast.lane.b32.xlu0 %v2095, %s2108
    %v2110 = vpop.permute.xlu0 %2109
    %s2112 = sor.u32 256, 32
    %2113 = vbcast.lane.b32.xlu0 %v2095, %s2112
    %v2114 = vpop.permute.xlu0 %2113
    %s2116 = sor.u32 256, 40
    %2117 = vbcast.lane.b32.xlu0 %v2095, %s2116
    %v2118 = vpop.permute.xlu0 %2117
    %s2120 = sor.u32 256, 48
    %2121 = vbcast.lane.b32.xlu0 %v2095, %s2120
    %v2122 = vpop.permute.xlu0 %2121
    %s2124 = sor.u32 256, 56
    %2125 = vbcast.lane.b32.xlu0 %v2095, %s2124
    %v2126 = vpop.permute.xlu0 %2125
    %s2128 = sor.u32 256, 64
    %2129 = vbcast.lane.b32.xlu0 %v2095, %s2128
    %v2130 = vpop.permute.xlu0 %2129
    %s2132 = sor.u32 256, 72
    %2133 = vbcast.lane.b32.xlu0 %v2095, %s2132
    %v2134 = vpop.permute.xlu0 %2133
    %s2136 = sor.u32 256, 80
    %2137 = vbcast.lane.b32.xlu0 %v2095, %s2136
    %v2138 = vpop.permute.xlu0 %2137
    %s2140 = sor.u32 256, 88
    %2141 = vbcast.lane.b32.xlu0 %v2095, %s2140
    %v2142 = vpop.permute.xlu0 %2141
    %s2144 = sor.u32 256, 96
    %2145 = vbcast.lane.b32.xlu0 %v2095, %s2144
    %v2146 = vpop.permute.xlu0 %2145
    %s2148 = sor.u32 256, 104
    %2149 = vbcast.lane.b32.xlu0 %v2095, %s2148
    %v2150 = vpop.permute.xlu0 %2149
    %s2152 = sor.u32 256, 112
    %2153 = vbcast.lane.b32.xlu0 %v2095, %s2152
    %v2154 = vpop.permute.xlu0 %2153
    %s2156 = sor.u32 256, 120
    %2157 = vbcast.lane.b32.xlu0 %v2095, %s2156
    %v2158 = vpop.permute.xlu0 %2157
    %v2159 = vlaneseq
    %v2160 = vshrl.u32 %v2159, 7
    %v2161 = vsub.s32 3, %v2160
    %v2162 = vrot.slane %v1419, %v2161
    %2164 = vbcast.lane.b32.xlu0 %v2162, 256
    %v2165 = vpop.permute.xlu0 %2164
    %s2167 = sor.u32 256, 8
    %2168 = vbcast.lane.b32.xlu0 %v2162, %s2167
    %v2169 = vpop.permute.xlu0 %2168
    %s2171 = sor.u32 256, 16
    %2172 = vbcast.lane.b32.xlu0 %v2162, %s2171
    %v2173 = vpop.permute.xlu0 %2172
    %s2175 = sor.u32 256, 24
    %2176 = vbcast.lane.b32.xlu0 %v2162, %s2175
    %v2177 = vpop.permute.xlu0 %2176
    %s2179 = sor.u32 256, 32
    %2180 = vbcast.lane.b32.xlu0 %v2162, %s2179
    %v2181 = vpop.permute.xlu0 %2180
    %s2183 = sor.u32 256, 40
    %2184 = vbcast.lane.b32.xlu0 %v2162, %s2183
    %v2185 = vpop.permute.xlu0 %2184
    %s2187 = sor.u32 256, 48
    %2188 = vbcast.lane.b32.xlu0 %v2162, %s2187
    %v2189 = vpop.permute.xlu0 %2188
    %s2191 = sor.u32 256, 56
    %2192 = vbcast.lane.b32.xlu0 %v2162, %s2191
    %v2193 = vpop.permute.xlu0 %2192
    %s2195 = sor.u32 256, 64
    %2196 = vbcast.lane.b32.xlu0 %v2162, %s2195
    %v2197 = vpop.permute.xlu0 %2196
    %s2199 = sor.u32 256, 72
    %2200 = vbcast.lane.b32.xlu0 %v2162, %s2199
    %v2201 = vpop.permute.xlu0 %2200
    %s2203 = sor.u32 256, 80
    %2204 = vbcast.lane.b32.xlu0 %v2162, %s2203
    %v2205 = vpop.permute.xlu0 %2204
    %s2207 = sor.u32 256, 88
    %2208 = vbcast.lane.b32.xlu0 %v2162, %s2207
    %v2209 = vpop.permute.xlu0 %2208
    %s2211 = sor.u32 256, 96
    %2212 = vbcast.lane.b32.xlu0 %v2162, %s2211
    %v2213 = vpop.permute.xlu0 %2212
    %s2215 = sor.u32 256, 104
    %2216 = vbcast.lane.b32.xlu0 %v2162, %s2215
    %v2217 = vpop.permute.xlu0 %2216
    %s2219 = sor.u32 256, 112
    %2220 = vbcast.lane.b32.xlu0 %v2162, %s2219
    %v2221 = vpop.permute.xlu0 %2220
    %s2223 = sor.u32 256, 120
    %2224 = vbcast.lane.b32.xlu0 %v2162, %s2223
    %v2225 = vpop.permute.xlu0 %2224
    %v2226 = vlaneseq
    %v2227 = vshrl.u32 %v2226, 7
    %v2228 = vsub.s32 4, %v2227
    %v2229 = vrot.slane %v1419, %v2228
    %2231 = vbcast.lane.b32.xlu0 %v2229, 256
    %v2232 = vpop.permute.xlu0 %2231
    %s2234 = sor.u32 256, 8
    %2235 = vbcast.lane.b32.xlu0 %v2229, %s2234
    %v2236 = vpop.permute.xlu0 %2235
    %s2238 = sor.u32 256, 16
    %2239 = vbcast.lane.b32.xlu0 %v2229, %s2238
    %v2240 = vpop.permute.xlu0 %2239
    %s2242 = sor.u32 256, 24
    %2243 = vbcast.lane.b32.xlu0 %v2229, %s2242
    %v2244 = vpop.permute.xlu0 %2243
    %s2246 = sor.u32 256, 32
    %2247 = vbcast.lane.b32.xlu0 %v2229, %s2246
    %v2248 = vpop.permute.xlu0 %2247
    %s2250 = sor.u32 256, 40
    %2251 = vbcast.lane.b32.xlu0 %v2229, %s2250
    %v2252 = vpop.permute.xlu0 %2251
    %s2254 = sor.u32 256, 48
    %2255 = vbcast.lane.b32.xlu0 %v2229, %s2254
    %v2256 = vpop.permute.xlu0 %2255
    %s2258 = sor.u32 256, 56
    %2259 = vbcast.lane.b32.xlu0 %v2229, %s2258
    %v2260 = vpop.permute.xlu0 %2259
    %s2262 = sor.u32 256, 64
    %2263 = vbcast.lane.b32.xlu0 %v2229, %s2262
    %v2264 = vpop.permute.xlu0 %2263
    %s2266 = sor.u32 256, 72
    %2267 = vbcast.lane.b32.xlu0 %v2229, %s2266
    %v2268 = vpop.permute.xlu0 %2267
    %s2270 = sor.u32 256, 80
    %2271 = vbcast.lane.b32.xlu0 %v2229, %s2270
    %v2272 = vpop.permute.xlu0 %2271
    %s2274 = sor.u32 256, 88
    %2275 = vbcast.lane.b32.xlu0 %v2229, %s2274
    %v2276 = vpop.permute.xlu0 %2275
    %s2278 = sor.u32 256, 96
    %2279 = vbcast.lane.b32.xlu0 %v2229, %s2278
    %v2280 = vpop.permute.xlu0 %2279
    %s2282 = sor.u32 256, 104
    %2283 = vbcast.lane.b32.xlu0 %v2229, %s2282
    %v2284 = vpop.permute.xlu0 %2283
    %s2286 = sor.u32 256, 112
    %2287 = vbcast.lane.b32.xlu0 %v2229, %s2286
    %v2288 = vpop.permute.xlu0 %2287
    %s2290 = sor.u32 256, 120
    %2291 = vbcast.lane.b32.xlu0 %v2229, %s2290
    %v2292 = vpop.permute.xlu0 %2291
    %v2293 = vlaneseq
    %v2294 = vshrl.u32 %v2293, 7
    %v2295 = vsub.s32 5, %v2294
    %v2296 = vrot.slane %v1419, %v2295
    %2298 = vbcast.lane.b32.xlu0 %v2296, 256
    %v2299 = vpop.permute.xlu0 %2298
    %s2301 = sor.u32 256, 8
    %2302 = vbcast.lane.b32.xlu0 %v2296, %s2301
    %v2303 = vpop.permute.xlu0 %2302
    %s2305 = sor.u32 256, 16
    %2306 = vbcast.lane.b32.xlu0 %v2296, %s2305
    %v2307 = vpop.permute.xlu0 %2306
    %s2309 = sor.u32 256, 24
    %2310 = vbcast.lane.b32.xlu0 %v2296, %s2309
    %v2311 = vpop.permute.xlu0 %2310
    %s2313 = sor.u32 256, 32
    %2314 = vbcast.lane.b32.xlu0 %v2296, %s2313
    %v2315 = vpop.permute.xlu0 %2314
    %s2317 = sor.u32 256, 40
    %2318 = vbcast.lane.b32.xlu0 %v2296, %s2317
    %v2319 = vpop.permute.xlu0 %2318
    %s2321 = sor.u32 256, 48
    %2322 = vbcast.lane.b32.xlu0 %v2296, %s2321
    %v2323 = vpop.permute.xlu0 %2322
    %s2325 = sor.u32 256, 56
    %2326 = vbcast.lane.b32.xlu0 %v2296, %s2325
    %v2327 = vpop.permute.xlu0 %2326
    %s2329 = sor.u32 256, 64
    %2330 = vbcast.lane.b32.xlu0 %v2296, %s2329
    %v2331 = vpop.permute.xlu0 %2330
    %s2333 = sor.u32 256, 72
    %2334 = vbcast.lane.b32.xlu0 %v2296, %s2333
    %v2335 = vpop.permute.xlu0 %2334
    %s2337 = sor.u32 256, 80
    %2338 = vbcast.lane.b32.xlu0 %v2296, %s2337
    %v2339 = vpop.permute.xlu0 %2338
    %s2341 = sor.u32 256, 88
    %2342 = vbcast.lane.b32.xlu0 %v2296, %s2341
    %v2343 = vpop.permute.xlu0 %2342
    %s2345 = sor.u32 256, 96
    %2346 = vbcast.lane.b32.xlu0 %v2296, %s2345
    %v2347 = vpop.permute.xlu0 %2346
    %s2349 = sor.u32 256, 104
    %2350 = vbcast.lane.b32.xlu0 %v2296, %s2349
    %v2351 = vpop.permute.xlu0 %2350
    %s2353 = sor.u32 256, 112
    %2354 = vbcast.lane.b32.xlu0 %v2296, %s2353
    %v2355 = vpop.permute.xlu0 %2354
    %s2357 = sor.u32 256, 120
    %2358 = vbcast.lane.b32.xlu0 %v2296, %s2357
    %v2359 = vpop.permute.xlu0 %2358
    %v2360 = vlaneseq
    %v2361 = vshrl.u32 %v2360, 7
    %v2362 = vsub.s32 6, %v2361
    %v2363 = vrot.slane %v1419, %v2362
    %2365 = vbcast.lane.b32.xlu0 %v2363, 256
    %v2366 = vpop.permute.xlu0 %2365
    %s2368 = sor.u32 256, 8
    %2369 = vbcast.lane.b32.xlu0 %v2363, %s2368
    %v2370 = vpop.permute.xlu0 %2369
    %s2372 = sor.u32 256, 16
    %2373 = vbcast.lane.b32.xlu0 %v2363, %s2372
    %v2374 = vpop.permute.xlu0 %2373
    %s2376 = sor.u32 256, 24
    %2377 = vbcast.lane.b32.xlu0 %v2363, %s2376
    %v2378 = vpop.permute.xlu0 %2377
    %s2380 = sor.u32 256, 32
    %2381 = vbcast.lane.b32.xlu0 %v2363, %s2380
    %v2382 = vpop.permute.xlu0 %2381
    %s2384 = sor.u32 256, 40
    %2385 = vbcast.lane.b32.xlu0 %v2363, %s2384
    %v2386 = vpop.permute.xlu0 %2385
    %s2388 = sor.u32 256, 48
    %2389 = vbcast.lane.b32.xlu0 %v2363, %s2388
    %v2390 = vpop.permute.xlu0 %2389
    %s2392 = sor.u32 256, 56
    %2393 = vbcast.lane.b32.xlu0 %v2363, %s2392
    %v2394 = vpop.permute.xlu0 %2393
    %s2396 = sor.u32 256, 64
    %2397 = vbcast.lane.b32.xlu0 %v2363, %s2396
    %v2398 = vpop.permute.xlu0 %2397
    %s2400 = sor.u32 256, 72
    %2401 = vbcast.lane.b32.xlu0 %v2363, %s2400
    %v2402 = vpop.permute.xlu0 %2401
    %s2404 = sor.u32 256, 80
    %2405 = vbcast.lane.b32.xlu0 %v2363, %s2404
    %v2406 = vpop.permute.xlu0 %2405
    %s2408 = sor.u32 256, 88
    %2409 = vbcast.lane.b32.xlu0 %v2363, %s2408
    %v2410 = vpop.permute.xlu0 %2409
    %s2412 = sor.u32 256, 96
    %2413 = vbcast.lane.b32.xlu0 %v2363, %s2412
    %v2414 = vpop.permute.xlu0 %2413
    %s2416 = sor.u32 256, 104
    %2417 = vbcast.lane.b32.xlu0 %v2363, %s2416
    %v2418 = vpop.permute.xlu0 %2417
    %s2420 = sor.u32 256, 112
    %2421 = vbcast.lane.b32.xlu0 %v2363, %s2420
    %v2422 = vpop.permute.xlu0 %2421
    %s2424 = sor.u32 256, 120
    %2425 = vbcast.lane.b32.xlu0 %v2363, %s2424
    %v2426 = vpop.permute.xlu0 %2425
    %v2427 = vlaneseq
    %v2428 = vshrl.u32 %v2427, 7
    %v2429 = vsub.s32 7, %v2428
    %v2430 = vrot.slane %v1419, %v2429
    %2432 = vbcast.lane.b32.xlu0 %v2430, 256
    %v2433 = vpop.permute.xlu0 %2432
    %s2435 = sor.u32 256, 8
    %2436 = vbcast.lane.b32.xlu0 %v2430, %s2435
    %v2437 = vpop.permute.xlu0 %2436
    %s2439 = sor.u32 256, 16
    %2440 = vbcast.lane.b32.xlu0 %v2430, %s2439
    %v2441 = vpop.permute.xlu0 %2440
    %s2443 = sor.u32 256, 24
    %2444 = vbcast.lane.b32.xlu0 %v2430, %s2443
    %v2445 = vpop.permute.xlu0 %2444
    %s2447 = sor.u32 256, 32
    %2448 = vbcast.lane.b32.xlu0 %v2430, %s2447
    %v2449 = vpop.permute.xlu0 %2448
    %s2451 = sor.u32 256, 40
    %2452 = vbcast.lane.b32.xlu0 %v2430, %s2451
    %v2453 = vpop.permute.xlu0 %2452
    %s2455 = sor.u32 256, 48
    %2456 = vbcast.lane.b32.xlu0 %v2430, %s2455
    %v2457 = vpop.permute.xlu0 %2456
    %s2459 = sor.u32 256, 56
    %2460 = vbcast.lane.b32.xlu0 %v2430, %s2459
    %v2461 = vpop.permute.xlu0 %2460
    %s2463 = sor.u32 256, 64
    %2464 = vbcast.lane.b32.xlu0 %v2430, %s2463
    %v2465 = vpop.permute.xlu0 %2464
    %s2467 = sor.u32 256, 72
    %2468 = vbcast.lane.b32.xlu0 %v2430, %s2467
    %v2469 = vpop.permute.xlu0 %2468
    %s2471 = sor.u32 256, 80
    %2472 = vbcast.lane.b32.xlu0 %v2430, %s2471
    %v2473 = vpop.permute.xlu0 %2472
    %s2475 = sor.u32 256, 88
    %2476 = vbcast.lane.b32.xlu0 %v2430, %s2475
    %v2477 = vpop.permute.xlu0 %2476
    %s2479 = sor.u32 256, 96
    %2480 = vbcast.lane.b32.xlu0 %v2430, %s2479
    %v2481 = vpop.permute.xlu0 %2480
    %s2483 = sor.u32 256, 104
    %2484 = vbcast.lane.b32.xlu0 %v2430, %s2483
    %v2485 = vpop.permute.xlu0 %2484
    %s2487 = sor.u32 256, 112
    %2488 = vbcast.lane.b32.xlu0 %v2430, %s2487
    %v2489 = vpop.permute.xlu0 %2488
    %s2491 = sor.u32 256, 120
    %2492 = vbcast.lane.b32.xlu0 %v2430, %s2491
    %v2493 = vpop.permute.xlu0 %2492
    %v2750 = vsub.f32 %v1243, %v1428
    %v2751 = vsub.f32 %v1246, %v1432
    %v2752 = vsub.f32 %v1249, %v1436
    %v2753 = vsub.f32 %v1252, %v1440
    %v2754 = vsub.f32 %v1255, %v1444
    %v2755 = vsub.f32 %v1258, %v1448
    %v2756 = vsub.f32 %v1261, %v1452
    %v2757 = vsub.f32 %v1264, %v1456
    %v2758 = vsub.f32 %v1267, %v1460
    %v2759 = vsub.f32 %v1270, %v1464
    %v2760 = vsub.f32 %v1273, %v1468
    %v2761 = vsub.f32 %v1276, %v1472
    %v2762 = vsub.f32 %v1279, %v1476
    %v2763 = vsub.f32 %v1282, %v1480
    %v2764 = vsub.f32 %v1285, %v1484
    %v2765 = vsub.f32 %v1288, %v1488
    %v2766 = vsub.f32 %v1243, %v1495
    %v2767 = vsub.f32 %v1246, %v1499
    %v2768 = vsub.f32 %v1249, %v1503
    %v2769 = vsub.f32 %v1252, %v1507
    %v2770 = vsub.f32 %v1255, %v1511
    %v2771 = vsub.f32 %v1258, %v1515
    %v2772 = vsub.f32 %v1261, %v1519
    %v2773 = vsub.f32 %v1264, %v1523
    %v2774 = vsub.f32 %v1267, %v1527
    %v2775 = vsub.f32 %v1270, %v1531
    %v2776 = vsub.f32 %v1273, %v1535
    %v2777 = vsub.f32 %v1276, %v1539
    %v2778 = vsub.f32 %v1279, %v1543
    %v2779 = vsub.f32 %v1282, %v1547
    %v2780 = vsub.f32 %v1285, %v1551
    %v2781 = vsub.f32 %v1288, %v1555
    %v2782 = vsub.f32 %v1243, %v1562
    %v2783 = vsub.f32 %v1246, %v1566
    %v2784 = vsub.f32 %v1249, %v1570
    %v2785 = vsub.f32 %v1252, %v1574
    %v2786 = vsub.f32 %v1255, %v1578
    %v2787 = vsub.f32 %v1258, %v1582
    %v2788 = vsub.f32 %v1261, %v1586
    %v2789 = vsub.f32 %v1264, %v1590
    %v2790 = vsub.f32 %v1267, %v1594
    %v2791 = vsub.f32 %v1270, %v1598
    %v2792 = vsub.f32 %v1273, %v1602
    %v2793 = vsub.f32 %v1276, %v1606
    %v2794 = vsub.f32 %v1279, %v1610
    %v2795 = vsub.f32 %v1282, %v1614
    %v2796 = vsub.f32 %v1285, %v1618
    %v2797 = vsub.f32 %v1288, %v1622
    %v2798 = vsub.f32 %v1243, %v1629
    %v2799 = vsub.f32 %v1246, %v1633
    %v2800 = vsub.f32 %v1249, %v1637
    %v2801 = vsub.f32 %v1252, %v1641
    %v2802 = vsub.f32 %v1255, %v1645
    %v2803 = vsub.f32 %v1258, %v1649
    %v2804 = vsub.f32 %v1261, %v1653
    %v2805 = vsub.f32 %v1264, %v1657
    %v2806 = vsub.f32 %v1267, %v1661
    %v2807 = vsub.f32 %v1270, %v1665
    %v2808 = vsub.f32 %v1273, %v1669
    %v2809 = vsub.f32 %v1276, %v1673
    %v2810 = vsub.f32 %v1279, %v1677
    %v2811 = vsub.f32 %v1282, %v1681
    %v2812 = vsub.f32 %v1285, %v1685
    %v2813 = vsub.f32 %v1288, %v1689
    %v2814 = vsub.f32 %v1243, %v1696
    %v2815 = vsub.f32 %v1246, %v1700
    %v2816 = vsub.f32 %v1249, %v1704
    %v2817 = vsub.f32 %v1252, %v1708
    %v2818 = vsub.f32 %v1255, %v1712
    %v2819 = vsub.f32 %v1258, %v1716
    %v2820 = vsub.f32 %v1261, %v1720
    %v2821 = vsub.f32 %v1264, %v1724
    %v2822 = vsub.f32 %v1267, %v1728
    %v2823 = vsub.f32 %v1270, %v1732
    %v2824 = vsub.f32 %v1273, %v1736
    %v2825 = vsub.f32 %v1276, %v1740
    %v2826 = vsub.f32 %v1279, %v1744
    %v2827 = vsub.f32 %v1282, %v1748
    %v2828 = vsub.f32 %v1285, %v1752
    %v2829 = vsub.f32 %v1288, %v1756
    %v2830 = vsub.f32 %v1243, %v1763
    %v2831 = vsub.f32 %v1246, %v1767
    %v2832 = vsub.f32 %v1249, %v1771
    %v2833 = vsub.f32 %v1252, %v1775
    %v2834 = vsub.f32 %v1255, %v1779
    %v2835 = vsub.f32 %v1258, %v1783
    %v2836 = vsub.f32 %v1261, %v1787
    %v2837 = vsub.f32 %v1264, %v1791
    %v2838 = vsub.f32 %v1267, %v1795
    %v2839 = vsub.f32 %v1270, %v1799
    %v2840 = vsub.f32 %v1273, %v1803
    %v2841 = vsub.f32 %v1276, %v1807
    %v2842 = vsub.f32 %v1279, %v1811
    %v2843 = vsub.f32 %v1282, %v1815
    %v2844 = vsub.f32 %v1285, %v1819
    %v2845 = vsub.f32 %v1288, %v1823
    %v2846 = vsub.f32 %v1243, %v1830
    %v2847 = vsub.f32 %v1246, %v1834
    %v2848 = vsub.f32 %v1249, %v1838
    %v2849 = vsub.f32 %v1252, %v1842
    %v2850 = vsub.f32 %v1255, %v1846
    %v2851 = vsub.f32 %v1258, %v1850
    %v2852 = vsub.f32 %v1261, %v1854
    %v2853 = vsub.f32 %v1264, %v1858
    %v2854 = vsub.f32 %v1267, %v1862
    %v2855 = vsub.f32 %v1270, %v1866
    %v2856 = vsub.f32 %v1273, %v1870
    %v2857 = vsub.f32 %v1276, %v1874
    %v2858 = vsub.f32 %v1279, %v1878
    %v2859 = vsub.f32 %v1282, %v1882
    %v2860 = vsub.f32 %v1285, %v1886
    %v2861 = vsub.f32 %v1288, %v1890
    %v2862 = vsub.f32 %v1243, %v1897
    %v2863 = vsub.f32 %v1246, %v1901
    %v2864 = vsub.f32 %v1249, %v1905
    %v2865 = vsub.f32 %v1252, %v1909
    %v2866 = vsub.f32 %v1255, %v1913
    %v2867 = vsub.f32 %v1258, %v1917
    %v2868 = vsub.f32 %v1261, %v1921
    %v2869 = vsub.f32 %v1264, %v1925
    %v2870 = vsub.f32 %v1267, %v1929
    %v2871 = vsub.f32 %v1270, %v1933
    %v2872 = vsub.f32 %v1273, %v1937
    %v2873 = vsub.f32 %v1276, %v1941
    %v2874 = vsub.f32 %v1279, %v1945
    %v2875 = vsub.f32 %v1282, %v1949
    %v2876 = vsub.f32 %v1285, %v1953
    %v2877 = vsub.f32 %v1288, %v1957
    %v2878 = vsub.f32 %v1243, %v1964
    %v2879 = vsub.f32 %v1246, %v1968
    %v2880 = vsub.f32 %v1249, %v1972
    %v2881 = vsub.f32 %v1252, %v1976
    %v2882 = vsub.f32 %v1255, %v1980
    %v2883 = vsub.f32 %v1258, %v1984
    %v2884 = vsub.f32 %v1261, %v1988
    %v2885 = vsub.f32 %v1264, %v1992
    %v2886 = vsub.f32 %v1267, %v1996
    %v2887 = vsub.f32 %v1270, %v2000
    %v2888 = vsub.f32 %v1273, %v2004
    %v2889 = vsub.f32 %v1276, %v2008
    %v2890 = vsub.f32 %v1279, %v2012
    %v2891 = vsub.f32 %v1282, %v2016
    %v2892 = vsub.f32 %v1285, %v2020
    %v2893 = vsub.f32 %v1288, %v2024
    %v2894 = vsub.f32 %v1243, %v2031
    %v2895 = vsub.f32 %v1246, %v2035
    %v2896 = vsub.f32 %v1249, %v2039
    %v2897 = vsub.f32 %v1252, %v2043
    %v2898 = vsub.f32 %v1255, %v2047
    %v2899 = vsub.f32 %v1258, %v2051
    %v2900 = vsub.f32 %v1261, %v2055
    %v2901 = vsub.f32 %v1264, %v2059
    %v2902 = vsub.f32 %v1267, %v2063
    %v2903 = vsub.f32 %v1270, %v2067
    %v2904 = vsub.f32 %v1273, %v2071
    %v2905 = vsub.f32 %v1276, %v2075
    %v2906 = vsub.f32 %v1279, %v2079
    %v2907 = vsub.f32 %v1282, %v2083
    %v2908 = vsub.f32 %v1285, %v2087
    %v2909 = vsub.f32 %v1288, %v2091
    %v2910 = vsub.f32 %v1243, %v2098
    %v2911 = vsub.f32 %v1246, %v2102
    %v2912 = vsub.f32 %v1249, %v2106
    %v2913 = vsub.f32 %v1252, %v2110
    %v2914 = vsub.f32 %v1255, %v2114
    %v2915 = vsub.f32 %v1258, %v2118
    %v2916 = vsub.f32 %v1261, %v2122
    %v2917 = vsub.f32 %v1264, %v2126
    %v2918 = vsub.f32 %v1267, %v2130
    %v2919 = vsub.f32 %v1270, %v2134
    %v2920 = vsub.f32 %v1273, %v2138
    %v2921 = vsub.f32 %v1276, %v2142
    %v2922 = vsub.f32 %v1279, %v2146
    %v2923 = vsub.f32 %v1282, %v2150
    %v2924 = vsub.f32 %v1285, %v2154
    %v2925 = vsub.f32 %v1288, %v2158
    %v2926 = vsub.f32 %v1243, %v2165
    %v2927 = vsub.f32 %v1246, %v2169
    %v2928 = vsub.f32 %v1249, %v2173
    %v2929 = vsub.f32 %v1252, %v2177
    %v2930 = vsub.f32 %v1255, %v2181
    %v2931 = vsub.f32 %v1258, %v2185
    %v2932 = vsub.f32 %v1261, %v2189
    %v2933 = vsub.f32 %v1264, %v2193
    %v2934 = vsub.f32 %v1267, %v2197
    %v2935 = vsub.f32 %v1270, %v2201
    %v2936 = vsub.f32 %v1273, %v2205
    %v2937 = vsub.f32 %v1276, %v2209
    %v2938 = vsub.f32 %v1279, %v2213
    %v2939 = vsub.f32 %v1282, %v2217
    %v2940 = vsub.f32 %v1285, %v2221
    %v2941 = vsub.f32 %v1288, %v2225
    %v2942 = vsub.f32 %v1243, %v2232
    %v2943 = vsub.f32 %v1246, %v2236
    %v2944 = vsub.f32 %v1249, %v2240
    %v2945 = vsub.f32 %v1252, %v2244
    %v2946 = vsub.f32 %v1255, %v2248
    %v2947 = vsub.f32 %v1258, %v2252
    %v2948 = vsub.f32 %v1261, %v2256
    %v2949 = vsub.f32 %v1264, %v2260
    %v2950 = vsub.f32 %v1267, %v2264
    %v2951 = vsub.f32 %v1270, %v2268
    %v2952 = vsub.f32 %v1273, %v2272
    %v2953 = vsub.f32 %v1276, %v2276
    %v2954 = vsub.f32 %v1279, %v2280
    %v2955 = vsub.f32 %v1282, %v2284
    %v2956 = vsub.f32 %v1285, %v2288
    %v2957 = vsub.f32 %v1288, %v2292
    %v2958 = vsub.f32 %v1243, %v2299
    %v2959 = vsub.f32 %v1246, %v2303
    %v2960 = vsub.f32 %v1249, %v2307
    %v2961 = vsub.f32 %v1252, %v2311
    %v2962 = vsub.f32 %v1255, %v2315
    %v2963 = vsub.f32 %v1258, %v2319
    %v2964 = vsub.f32 %v1261, %v2323
    %v2965 = vsub.f32 %v1264, %v2327
    %v2966 = vsub.f32 %v1267, %v2331
    %v2967 = vsub.f32 %v1270, %v2335
    %v2968 = vsub.f32 %v1273, %v2339
    %v2969 = vsub.f32 %v1276, %v2343
    %v2970 = vsub.f32 %v1279, %v2347
    %v2971 = vsub.f32 %v1282, %v2351
    %v2972 = vsub.f32 %v1285, %v2355
    %v2973 = vsub.f32 %v1288, %v2359
    %v2974 = vsub.f32 %v1243, %v2366
    %v2975 = vsub.f32 %v1246, %v2370
    %v2976 = vsub.f32 %v1249, %v2374
    %v2977 = vsub.f32 %v1252, %v2378
    %v2978 = vsub.f32 %v1255, %v2382
    %v2979 = vsub.f32 %v1258, %v2386
    %v2980 = vsub.f32 %v1261, %v2390
    %v2981 = vsub.f32 %v1264, %v2394
    %v2982 = vsub.f32 %v1267, %v2398
    %v2983 = vsub.f32 %v1270, %v2402
    %v2984 = vsub.f32 %v1273, %v2406
    %v2985 = vsub.f32 %v1276, %v2410
    %v2986 = vsub.f32 %v1279, %v2414
    %v2987 = vsub.f32 %v1282, %v2418
    %v2988 = vsub.f32 %v1285, %v2422
    %v2989 = vsub.f32 %v1288, %v2426
    %v2990 = vsub.f32 %v1243, %v2433
    %v2991 = vsub.f32 %v1246, %v2437
    %v2992 = vsub.f32 %v1249, %v2441
    %v2993 = vsub.f32 %v1252, %v2445
    %v2994 = vsub.f32 %v1255, %v2449
    %v2995 = vsub.f32 %v1258, %v2453
    %v2996 = vsub.f32 %v1261, %v2457
    %v2997 = vsub.f32 %v1264, %v2461
    %v2998 = vsub.f32 %v1267, %v2465
    %v2999 = vsub.f32 %v1270, %v2469
    %v3000 = vsub.f32 %v1273, %v2473
    %v3001 = vsub.f32 %v1276, %v2477
    %v3002 = vsub.f32 %v1279, %v2481
    %v3003 = vsub.f32 %v1282, %v2485
    %v3004 = vsub.f32 %v1285, %v2489
    %v3005 = vsub.f32 %v1288, %v2493
    %v3006 = vlaneseq
    %v3007 = vand.u32 %v3006, 127
    %3264 = vset.pattern.permute.xlu0 0
    %3265 = vperm.xlu0 %3264, %v2750
    %v3266 = vpop.permute.xlu0 %3265
    %3267 = vset.pattern.permute.xlu0 0
    %3268 = vperm.xlu0 %3267, %v2751
    %v3269 = vpop.permute.xlu0 %3268
    %3270 = vset.pattern.permute.xlu0 0
    %3271 = vperm.xlu0 %3270, %v2752
    %v3272 = vpop.permute.xlu0 %3271
    %3273 = vset.pattern.permute.xlu0 0
    %3274 = vperm.xlu0 %3273, %v2753
    %v3275 = vpop.permute.xlu0 %3274
    %3276 = vset.pattern.permute.xlu0 0
    %3277 = vperm.xlu0 %3276, %v2754
    %v3278 = vpop.permute.xlu0 %3277
    %3279 = vset.pattern.permute.xlu0 0
    %3280 = vperm.xlu0 %3279, %v2755
    %v3281 = vpop.permute.xlu0 %3280
    %3282 = vset.pattern.permute.xlu0 0
    %3283 = vperm.xlu0 %3282, %v2756
    %v3284 = vpop.permute.xlu0 %3283
    %3285 = vset.pattern.permute.xlu0 0
    %3286 = vperm.xlu0 %3285, %v2757
    %v3287 = vpop.permute.xlu0 %3286
    %3288 = vset.pattern.permute.xlu0 0
    %3289 = vperm.xlu0 %3288, %v2758
    %v3290 = vpop.permute.xlu0 %3289
    %3291 = vset.pattern.permute.xlu0 0
    %3292 = vperm.xlu0 %3291, %v2759
    %v3293 = vpop.permute.xlu0 %3292
    %3294 = vset.pattern.permute.xlu0 0
    %3295 = vperm.xlu0 %3294, %v2760
    %v3296 = vpop.permute.xlu0 %3295
    %3297 = vset.pattern.permute.xlu0 0
    %3298 = vperm.xlu0 %3297, %v2761
    %v3299 = vpop.permute.xlu0 %3298
    %3300 = vset.pattern.permute.xlu0 0
    %3301 = vperm.xlu0 %3300, %v2762
    %v3302 = vpop.permute.xlu0 %3301
    %3303 = vset.pattern.permute.xlu0 0
    %3304 = vperm.xlu0 %3303, %v2763
    %v3305 = vpop.permute.xlu0 %3304
    %3306 = vset.pattern.permute.xlu0 0
    %3307 = vperm.xlu0 %3306, %v2764
    %v3308 = vpop.permute.xlu0 %3307
    %3309 = vset.pattern.permute.xlu0 0
    %3310 = vperm.xlu0 %3309, %v2765
    %v3311 = vpop.permute.xlu0 %3310
    %3312 = vset.pattern.permute.xlu0 0
    %3313 = vperm.xlu0 %3312, %v2766
    %v3314 = vpop.permute.xlu0 %3313
    %3315 = vset.pattern.permute.xlu0 0
    %3316 = vperm.xlu0 %3315, %v2767
    %v3317 = vpop.permute.xlu0 %3316
    %3318 = vset.pattern.permute.xlu0 0
    %3319 = vperm.xlu0 %3318, %v2768
    %v3320 = vpop.permute.xlu0 %3319
    %3321 = vset.pattern.permute.xlu0 0
    %3322 = vperm.xlu0 %3321, %v2769
    %v3323 = vpop.permute.xlu0 %3322
    %3324 = vset.pattern.permute.xlu0 0
    %3325 = vperm.xlu0 %3324, %v2770
    %v3326 = vpop.permute.xlu0 %3325
    %3327 = vset.pattern.permute.xlu0 0
    %3328 = vperm.xlu0 %3327, %v2771
    %v3329 = vpop.permute.xlu0 %3328
    %3330 = vset.pattern.permute.xlu0 0
    %3331 = vperm.xlu0 %3330, %v2772
    %v3332 = vpop.permute.xlu0 %3331
    %3333 = vset.pattern.permute.xlu0 0
    %3334 = vperm.xlu0 %3333, %v2773
    %v3335 = vpop.permute.xlu0 %3334
    %3336 = vset.pattern.permute.xlu0 0
    %3337 = vperm.xlu0 %3336, %v2774
    %v3338 = vpop.permute.xlu0 %3337
    %3339 = vset.pattern.permute.xlu0 0
    %3340 = vperm.xlu0 %3339, %v2775
    %v3341 = vpop.permute.xlu0 %3340
    %3342 = vset.pattern.permute.xlu0 0
    %3343 = vperm.xlu0 %3342, %v2776
    %v3344 = vpop.permute.xlu0 %3343
    %3345 = vset.pattern.permute.xlu0 0
    %3346 = vperm.xlu0 %3345, %v2777
    %v3347 = vpop.permute.xlu0 %3346
    %3348 = vset.pattern.permute.xlu0 0
    %3349 = vperm.xlu0 %3348, %v2778
    %v3350 = vpop.permute.xlu0 %3349
    %3351 = vset.pattern.permute.xlu0 0
    %3352 = vperm.xlu0 %3351, %v2779
    %v3353 = vpop.permute.xlu0 %3352
    %3354 = vset.pattern.permute.xlu0 0
    %3355 = vperm.xlu0 %3354, %v2780
    %v3356 = vpop.permute.xlu0 %3355
    %3357 = vset.pattern.permute.xlu0 0
    %3358 = vperm.xlu0 %3357, %v2781
    %v3359 = vpop.permute.xlu0 %3358
    %3360 = vset.pattern.permute.xlu0 0
    %3361 = vperm.xlu0 %3360, %v2782
    %v3362 = vpop.permute.xlu0 %3361
    %3363 = vset.pattern.permute.xlu0 0
    %3364 = vperm.xlu0 %3363, %v2783
    %v3365 = vpop.permute.xlu0 %3364
    %3366 = vset.pattern.permute.xlu0 0
    %3367 = vperm.xlu0 %3366, %v2784
    %v3368 = vpop.permute.xlu0 %3367
    %3369 = vset.pattern.permute.xlu0 0
    %3370 = vperm.xlu0 %3369, %v2785
    %v3371 = vpop.permute.xlu0 %3370
    %3372 = vset.pattern.permute.xlu0 0
    %3373 = vperm.xlu0 %3372, %v2786
    %v3374 = vpop.permute.xlu0 %3373
    %3375 = vset.pattern.permute.xlu0 0
    %3376 = vperm.xlu0 %3375, %v2787
    %v3377 = vpop.permute.xlu0 %3376
    %3378 = vset.pattern.permute.xlu0 0
    %3379 = vperm.xlu0 %3378, %v2788
    %v3380 = vpop.permute.xlu0 %3379
    %3381 = vset.pattern.permute.xlu0 0
    %3382 = vperm.xlu0 %3381, %v2789
    %v3383 = vpop.permute.xlu0 %3382
    %3384 = vset.pattern.permute.xlu0 0
    %3385 = vperm.xlu0 %3384, %v2790
    %v3386 = vpop.permute.xlu0 %3385
    %3387 = vset.pattern.permute.xlu0 0
    %3388 = vperm.xlu0 %3387, %v2791
    %v3389 = vpop.permute.xlu0 %3388
    %3390 = vset.pattern.permute.xlu0 0
    %3391 = vperm.xlu0 %3390, %v2792
    %v3392 = vpop.permute.xlu0 %3391
    %3393 = vset.pattern.permute.xlu0 0
    %3394 = vperm.xlu0 %3393, %v2793
    %v3395 = vpop.permute.xlu0 %3394
    %3396 = vset.pattern.permute.xlu0 0
    %3397 = vperm.xlu0 %3396, %v2794
    %v3398 = vpop.permute.xlu0 %3397
    %3399 = vset.pattern.permute.xlu0 0
    %3400 = vperm.xlu0 %3399, %v2795
    %v3401 = vpop.permute.xlu0 %3400
    %3402 = vset.pattern.permute.xlu0 0
    %3403 = vperm.xlu0 %3402, %v2796
    %v3404 = vpop.permute.xlu0 %3403
    %3405 = vset.pattern.permute.xlu0 0
    %3406 = vperm.xlu0 %3405, %v2797
    %v3407 = vpop.permute.xlu0 %3406
    %3408 = vset.pattern.permute.xlu0 0
    %3409 = vperm.xlu0 %3408, %v2798
    %v3410 = vpop.permute.xlu0 %3409
    %3411 = vset.pattern.permute.xlu0 0
    %3412 = vperm.xlu0 %3411, %v2799
    %v3413 = vpop.permute.xlu0 %3412
    %3414 = vset.pattern.permute.xlu0 0
    %3415 = vperm.xlu0 %3414, %v2800
    %v3416 = vpop.permute.xlu0 %3415
    %3417 = vset.pattern.permute.xlu0 0
    %3418 = vperm.xlu0 %3417, %v2801
    %v3419 = vpop.permute.xlu0 %3418
    %3420 = vset.pattern.permute.xlu0 0
    %3421 = vperm.xlu0 %3420, %v2802
    %v3422 = vpop.permute.xlu0 %3421
    %3423 = vset.pattern.permute.xlu0 0
    %3424 = vperm.xlu0 %3423, %v2803
    %v3425 = vpop.permute.xlu0 %3424
    %3426 = vset.pattern.permute.xlu0 0
    %3427 = vperm.xlu0 %3426, %v2804
    %v3428 = vpop.permute.xlu0 %3427
    %3429 = vset.pattern.permute.xlu0 0
    %3430 = vperm.xlu0 %3429, %v2805
    %v3431 = vpop.permute.xlu0 %3430
    %3432 = vset.pattern.permute.xlu0 0
    %3433 = vperm.xlu0 %3432, %v2806
    %v3434 = vpop.permute.xlu0 %3433
    %3435 = vset.pattern.permute.xlu0 0
    %3436 = vperm.xlu0 %3435, %v2807
    %v3437 = vpop.permute.xlu0 %3436
    %3438 = vset.pattern.permute.xlu0 0
    %3439 = vperm.xlu0 %3438, %v2808
    %v3440 = vpop.permute.xlu0 %3439
    %3441 = vset.pattern.permute.xlu0 0
    %3442 = vperm.xlu0 %3441, %v2809
    %v3443 = vpop.permute.xlu0 %3442
    %3444 = vset.pattern.permute.xlu0 0
    %3445 = vperm.xlu0 %3444, %v2810
    %v3446 = vpop.permute.xlu0 %3445
    %3447 = vset.pattern.permute.xlu0 0
    %3448 = vperm.xlu0 %3447, %v2811
    %v3449 = vpop.permute.xlu0 %3448
    %3450 = vset.pattern.permute.xlu0 0
    %3451 = vperm.xlu0 %3450, %v2812
    %v3452 = vpop.permute.xlu0 %3451
    %3453 = vset.pattern.permute.xlu0 0
    %3454 = vperm.xlu0 %3453, %v2813
    %v3455 = vpop.permute.xlu0 %3454
    %3456 = vset.pattern.permute.xlu0 0
    %3457 = vperm.xlu0 %3456, %v2814
    %v3458 = vpop.permute.xlu0 %3457
    %3459 = vset.pattern.permute.xlu0 0
    %3460 = vperm.xlu0 %3459, %v2815
    %v3461 = vpop.permute.xlu0 %3460
    %3462 = vset.pattern.permute.xlu0 0
    %3463 = vperm.xlu0 %3462, %v2816
    %v3464 = vpop.permute.xlu0 %3463
    %3465 = vset.pattern.permute.xlu0 0
    %3466 = vperm.xlu0 %3465, %v2817
    %v3467 = vpop.permute.xlu0 %3466
    %3468 = vset.pattern.permute.xlu0 0
    %3469 = vperm.xlu0 %3468, %v2818
    %v3470 = vpop.permute.xlu0 %3469
    %3471 = vset.pattern.permute.xlu0 0
    %3472 = vperm.xlu0 %3471, %v2819
    %v3473 = vpop.permute.xlu0 %3472
    %3474 = vset.pattern.permute.xlu0 0
    %3475 = vperm.xlu0 %3474, %v2820
    %v3476 = vpop.permute.xlu0 %3475
    %3477 = vset.pattern.permute.xlu0 0
    %3478 = vperm.xlu0 %3477, %v2821
    %v3479 = vpop.permute.xlu0 %3478
    %3480 = vset.pattern.permute.xlu0 0
    %3481 = vperm.xlu0 %3480, %v2822
    %v3482 = vpop.permute.xlu0 %3481
    %3483 = vset.pattern.permute.xlu0 0
    %3484 = vperm.xlu0 %3483, %v2823
    %v3485 = vpop.permute.xlu0 %3484
    %3486 = vset.pattern.permute.xlu0 0
    %3487 = vperm.xlu0 %3486, %v2824
    %v3488 = vpop.permute.xlu0 %3487
    %3489 = vset.pattern.permute.xlu0 0
    %3490 = vperm.xlu0 %3489, %v2825
    %v3491 = vpop.permute.xlu0 %3490
    %3492 = vset.pattern.permute.xlu0 0
    %3493 = vperm.xlu0 %3492, %v2826
    %v3494 = vpop.permute.xlu0 %3493
    %3495 = vset.pattern.permute.xlu0 0
    %3496 = vperm.xlu0 %3495, %v2827
    %v3497 = vpop.permute.xlu0 %3496
    %3498 = vset.pattern.permute.xlu0 0
    %3499 = vperm.xlu0 %3498, %v2828
    %v3500 = vpop.permute.xlu0 %3499
    %3501 = vset.pattern.permute.xlu0 0
    %3502 = vperm.xlu0 %3501, %v2829
    %v3503 = vpop.permute.xlu0 %3502
    %3504 = vset.pattern.permute.xlu0 0
    %3505 = vperm.xlu0 %3504, %v2830
    %v3506 = vpop.permute.xlu0 %3505
    %3507 = vset.pattern.permute.xlu0 0
    %3508 = vperm.xlu0 %3507, %v2831
    %v3509 = vpop.permute.xlu0 %3508
    %3510 = vset.pattern.permute.xlu0 0
    %3511 = vperm.xlu0 %3510, %v2832
    %v3512 = vpop.permute.xlu0 %3511
    %3513 = vset.pattern.permute.xlu0 0
    %3514 = vperm.xlu0 %3513, %v2833
    %v3515 = vpop.permute.xlu0 %3514
    %3516 = vset.pattern.permute.xlu0 0
    %3517 = vperm.xlu0 %3516, %v2834
    %v3518 = vpop.permute.xlu0 %3517
    %3519 = vset.pattern.permute.xlu0 0
    %3520 = vperm.xlu0 %3519, %v2835
    %v3521 = vpop.permute.xlu0 %3520
    %3522 = vset.pattern.permute.xlu0 0
    %3523 = vperm.xlu0 %3522, %v2836
    %v3524 = vpop.permute.xlu0 %3523
    %3525 = vset.pattern.permute.xlu0 0
    %3526 = vperm.xlu0 %3525, %v2837
    %v3527 = vpop.permute.xlu0 %3526
    %3528 = vset.pattern.permute.xlu0 0
    %3529 = vperm.xlu0 %3528, %v2838
    %v3530 = vpop.permute.xlu0 %3529
    %3531 = vset.pattern.permute.xlu0 0
    %3532 = vperm.xlu0 %3531, %v2839
    %v3533 = vpop.permute.xlu0 %3532
    %3534 = vset.pattern.permute.xlu0 0
    %3535 = vperm.xlu0 %3534, %v2840
    %v3536 = vpop.permute.xlu0 %3535
    %3537 = vset.pattern.permute.xlu0 0
    %3538 = vperm.xlu0 %3537, %v2841
    %v3539 = vpop.permute.xlu0 %3538
    %3540 = vset.pattern.permute.xlu0 0
    %3541 = vperm.xlu0 %3540, %v2842
    %v3542 = vpop.permute.xlu0 %3541
    %3543 = vset.pattern.permute.xlu0 0
    %3544 = vperm.xlu0 %3543, %v2843
    %v3545 = vpop.permute.xlu0 %3544
    %3546 = vset.pattern.permute.xlu0 0
    %3547 = vperm.xlu0 %3546, %v2844
    %v3548 = vpop.permute.xlu0 %3547
    %3549 = vset.pattern.permute.xlu0 0
    %3550 = vperm.xlu0 %3549, %v2845
    %v3551 = vpop.permute.xlu0 %3550
    %3552 = vset.pattern.permute.xlu0 0
    %3553 = vperm.xlu0 %3552, %v2846
    %v3554 = vpop.permute.xlu0 %3553
    %3555 = vset.pattern.permute.xlu0 0
    %3556 = vperm.xlu0 %3555, %v2847
    %v3557 = vpop.permute.xlu0 %3556
    %3558 = vset.pattern.permute.xlu0 0
    %3559 = vperm.xlu0 %3558, %v2848
    %v3560 = vpop.permute.xlu0 %3559
    %3561 = vset.pattern.permute.xlu0 0
    %3562 = vperm.xlu0 %3561, %v2849
    %v3563 = vpop.permute.xlu0 %3562
    %3564 = vset.pattern.permute.xlu0 0
    %3565 = vperm.xlu0 %3564, %v2850
    %v3566 = vpop.permute.xlu0 %3565
    %3567 = vset.pattern.permute.xlu0 0
    %3568 = vperm.xlu0 %3567, %v2851
    %v3569 = vpop.permute.xlu0 %3568
    %3570 = vset.pattern.permute.xlu0 0
    %3571 = vperm.xlu0 %3570, %v2852
    %v3572 = vpop.permute.xlu0 %3571
    %3573 = vset.pattern.permute.xlu0 0
    %3574 = vperm.xlu0 %3573, %v2853
    %v3575 = vpop.permute.xlu0 %3574
    %3576 = vset.pattern.permute.xlu0 0
    %3577 = vperm.xlu0 %3576, %v2854
    %v3578 = vpop.permute.xlu0 %3577
    %3579 = vset.pattern.permute.xlu0 0
    %3580 = vperm.xlu0 %3579, %v2855
    %v3581 = vpop.permute.xlu0 %3580
    %3582 = vset.pattern.permute.xlu0 0
    %3583 = vperm.xlu0 %3582, %v2856
    %v3584 = vpop.permute.xlu0 %3583
    %3585 = vset.pattern.permute.xlu0 0
    %3586 = vperm.xlu0 %3585, %v2857
    %v3587 = vpop.permute.xlu0 %3586
    %3588 = vset.pattern.permute.xlu0 0
    %3589 = vperm.xlu0 %3588, %v2858
    %v3590 = vpop.permute.xlu0 %3589
    %3591 = vset.pattern.permute.xlu0 0
    %3592 = vperm.xlu0 %3591, %v2859
    %v3593 = vpop.permute.xlu0 %3592
    %3594 = vset.pattern.permute.xlu0 0
    %3595 = vperm.xlu0 %3594, %v2860
    %v3596 = vpop.permute.xlu0 %3595
    %3597 = vset.pattern.permute.xlu0 0
    %3598 = vperm.xlu0 %3597, %v2861
    %v3599 = vpop.permute.xlu0 %3598
    %3600 = vset.pattern.permute.xlu0 0
    %3601 = vperm.xlu0 %3600, %v2862
    %v3602 = vpop.permute.xlu0 %3601
    %3603 = vset.pattern.permute.xlu0 0
    %3604 = vperm.xlu0 %3603, %v2863
    %v3605 = vpop.permute.xlu0 %3604
    %3606 = vset.pattern.permute.xlu0 0
    %3607 = vperm.xlu0 %3606, %v2864
    %v3608 = vpop.permute.xlu0 %3607
    %3609 = vset.pattern.permute.xlu0 0
    %3610 = vperm.xlu0 %3609, %v2865
    %v3611 = vpop.permute.xlu0 %3610
    %3612 = vset.pattern.permute.xlu0 0
    %3613 = vperm.xlu0 %3612, %v2866
    %v3614 = vpop.permute.xlu0 %3613
    %3615 = vset.pattern.permute.xlu0 0
    %3616 = vperm.xlu0 %3615, %v2867
    %v3617 = vpop.permute.xlu0 %3616
    %3618 = vset.pattern.permute.xlu0 0
    %3619 = vperm.xlu0 %3618, %v2868
    %v3620 = vpop.permute.xlu0 %3619
    %3621 = vset.pattern.permute.xlu0 0
    %3622 = vperm.xlu0 %3621, %v2869
    %v3623 = vpop.permute.xlu0 %3622
    %3624 = vset.pattern.permute.xlu0 0
    %3625 = vperm.xlu0 %3624, %v2870
    %v3626 = vpop.permute.xlu0 %3625
    %3627 = vset.pattern.permute.xlu0 0
    %3628 = vperm.xlu0 %3627, %v2871
    %v3629 = vpop.permute.xlu0 %3628
    %3630 = vset.pattern.permute.xlu0 0
    %3631 = vperm.xlu0 %3630, %v2872
    %v3632 = vpop.permute.xlu0 %3631
    %3633 = vset.pattern.permute.xlu0 0
    %3634 = vperm.xlu0 %3633, %v2873
    %v3635 = vpop.permute.xlu0 %3634
    %3636 = vset.pattern.permute.xlu0 0
    %3637 = vperm.xlu0 %3636, %v2874
    %v3638 = vpop.permute.xlu0 %3637
    %3639 = vset.pattern.permute.xlu0 0
    %3640 = vperm.xlu0 %3639, %v2875
    %v3641 = vpop.permute.xlu0 %3640
    %3642 = vset.pattern.permute.xlu0 0
    %3643 = vperm.xlu0 %3642, %v2876
    %v3644 = vpop.permute.xlu0 %3643
    %3645 = vset.pattern.permute.xlu0 0
    %3646 = vperm.xlu0 %3645, %v2877
    %v3647 = vpop.permute.xlu0 %3646
    %3648 = vset.pattern.permute.xlu0 0
    %3649 = vperm.xlu0 %3648, %v2878
    %v3650 = vpop.permute.xlu0 %3649
    %3651 = vset.pattern.permute.xlu0 0
    %3652 = vperm.xlu0 %3651, %v2879
    %v3653 = vpop.permute.xlu0 %3652
    %3654 = vset.pattern.permute.xlu0 0
    %3655 = vperm.xlu0 %3654, %v2880
    %v3656 = vpop.permute.xlu0 %3655
    %3657 = vset.pattern.permute.xlu0 0
    %3658 = vperm.xlu0 %3657, %v2881
    %v3659 = vpop.permute.xlu0 %3658
    %3660 = vset.pattern.permute.xlu0 0
    %3661 = vperm.xlu0 %3660, %v2882
    %v3662 = vpop.permute.xlu0 %3661
    %3663 = vset.pattern.permute.xlu0 0
    %3664 = vperm.xlu0 %3663, %v2883
    %v3665 = vpop.permute.xlu0 %3664
    %3666 = vset.pattern.permute.xlu0 0
    %3667 = vperm.xlu0 %3666, %v2884
    %v3668 = vpop.permute.xlu0 %3667
    %3669 = vset.pattern.permute.xlu0 0
    %3670 = vperm.xlu0 %3669, %v2885
    %v3671 = vpop.permute.xlu0 %3670
    %3672 = vset.pattern.permute.xlu0 0
    %3673 = vperm.xlu0 %3672, %v2886
    %v3674 = vpop.permute.xlu0 %3673
    %3675 = vset.pattern.permute.xlu0 0
    %3676 = vperm.xlu0 %3675, %v2887
    %v3677 = vpop.permute.xlu0 %3676
    %3678 = vset.pattern.permute.xlu0 0
    %3679 = vperm.xlu0 %3678, %v2888
    %v3680 = vpop.permute.xlu0 %3679
    %3681 = vset.pattern.permute.xlu0 0
    %3682 = vperm.xlu0 %3681, %v2889
    %v3683 = vpop.permute.xlu0 %3682
    %3684 = vset.pattern.permute.xlu0 0
    %3685 = vperm.xlu0 %3684, %v2890
    %v3686 = vpop.permute.xlu0 %3685
    %3687 = vset.pattern.permute.xlu0 0
    %3688 = vperm.xlu0 %3687, %v2891
    %v3689 = vpop.permute.xlu0 %3688
    %3690 = vset.pattern.permute.xlu0 0
    %3691 = vperm.xlu0 %3690, %v2892
    %v3692 = vpop.permute.xlu0 %3691
    %3693 = vset.pattern.permute.xlu0 0
    %3694 = vperm.xlu0 %3693, %v2893
    %v3695 = vpop.permute.xlu0 %3694
    %3696 = vset.pattern.permute.xlu0 0
    %3697 = vperm.xlu0 %3696, %v2894
    %v3698 = vpop.permute.xlu0 %3697
    %3699 = vset.pattern.permute.xlu0 0
    %3700 = vperm.xlu0 %3699, %v2895
    %v3701 = vpop.permute.xlu0 %3700
    %3702 = vset.pattern.permute.xlu0 0
    %3703 = vperm.xlu0 %3702, %v2896
    %v3704 = vpop.permute.xlu0 %3703
    %3705 = vset.pattern.permute.xlu0 0
    %3706 = vperm.xlu0 %3705, %v2897
    %v3707 = vpop.permute.xlu0 %3706
    %3708 = vset.pattern.permute.xlu0 0
    %3709 = vperm.xlu0 %3708, %v2898
    %v3710 = vpop.permute.xlu0 %3709
    %3711 = vset.pattern.permute.xlu0 0
    %3712 = vperm.xlu0 %3711, %v2899
    %v3713 = vpop.permute.xlu0 %3712
    %3714 = vset.pattern.permute.xlu0 0
    %3715 = vperm.xlu0 %3714, %v2900
    %v3716 = vpop.permute.xlu0 %3715
    %3717 = vset.pattern.permute.xlu0 0
    %3718 = vperm.xlu0 %3717, %v2901
    %v3719 = vpop.permute.xlu0 %3718
    %3720 = vset.pattern.permute.xlu0 0
    %3721 = vperm.xlu0 %3720, %v2902
    %v3722 = vpop.permute.xlu0 %3721
    %3723 = vset.pattern.permute.xlu0 0
    %3724 = vperm.xlu0 %3723, %v2903
    %v3725 = vpop.permute.xlu0 %3724
    %3726 = vset.pattern.permute.xlu0 0
    %3727 = vperm.xlu0 %3726, %v2904
    %v3728 = vpop.permute.xlu0 %3727
    %3729 = vset.pattern.permute.xlu0 0
    %3730 = vperm.xlu0 %3729, %v2905
    %v3731 = vpop.permute.xlu0 %3730
    %3732 = vset.pattern.permute.xlu0 0
    %3733 = vperm.xlu0 %3732, %v2906
    %v3734 = vpop.permute.xlu0 %3733
    %3735 = vset.pattern.permute.xlu0 0
    %3736 = vperm.xlu0 %3735, %v2907
    %v3737 = vpop.permute.xlu0 %3736
    %3738 = vset.pattern.permute.xlu0 0
    %3739 = vperm.xlu0 %3738, %v2908
    %v3740 = vpop.permute.xlu0 %3739
    %3741 = vset.pattern.permute.xlu0 0
    %3742 = vperm.xlu0 %3741, %v2909
    %v3743 = vpop.permute.xlu0 %3742
    %3744 = vset.pattern.permute.xlu0 0
    %3745 = vperm.xlu0 %3744, %v2910
    %v3746 = vpop.permute.xlu0 %3745
    %3747 = vset.pattern.permute.xlu0 0
    %3748 = vperm.xlu0 %3747, %v2911
    %v3749 = vpop.permute.xlu0 %3748
    %3750 = vset.pattern.permute.xlu0 0
    %3751 = vperm.xlu0 %3750, %v2912
    %v3752 = vpop.permute.xlu0 %3751
    %3753 = vset.pattern.permute.xlu0 0
    %3754 = vperm.xlu0 %3753, %v2913
    %v3755 = vpop.permute.xlu0 %3754
    %3756 = vset.pattern.permute.xlu0 0
    %3757 = vperm.xlu0 %3756, %v2914
    %v3758 = vpop.permute.xlu0 %3757
    %3759 = vset.pattern.permute.xlu0 0
    %3760 = vperm.xlu0 %3759, %v2915
    %v3761 = vpop.permute.xlu0 %3760
    %3762 = vset.pattern.permute.xlu0 0
    %3763 = vperm.xlu0 %3762, %v2916
    %v3764 = vpop.permute.xlu0 %3763
    %3765 = vset.pattern.permute.xlu0 0
    %3766 = vperm.xlu0 %3765, %v2917
    %v3767 = vpop.permute.xlu0 %3766
    %3768 = vset.pattern.permute.xlu0 0
    %3769 = vperm.xlu0 %3768, %v2918
    %v3770 = vpop.permute.xlu0 %3769
    %3771 = vset.pattern.permute.xlu0 0
    %3772 = vperm.xlu0 %3771, %v2919
    %v3773 = vpop.permute.xlu0 %3772
    %3774 = vset.pattern.permute.xlu0 0
    %3775 = vperm.xlu0 %3774, %v2920
    %v3776 = vpop.permute.xlu0 %3775
    %3777 = vset.pattern.permute.xlu0 0
    %3778 = vperm.xlu0 %3777, %v2921
    %v3779 = vpop.permute.xlu0 %3778
    %3780 = vset.pattern.permute.xlu0 0
    %3781 = vperm.xlu0 %3780, %v2922
    %v3782 = vpop.permute.xlu0 %3781
    %3783 = vset.pattern.permute.xlu0 0
    %3784 = vperm.xlu0 %3783, %v2923
    %v3785 = vpop.permute.xlu0 %3784
    %3786 = vset.pattern.permute.xlu0 0
    %3787 = vperm.xlu0 %3786, %v2924
    %v3788 = vpop.permute.xlu0 %3787
    %3789 = vset.pattern.permute.xlu0 0
    %3790 = vperm.xlu0 %3789, %v2925
    %v3791 = vpop.permute.xlu0 %3790
    %3792 = vset.pattern.permute.xlu0 0
    %3793 = vperm.xlu0 %3792, %v2926
    %v3794 = vpop.permute.xlu0 %3793
    %3795 = vset.pattern.permute.xlu0 0
    %3796 = vperm.xlu0 %3795, %v2927
    %v3797 = vpop.permute.xlu0 %3796
    %3798 = vset.pattern.permute.xlu0 0
    %3799 = vperm.xlu0 %3798, %v2928
    %v3800 = vpop.permute.xlu0 %3799
    %3801 = vset.pattern.permute.xlu0 0
    %3802 = vperm.xlu0 %3801, %v2929
    %v3803 = vpop.permute.xlu0 %3802
    %3804 = vset.pattern.permute.xlu0 0
    %3805 = vperm.xlu0 %3804, %v2930
    %v3806 = vpop.permute.xlu0 %3805
    %3807 = vset.pattern.permute.xlu0 0
    %3808 = vperm.xlu0 %3807, %v2931
    %v3809 = vpop.permute.xlu0 %3808
    %3810 = vset.pattern.permute.xlu0 0
    %3811 = vperm.xlu0 %3810, %v2932
    %v3812 = vpop.permute.xlu0 %3811
    %3813 = vset.pattern.permute.xlu0 0
    %3814 = vperm.xlu0 %3813, %v2933
    %v3815 = vpop.permute.xlu0 %3814
    %3816 = vset.pattern.permute.xlu0 0
    %3817 = vperm.xlu0 %3816, %v2934
    %v3818 = vpop.permute.xlu0 %3817
    %3819 = vset.pattern.permute.xlu0 0
    %3820 = vperm.xlu0 %3819, %v2935
    %v3821 = vpop.permute.xlu0 %3820
    %3822 = vset.pattern.permute.xlu0 0
    %3823 = vperm.xlu0 %3822, %v2936
    %v3824 = vpop.permute.xlu0 %3823
    %3825 = vset.pattern.permute.xlu0 0
    %3826 = vperm.xlu0 %3825, %v2937
    %v3827 = vpop.permute.xlu0 %3826
    %3828 = vset.pattern.permute.xlu0 0
    %3829 = vperm.xlu0 %3828, %v2938
    %v3830 = vpop.permute.xlu0 %3829
    %3831 = vset.pattern.permute.xlu0 0
    %3832 = vperm.xlu0 %3831, %v2939
    %v3833 = vpop.permute.xlu0 %3832
    %3834 = vset.pattern.permute.xlu0 0
    %3835 = vperm.xlu0 %3834, %v2940
    %v3836 = vpop.permute.xlu0 %3835
    %3837 = vset.pattern.permute.xlu0 0
    %3838 = vperm.xlu0 %3837, %v2941
    %v3839 = vpop.permute.xlu0 %3838
    %3840 = vset.pattern.permute.xlu0 0
    %3841 = vperm.xlu0 %3840, %v2942
    %v3842 = vpop.permute.xlu0 %3841
    %3843 = vset.pattern.permute.xlu0 0
    %3844 = vperm.xlu0 %3843, %v2943
    %v3845 = vpop.permute.xlu0 %3844
    %3846 = vset.pattern.permute.xlu0 0
    %3847 = vperm.xlu0 %3846, %v2944
    %v3848 = vpop.permute.xlu0 %3847
    %3849 = vset.pattern.permute.xlu0 0
    %3850 = vperm.xlu0 %3849, %v2945
    %v3851 = vpop.permute.xlu0 %3850
    %3852 = vset.pattern.permute.xlu0 0
    %3853 = vperm.xlu0 %3852, %v2946
    %v3854 = vpop.permute.xlu0 %3853
    %3855 = vset.pattern.permute.xlu0 0
    %3856 = vperm.xlu0 %3855, %v2947
    %v3857 = vpop.permute.xlu0 %3856
    %3858 = vset.pattern.permute.xlu0 0
    %3859 = vperm.xlu0 %3858, %v2948
    %v3860 = vpop.permute.xlu0 %3859
    %3861 = vset.pattern.permute.xlu0 0
    %3862 = vperm.xlu0 %3861, %v2949
    %v3863 = vpop.permute.xlu0 %3862
    %3864 = vset.pattern.permute.xlu0 0
    %3865 = vperm.xlu0 %3864, %v2950
    %v3866 = vpop.permute.xlu0 %3865
    %3867 = vset.pattern.permute.xlu0 0
    %3868 = vperm.xlu0 %3867, %v2951
    %v3869 = vpop.permute.xlu0 %3868
    %3870 = vset.pattern.permute.xlu0 0
    %3871 = vperm.xlu0 %3870, %v2952
    %v3872 = vpop.permute.xlu0 %3871
    %3873 = vset.pattern.permute.xlu0 0
    %3874 = vperm.xlu0 %3873, %v2953
    %v3875 = vpop.permute.xlu0 %3874
    %3876 = vset.pattern.permute.xlu0 0
    %3877 = vperm.xlu0 %3876, %v2954
    %v3878 = vpop.permute.xlu0 %3877
    %3879 = vset.pattern.permute.xlu0 0
    %3880 = vperm.xlu0 %3879, %v2955
    %v3881 = vpop.permute.xlu0 %3880
    %3882 = vset.pattern.permute.xlu0 0
    %3883 = vperm.xlu0 %3882, %v2956
    %v3884 = vpop.permute.xlu0 %3883
    %3885 = vset.pattern.permute.xlu0 0
    %3886 = vperm.xlu0 %3885, %v2957
    %v3887 = vpop.permute.xlu0 %3886
    %3888 = vset.pattern.permute.xlu0 0
    %3889 = vperm.xlu0 %3888, %v2958
    %v3890 = vpop.permute.xlu0 %3889
    %3891 = vset.pattern.permute.xlu0 0
    %3892 = vperm.xlu0 %3891, %v2959
    %v3893 = vpop.permute.xlu0 %3892
    %3894 = vset.pattern.permute.xlu0 0
    %3895 = vperm.xlu0 %3894, %v2960
    %v3896 = vpop.permute.xlu0 %3895
    %3897 = vset.pattern.permute.xlu0 0
    %3898 = vperm.xlu0 %3897, %v2961
    %v3899 = vpop.permute.xlu0 %3898
    %3900 = vset.pattern.permute.xlu0 0
    %3901 = vperm.xlu0 %3900, %v2962
    %v3902 = vpop.permute.xlu0 %3901
    %3903 = vset.pattern.permute.xlu0 0
    %3904 = vperm.xlu0 %3903, %v2963
    %v3905 = vpop.permute.xlu0 %3904
    %3906 = vset.pattern.permute.xlu0 0
    %3907 = vperm.xlu0 %3906, %v2964
    %v3908 = vpop.permute.xlu0 %3907
    %3909 = vset.pattern.permute.xlu0 0
    %3910 = vperm.xlu0 %3909, %v2965
    %v3911 = vpop.permute.xlu0 %3910
    %3912 = vset.pattern.permute.xlu0 0
    %3913 = vperm.xlu0 %3912, %v2966
    %v3914 = vpop.permute.xlu0 %3913
    %3915 = vset.pattern.permute.xlu0 0
    %3916 = vperm.xlu0 %3915, %v2967
    %v3917 = vpop.permute.xlu0 %3916
    %3918 = vset.pattern.permute.xlu0 0
    %3919 = vperm.xlu0 %3918, %v2968
    %v3920 = vpop.permute.xlu0 %3919
    %3921 = vset.pattern.permute.xlu0 0
    %3922 = vperm.xlu0 %3921, %v2969
    %v3923 = vpop.permute.xlu0 %3922
    %3924 = vset.pattern.permute.xlu0 0
    %3925 = vperm.xlu0 %3924, %v2970
    %v3926 = vpop.permute.xlu0 %3925
    %3927 = vset.pattern.permute.xlu0 0
    %3928 = vperm.xlu0 %3927, %v2971
    %v3929 = vpop.permute.xlu0 %3928
    %3930 = vset.pattern.permute.xlu0 0
    %3931 = vperm.xlu0 %3930, %v2972
    %v3932 = vpop.permute.xlu0 %3931
    %3933 = vset.pattern.permute.xlu0 0
    %3934 = vperm.xlu0 %3933, %v2973
    %v3935 = vpop.permute.xlu0 %3934
    %3936 = vset.pattern.permute.xlu0 0
    %3937 = vperm.xlu0 %3936, %v2974
    %v3938 = vpop.permute.xlu0 %3937
    %3939 = vset.pattern.permute.xlu0 0
    %3940 = vperm.xlu0 %3939, %v2975
    %v3941 = vpop.permute.xlu0 %3940
    %3942 = vset.pattern.permute.xlu0 0
    %3943 = vperm.xlu0 %3942, %v2976
    %v3944 = vpop.permute.xlu0 %3943
    %3945 = vset.pattern.permute.xlu0 0
    %3946 = vperm.xlu0 %3945, %v2977
    %v3947 = vpop.permute.xlu0 %3946
    %3948 = vset.pattern.permute.xlu0 0
    %3949 = vperm.xlu0 %3948, %v2978
    %v3950 = vpop.permute.xlu0 %3949
    %3951 = vset.pattern.permute.xlu0 0
    %3952 = vperm.xlu0 %3951, %v2979
    %v3953 = vpop.permute.xlu0 %3952
    %3954 = vset.pattern.permute.xlu0 0
    %3955 = vperm.xlu0 %3954, %v2980
    %v3956 = vpop.permute.xlu0 %3955
    %3957 = vset.pattern.permute.xlu0 0
    %3958 = vperm.xlu0 %3957, %v2981
    %v3959 = vpop.permute.xlu0 %3958
    %3960 = vset.pattern.permute.xlu0 0
    %3961 = vperm.xlu0 %3960, %v2982
    %v3962 = vpop.permute.xlu0 %3961
    %3963 = vset.pattern.permute.xlu0 0
    %3964 = vperm.xlu0 %3963, %v2983
    %v3965 = vpop.permute.xlu0 %3964
    %3966 = vset.pattern.permute.xlu0 0
    %3967 = vperm.xlu0 %3966, %v2984
    %v3968 = vpop.permute.xlu0 %3967
    %3969 = vset.pattern.permute.xlu0 0
    %3970 = vperm.xlu0 %3969, %v2985
    %v3971 = vpop.permute.xlu0 %3970
    %3972 = vset.pattern.permute.xlu0 0
    %3973 = vperm.xlu0 %3972, %v2986
    %v3974 = vpop.permute.xlu0 %3973
    %3975 = vset.pattern.permute.xlu0 0
    %3976 = vperm.xlu0 %3975, %v2987
    %v3977 = vpop.permute.xlu0 %3976
    %3978 = vset.pattern.permute.xlu0 0
    %3979 = vperm.xlu0 %3978, %v2988
    %v3980 = vpop.permute.xlu0 %3979
    %3981 = vset.pattern.permute.xlu0 0
    %3982 = vperm.xlu0 %3981, %v2989
    %v3983 = vpop.permute.xlu0 %3982
    %3984 = vset.pattern.permute.xlu0 0
    %3985 = vperm.xlu0 %3984, %v2990
    %v3986 = vpop.permute.xlu0 %3985
    %3987 = vset.pattern.permute.xlu0 0
    %3988 = vperm.xlu0 %3987, %v2991
    %v3989 = vpop.permute.xlu0 %3988
    %3990 = vset.pattern.permute.xlu0 0
    %3991 = vperm.xlu0 %3990, %v2992
    %v3992 = vpop.permute.xlu0 %3991
    %3993 = vset.pattern.permute.xlu0 0
    %3994 = vperm.xlu0 %3993, %v2993
    %v3995 = vpop.permute.xlu0 %3994
    %3996 = vset.pattern.permute.xlu0 0
    %3997 = vperm.xlu0 %3996, %v2994
    %v3998 = vpop.permute.xlu0 %3997
    %3999 = vset.pattern.permute.xlu0 0
    %4000 = vperm.xlu0 %3999, %v2995
    %v4001 = vpop.permute.xlu0 %4000
    %4002 = vset.pattern.permute.xlu0 0
    %4003 = vperm.xlu0 %4002, %v2996
    %v4004 = vpop.permute.xlu0 %4003
    %4005 = vset.pattern.permute.xlu0 0
    %4006 = vperm.xlu0 %4005, %v2997
    %v4007 = vpop.permute.xlu0 %4006
    %4008 = vset.pattern.permute.xlu0 0
    %4009 = vperm.xlu0 %4008, %v2998
    %v4010 = vpop.permute.xlu0 %4009
    %4011 = vset.pattern.permute.xlu0 0
    %4012 = vperm.xlu0 %4011, %v2999
    %v4013 = vpop.permute.xlu0 %4012
    %4014 = vset.pattern.permute.xlu0 0
    %4015 = vperm.xlu0 %4014, %v3000
    %v4016 = vpop.permute.xlu0 %4015
    %4017 = vset.pattern.permute.xlu0 0
    %4018 = vperm.xlu0 %4017, %v3001
    %v4019 = vpop.permute.xlu0 %4018
    %4020 = vset.pattern.permute.xlu0 0
    %4021 = vperm.xlu0 %4020, %v3002
    %v4022 = vpop.permute.xlu0 %4021
    %4023 = vset.pattern.permute.xlu0 0
    %4024 = vperm.xlu0 %4023, %v3003
    %v4025 = vpop.permute.xlu0 %4024
    %4026 = vset.pattern.permute.xlu0 0
    %4027 = vperm.xlu0 %4026, %v3004
    %v4028 = vpop.permute.xlu0 %4027
    %4029 = vset.pattern.permute.xlu0 0
    %4030 = vperm.xlu0 %4029, %v3005
    %v4031 = vpop.permute.xlu0 %4030
    %v4032 = vlaneseq
    %v4033 = vshrl.u32 %v4032, 7
    %v4034 = vsub.s32 %v3007, %v4033
    %v4035 = vrot.slane %v3266, %v4034
    %v4036 = vadd.s32 %v3007, 4294967288
    %v4037 = vlaneseq
    %v4038 = vshrl.u32 %v4037, 7
    %v4039 = vsub.s32 %v4036, %v4038
    %v4040 = vrot.slane %v3269, %v4039
    %vm4041 = vcmask 130112
    %v4042 = vsel %vm4041, %v4040, %v4035
    %v4043 = vadd.s32 %v3007, 4294967280
    %v4044 = vlaneseq
    %v4045 = vshrl.u32 %v4044, 7
    %v4046 = vsub.s32 %v4043, %v4045
    %v4047 = vrot.slane %v3272, %v4046
    %vm4048 = vcmask 195712
    %v4049 = vsel %vm4048, %v4047, %v4042
    %v4050 = vadd.s32 %v3007, 4294967272
    %v4051 = vlaneseq
    %v4052 = vshrl.u32 %v4051, 7
    %v4053 = vsub.s32 %v4050, %v4052
    %v4054 = vrot.slane %v3275, %v4053
    %vm4055 = vcmask 261312
    %v4056 = vsel %vm4055, %v4054, %v4049
    %v4057 = vadd.s32 %v3007, 4294967264
    %v4058 = vlaneseq
    %v4059 = vshrl.u32 %v4058, 7
    %v4060 = vsub.s32 %v4057, %v4059
    %v4061 = vrot.slane %v3278, %v4060
    %vm4062 = vcmask 326912
    %v4063 = vsel %vm4062, %v4061, %v4056
    %v4064 = vadd.s32 %v3007, 4294967256
    %v4065 = vlaneseq
    %v4066 = vshrl.u32 %v4065, 7
    %v4067 = vsub.s32 %v4064, %v4066
    %v4068 = vrot.slane %v3281, %v4067
    %vm4069 = vcmask 392512
    %v4070 = vsel %vm4069, %v4068, %v4063
    %v4071 = vadd.s32 %v3007, 4294967248
    %v4072 = vlaneseq
    %v4073 = vshrl.u32 %v4072, 7
    %v4074 = vsub.s32 %v4071, %v4073
    %v4075 = vrot.slane %v3284, %v4074
    %vm4076 = vcmask 458112
    %v4077 = vsel %vm4076, %v4075, %v4070
    %v4078 = vadd.s32 %v3007, 4294967240
    %v4079 = vlaneseq
    %v4080 = vshrl.u32 %v4079, 7
    %v4081 = vsub.s32 %v4078, %v4080
    %v4082 = vrot.slane %v3287, %v4081
    %vm4083 = vcmask 523712
    %v4084 = vsel %vm4083, %v4082, %v4077
    %v4085 = vadd.s32 %v3007, 4294967232
    %v4086 = vlaneseq
    %v4087 = vshrl.u32 %v4086, 7
    %v4088 = vsub.s32 %v4085, %v4087
    %v4089 = vrot.slane %v3290, %v4088
    %vm4090 = vcmask 589312
    %v4091 = vsel %vm4090, %v4089, %v4084
    %v4092 = vadd.s32 %v3007, 4294967224
    %v4093 = vlaneseq
    %v4094 = vshrl.u32 %v4093, 7
    %v4095 = vsub.s32 %v4092, %v4094
    %v4096 = vrot.slane %v3293, %v4095
    %vm4097 = vcmask 654912
    %v4098 = vsel %vm4097, %v4096, %v4091
    %v4099 = vadd.s32 %v3007, 4294967216
    %v4100 = vlaneseq
    %v4101 = vshrl.u32 %v4100, 7
    %v4102 = vsub.s32 %v4099, %v4101
    %v4103 = vrot.slane %v3296, %v4102
    %vm4104 = vcmask 720512
    %v4105 = vsel %vm4104, %v4103, %v4098
    %v4106 = vadd.s32 %v3007, 4294967208
    %v4107 = vlaneseq
    %v4108 = vshrl.u32 %v4107, 7
    %v4109 = vsub.s32 %v4106, %v4108
    %v4110 = vrot.slane %v3299, %v4109
    %vm4111 = vcmask 786112
    %v4112 = vsel %vm4111, %v4110, %v4105
    %v4113 = vadd.s32 %v3007, 4294967200
    %v4114 = vlaneseq
    %v4115 = vshrl.u32 %v4114, 7
    %v4116 = vsub.s32 %v4113, %v4115
    %v4117 = vrot.slane %v3302, %v4116
    %vm4118 = vcmask 851712
    %v4119 = vsel %vm4118, %v4117, %v4112
    %v4120 = vadd.s32 %v3007, 4294967192
    %v4121 = vlaneseq
    %v4122 = vshrl.u32 %v4121, 7
    %v4123 = vsub.s32 %v4120, %v4122
    %v4124 = vrot.slane %v3305, %v4123
    %vm4125 = vcmask 917312
    %v4126 = vsel %vm4125, %v4124, %v4119
    %v4127 = vadd.s32 %v3007, 4294967184
    %v4128 = vlaneseq
    %v4129 = vshrl.u32 %v4128, 7
    %v4130 = vsub.s32 %v4127, %v4129
    %v4131 = vrot.slane %v3308, %v4130
    %vm4132 = vcmask 982912
    %v4133 = vsel %vm4132, %v4131, %v4126
    %v4134 = vadd.s32 %v3007, 4294967176
    %v4135 = vlaneseq
    %v4136 = vshrl.u32 %v4135, 7
    %v4137 = vsub.s32 %v4134, %v4136
    %v4138 = vrot.slane %v3311, %v4137
    %vm4139 = vcmask 1048512
    %v4140 = vsel %vm4139, %v4138, %v4133
    %v4141 = vlaneseq
    %v4142 = vshrl.u32 %v4141, 7
    %v4143 = vsub.s32 %v3007, %v4142
    %v4144 = vrot.slane %v3314, %v4143
    %v4145 = vlaneseq
    %v4146 = vshrl.u32 %v4145, 7
    %v4147 = vsub.s32 %v4036, %v4146
    %v4148 = vrot.slane %v3317, %v4147
    %v4149 = vsel %vm4041, %v4148, %v4144
    %v4150 = vlaneseq
    %v4151 = vshrl.u32 %v4150, 7
    %v4152 = vsub.s32 %v4043, %v4151
    %v4153 = vrot.slane %v3320, %v4152
    %v4154 = vsel %vm4048, %v4153, %v4149
    %v4155 = vlaneseq
    %v4156 = vshrl.u32 %v4155, 7
    %v4157 = vsub.s32 %v4050, %v4156
    %v4158 = vrot.slane %v3323, %v4157
    %v4159 = vsel %vm4055, %v4158, %v4154
    %v4160 = vlaneseq
    %v4161 = vshrl.u32 %v4160, 7
    %v4162 = vsub.s32 %v4057, %v4161
    %v4163 = vrot.slane %v3326, %v4162
    %v4164 = vsel %vm4062, %v4163, %v4159
    %v4165 = vlaneseq
    %v4166 = vshrl.u32 %v4165, 7
    %v4167 = vsub.s32 %v4064, %v4166
    %v4168 = vrot.slane %v3329, %v4167
    %v4169 = vsel %vm4069, %v4168, %v4164
    %v4170 = vlaneseq
    %v4171 = vshrl.u32 %v4170, 7
    %v4172 = vsub.s32 %v4071, %v4171
    %v4173 = vrot.slane %v3332, %v4172
    %v4174 = vsel %vm4076, %v4173, %v4169
    %v4175 = vlaneseq
    %v4176 = vshrl.u32 %v4175, 7
    %v4177 = vsub.s32 %v4078, %v4176
    %v4178 = vrot.slane %v3335, %v4177
    %v4179 = vsel %vm4083, %v4178, %v4174
    %v4180 = vlaneseq
    %v4181 = vshrl.u32 %v4180, 7
    %v4182 = vsub.s32 %v4085, %v4181
    %v4183 = vrot.slane %v3338, %v4182
    %v4184 = vsel %vm4090, %v4183, %v4179
    %v4185 = vlaneseq
    %v4186 = vshrl.u32 %v4185, 7
    %v4187 = vsub.s32 %v4092, %v4186
    %v4188 = vrot.slane %v3341, %v4187
    %v4189 = vsel %vm4097, %v4188, %v4184
    %v4190 = vlaneseq
    %v4191 = vshrl.u32 %v4190, 7
    %v4192 = vsub.s32 %v4099, %v4191
    %v4193 = vrot.slane %v3344, %v4192
    %v4194 = vsel %vm4104, %v4193, %v4189
    %v4195 = vlaneseq
    %v4196 = vshrl.u32 %v4195, 7
    %v4197 = vsub.s32 %v4106, %v4196
    %v4198 = vrot.slane %v3347, %v4197
    %v4199 = vsel %vm4111, %v4198, %v4194
    %v4200 = vlaneseq
    %v4201 = vshrl.u32 %v4200, 7
    %v4202 = vsub.s32 %v4113, %v4201
    %v4203 = vrot.slane %v3350, %v4202
    %v4204 = vsel %vm4118, %v4203, %v4199
    %v4205 = vlaneseq
    %v4206 = vshrl.u32 %v4205, 7
    %v4207 = vsub.s32 %v4120, %v4206
    %v4208 = vrot.slane %v3353, %v4207
    %v4209 = vsel %vm4125, %v4208, %v4204
    %v4210 = vlaneseq
    %v4211 = vshrl.u32 %v4210, 7
    %v4212 = vsub.s32 %v4127, %v4211
    %v4213 = vrot.slane %v3356, %v4212
    %v4214 = vsel %vm4132, %v4213, %v4209
    %v4215 = vlaneseq
    %v4216 = vshrl.u32 %v4215, 7
    %v4217 = vsub.s32 %v4134, %v4216
    %v4218 = vrot.slane %v3359, %v4217
    %v4219 = vsel %vm4139, %v4218, %v4214
    %v4220 = vlaneseq
    %v4221 = vshrl.u32 %v4220, 7
    %v4222 = vsub.s32 %v3007, %v4221
    %v4223 = vrot.slane %v3362, %v4222
    %v4224 = vlaneseq
    %v4225 = vshrl.u32 %v4224, 7
    %v4226 = vsub.s32 %v4036, %v4225
    %v4227 = vrot.slane %v3365, %v4226
    %v4228 = vsel %vm4041, %v4227, %v4223
    %v4229 = vlaneseq
    %v4230 = vshrl.u32 %v4229, 7
    %v4231 = vsub.s32 %v4043, %v4230
    %v4232 = vrot.slane %v3368, %v4231
    %v4233 = vsel %vm4048, %v4232, %v4228
    %v4234 = vlaneseq
    %v4235 = vshrl.u32 %v4234, 7
    %v4236 = vsub.s32 %v4050, %v4235
    %v4237 = vrot.slane %v3371, %v4236
    %v4238 = vsel %vm4055, %v4237, %v4233
    %v4239 = vlaneseq
    %v4240 = vshrl.u32 %v4239, 7
    %v4241 = vsub.s32 %v4057, %v4240
    %v4242 = vrot.slane %v3374, %v4241
    %v4243 = vsel %vm4062, %v4242, %v4238
    %v4244 = vlaneseq
    %v4245 = vshrl.u32 %v4244, 7
    %v4246 = vsub.s32 %v4064, %v4245
    %v4247 = vrot.slane %v3377, %v4246
    %v4248 = vsel %vm4069, %v4247, %v4243
    %v4249 = vlaneseq
    %v4250 = vshrl.u32 %v4249, 7
    %v4251 = vsub.s32 %v4071, %v4250
    %v4252 = vrot.slane %v3380, %v4251
    %v4253 = vsel %vm4076, %v4252, %v4248
    %v4254 = vlaneseq
    %v4255 = vshrl.u32 %v4254, 7
    %v4256 = vsub.s32 %v4078, %v4255
    %v4257 = vrot.slane %v3383, %v4256
    %v4258 = vsel %vm4083, %v4257, %v4253
    %v4259 = vlaneseq
    %v4260 = vshrl.u32 %v4259, 7
    %v4261 = vsub.s32 %v4085, %v4260
    %v4262 = vrot.slane %v3386, %v4261
    %v4263 = vsel %vm4090, %v4262, %v4258
    %v4264 = vlaneseq
    %v4265 = vshrl.u32 %v4264, 7
    %v4266 = vsub.s32 %v4092, %v4265
    %v4267 = vrot.slane %v3389, %v4266
    %v4268 = vsel %vm4097, %v4267, %v4263
    %v4269 = vlaneseq
    %v4270 = vshrl.u32 %v4269, 7
    %v4271 = vsub.s32 %v4099, %v4270
    %v4272 = vrot.slane %v3392, %v4271
    %v4273 = vsel %vm4104, %v4272, %v4268
    %v4274 = vlaneseq
    %v4275 = vshrl.u32 %v4274, 7
    %v4276 = vsub.s32 %v4106, %v4275
    %v4277 = vrot.slane %v3395, %v4276
    %v4278 = vsel %vm4111, %v4277, %v4273
    %v4279 = vlaneseq
    %v4280 = vshrl.u32 %v4279, 7
    %v4281 = vsub.s32 %v4113, %v4280
    %v4282 = vrot.slane %v3398, %v4281
    %v4283 = vsel %vm4118, %v4282, %v4278
    %v4284 = vlaneseq
    %v4285 = vshrl.u32 %v4284, 7
    %v4286 = vsub.s32 %v4120, %v4285
    %v4287 = vrot.slane %v3401, %v4286
    %v4288 = vsel %vm4125, %v4287, %v4283
    %v4289 = vlaneseq
    %v4290 = vshrl.u32 %v4289, 7
    %v4291 = vsub.s32 %v4127, %v4290
    %v4292 = vrot.slane %v3404, %v4291
    %v4293 = vsel %vm4132, %v4292, %v4288
    %v4294 = vlaneseq
    %v4295 = vshrl.u32 %v4294, 7
    %v4296 = vsub.s32 %v4134, %v4295
    %v4297 = vrot.slane %v3407, %v4296
    %v4298 = vsel %vm4139, %v4297, %v4293
    %v4299 = vlaneseq
    %v4300 = vshrl.u32 %v4299, 7
    %v4301 = vsub.s32 %v3007, %v4300
    %v4302 = vrot.slane %v3410, %v4301
    %v4303 = vlaneseq
    %v4304 = vshrl.u32 %v4303, 7
    %v4305 = vsub.s32 %v4036, %v4304
    %v4306 = vrot.slane %v3413, %v4305
    %v4307 = vsel %vm4041, %v4306, %v4302
    %v4308 = vlaneseq
    %v4309 = vshrl.u32 %v4308, 7
    %v4310 = vsub.s32 %v4043, %v4309
    %v4311 = vrot.slane %v3416, %v4310
    %v4312 = vsel %vm4048, %v4311, %v4307
    %v4313 = vlaneseq
    %v4314 = vshrl.u32 %v4313, 7
    %v4315 = vsub.s32 %v4050, %v4314
    %v4316 = vrot.slane %v3419, %v4315
    %v4317 = vsel %vm4055, %v4316, %v4312
    %v4318 = vlaneseq
    %v4319 = vshrl.u32 %v4318, 7
    %v4320 = vsub.s32 %v4057, %v4319
    %v4321 = vrot.slane %v3422, %v4320
    %v4322 = vsel %vm4062, %v4321, %v4317
    %v4323 = vlaneseq
    %v4324 = vshrl.u32 %v4323, 7
    %v4325 = vsub.s32 %v4064, %v4324
    %v4326 = vrot.slane %v3425, %v4325
    %v4327 = vsel %vm4069, %v4326, %v4322
    %v4328 = vlaneseq
    %v4329 = vshrl.u32 %v4328, 7
    %v4330 = vsub.s32 %v4071, %v4329
    %v4331 = vrot.slane %v3428, %v4330
    %v4332 = vsel %vm4076, %v4331, %v4327
    %v4333 = vlaneseq
    %v4334 = vshrl.u32 %v4333, 7
    %v4335 = vsub.s32 %v4078, %v4334
    %v4336 = vrot.slane %v3431, %v4335
    %v4337 = vsel %vm4083, %v4336, %v4332
    %v4338 = vlaneseq
    %v4339 = vshrl.u32 %v4338, 7
    %v4340 = vsub.s32 %v4085, %v4339
    %v4341 = vrot.slane %v3434, %v4340
    %v4342 = vsel %vm4090, %v4341, %v4337
    %v4343 = vlaneseq
    %v4344 = vshrl.u32 %v4343, 7
    %v4345 = vsub.s32 %v4092, %v4344
    %v4346 = vrot.slane %v3437, %v4345
    %v4347 = vsel %vm4097, %v4346, %v4342
    %v4348 = vlaneseq
    %v4349 = vshrl.u32 %v4348, 7
    %v4350 = vsub.s32 %v4099, %v4349
    %v4351 = vrot.slane %v3440, %v4350
    %v4352 = vsel %vm4104, %v4351, %v4347
    %v4353 = vlaneseq
    %v4354 = vshrl.u32 %v4353, 7
    %v4355 = vsub.s32 %v4106, %v4354
    %v4356 = vrot.slane %v3443, %v4355
    %v4357 = vsel %vm4111, %v4356, %v4352
    %v4358 = vlaneseq
    %v4359 = vshrl.u32 %v4358, 7
    %v4360 = vsub.s32 %v4113, %v4359
    %v4361 = vrot.slane %v3446, %v4360
    %v4362 = vsel %vm4118, %v4361, %v4357
    %v4363 = vlaneseq
    %v4364 = vshrl.u32 %v4363, 7
    %v4365 = vsub.s32 %v4120, %v4364
    %v4366 = vrot.slane %v3449, %v4365
    %v4367 = vsel %vm4125, %v4366, %v4362
    %v4368 = vlaneseq
    %v4369 = vshrl.u32 %v4368, 7
    %v4370 = vsub.s32 %v4127, %v4369
    %v4371 = vrot.slane %v3452, %v4370
    %v4372 = vsel %vm4132, %v4371, %v4367
    %v4373 = vlaneseq
    %v4374 = vshrl.u32 %v4373, 7
    %v4375 = vsub.s32 %v4134, %v4374
    %v4376 = vrot.slane %v3455, %v4375
    %v4377 = vsel %vm4139, %v4376, %v4372
    %v4378 = vlaneseq
    %v4379 = vshrl.u32 %v4378, 7
    %v4380 = vsub.s32 %v3007, %v4379
    %v4381 = vrot.slane %v3458, %v4380
    %v4382 = vlaneseq
    %v4383 = vshrl.u32 %v4382, 7
    %v4384 = vsub.s32 %v4036, %v4383
    %v4385 = vrot.slane %v3461, %v4384
    %v4386 = vsel %vm4041, %v4385, %v4381
    %v4387 = vlaneseq
    %v4388 = vshrl.u32 %v4387, 7
    %v4389 = vsub.s32 %v4043, %v4388
    %v4390 = vrot.slane %v3464, %v4389
    %v4391 = vsel %vm4048, %v4390, %v4386
    %v4392 = vlaneseq
    %v4393 = vshrl.u32 %v4392, 7
    %v4394 = vsub.s32 %v4050, %v4393
    %v4395 = vrot.slane %v3467, %v4394
    %v4396 = vsel %vm4055, %v4395, %v4391
    %v4397 = vlaneseq
    %v4398 = vshrl.u32 %v4397, 7
    %v4399 = vsub.s32 %v4057, %v4398
    %v4400 = vrot.slane %v3470, %v4399
    %v4401 = vsel %vm4062, %v4400, %v4396
    %v4402 = vlaneseq
    %v4403 = vshrl.u32 %v4402, 7
    %v4404 = vsub.s32 %v4064, %v4403
    %v4405 = vrot.slane %v3473, %v4404
    %v4406 = vsel %vm4069, %v4405, %v4401
    %v4407 = vlaneseq
    %v4408 = vshrl.u32 %v4407, 7
    %v4409 = vsub.s32 %v4071, %v4408
    %v4410 = vrot.slane %v3476, %v4409
    %v4411 = vsel %vm4076, %v4410, %v4406
    %v4412 = vlaneseq
    %v4413 = vshrl.u32 %v4412, 7
    %v4414 = vsub.s32 %v4078, %v4413
    %v4415 = vrot.slane %v3479, %v4414
    %v4416 = vsel %vm4083, %v4415, %v4411
    %v4417 = vlaneseq
    %v4418 = vshrl.u32 %v4417, 7
    %v4419 = vsub.s32 %v4085, %v4418
    %v4420 = vrot.slane %v3482, %v4419
    %v4421 = vsel %vm4090, %v4420, %v4416
    %v4422 = vlaneseq
    %v4423 = vshrl.u32 %v4422, 7
    %v4424 = vsub.s32 %v4092, %v4423
    %v4425 = vrot.slane %v3485, %v4424
    %v4426 = vsel %vm4097, %v4425, %v4421
    %v4427 = vlaneseq
    %v4428 = vshrl.u32 %v4427, 7
    %v4429 = vsub.s32 %v4099, %v4428
    %v4430 = vrot.slane %v3488, %v4429
    %v4431 = vsel %vm4104, %v4430, %v4426
    %v4432 = vlaneseq
    %v4433 = vshrl.u32 %v4432, 7
    %v4434 = vsub.s32 %v4106, %v4433
    %v4435 = vrot.slane %v3491, %v4434
    %v4436 = vsel %vm4111, %v4435, %v4431
    %v4437 = vlaneseq
    %v4438 = vshrl.u32 %v4437, 7
    %v4439 = vsub.s32 %v4113, %v4438
    %v4440 = vrot.slane %v3494, %v4439
    %v4441 = vsel %vm4118, %v4440, %v4436
    %v4442 = vlaneseq
    %v4443 = vshrl.u32 %v4442, 7
    %v4444 = vsub.s32 %v4120, %v4443
    %v4445 = vrot.slane %v3497, %v4444
    %v4446 = vsel %vm4125, %v4445, %v4441
    %v4447 = vlaneseq
    %v4448 = vshrl.u32 %v4447, 7
    %v4449 = vsub.s32 %v4127, %v4448
    %v4450 = vrot.slane %v3500, %v4449
    %v4451 = vsel %vm4132, %v4450, %v4446
    %v4452 = vlaneseq
    %v4453 = vshrl.u32 %v4452, 7
    %v4454 = vsub.s32 %v4134, %v4453
    %v4455 = vrot.slane %v3503, %v4454
    %v4456 = vsel %vm4139, %v4455, %v4451
    %v4457 = vlaneseq
    %v4458 = vshrl.u32 %v4457, 7
    %v4459 = vsub.s32 %v3007, %v4458
    %v4460 = vrot.slane %v3506, %v4459
    %v4461 = vlaneseq
    %v4462 = vshrl.u32 %v4461, 7
    %v4463 = vsub.s32 %v4036, %v4462
    %v4464 = vrot.slane %v3509, %v4463
    %v4465 = vsel %vm4041, %v4464, %v4460
    %v4466 = vlaneseq
    %v4467 = vshrl.u32 %v4466, 7
    %v4468 = vsub.s32 %v4043, %v4467
    %v4469 = vrot.slane %v3512, %v4468
    %v4470 = vsel %vm4048, %v4469, %v4465
    %v4471 = vlaneseq
    %v4472 = vshrl.u32 %v4471, 7
    %v4473 = vsub.s32 %v4050, %v4472
    %v4474 = vrot.slane %v3515, %v4473
    %v4475 = vsel %vm4055, %v4474, %v4470
    %v4476 = vlaneseq
    %v4477 = vshrl.u32 %v4476, 7
    %v4478 = vsub.s32 %v4057, %v4477
    %v4479 = vrot.slane %v3518, %v4478
    %v4480 = vsel %vm4062, %v4479, %v4475
    %v4481 = vlaneseq
    %v4482 = vshrl.u32 %v4481, 7
    %v4483 = vsub.s32 %v4064, %v4482
    %v4484 = vrot.slane %v3521, %v4483
    %v4485 = vsel %vm4069, %v4484, %v4480
    %v4486 = vlaneseq
    %v4487 = vshrl.u32 %v4486, 7
    %v4488 = vsub.s32 %v4071, %v4487
    %v4489 = vrot.slane %v3524, %v4488
    %v4490 = vsel %vm4076, %v4489, %v4485
    %v4491 = vlaneseq
    %v4492 = vshrl.u32 %v4491, 7
    %v4493 = vsub.s32 %v4078, %v4492
    %v4494 = vrot.slane %v3527, %v4493
    %v4495 = vsel %vm4083, %v4494, %v4490
    %v4496 = vlaneseq
    %v4497 = vshrl.u32 %v4496, 7
    %v4498 = vsub.s32 %v4085, %v4497
    %v4499 = vrot.slane %v3530, %v4498
    %v4500 = vsel %vm4090, %v4499, %v4495
    %v4501 = vlaneseq
    %v4502 = vshrl.u32 %v4501, 7
    %v4503 = vsub.s32 %v4092, %v4502
    %v4504 = vrot.slane %v3533, %v4503
    %v4505 = vsel %vm4097, %v4504, %v4500
    %v4506 = vlaneseq
    %v4507 = vshrl.u32 %v4506, 7
    %v4508 = vsub.s32 %v4099, %v4507
    %v4509 = vrot.slane %v3536, %v4508
    %v4510 = vsel %vm4104, %v4509, %v4505
    %v4511 = vlaneseq
    %v4512 = vshrl.u32 %v4511, 7
    %v4513 = vsub.s32 %v4106, %v4512
    %v4514 = vrot.slane %v3539, %v4513
    %v4515 = vsel %vm4111, %v4514, %v4510
    %v4516 = vlaneseq
    %v4517 = vshrl.u32 %v4516, 7
    %v4518 = vsub.s32 %v4113, %v4517
    %v4519 = vrot.slane %v3542, %v4518
    %v4520 = vsel %vm4118, %v4519, %v4515
    %v4521 = vlaneseq
    %v4522 = vshrl.u32 %v4521, 7
    %v4523 = vsub.s32 %v4120, %v4522
    %v4524 = vrot.slane %v3545, %v4523
    %v4525 = vsel %vm4125, %v4524, %v4520
    %v4526 = vlaneseq
    %v4527 = vshrl.u32 %v4526, 7
    %v4528 = vsub.s32 %v4127, %v4527
    %v4529 = vrot.slane %v3548, %v4528
    %v4530 = vsel %vm4132, %v4529, %v4525
    %v4531 = vlaneseq
    %v4532 = vshrl.u32 %v4531, 7
    %v4533 = vsub.s32 %v4134, %v4532
    %v4534 = vrot.slane %v3551, %v4533
    %v4535 = vsel %vm4139, %v4534, %v4530
    %v4536 = vlaneseq
    %v4537 = vshrl.u32 %v4536, 7
    %v4538 = vsub.s32 %v3007, %v4537
    %v4539 = vrot.slane %v3554, %v4538
    %v4540 = vlaneseq
    %v4541 = vshrl.u32 %v4540, 7
    %v4542 = vsub.s32 %v4036, %v4541
    %v4543 = vrot.slane %v3557, %v4542
    %v4544 = vsel %vm4041, %v4543, %v4539
    %v4545 = vlaneseq
    %v4546 = vshrl.u32 %v4545, 7
    %v4547 = vsub.s32 %v4043, %v4546
    %v4548 = vrot.slane %v3560, %v4547
    %v4549 = vsel %vm4048, %v4548, %v4544
    %v4550 = vlaneseq
    %v4551 = vshrl.u32 %v4550, 7
    %v4552 = vsub.s32 %v4050, %v4551
    %v4553 = vrot.slane %v3563, %v4552
    %v4554 = vsel %vm4055, %v4553, %v4549
    %v4555 = vlaneseq
    %v4556 = vshrl.u32 %v4555, 7
    %v4557 = vsub.s32 %v4057, %v4556
    %v4558 = vrot.slane %v3566, %v4557
    %v4559 = vsel %vm4062, %v4558, %v4554
    %v4560 = vlaneseq
    %v4561 = vshrl.u32 %v4560, 7
    %v4562 = vsub.s32 %v4064, %v4561
    %v4563 = vrot.slane %v3569, %v4562
    %v4564 = vsel %vm4069, %v4563, %v4559
    %v4565 = vlaneseq
    %v4566 = vshrl.u32 %v4565, 7
    %v4567 = vsub.s32 %v4071, %v4566
    %v4568 = vrot.slane %v3572, %v4567
    %v4569 = vsel %vm4076, %v4568, %v4564
    %v4570 = vlaneseq
    %v4571 = vshrl.u32 %v4570, 7
    %v4572 = vsub.s32 %v4078, %v4571
    %v4573 = vrot.slane %v3575, %v4572
    %v4574 = vsel %vm4083, %v4573, %v4569
    %v4575 = vlaneseq
    %v4576 = vshrl.u32 %v4575, 7
    %v4577 = vsub.s32 %v4085, %v4576
    %v4578 = vrot.slane %v3578, %v4577
    %v4579 = vsel %vm4090, %v4578, %v4574
    %v4580 = vlaneseq
    %v4581 = vshrl.u32 %v4580, 7
    %v4582 = vsub.s32 %v4092, %v4581
    %v4583 = vrot.slane %v3581, %v4582
    %v4584 = vsel %vm4097, %v4583, %v4579
    %v4585 = vlaneseq
    %v4586 = vshrl.u32 %v4585, 7
    %v4587 = vsub.s32 %v4099, %v4586
    %v4588 = vrot.slane %v3584, %v4587
    %v4589 = vsel %vm4104, %v4588, %v4584
    %v4590 = vlaneseq
    %v4591 = vshrl.u32 %v4590, 7
    %v4592 = vsub.s32 %v4106, %v4591
    %v4593 = vrot.slane %v3587, %v4592
    %v4594 = vsel %vm4111, %v4593, %v4589
    %v4595 = vlaneseq
    %v4596 = vshrl.u32 %v4595, 7
    %v4597 = vsub.s32 %v4113, %v4596
    %v4598 = vrot.slane %v3590, %v4597
    %v4599 = vsel %vm4118, %v4598, %v4594
    %v4600 = vlaneseq
    %v4601 = vshrl.u32 %v4600, 7
    %v4602 = vsub.s32 %v4120, %v4601
    %v4603 = vrot.slane %v3593, %v4602
    %v4604 = vsel %vm4125, %v4603, %v4599
    %v4605 = vlaneseq
    %v4606 = vshrl.u32 %v4605, 7
    %v4607 = vsub.s32 %v4127, %v4606
    %v4608 = vrot.slane %v3596, %v4607
    %v4609 = vsel %vm4132, %v4608, %v4604
    %v4610 = vlaneseq
    %v4611 = vshrl.u32 %v4610, 7
    %v4612 = vsub.s32 %v4134, %v4611
    %v4613 = vrot.slane %v3599, %v4612
    %v4614 = vsel %vm4139, %v4613, %v4609
    %v4615 = vlaneseq
    %v4616 = vshrl.u32 %v4615, 7
    %v4617 = vsub.s32 %v3007, %v4616
    %v4618 = vrot.slane %v3602, %v4617
    %v4619 = vlaneseq
    %v4620 = vshrl.u32 %v4619, 7
    %v4621 = vsub.s32 %v4036, %v4620
    %v4622 = vrot.slane %v3605, %v4621
    %v4623 = vsel %vm4041, %v4622, %v4618
    %v4624 = vlaneseq
    %v4625 = vshrl.u32 %v4624, 7
    %v4626 = vsub.s32 %v4043, %v4625
    %v4627 = vrot.slane %v3608, %v4626
    %v4628 = vsel %vm4048, %v4627, %v4623
    %v4629 = vlaneseq
    %v4630 = vshrl.u32 %v4629, 7
    %v4631 = vsub.s32 %v4050, %v4630
    %v4632 = vrot.slane %v3611, %v4631
    %v4633 = vsel %vm4055, %v4632, %v4628
    %v4634 = vlaneseq
    %v4635 = vshrl.u32 %v4634, 7
    %v4636 = vsub.s32 %v4057, %v4635
    %v4637 = vrot.slane %v3614, %v4636
    %v4638 = vsel %vm4062, %v4637, %v4633
    %v4639 = vlaneseq
    %v4640 = vshrl.u32 %v4639, 7
    %v4641 = vsub.s32 %v4064, %v4640
    %v4642 = vrot.slane %v3617, %v4641
    %v4643 = vsel %vm4069, %v4642, %v4638
    %v4644 = vlaneseq
    %v4645 = vshrl.u32 %v4644, 7
    %v4646 = vsub.s32 %v4071, %v4645
    %v4647 = vrot.slane %v3620, %v4646
    %v4648 = vsel %vm4076, %v4647, %v4643
    %v4649 = vlaneseq
    %v4650 = vshrl.u32 %v4649, 7
    %v4651 = vsub.s32 %v4078, %v4650
    %v4652 = vrot.slane %v3623, %v4651
    %v4653 = vsel %vm4083, %v4652, %v4648
    %v4654 = vlaneseq
    %v4655 = vshrl.u32 %v4654, 7
    %v4656 = vsub.s32 %v4085, %v4655
    %v4657 = vrot.slane %v3626, %v4656
    %v4658 = vsel %vm4090, %v4657, %v4653
    %v4659 = vlaneseq
    %v4660 = vshrl.u32 %v4659, 7
    %v4661 = vsub.s32 %v4092, %v4660
    %v4662 = vrot.slane %v3629, %v4661
    %v4663 = vsel %vm4097, %v4662, %v4658
    %v4664 = vlaneseq
    %v4665 = vshrl.u32 %v4664, 7
    %v4666 = vsub.s32 %v4099, %v4665
    %v4667 = vrot.slane %v3632, %v4666
    %v4668 = vsel %vm4104, %v4667, %v4663
    %v4669 = vlaneseq
    %v4670 = vshrl.u32 %v4669, 7
    %v4671 = vsub.s32 %v4106, %v4670
    %v4672 = vrot.slane %v3635, %v4671
    %v4673 = vsel %vm4111, %v4672, %v4668
    %v4674 = vlaneseq
    %v4675 = vshrl.u32 %v4674, 7
    %v4676 = vsub.s32 %v4113, %v4675
    %v4677 = vrot.slane %v3638, %v4676
    %v4678 = vsel %vm4118, %v4677, %v4673
    %v4679 = vlaneseq
    %v4680 = vshrl.u32 %v4679, 7
    %v4681 = vsub.s32 %v4120, %v4680
    %v4682 = vrot.slane %v3641, %v4681
    %v4683 = vsel %vm4125, %v4682, %v4678
    %v4684 = vlaneseq
    %v4685 = vshrl.u32 %v4684, 7
    %v4686 = vsub.s32 %v4127, %v4685
    %v4687 = vrot.slane %v3644, %v4686
    %v4688 = vsel %vm4132, %v4687, %v4683
    %v4689 = vlaneseq
    %v4690 = vshrl.u32 %v4689, 7
    %v4691 = vsub.s32 %v4134, %v4690
    %v4692 = vrot.slane %v3647, %v4691
    %v4693 = vsel %vm4139, %v4692, %v4688
    %v4694 = vlaneseq
    %v4695 = vshrl.u32 %v4694, 7
    %v4696 = vsub.s32 %v3007, %v4695
    %v4697 = vrot.slane %v3650, %v4696
    %v4698 = vlaneseq
    %v4699 = vshrl.u32 %v4698, 7
    %v4700 = vsub.s32 %v4036, %v4699
    %v4701 = vrot.slane %v3653, %v4700
    %v4702 = vsel %vm4041, %v4701, %v4697
    %v4703 = vlaneseq
    %v4704 = vshrl.u32 %v4703, 7
    %v4705 = vsub.s32 %v4043, %v4704
    %v4706 = vrot.slane %v3656, %v4705
    %v4707 = vsel %vm4048, %v4706, %v4702
    %v4708 = vlaneseq
    %v4709 = vshrl.u32 %v4708, 7
    %v4710 = vsub.s32 %v4050, %v4709
    %v4711 = vrot.slane %v3659, %v4710
    %v4712 = vsel %vm4055, %v4711, %v4707
    %v4713 = vlaneseq
    %v4714 = vshrl.u32 %v4713, 7
    %v4715 = vsub.s32 %v4057, %v4714
    %v4716 = vrot.slane %v3662, %v4715
    %v4717 = vsel %vm4062, %v4716, %v4712
    %v4718 = vlaneseq
    %v4719 = vshrl.u32 %v4718, 7
    %v4720 = vsub.s32 %v4064, %v4719
    %v4721 = vrot.slane %v3665, %v4720
    %v4722 = vsel %vm4069, %v4721, %v4717
    %v4723 = vlaneseq
    %v4724 = vshrl.u32 %v4723, 7
    %v4725 = vsub.s32 %v4071, %v4724
    %v4726 = vrot.slane %v3668, %v4725
    %v4727 = vsel %vm4076, %v4726, %v4722
    %v4728 = vlaneseq
    %v4729 = vshrl.u32 %v4728, 7
    %v4730 = vsub.s32 %v4078, %v4729
    %v4731 = vrot.slane %v3671, %v4730
    %v4732 = vsel %vm4083, %v4731, %v4727
    %v4733 = vlaneseq
    %v4734 = vshrl.u32 %v4733, 7
    %v4735 = vsub.s32 %v4085, %v4734
    %v4736 = vrot.slane %v3674, %v4735
    %v4737 = vsel %vm4090, %v4736, %v4732
    %v4738 = vlaneseq
    %v4739 = vshrl.u32 %v4738, 7
    %v4740 = vsub.s32 %v4092, %v4739
    %v4741 = vrot.slane %v3677, %v4740
    %v4742 = vsel %vm4097, %v4741, %v4737
    %v4743 = vlaneseq
    %v4744 = vshrl.u32 %v4743, 7
    %v4745 = vsub.s32 %v4099, %v4744
    %v4746 = vrot.slane %v3680, %v4745
    %v4747 = vsel %vm4104, %v4746, %v4742
    %v4748 = vlaneseq
    %v4749 = vshrl.u32 %v4748, 7
    %v4750 = vsub.s32 %v4106, %v4749
    %v4751 = vrot.slane %v3683, %v4750
    %v4752 = vsel %vm4111, %v4751, %v4747
    %v4753 = vlaneseq
    %v4754 = vshrl.u32 %v4753, 7
    %v4755 = vsub.s32 %v4113, %v4754
    %v4756 = vrot.slane %v3686, %v4755
    %v4757 = vsel %vm4118, %v4756, %v4752
    %v4758 = vlaneseq
    %v4759 = vshrl.u32 %v4758, 7
    %v4760 = vsub.s32 %v4120, %v4759
    %v4761 = vrot.slane %v3689, %v4760
    %v4762 = vsel %vm4125, %v4761, %v4757
    %v4763 = vlaneseq
    %v4764 = vshrl.u32 %v4763, 7
    %v4765 = vsub.s32 %v4127, %v4764
    %v4766 = vrot.slane %v3692, %v4765
    %v4767 = vsel %vm4132, %v4766, %v4762
    %v4768 = vlaneseq
    %v4769 = vshrl.u32 %v4768, 7
    %v4770 = vsub.s32 %v4134, %v4769
    %v4771 = vrot.slane %v3695, %v4770
    %v4772 = vsel %vm4139, %v4771, %v4767
    %v4773 = vlaneseq
    %v4774 = vshrl.u32 %v4773, 7
    %v4775 = vsub.s32 %v3007, %v4774
    %v4776 = vrot.slane %v3698, %v4775
    %v4777 = vlaneseq
    %v4778 = vshrl.u32 %v4777, 7
    %v4779 = vsub.s32 %v4036, %v4778
    %v4780 = vrot.slane %v3701, %v4779
    %v4781 = vsel %vm4041, %v4780, %v4776
    %v4782 = vlaneseq
    %v4783 = vshrl.u32 %v4782, 7
    %v4784 = vsub.s32 %v4043, %v4783
    %v4785 = vrot.slane %v3704, %v4784
    %v4786 = vsel %vm4048, %v4785, %v4781
    %v4787 = vlaneseq
    %v4788 = vshrl.u32 %v4787, 7
    %v4789 = vsub.s32 %v4050, %v4788
    %v4790 = vrot.slane %v3707, %v4789
    %v4791 = vsel %vm4055, %v4790, %v4786
    %v4792 = vlaneseq
    %v4793 = vshrl.u32 %v4792, 7
    %v4794 = vsub.s32 %v4057, %v4793
    %v4795 = vrot.slane %v3710, %v4794
    %v4796 = vsel %vm4062, %v4795, %v4791
    %v4797 = vlaneseq
    %v4798 = vshrl.u32 %v4797, 7
    %v4799 = vsub.s32 %v4064, %v4798
    %v4800 = vrot.slane %v3713, %v4799
    %v4801 = vsel %vm4069, %v4800, %v4796
    %v4802 = vlaneseq
    %v4803 = vshrl.u32 %v4802, 7
    %v4804 = vsub.s32 %v4071, %v4803
    %v4805 = vrot.slane %v3716, %v4804
    %v4806 = vsel %vm4076, %v4805, %v4801
    %v4807 = vlaneseq
    %v4808 = vshrl.u32 %v4807, 7
    %v4809 = vsub.s32 %v4078, %v4808
    %v4810 = vrot.slane %v3719, %v4809
    %v4811 = vsel %vm4083, %v4810, %v4806
    %v4812 = vlaneseq
    %v4813 = vshrl.u32 %v4812, 7
    %v4814 = vsub.s32 %v4085, %v4813
    %v4815 = vrot.slane %v3722, %v4814
    %v4816 = vsel %vm4090, %v4815, %v4811
    %v4817 = vlaneseq
    %v4818 = vshrl.u32 %v4817, 7
    %v4819 = vsub.s32 %v4092, %v4818
    %v4820 = vrot.slane %v3725, %v4819
    %v4821 = vsel %vm4097, %v4820, %v4816
    %v4822 = vlaneseq
    %v4823 = vshrl.u32 %v4822, 7
    %v4824 = vsub.s32 %v4099, %v4823
    %v4825 = vrot.slane %v3728, %v4824
    %v4826 = vsel %vm4104, %v4825, %v4821
    %v4827 = vlaneseq
    %v4828 = vshrl.u32 %v4827, 7
    %v4829 = vsub.s32 %v4106, %v4828
    %v4830 = vrot.slane %v3731, %v4829
    %v4831 = vsel %vm4111, %v4830, %v4826
    %v4832 = vlaneseq
    %v4833 = vshrl.u32 %v4832, 7
    %v4834 = vsub.s32 %v4113, %v4833
    %v4835 = vrot.slane %v3734, %v4834
    %v4836 = vsel %vm4118, %v4835, %v4831
    %v4837 = vlaneseq
    %v4838 = vshrl.u32 %v4837, 7
    %v4839 = vsub.s32 %v4120, %v4838
    %v4840 = vrot.slane %v3737, %v4839
    %v4841 = vsel %vm4125, %v4840, %v4836
    %v4842 = vlaneseq
    %v4843 = vshrl.u32 %v4842, 7
    %v4844 = vsub.s32 %v4127, %v4843
    %v4845 = vrot.slane %v3740, %v4844
    %v4846 = vsel %vm4132, %v4845, %v4841
    %v4847 = vlaneseq
    %v4848 = vshrl.u32 %v4847, 7
    %v4849 = vsub.s32 %v4134, %v4848
    %v4850 = vrot.slane %v3743, %v4849
    %v4851 = vsel %vm4139, %v4850, %v4846
    %v4852 = vlaneseq
    %v4853 = vshrl.u32 %v4852, 7
    %v4854 = vsub.s32 %v3007, %v4853
    %v4855 = vrot.slane %v3746, %v4854
    %v4856 = vlaneseq
    %v4857 = vshrl.u32 %v4856, 7
    %v4858 = vsub.s32 %v4036, %v4857
    %v4859 = vrot.slane %v3749, %v4858
    %v4860 = vsel %vm4041, %v4859, %v4855
    %v4861 = vlaneseq
    %v4862 = vshrl.u32 %v4861, 7
    %v4863 = vsub.s32 %v4043, %v4862
    %v4864 = vrot.slane %v3752, %v4863
    %v4865 = vsel %vm4048, %v4864, %v4860
    %v4866 = vlaneseq
    %v4867 = vshrl.u32 %v4866, 7
    %v4868 = vsub.s32 %v4050, %v4867
    %v4869 = vrot.slane %v3755, %v4868
    %v4870 = vsel %vm4055, %v4869, %v4865
    %v4871 = vlaneseq
    %v4872 = vshrl.u32 %v4871, 7
    %v4873 = vsub.s32 %v4057, %v4872
    %v4874 = vrot.slane %v3758, %v4873
    %v4875 = vsel %vm4062, %v4874, %v4870
    %v4876 = vlaneseq
    %v4877 = vshrl.u32 %v4876, 7
    %v4878 = vsub.s32 %v4064, %v4877
    %v4879 = vrot.slane %v3761, %v4878
    %v4880 = vsel %vm4069, %v4879, %v4875
    %v4881 = vlaneseq
    %v4882 = vshrl.u32 %v4881, 7
    %v4883 = vsub.s32 %v4071, %v4882
    %v4884 = vrot.slane %v3764, %v4883
    %v4885 = vsel %vm4076, %v4884, %v4880
    %v4886 = vlaneseq
    %v4887 = vshrl.u32 %v4886, 7
    %v4888 = vsub.s32 %v4078, %v4887
    %v4889 = vrot.slane %v3767, %v4888
    %v4890 = vsel %vm4083, %v4889, %v4885
    %v4891 = vlaneseq
    %v4892 = vshrl.u32 %v4891, 7
    %v4893 = vsub.s32 %v4085, %v4892
    %v4894 = vrot.slane %v3770, %v4893
    %v4895 = vsel %vm4090, %v4894, %v4890
    %v4896 = vlaneseq
    %v4897 = vshrl.u32 %v4896, 7
    %v4898 = vsub.s32 %v4092, %v4897
    %v4899 = vrot.slane %v3773, %v4898
    %v4900 = vsel %vm4097, %v4899, %v4895
    %v4901 = vlaneseq
    %v4902 = vshrl.u32 %v4901, 7
    %v4903 = vsub.s32 %v4099, %v4902
    %v4904 = vrot.slane %v3776, %v4903
    %v4905 = vsel %vm4104, %v4904, %v4900
    %v4906 = vlaneseq
    %v4907 = vshrl.u32 %v4906, 7
    %v4908 = vsub.s32 %v4106, %v4907
    %v4909 = vrot.slane %v3779, %v4908
    %v4910 = vsel %vm4111, %v4909, %v4905
    %v4911 = vlaneseq
    %v4912 = vshrl.u32 %v4911, 7
    %v4913 = vsub.s32 %v4113, %v4912
    %v4914 = vrot.slane %v3782, %v4913
    %v4915 = vsel %vm4118, %v4914, %v4910
    %v4916 = vlaneseq
    %v4917 = vshrl.u32 %v4916, 7
    %v4918 = vsub.s32 %v4120, %v4917
    %v4919 = vrot.slane %v3785, %v4918
    %v4920 = vsel %vm4125, %v4919, %v4915
    %v4921 = vlaneseq
    %v4922 = vshrl.u32 %v4921, 7
    %v4923 = vsub.s32 %v4127, %v4922
    %v4924 = vrot.slane %v3788, %v4923
    %v4925 = vsel %vm4132, %v4924, %v4920
    %v4926 = vlaneseq
    %v4927 = vshrl.u32 %v4926, 7
    %v4928 = vsub.s32 %v4134, %v4927
    %v4929 = vrot.slane %v3791, %v4928
    %v4930 = vsel %vm4139, %v4929, %v4925
    %v4931 = vlaneseq
    %v4932 = vshrl.u32 %v4931, 7
    %v4933 = vsub.s32 %v3007, %v4932
    %v4934 = vrot.slane %v3794, %v4933
    %v4935 = vlaneseq
    %v4936 = vshrl.u32 %v4935, 7
    %v4937 = vsub.s32 %v4036, %v4936
    %v4938 = vrot.slane %v3797, %v4937
    %v4939 = vsel %vm4041, %v4938, %v4934
    %v4940 = vlaneseq
    %v4941 = vshrl.u32 %v4940, 7
    %v4942 = vsub.s32 %v4043, %v4941
    %v4943 = vrot.slane %v3800, %v4942
    %v4944 = vsel %vm4048, %v4943, %v4939
    %v4945 = vlaneseq
    %v4946 = vshrl.u32 %v4945, 7
    %v4947 = vsub.s32 %v4050, %v4946
    %v4948 = vrot.slane %v3803, %v4947
    %v4949 = vsel %vm4055, %v4948, %v4944
    %v4950 = vlaneseq
    %v4951 = vshrl.u32 %v4950, 7
    %v4952 = vsub.s32 %v4057, %v4951
    %v4953 = vrot.slane %v3806, %v4952
    %v4954 = vsel %vm4062, %v4953, %v4949
    %v4955 = vlaneseq
    %v4956 = vshrl.u32 %v4955, 7
    %v4957 = vsub.s32 %v4064, %v4956
    %v4958 = vrot.slane %v3809, %v4957
    %v4959 = vsel %vm4069, %v4958, %v4954
    %v4960 = vlaneseq
    %v4961 = vshrl.u32 %v4960, 7
    %v4962 = vsub.s32 %v4071, %v4961
    %v4963 = vrot.slane %v3812, %v4962
    %v4964 = vsel %vm4076, %v4963, %v4959
    %v4965 = vlaneseq
    %v4966 = vshrl.u32 %v4965, 7
    %v4967 = vsub.s32 %v4078, %v4966
    %v4968 = vrot.slane %v3815, %v4967
    %v4969 = vsel %vm4083, %v4968, %v4964
    %v4970 = vlaneseq
    %v4971 = vshrl.u32 %v4970, 7
    %v4972 = vsub.s32 %v4085, %v4971
    %v4973 = vrot.slane %v3818, %v4972
    %v4974 = vsel %vm4090, %v4973, %v4969
    %v4975 = vlaneseq
    %v4976 = vshrl.u32 %v4975, 7
    %v4977 = vsub.s32 %v4092, %v4976
    %v4978 = vrot.slane %v3821, %v4977
    %v4979 = vsel %vm4097, %v4978, %v4974
    %v4980 = vlaneseq
    %v4981 = vshrl.u32 %v4980, 7
    %v4982 = vsub.s32 %v4099, %v4981
    %v4983 = vrot.slane %v3824, %v4982
    %v4984 = vsel %vm4104, %v4983, %v4979
    %v4985 = vlaneseq
    %v4986 = vshrl.u32 %v4985, 7
    %v4987 = vsub.s32 %v4106, %v4986
    %v4988 = vrot.slane %v3827, %v4987
    %v4989 = vsel %vm4111, %v4988, %v4984
    %v4990 = vlaneseq
    %v4991 = vshrl.u32 %v4990, 7
    %v4992 = vsub.s32 %v4113, %v4991
    %v4993 = vrot.slane %v3830, %v4992
    %v4994 = vsel %vm4118, %v4993, %v4989
    %v4995 = vlaneseq
    %v4996 = vshrl.u32 %v4995, 7
    %v4997 = vsub.s32 %v4120, %v4996
    %v4998 = vrot.slane %v3833, %v4997
    %v4999 = vsel %vm4125, %v4998, %v4994
    %v5000 = vlaneseq
    %v5001 = vshrl.u32 %v5000, 7
    %v5002 = vsub.s32 %v4127, %v5001
    %v5003 = vrot.slane %v3836, %v5002
    %v5004 = vsel %vm4132, %v5003, %v4999
    %v5005 = vlaneseq
    %v5006 = vshrl.u32 %v5005, 7
    %v5007 = vsub.s32 %v4134, %v5006
    %v5008 = vrot.slane %v3839, %v5007
    %v5009 = vsel %vm4139, %v5008, %v5004
    %v5010 = vlaneseq
    %v5011 = vshrl.u32 %v5010, 7
    %v5012 = vsub.s32 %v3007, %v5011
    %v5013 = vrot.slane %v3842, %v5012
    %v5014 = vlaneseq
    %v5015 = vshrl.u32 %v5014, 7
    %v5016 = vsub.s32 %v4036, %v5015
    %v5017 = vrot.slane %v3845, %v5016
    %v5018 = vsel %vm4041, %v5017, %v5013
    %v5019 = vlaneseq
    %v5020 = vshrl.u32 %v5019, 7
    %v5021 = vsub.s32 %v4043, %v5020
    %v5022 = vrot.slane %v3848, %v5021
    %v5023 = vsel %vm4048, %v5022, %v5018
    %v5024 = vlaneseq
    %v5025 = vshrl.u32 %v5024, 7
    %v5026 = vsub.s32 %v4050, %v5025
    %v5027 = vrot.slane %v3851, %v5026
    %v5028 = vsel %vm4055, %v5027, %v5023
    %v5029 = vlaneseq
    %v5030 = vshrl.u32 %v5029, 7
    %v5031 = vsub.s32 %v4057, %v5030
    %v5032 = vrot.slane %v3854, %v5031
    %v5033 = vsel %vm4062, %v5032, %v5028
    %v5034 = vlaneseq
    %v5035 = vshrl.u32 %v5034, 7
    %v5036 = vsub.s32 %v4064, %v5035
    %v5037 = vrot.slane %v3857, %v5036
    %v5038 = vsel %vm4069, %v5037, %v5033
    %v5039 = vlaneseq
    %v5040 = vshrl.u32 %v5039, 7
    %v5041 = vsub.s32 %v4071, %v5040
    %v5042 = vrot.slane %v3860, %v5041
    %v5043 = vsel %vm4076, %v5042, %v5038
    %v5044 = vlaneseq
    %v5045 = vshrl.u32 %v5044, 7
    %v5046 = vsub.s32 %v4078, %v5045
    %v5047 = vrot.slane %v3863, %v5046
    %v5048 = vsel %vm4083, %v5047, %v5043
    %v5049 = vlaneseq
    %v5050 = vshrl.u32 %v5049, 7
    %v5051 = vsub.s32 %v4085, %v5050
    %v5052 = vrot.slane %v3866, %v5051
    %v5053 = vsel %vm4090, %v5052, %v5048
    %v5054 = vlaneseq
    %v5055 = vshrl.u32 %v5054, 7
    %v5056 = vsub.s32 %v4092, %v5055
    %v5057 = vrot.slane %v3869, %v5056
    %v5058 = vsel %vm4097, %v5057, %v5053
    %v5059 = vlaneseq
    %v5060 = vshrl.u32 %v5059, 7
    %v5061 = vsub.s32 %v4099, %v5060
    %v5062 = vrot.slane %v3872, %v5061
    %v5063 = vsel %vm4104, %v5062, %v5058
    %v5064 = vlaneseq
    %v5065 = vshrl.u32 %v5064, 7
    %v5066 = vsub.s32 %v4106, %v5065
    %v5067 = vrot.slane %v3875, %v5066
    %v5068 = vsel %vm4111, %v5067, %v5063
    %v5069 = vlaneseq
    %v5070 = vshrl.u32 %v5069, 7
    %v5071 = vsub.s32 %v4113, %v5070
    %v5072 = vrot.slane %v3878, %v5071
    %v5073 = vsel %vm4118, %v5072, %v5068
    %v5074 = vlaneseq
    %v5075 = vshrl.u32 %v5074, 7
    %v5076 = vsub.s32 %v4120, %v5075
    %v5077 = vrot.slane %v3881, %v5076
    %v5078 = vsel %vm4125, %v5077, %v5073
    %v5079 = vlaneseq
    %v5080 = vshrl.u32 %v5079, 7
    %v5081 = vsub.s32 %v4127, %v5080
    %v5082 = vrot.slane %v3884, %v5081
    %v5083 = vsel %vm4132, %v5082, %v5078
    %v5084 = vlaneseq
    %v5085 = vshrl.u32 %v5084, 7
    %v5086 = vsub.s32 %v4134, %v5085
    %v5087 = vrot.slane %v3887, %v5086
    %v5088 = vsel %vm4139, %v5087, %v5083
    %v5089 = vlaneseq
    %v5090 = vshrl.u32 %v5089, 7
    %v5091 = vsub.s32 %v3007, %v5090
    %v5092 = vrot.slane %v3890, %v5091
    %v5093 = vlaneseq
    %v5094 = vshrl.u32 %v5093, 7
    %v5095 = vsub.s32 %v4036, %v5094
    %v5096 = vrot.slane %v3893, %v5095
    %v5097 = vsel %vm4041, %v5096, %v5092
    %v5098 = vlaneseq
    %v5099 = vshrl.u32 %v5098, 7
    %v5100 = vsub.s32 %v4043, %v5099
    %v5101 = vrot.slane %v3896, %v5100
    %v5102 = vsel %vm4048, %v5101, %v5097
    %v5103 = vlaneseq
    %v5104 = vshrl.u32 %v5103, 7
    %v5105 = vsub.s32 %v4050, %v5104
    %v5106 = vrot.slane %v3899, %v5105
    %v5107 = vsel %vm4055, %v5106, %v5102
    %v5108 = vlaneseq
    %v5109 = vshrl.u32 %v5108, 7
    %v5110 = vsub.s32 %v4057, %v5109
    %v5111 = vrot.slane %v3902, %v5110
    %v5112 = vsel %vm4062, %v5111, %v5107
    %v5113 = vlaneseq
    %v5114 = vshrl.u32 %v5113, 7
    %v5115 = vsub.s32 %v4064, %v5114
    %v5116 = vrot.slane %v3905, %v5115
    %v5117 = vsel %vm4069, %v5116, %v5112
    %v5118 = vlaneseq
    %v5119 = vshrl.u32 %v5118, 7
    %v5120 = vsub.s32 %v4071, %v5119
    %v5121 = vrot.slane %v3908, %v5120
    %v5122 = vsel %vm4076, %v5121, %v5117
    %v5123 = vlaneseq
    %v5124 = vshrl.u32 %v5123, 7
    %v5125 = vsub.s32 %v4078, %v5124
    %v5126 = vrot.slane %v3911, %v5125
    %v5127 = vsel %vm4083, %v5126, %v5122
    %v5128 = vlaneseq
    %v5129 = vshrl.u32 %v5128, 7
    %v5130 = vsub.s32 %v4085, %v5129
    %v5131 = vrot.slane %v3914, %v5130
    %v5132 = vsel %vm4090, %v5131, %v5127
    %v5133 = vlaneseq
    %v5134 = vshrl.u32 %v5133, 7
    %v5135 = vsub.s32 %v4092, %v5134
    %v5136 = vrot.slane %v3917, %v5135
    %v5137 = vsel %vm4097, %v5136, %v5132
    %v5138 = vlaneseq
    %v5139 = vshrl.u32 %v5138, 7
    %v5140 = vsub.s32 %v4099, %v5139
    %v5141 = vrot.slane %v3920, %v5140
    %v5142 = vsel %vm4104, %v5141, %v5137
    %v5143 = vlaneseq
    %v5144 = vshrl.u32 %v5143, 7
    %v5145 = vsub.s32 %v4106, %v5144
    %v5146 = vrot.slane %v3923, %v5145
    %v5147 = vsel %vm4111, %v5146, %v5142
    %v5148 = vlaneseq
    %v5149 = vshrl.u32 %v5148, 7
    %v5150 = vsub.s32 %v4113, %v5149
    %v5151 = vrot.slane %v3926, %v5150
    %v5152 = vsel %vm4118, %v5151, %v5147
    %v5153 = vlaneseq
    %v5154 = vshrl.u32 %v5153, 7
    %v5155 = vsub.s32 %v4120, %v5154
    %v5156 = vrot.slane %v3929, %v5155
    %v5157 = vsel %vm4125, %v5156, %v5152
    %v5158 = vlaneseq
    %v5159 = vshrl.u32 %v5158, 7
    %v5160 = vsub.s32 %v4127, %v5159
    %v5161 = vrot.slane %v3932, %v5160
    %v5162 = vsel %vm4132, %v5161, %v5157
    %v5163 = vlaneseq
    %v5164 = vshrl.u32 %v5163, 7
    %v5165 = vsub.s32 %v4134, %v5164
    %v5166 = vrot.slane %v3935, %v5165
    %v5167 = vsel %vm4139, %v5166, %v5162
    %v5168 = vlaneseq
    %v5169 = vshrl.u32 %v5168, 7
    %v5170 = vsub.s32 %v3007, %v5169
    %v5171 = vrot.slane %v3938, %v5170
    %v5172 = vlaneseq
    %v5173 = vshrl.u32 %v5172, 7
    %v5174 = vsub.s32 %v4036, %v5173
    %v5175 = vrot.slane %v3941, %v5174
    %v5176 = vsel %vm4041, %v5175, %v5171
    %v5177 = vlaneseq
    %v5178 = vshrl.u32 %v5177, 7
    %v5179 = vsub.s32 %v4043, %v5178
    %v5180 = vrot.slane %v3944, %v5179
    %v5181 = vsel %vm4048, %v5180, %v5176
    %v5182 = vlaneseq
    %v5183 = vshrl.u32 %v5182, 7
    %v5184 = vsub.s32 %v4050, %v5183
    %v5185 = vrot.slane %v3947, %v5184
    %v5186 = vsel %vm4055, %v5185, %v5181
    %v5187 = vlaneseq
    %v5188 = vshrl.u32 %v5187, 7
    %v5189 = vsub.s32 %v4057, %v5188
    %v5190 = vrot.slane %v3950, %v5189
    %v5191 = vsel %vm4062, %v5190, %v5186
    %v5192 = vlaneseq
    %v5193 = vshrl.u32 %v5192, 7
    %v5194 = vsub.s32 %v4064, %v5193
    %v5195 = vrot.slane %v3953, %v5194
    %v5196 = vsel %vm4069, %v5195, %v5191
    %v5197 = vlaneseq
    %v5198 = vshrl.u32 %v5197, 7
    %v5199 = vsub.s32 %v4071, %v5198
    %v5200 = vrot.slane %v3956, %v5199
    %v5201 = vsel %vm4076, %v5200, %v5196
    %v5202 = vlaneseq
    %v5203 = vshrl.u32 %v5202, 7
    %v5204 = vsub.s32 %v4078, %v5203
    %v5205 = vrot.slane %v3959, %v5204
    %v5206 = vsel %vm4083, %v5205, %v5201
    %v5207 = vlaneseq
    %v5208 = vshrl.u32 %v5207, 7
    %v5209 = vsub.s32 %v4085, %v5208
    %v5210 = vrot.slane %v3962, %v5209
    %v5211 = vsel %vm4090, %v5210, %v5206
    %v5212 = vlaneseq
    %v5213 = vshrl.u32 %v5212, 7
    %v5214 = vsub.s32 %v4092, %v5213
    %v5215 = vrot.slane %v3965, %v5214
    %v5216 = vsel %vm4097, %v5215, %v5211
    %v5217 = vlaneseq
    %v5218 = vshrl.u32 %v5217, 7
    %v5219 = vsub.s32 %v4099, %v5218
    %v5220 = vrot.slane %v3968, %v5219
    %v5221 = vsel %vm4104, %v5220, %v5216
    %v5222 = vlaneseq
    %v5223 = vshrl.u32 %v5222, 7
    %v5224 = vsub.s32 %v4106, %v5223
    %v5225 = vrot.slane %v3971, %v5224
    %v5226 = vsel %vm4111, %v5225, %v5221
    %v5227 = vlaneseq
    %v5228 = vshrl.u32 %v5227, 7
    %v5229 = vsub.s32 %v4113, %v5228
    %v5230 = vrot.slane %v3974, %v5229
    %v5231 = vsel %vm4118, %v5230, %v5226
    %v5232 = vlaneseq
    %v5233 = vshrl.u32 %v5232, 7
    %v5234 = vsub.s32 %v4120, %v5233
    %v5235 = vrot.slane %v3977, %v5234
    %v5236 = vsel %vm4125, %v5235, %v5231
    %v5237 = vlaneseq
    %v5238 = vshrl.u32 %v5237, 7
    %v5239 = vsub.s32 %v4127, %v5238
    %v5240 = vrot.slane %v3980, %v5239
    %v5241 = vsel %vm4132, %v5240, %v5236
    %v5242 = vlaneseq
    %v5243 = vshrl.u32 %v5242, 7
    %v5244 = vsub.s32 %v4134, %v5243
    %v5245 = vrot.slane %v3983, %v5244
    %v5246 = vsel %vm4139, %v5245, %v5241
    %v5247 = vlaneseq
    %v5248 = vshrl.u32 %v5247, 7
    %v5249 = vsub.s32 %v3007, %v5248
    %v5250 = vrot.slane %v3986, %v5249
    %v5251 = vlaneseq
    %v5252 = vshrl.u32 %v5251, 7
    %v5253 = vsub.s32 %v4036, %v5252
    %v5254 = vrot.slane %v3989, %v5253
    %v5255 = vsel %vm4041, %v5254, %v5250
    %v5256 = vlaneseq
    %v5257 = vshrl.u32 %v5256, 7
    %v5258 = vsub.s32 %v4043, %v5257
    %v5259 = vrot.slane %v3992, %v5258
    %v5260 = vsel %vm4048, %v5259, %v5255
    %v5261 = vlaneseq
    %v5262 = vshrl.u32 %v5261, 7
    %v5263 = vsub.s32 %v4050, %v5262
    %v5264 = vrot.slane %v3995, %v5263
    %v5265 = vsel %vm4055, %v5264, %v5260
    %v5266 = vlaneseq
    %v5267 = vshrl.u32 %v5266, 7
    %v5268 = vsub.s32 %v4057, %v5267
    %v5269 = vrot.slane %v3998, %v5268
    %v5270 = vsel %vm4062, %v5269, %v5265
    %v5271 = vlaneseq
    %v5272 = vshrl.u32 %v5271, 7
    %v5273 = vsub.s32 %v4064, %v5272
    %v5274 = vrot.slane %v4001, %v5273
    %v5275 = vsel %vm4069, %v5274, %v5270
    %v5276 = vlaneseq
    %v5277 = vshrl.u32 %v5276, 7
    %v5278 = vsub.s32 %v4071, %v5277
    %v5279 = vrot.slane %v4004, %v5278
    %v5280 = vsel %vm4076, %v5279, %v5275
    %v5281 = vlaneseq
    %v5282 = vshrl.u32 %v5281, 7
    %v5283 = vsub.s32 %v4078, %v5282
    %v5284 = vrot.slane %v4007, %v5283
    %v5285 = vsel %vm4083, %v5284, %v5280
    %v5286 = vlaneseq
    %v5287 = vshrl.u32 %v5286, 7
    %v5288 = vsub.s32 %v4085, %v5287
    %v5289 = vrot.slane %v4010, %v5288
    %v5290 = vsel %vm4090, %v5289, %v5285
    %v5291 = vlaneseq
    %v5292 = vshrl.u32 %v5291, 7
    %v5293 = vsub.s32 %v4092, %v5292
    %v5294 = vrot.slane %v4013, %v5293
    %v5295 = vsel %vm4097, %v5294, %v5290
    %v5296 = vlaneseq
    %v5297 = vshrl.u32 %v5296, 7
    %v5298 = vsub.s32 %v4099, %v5297
    %v5299 = vrot.slane %v4016, %v5298
    %v5300 = vsel %vm4104, %v5299, %v5295
    %v5301 = vlaneseq
    %v5302 = vshrl.u32 %v5301, 7
    %v5303 = vsub.s32 %v4106, %v5302
    %v5304 = vrot.slane %v4019, %v5303
    %v5305 = vsel %vm4111, %v5304, %v5300
    %v5306 = vlaneseq
    %v5307 = vshrl.u32 %v5306, 7
    %v5308 = vsub.s32 %v4113, %v5307
    %v5309 = vrot.slane %v4022, %v5308
    %v5310 = vsel %vm4118, %v5309, %v5305
    %v5311 = vlaneseq
    %v5312 = vshrl.u32 %v5311, 7
    %v5313 = vsub.s32 %v4120, %v5312
    %v5314 = vrot.slane %v4025, %v5313
    %v5315 = vsel %vm4125, %v5314, %v5310
    %v5316 = vlaneseq
    %v5317 = vshrl.u32 %v5316, 7
    %v5318 = vsub.s32 %v4127, %v5317
    %v5319 = vrot.slane %v4028, %v5318
    %v5320 = vsel %vm4132, %v5319, %v5315
    %v5321 = vlaneseq
    %v5322 = vshrl.u32 %v5321, 7
    %v5323 = vsub.s32 %v4134, %v5322
    %v5324 = vrot.slane %v4031, %v5323
    %v5325 = vsel %vm4139, %v5324, %v5320
    %vm5326 = vcmask 1041409
    %v5327 = vsel %vm5326, %v4219, %v4140
    %vm5328 = vcmask 1042434
    %v5329 = vsel %vm5328, %v4298, %v5327
    %vm5330 = vcmask 1043459
    %v5331 = vsel %vm5330, %v4377, %v5329
    %vm5332 = vcmask 1044484
    %v5333 = vsel %vm5332, %v4456, %v5331
    %vm5334 = vcmask 1045509
    %v5335 = vsel %vm5334, %v4535, %v5333
    %vm5336 = vcmask 1046534
    %v5337 = vsel %vm5336, %v4614, %v5335
    %vm5338 = vcmask 1047559
    %v5339 = vsel %vm5338, %v4693, %v5337
    %v5340 = vsel %vm5326, %v4851, %v4772
    %v5341 = vsel %vm5328, %v4930, %v5340
    %v5342 = vsel %vm5330, %v5009, %v5341
    %v5343 = vsel %vm5332, %v5088, %v5342
    %v5344 = vsel %vm5334, %v5167, %v5343
    %v5345 = vsel %vm5336, %v5246, %v5344
    %v5346 = vsel %vm5338, %v5325, %v5345
    %5349 = vmin.xlane.f32.xlu0 %v5339
    %v5350 = vpop.xlane.xlu0 %5349
    %5351 = vmin.xlane.f32.xlu0 %v5346
    %v5352 = vpop.xlane.xlu0 %5351
    %v5355 = vlaneseq
    %v5356 = vshrl.u32 %v5355, 7
    %v5357 = vsub.s32 0, %v5356
    %v5358 = vrot.slane %v5350, %v5357
    %v5359 = vlaneseq
    %v5360 = vshrl.u32 %v5359, 7
    %v5361 = vsub.s32 1, %v5360
    %v5362 = vrot.slane %v5350, %v5361
    %v5363 = vlaneseq
    %v5364 = vshrl.u32 %v5363, 7
    %v5365 = vsub.s32 2, %v5364
    %v5366 = vrot.slane %v5350, %v5365
    %v5367 = vlaneseq
    %v5368 = vshrl.u32 %v5367, 7
    %v5369 = vsub.s32 3, %v5368
    %v5370 = vrot.slane %v5350, %v5369
    %v5371 = vlaneseq
    %v5372 = vshrl.u32 %v5371, 7
    %v5373 = vsub.s32 4, %v5372
    %v5374 = vrot.slane %v5350, %v5373
    %v5375 = vlaneseq
    %v5376 = vshrl.u32 %v5375, 7
    %v5377 = vsub.s32 5, %v5376
    %v5378 = vrot.slane %v5350, %v5377
    %v5379 = vlaneseq
    %v5380 = vshrl.u32 %v5379, 7
    %v5381 = vsub.s32 6, %v5380
    %v5382 = vrot.slane %v5350, %v5381
    %v5383 = vlaneseq
    %v5384 = vshrl.u32 %v5383, 7
    %v5385 = vsub.s32 7, %v5384
    %v5386 = vrot.slane %v5350, %v5385
    %v5387 = vlaneseq
    %v5388 = vshrl.u32 %v5387, 7
    %v5389 = vsub.s32 0, %v5388
    %v5390 = vrot.slane %v5352, %v5389
    %v5391 = vlaneseq
    %v5392 = vshrl.u32 %v5391, 7
    %v5393 = vsub.s32 1, %v5392
    %v5394 = vrot.slane %v5352, %v5393
    %v5395 = vlaneseq
    %v5396 = vshrl.u32 %v5395, 7
    %v5397 = vsub.s32 2, %v5396
    %v5398 = vrot.slane %v5352, %v5397
    %v5399 = vlaneseq
    %v5400 = vshrl.u32 %v5399, 7
    %v5401 = vsub.s32 3, %v5400
    %v5402 = vrot.slane %v5352, %v5401
    %v5403 = vlaneseq
    %v5404 = vshrl.u32 %v5403, 7
    %v5405 = vsub.s32 4, %v5404
    %v5406 = vrot.slane %v5352, %v5405
    %v5407 = vlaneseq
    %v5408 = vshrl.u32 %v5407, 7
    %v5409 = vsub.s32 5, %v5408
    %v5410 = vrot.slane %v5352, %v5409
    %v5411 = vlaneseq
    %v5412 = vshrl.u32 %v5411, 7
    %v5413 = vsub.s32 6, %v5412
    %v5414 = vrot.slane %v5352, %v5413
    %v5415 = vlaneseq
    %v5416 = vshrl.u32 %v5415, 7
    %v5417 = vsub.s32 7, %v5416
    %v5418 = vrot.slane %v5352, %v5417
    %vm5435 = vcmp.le.f32.partialorder %v2750, %v5358
    %vm5436 = vcmp.le.f32.partialorder %v2751, %v5358
    %vm5437 = vcmp.le.f32.partialorder %v2752, %v5358
    %vm5438 = vcmp.le.f32.partialorder %v2753, %v5358
    %vm5439 = vcmp.le.f32.partialorder %v2754, %v5358
    %vm5440 = vcmp.le.f32.partialorder %v2755, %v5358
    %vm5441 = vcmp.le.f32.partialorder %v2756, %v5358
    %vm5442 = vcmp.le.f32.partialorder %v2757, %v5358
    %vm5443 = vcmp.le.f32.partialorder %v2758, %v5358
    %vm5444 = vcmp.le.f32.partialorder %v2759, %v5358
    %vm5445 = vcmp.le.f32.partialorder %v2760, %v5358
    %vm5446 = vcmp.le.f32.partialorder %v2761, %v5358
    %vm5447 = vcmp.le.f32.partialorder %v2762, %v5358
    %vm5448 = vcmp.le.f32.partialorder %v2763, %v5358
    %vm5449 = vcmp.le.f32.partialorder %v2764, %v5358
    %vm5450 = vcmp.le.f32.partialorder %v2765, %v5358
    %vm5451 = vcmp.le.f32.partialorder %v2766, %v5362
    %vm5452 = vcmp.le.f32.partialorder %v2767, %v5362
    %vm5453 = vcmp.le.f32.partialorder %v2768, %v5362
    %vm5454 = vcmp.le.f32.partialorder %v2769, %v5362
    %vm5455 = vcmp.le.f32.partialorder %v2770, %v5362
    %vm5456 = vcmp.le.f32.partialorder %v2771, %v5362
    %vm5457 = vcmp.le.f32.partialorder %v2772, %v5362
    %vm5458 = vcmp.le.f32.partialorder %v2773, %v5362
    %vm5459 = vcmp.le.f32.partialorder %v2774, %v5362
    %vm5460 = vcmp.le.f32.partialorder %v2775, %v5362
    %vm5461 = vcmp.le.f32.partialorder %v2776, %v5362
    %vm5462 = vcmp.le.f32.partialorder %v2777, %v5362
    %vm5463 = vcmp.le.f32.partialorder %v2778, %v5362
    %vm5464 = vcmp.le.f32.partialorder %v2779, %v5362
    %vm5465 = vcmp.le.f32.partialorder %v2780, %v5362
    %vm5466 = vcmp.le.f32.partialorder %v2781, %v5362
    %vm5467 = vcmp.le.f32.partialorder %v2782, %v5366
    %vm5468 = vcmp.le.f32.partialorder %v2783, %v5366
    %vm5469 = vcmp.le.f32.partialorder %v2784, %v5366
    %vm5470 = vcmp.le.f32.partialorder %v2785, %v5366
    %vm5471 = vcmp.le.f32.partialorder %v2786, %v5366
    %vm5472 = vcmp.le.f32.partialorder %v2787, %v5366
    %vm5473 = vcmp.le.f32.partialorder %v2788, %v5366
    %vm5474 = vcmp.le.f32.partialorder %v2789, %v5366
    %vm5475 = vcmp.le.f32.partialorder %v2790, %v5366
    %vm5476 = vcmp.le.f32.partialorder %v2791, %v5366
    %vm5477 = vcmp.le.f32.partialorder %v2792, %v5366
    %vm5478 = vcmp.le.f32.partialorder %v2793, %v5366
    %vm5479 = vcmp.le.f32.partialorder %v2794, %v5366
    %vm5480 = vcmp.le.f32.partialorder %v2795, %v5366
    %vm5481 = vcmp.le.f32.partialorder %v2796, %v5366
    %vm5482 = vcmp.le.f32.partialorder %v2797, %v5366
    %vm5483 = vcmp.le.f32.partialorder %v2798, %v5370
    %vm5484 = vcmp.le.f32.partialorder %v2799, %v5370
    %vm5485 = vcmp.le.f32.partialorder %v2800, %v5370
    %vm5486 = vcmp.le.f32.partialorder %v2801, %v5370
    %vm5487 = vcmp.le.f32.partialorder %v2802, %v5370
    %vm5488 = vcmp.le.f32.partialorder %v2803, %v5370
    %vm5489 = vcmp.le.f32.partialorder %v2804, %v5370
    %vm5490 = vcmp.le.f32.partialorder %v2805, %v5370
    %vm5491 = vcmp.le.f32.partialorder %v2806, %v5370
    %vm5492 = vcmp.le.f32.partialorder %v2807, %v5370
    %vm5493 = vcmp.le.f32.partialorder %v2808, %v5370
    %vm5494 = vcmp.le.f32.partialorder %v2809, %v5370
    %vm5495 = vcmp.le.f32.partialorder %v2810, %v5370
    %vm5496 = vcmp.le.f32.partialorder %v2811, %v5370
    %vm5497 = vcmp.le.f32.partialorder %v2812, %v5370
    %vm5498 = vcmp.le.f32.partialorder %v2813, %v5370
    %vm5499 = vcmp.le.f32.partialorder %v2814, %v5374
    %vm5500 = vcmp.le.f32.partialorder %v2815, %v5374
    %vm5501 = vcmp.le.f32.partialorder %v2816, %v5374
    %vm5502 = vcmp.le.f32.partialorder %v2817, %v5374
    %vm5503 = vcmp.le.f32.partialorder %v2818, %v5374
    %vm5504 = vcmp.le.f32.partialorder %v2819, %v5374
    %vm5505 = vcmp.le.f32.partialorder %v2820, %v5374
    %vm5506 = vcmp.le.f32.partialorder %v2821, %v5374
    %vm5507 = vcmp.le.f32.partialorder %v2822, %v5374
    %vm5508 = vcmp.le.f32.partialorder %v2823, %v5374
    %vm5509 = vcmp.le.f32.partialorder %v2824, %v5374
    %vm5510 = vcmp.le.f32.partialorder %v2825, %v5374
    %vm5511 = vcmp.le.f32.partialorder %v2826, %v5374
    %vm5512 = vcmp.le.f32.partialorder %v2827, %v5374
    %vm5513 = vcmp.le.f32.partialorder %v2828, %v5374
    %vm5514 = vcmp.le.f32.partialorder %v2829, %v5374
    %vm5515 = vcmp.le.f32.partialorder %v2830, %v5378
    %vm5516 = vcmp.le.f32.partialorder %v2831, %v5378
    %vm5517 = vcmp.le.f32.partialorder %v2832, %v5378
    %vm5518 = vcmp.le.f32.partialorder %v2833, %v5378
    %vm5519 = vcmp.le.f32.partialorder %v2834, %v5378
    %vm5520 = vcmp.le.f32.partialorder %v2835, %v5378
    %vm5521 = vcmp.le.f32.partialorder %v2836, %v5378
    %vm5522 = vcmp.le.f32.partialorder %v2837, %v5378
    %vm5523 = vcmp.le.f32.partialorder %v2838, %v5378
    %vm5524 = vcmp.le.f32.partialorder %v2839, %v5378
    %vm5525 = vcmp.le.f32.partialorder %v2840, %v5378
    %vm5526 = vcmp.le.f32.partialorder %v2841, %v5378
    %vm5527 = vcmp.le.f32.partialorder %v2842, %v5378
    %vm5528 = vcmp.le.f32.partialorder %v2843, %v5378
    %vm5529 = vcmp.le.f32.partialorder %v2844, %v5378
    %vm5530 = vcmp.le.f32.partialorder %v2845, %v5378
    %vm5531 = vcmp.le.f32.partialorder %v2846, %v5382
    %vm5532 = vcmp.le.f32.partialorder %v2847, %v5382
    %vm5533 = vcmp.le.f32.partialorder %v2848, %v5382
    %vm5534 = vcmp.le.f32.partialorder %v2849, %v5382
    %vm5535 = vcmp.le.f32.partialorder %v2850, %v5382
    %vm5536 = vcmp.le.f32.partialorder %v2851, %v5382
    %vm5537 = vcmp.le.f32.partialorder %v2852, %v5382
    %vm5538 = vcmp.le.f32.partialorder %v2853, %v5382
    %vm5539 = vcmp.le.f32.partialorder %v2854, %v5382
    %vm5540 = vcmp.le.f32.partialorder %v2855, %v5382
    %vm5541 = vcmp.le.f32.partialorder %v2856, %v5382
    %vm5542 = vcmp.le.f32.partialorder %v2857, %v5382
    %vm5543 = vcmp.le.f32.partialorder %v2858, %v5382
    %vm5544 = vcmp.le.f32.partialorder %v2859, %v5382
    %vm5545 = vcmp.le.f32.partialorder %v2860, %v5382
    %vm5546 = vcmp.le.f32.partialorder %v2861, %v5382
    %vm5547 = vcmp.le.f32.partialorder %v2862, %v5386
    %vm5548 = vcmp.le.f32.partialorder %v2863, %v5386
    %vm5549 = vcmp.le.f32.partialorder %v2864, %v5386
    %vm5550 = vcmp.le.f32.partialorder %v2865, %v5386
    %vm5551 = vcmp.le.f32.partialorder %v2866, %v5386
    %vm5552 = vcmp.le.f32.partialorder %v2867, %v5386
    %vm5553 = vcmp.le.f32.partialorder %v2868, %v5386
    %vm5554 = vcmp.le.f32.partialorder %v2869, %v5386
    %vm5555 = vcmp.le.f32.partialorder %v2870, %v5386
    %vm5556 = vcmp.le.f32.partialorder %v2871, %v5386
    %vm5557 = vcmp.le.f32.partialorder %v2872, %v5386
    %vm5558 = vcmp.le.f32.partialorder %v2873, %v5386
    %vm5559 = vcmp.le.f32.partialorder %v2874, %v5386
    %vm5560 = vcmp.le.f32.partialorder %v2875, %v5386
    %vm5561 = vcmp.le.f32.partialorder %v2876, %v5386
    %vm5562 = vcmp.le.f32.partialorder %v2877, %v5386
    %vm5563 = vcmp.le.f32.partialorder %v2878, %v5390
    %vm5564 = vcmp.le.f32.partialorder %v2879, %v5390
    %vm5565 = vcmp.le.f32.partialorder %v2880, %v5390
    %vm5566 = vcmp.le.f32.partialorder %v2881, %v5390
    %vm5567 = vcmp.le.f32.partialorder %v2882, %v5390
    %vm5568 = vcmp.le.f32.partialorder %v2883, %v5390
    %vm5569 = vcmp.le.f32.partialorder %v2884, %v5390
    %vm5570 = vcmp.le.f32.partialorder %v2885, %v5390
    %vm5571 = vcmp.le.f32.partialorder %v2886, %v5390
    %vm5572 = vcmp.le.f32.partialorder %v2887, %v5390
    %vm5573 = vcmp.le.f32.partialorder %v2888, %v5390
    %vm5574 = vcmp.le.f32.partialorder %v2889, %v5390
    %vm5575 = vcmp.le.f32.partialorder %v2890, %v5390
    %vm5576 = vcmp.le.f32.partialorder %v2891, %v5390
    %vm5577 = vcmp.le.f32.partialorder %v2892, %v5390
    %vm5578 = vcmp.le.f32.partialorder %v2893, %v5390
    %vm5579 = vcmp.le.f32.partialorder %v2894, %v5394
    %vm5580 = vcmp.le.f32.partialorder %v2895, %v5394
    %vm5581 = vcmp.le.f32.partialorder %v2896, %v5394
    %vm5582 = vcmp.le.f32.partialorder %v2897, %v5394
    %vm5583 = vcmp.le.f32.partialorder %v2898, %v5394
    %vm5584 = vcmp.le.f32.partialorder %v2899, %v5394
    %vm5585 = vcmp.le.f32.partialorder %v2900, %v5394
    %vm5586 = vcmp.le.f32.partialorder %v2901, %v5394
    %vm5587 = vcmp.le.f32.partialorder %v2902, %v5394
    %vm5588 = vcmp.le.f32.partialorder %v2903, %v5394
    %vm5589 = vcmp.le.f32.partialorder %v2904, %v5394
    %vm5590 = vcmp.le.f32.partialorder %v2905, %v5394
    %vm5591 = vcmp.le.f32.partialorder %v2906, %v5394
    %vm5592 = vcmp.le.f32.partialorder %v2907, %v5394
    %vm5593 = vcmp.le.f32.partialorder %v2908, %v5394
    %vm5594 = vcmp.le.f32.partialorder %v2909, %v5394
    %vm5595 = vcmp.le.f32.partialorder %v2910, %v5398
    %vm5596 = vcmp.le.f32.partialorder %v2911, %v5398
    %vm5597 = vcmp.le.f32.partialorder %v2912, %v5398
    %vm5598 = vcmp.le.f32.partialorder %v2913, %v5398
    %vm5599 = vcmp.le.f32.partialorder %v2914, %v5398
    %vm5600 = vcmp.le.f32.partialorder %v2915, %v5398
    %vm5601 = vcmp.le.f32.partialorder %v2916, %v5398
    %vm5602 = vcmp.le.f32.partialorder %v2917, %v5398
    %vm5603 = vcmp.le.f32.partialorder %v2918, %v5398
    %vm5604 = vcmp.le.f32.partialorder %v2919, %v5398
    %vm5605 = vcmp.le.f32.partialorder %v2920, %v5398
    %vm5606 = vcmp.le.f32.partialorder %v2921, %v5398
    %vm5607 = vcmp.le.f32.partialorder %v2922, %v5398
    %vm5608 = vcmp.le.f32.partialorder %v2923, %v5398
    %vm5609 = vcmp.le.f32.partialorder %v2924, %v5398
    %vm5610 = vcmp.le.f32.partialorder %v2925, %v5398
    %vm5611 = vcmp.le.f32.partialorder %v2926, %v5402
    %vm5612 = vcmp.le.f32.partialorder %v2927, %v5402
    %vm5613 = vcmp.le.f32.partialorder %v2928, %v5402
    %vm5614 = vcmp.le.f32.partialorder %v2929, %v5402
    %vm5615 = vcmp.le.f32.partialorder %v2930, %v5402
    %vm5616 = vcmp.le.f32.partialorder %v2931, %v5402
    %vm5617 = vcmp.le.f32.partialorder %v2932, %v5402
    %vm5618 = vcmp.le.f32.partialorder %v2933, %v5402
    %vm5619 = vcmp.le.f32.partialorder %v2934, %v5402
    %vm5620 = vcmp.le.f32.partialorder %v2935, %v5402
    %vm5621 = vcmp.le.f32.partialorder %v2936, %v5402
    %vm5622 = vcmp.le.f32.partialorder %v2937, %v5402
    %vm5623 = vcmp.le.f32.partialorder %v2938, %v5402
    %vm5624 = vcmp.le.f32.partialorder %v2939, %v5402
    %vm5625 = vcmp.le.f32.partialorder %v2940, %v5402
    %vm5626 = vcmp.le.f32.partialorder %v2941, %v5402
    %vm5627 = vcmp.le.f32.partialorder %v2942, %v5406
    %vm5628 = vcmp.le.f32.partialorder %v2943, %v5406
    %vm5629 = vcmp.le.f32.partialorder %v2944, %v5406
    %vm5630 = vcmp.le.f32.partialorder %v2945, %v5406
    %vm5631 = vcmp.le.f32.partialorder %v2946, %v5406
    %vm5632 = vcmp.le.f32.partialorder %v2947, %v5406
    %vm5633 = vcmp.le.f32.partialorder %v2948, %v5406
    %vm5634 = vcmp.le.f32.partialorder %v2949, %v5406
    %vm5635 = vcmp.le.f32.partialorder %v2950, %v5406
    %vm5636 = vcmp.le.f32.partialorder %v2951, %v5406
    %vm5637 = vcmp.le.f32.partialorder %v2952, %v5406
    %vm5638 = vcmp.le.f32.partialorder %v2953, %v5406
    %vm5639 = vcmp.le.f32.partialorder %v2954, %v5406
    %vm5640 = vcmp.le.f32.partialorder %v2955, %v5406
    %vm5641 = vcmp.le.f32.partialorder %v2956, %v5406
    %vm5642 = vcmp.le.f32.partialorder %v2957, %v5406
    %vm5643 = vcmp.le.f32.partialorder %v2958, %v5410
    %vm5644 = vcmp.le.f32.partialorder %v2959, %v5410
    %vm5645 = vcmp.le.f32.partialorder %v2960, %v5410
    %vm5646 = vcmp.le.f32.partialorder %v2961, %v5410
    %vm5647 = vcmp.le.f32.partialorder %v2962, %v5410
    %vm5648 = vcmp.le.f32.partialorder %v2963, %v5410
    %vm5649 = vcmp.le.f32.partialorder %v2964, %v5410
    %vm5650 = vcmp.le.f32.partialorder %v2965, %v5410
    %vm5651 = vcmp.le.f32.partialorder %v2966, %v5410
    %vm5652 = vcmp.le.f32.partialorder %v2967, %v5410
    %vm5653 = vcmp.le.f32.partialorder %v2968, %v5410
    %vm5654 = vcmp.le.f32.partialorder %v2969, %v5410
    %vm5655 = vcmp.le.f32.partialorder %v2970, %v5410
    %vm5656 = vcmp.le.f32.partialorder %v2971, %v5410
    %vm5657 = vcmp.le.f32.partialorder %v2972, %v5410
    %vm5658 = vcmp.le.f32.partialorder %v2973, %v5410
    %vm5659 = vcmp.le.f32.partialorder %v2974, %v5414
    %vm5660 = vcmp.le.f32.partialorder %v2975, %v5414
    %vm5661 = vcmp.le.f32.partialorder %v2976, %v5414
    %vm5662 = vcmp.le.f32.partialorder %v2977, %v5414
    %vm5663 = vcmp.le.f32.partialorder %v2978, %v5414
    %vm5664 = vcmp.le.f32.partialorder %v2979, %v5414
    %vm5665 = vcmp.le.f32.partialorder %v2980, %v5414
    %vm5666 = vcmp.le.f32.partialorder %v2981, %v5414
    %vm5667 = vcmp.le.f32.partialorder %v2982, %v5414
    %vm5668 = vcmp.le.f32.partialorder %v2983, %v5414
    %vm5669 = vcmp.le.f32.partialorder %v2984, %v5414
    %vm5670 = vcmp.le.f32.partialorder %v2985, %v5414
    %vm5671 = vcmp.le.f32.partialorder %v2986, %v5414
    %vm5672 = vcmp.le.f32.partialorder %v2987, %v5414
    %vm5673 = vcmp.le.f32.partialorder %v2988, %v5414
    %vm5674 = vcmp.le.f32.partialorder %v2989, %v5414
    %vm5675 = vcmp.le.f32.partialorder %v2990, %v5418
    %vm5676 = vcmp.le.f32.partialorder %v2991, %v5418
    %vm5677 = vcmp.le.f32.partialorder %v2992, %v5418
    %vm5678 = vcmp.le.f32.partialorder %v2993, %v5418
    %vm5679 = vcmp.le.f32.partialorder %v2994, %v5418
    %vm5680 = vcmp.le.f32.partialorder %v2995, %v5418
    %vm5681 = vcmp.le.f32.partialorder %v2996, %v5418
    %vm5682 = vcmp.le.f32.partialorder %v2997, %v5418
    %vm5683 = vcmp.le.f32.partialorder %v2998, %v5418
    %vm5684 = vcmp.le.f32.partialorder %v2999, %v5418
    %vm5685 = vcmp.le.f32.partialorder %v3000, %v5418
    %vm5686 = vcmp.le.f32.partialorder %v3001, %v5418
    %vm5687 = vcmp.le.f32.partialorder %v3002, %v5418
    %vm5688 = vcmp.le.f32.partialorder %v3003, %v5418
    %vm5689 = vcmp.le.f32.partialorder %v3004, %v5418
    %vm5690 = vcmp.le.f32.partialorder %v3005, %v5418
    %5692 = vbcast.lane.b32.xlu0 %v3007, 256
    %v5693 = vpop.permute.xlu0 %5692
    %s5695 = sor.u32 256, 8
    %5696 = vbcast.lane.b32.xlu0 %v3007, %s5695
    %v5697 = vpop.permute.xlu0 %5696
    %s5699 = sor.u32 256, 16
    %5700 = vbcast.lane.b32.xlu0 %v3007, %s5699
    %v5701 = vpop.permute.xlu0 %5700
    %s5703 = sor.u32 256, 24
    %5704 = vbcast.lane.b32.xlu0 %v3007, %s5703
    %v5705 = vpop.permute.xlu0 %5704
    %s5707 = sor.u32 256, 32
    %5708 = vbcast.lane.b32.xlu0 %v3007, %s5707
    %v5709 = vpop.permute.xlu0 %5708
    %s5711 = sor.u32 256, 40
    %5712 = vbcast.lane.b32.xlu0 %v3007, %s5711
    %v5713 = vpop.permute.xlu0 %5712
    %s5715 = sor.u32 256, 48
    %5716 = vbcast.lane.b32.xlu0 %v3007, %s5715
    %v5717 = vpop.permute.xlu0 %5716
    %s5719 = sor.u32 256, 56
    %5720 = vbcast.lane.b32.xlu0 %v3007, %s5719
    %v5721 = vpop.permute.xlu0 %5720
    %s5723 = sor.u32 256, 64
    %5724 = vbcast.lane.b32.xlu0 %v3007, %s5723
    %v5725 = vpop.permute.xlu0 %5724
    %s5727 = sor.u32 256, 72
    %5728 = vbcast.lane.b32.xlu0 %v3007, %s5727
    %v5729 = vpop.permute.xlu0 %5728
    %s5731 = sor.u32 256, 80
    %5732 = vbcast.lane.b32.xlu0 %v3007, %s5731
    %v5733 = vpop.permute.xlu0 %5732
    %s5735 = sor.u32 256, 88
    %5736 = vbcast.lane.b32.xlu0 %v3007, %s5735
    %v5737 = vpop.permute.xlu0 %5736
    %s5739 = sor.u32 256, 96
    %5740 = vbcast.lane.b32.xlu0 %v3007, %s5739
    %v5741 = vpop.permute.xlu0 %5740
    %s5743 = sor.u32 256, 104
    %5744 = vbcast.lane.b32.xlu0 %v3007, %s5743
    %v5745 = vpop.permute.xlu0 %5744
    %s5747 = sor.u32 256, 112
    %5748 = vbcast.lane.b32.xlu0 %v3007, %s5747
    %v5749 = vpop.permute.xlu0 %5748
    %s5751 = sor.u32 256, 120
    %5752 = vbcast.lane.b32.xlu0 %v3007, %s5751
    %v5753 = vpop.permute.xlu0 %5752
    %v5754 = vsel %vm5435, %v5693, 128
    %v5755 = vsel %vm5436, %v5697, 128
    %v5756 = vsel %vm5437, %v5701, 128
    %v5757 = vsel %vm5438, %v5705, 128
    %v5758 = vsel %vm5439, %v5709, 128
    %v5759 = vsel %vm5440, %v5713, 128
    %v5760 = vsel %vm5441, %v5717, 128
    %v5761 = vsel %vm5442, %v5721, 128
    %v5762 = vsel %vm5443, %v5725, 128
    %v5763 = vsel %vm5444, %v5729, 128
    %v5764 = vsel %vm5445, %v5733, 128
    %v5765 = vsel %vm5446, %v5737, 128
    %v5766 = vsel %vm5447, %v5741, 128
    %v5767 = vsel %vm5448, %v5745, 128
    %v5768 = vsel %vm5449, %v5749, 128
    %v5769 = vsel %vm5450, %v5753, 128
    %v5770 = vsel %vm5451, %v5693, 128
    %v5771 = vsel %vm5452, %v5697, 128
    %v5772 = vsel %vm5453, %v5701, 128
    %v5773 = vsel %vm5454, %v5705, 128
    %v5774 = vsel %vm5455, %v5709, 128
    %v5775 = vsel %vm5456, %v5713, 128
    %v5776 = vsel %vm5457, %v5717, 128
    %v5777 = vsel %vm5458, %v5721, 128
    %v5778 = vsel %vm5459, %v5725, 128
    %v5779 = vsel %vm5460, %v5729, 128
    %v5780 = vsel %vm5461, %v5733, 128
    %v5781 = vsel %vm5462, %v5737, 128
    %v5782 = vsel %vm5463, %v5741, 128
    %v5783 = vsel %vm5464, %v5745, 128
    %v5784 = vsel %vm5465, %v5749, 128
    %v5785 = vsel %vm5466, %v5753, 128
    %v5786 = vsel %vm5467, %v5693, 128
    %v5787 = vsel %vm5468, %v5697, 128
    %v5788 = vsel %vm5469, %v5701, 128
    %v5789 = vsel %vm5470, %v5705, 128
    %v5790 = vsel %vm5471, %v5709, 128
    %v5791 = vsel %vm5472, %v5713, 128
    %v5792 = vsel %vm5473, %v5717, 128
    %v5793 = vsel %vm5474, %v5721, 128
    %v5794 = vsel %vm5475, %v5725, 128
    %v5795 = vsel %vm5476, %v5729, 128
    %v5796 = vsel %vm5477, %v5733, 128
    %v5797 = vsel %vm5478, %v5737, 128
    %v5798 = vsel %vm5479, %v5741, 128
    %v5799 = vsel %vm5480, %v5745, 128
    %v5800 = vsel %vm5481, %v5749, 128
    %v5801 = vsel %vm5482, %v5753, 128
    %v5802 = vsel %vm5483, %v5693, 128
    %v5803 = vsel %vm5484, %v5697, 128
    %v5804 = vsel %vm5485, %v5701, 128
    %v5805 = vsel %vm5486, %v5705, 128
    %v5806 = vsel %vm5487, %v5709, 128
    %v5807 = vsel %vm5488, %v5713, 128
    %v5808 = vsel %vm5489, %v5717, 128
    %v5809 = vsel %vm5490, %v5721, 128
    %v5810 = vsel %vm5491, %v5725, 128
    %v5811 = vsel %vm5492, %v5729, 128
    %v5812 = vsel %vm5493, %v5733, 128
    %v5813 = vsel %vm5494, %v5737, 128
    %v5814 = vsel %vm5495, %v5741, 128
    %v5815 = vsel %vm5496, %v5745, 128
    %v5816 = vsel %vm5497, %v5749, 128
    %v5817 = vsel %vm5498, %v5753, 128
    %v5818 = vsel %vm5499, %v5693, 128
    %v5819 = vsel %vm5500, %v5697, 128
    %v5820 = vsel %vm5501, %v5701, 128
    %v5821 = vsel %vm5502, %v5705, 128
    %v5822 = vsel %vm5503, %v5709, 128
    %v5823 = vsel %vm5504, %v5713, 128
    %v5824 = vsel %vm5505, %v5717, 128
    %v5825 = vsel %vm5506, %v5721, 128
    %v5826 = vsel %vm5507, %v5725, 128
    %v5827 = vsel %vm5508, %v5729, 128
    %v5828 = vsel %vm5509, %v5733, 128
    %v5829 = vsel %vm5510, %v5737, 128
    %v5830 = vsel %vm5511, %v5741, 128
    %v5831 = vsel %vm5512, %v5745, 128
    %v5832 = vsel %vm5513, %v5749, 128
    %v5833 = vsel %vm5514, %v5753, 128
    %v5834 = vsel %vm5515, %v5693, 128
    %v5835 = vsel %vm5516, %v5697, 128
    %v5836 = vsel %vm5517, %v5701, 128
    %v5837 = vsel %vm5518, %v5705, 128
    %v5838 = vsel %vm5519, %v5709, 128
    %v5839 = vsel %vm5520, %v5713, 128
    %v5840 = vsel %vm5521, %v5717, 128
    %v5841 = vsel %vm5522, %v5721, 128
    %v5842 = vsel %vm5523, %v5725, 128
    %v5843 = vsel %vm5524, %v5729, 128
    %v5844 = vsel %vm5525, %v5733, 128
    %v5845 = vsel %vm5526, %v5737, 128
    %v5846 = vsel %vm5527, %v5741, 128
    %v5847 = vsel %vm5528, %v5745, 128
    %v5848 = vsel %vm5529, %v5749, 128
    %v5849 = vsel %vm5530, %v5753, 128
    %v5850 = vsel %vm5531, %v5693, 128
    %v5851 = vsel %vm5532, %v5697, 128
    %v5852 = vsel %vm5533, %v5701, 128
    %v5853 = vsel %vm5534, %v5705, 128
    %v5854 = vsel %vm5535, %v5709, 128
    %v5855 = vsel %vm5536, %v5713, 128
    %v5856 = vsel %vm5537, %v5717, 128
    %v5857 = vsel %vm5538, %v5721, 128
    %v5858 = vsel %vm5539, %v5725, 128
    %v5859 = vsel %vm5540, %v5729, 128
    %v5860 = vsel %vm5541, %v5733, 128
    %v5861 = vsel %vm5542, %v5737, 128
    %v5862 = vsel %vm5543, %v5741, 128
    %v5863 = vsel %vm5544, %v5745, 128
    %v5864 = vsel %vm5545, %v5749, 128
    %v5865 = vsel %vm5546, %v5753, 128
    %v5866 = vsel %vm5547, %v5693, 128
    %v5867 = vsel %vm5548, %v5697, 128
    %v5868 = vsel %vm5549, %v5701, 128
    %v5869 = vsel %vm5550, %v5705, 128
    %v5870 = vsel %vm5551, %v5709, 128
    %v5871 = vsel %vm5552, %v5713, 128
    %v5872 = vsel %vm5553, %v5717, 128
    %v5873 = vsel %vm5554, %v5721, 128
    %v5874 = vsel %vm5555, %v5725, 128
    %v5875 = vsel %vm5556, %v5729, 128
    %v5876 = vsel %vm5557, %v5733, 128
    %v5877 = vsel %vm5558, %v5737, 128
    %v5878 = vsel %vm5559, %v5741, 128
    %v5879 = vsel %vm5560, %v5745, 128
    %v5880 = vsel %vm5561, %v5749, 128
    %v5881 = vsel %vm5562, %v5753, 128
    %v5882 = vsel %vm5563, %v5693, 128
    %v5883 = vsel %vm5564, %v5697, 128
    %v5884 = vsel %vm5565, %v5701, 128
    %v5885 = vsel %vm5566, %v5705, 128
    %v5886 = vsel %vm5567, %v5709, 128
    %v5887 = vsel %vm5568, %v5713, 128
    %v5888 = vsel %vm5569, %v5717, 128
    %v5889 = vsel %vm5570, %v5721, 128
    %v5890 = vsel %vm5571, %v5725, 128
    %v5891 = vsel %vm5572, %v5729, 128
    %v5892 = vsel %vm5573, %v5733, 128
    %v5893 = vsel %vm5574, %v5737, 128
    %v5894 = vsel %vm5575, %v5741, 128
    %v5895 = vsel %vm5576, %v5745, 128
    %v5896 = vsel %vm5577, %v5749, 128
    %v5897 = vsel %vm5578, %v5753, 128
    %v5898 = vsel %vm5579, %v5693, 128
    %v5899 = vsel %vm5580, %v5697, 128
    %v5900 = vsel %vm5581, %v5701, 128
    %v5901 = vsel %vm5582, %v5705, 128
    %v5902 = vsel %vm5583, %v5709, 128
    %v5903 = vsel %vm5584, %v5713, 128
    %v5904 = vsel %vm5585, %v5717, 128
    %v5905 = vsel %vm5586, %v5721, 128
    %v5906 = vsel %vm5587, %v5725, 128
    %v5907 = vsel %vm5588, %v5729, 128
    %v5908 = vsel %vm5589, %v5733, 128
    %v5909 = vsel %vm5590, %v5737, 128
    %v5910 = vsel %vm5591, %v5741, 128
    %v5911 = vsel %vm5592, %v5745, 128
    %v5912 = vsel %vm5593, %v5749, 128
    %v5913 = vsel %vm5594, %v5753, 128
    %v5914 = vsel %vm5595, %v5693, 128
    %v5915 = vsel %vm5596, %v5697, 128
    %v5916 = vsel %vm5597, %v5701, 128
    %v5917 = vsel %vm5598, %v5705, 128
    %v5918 = vsel %vm5599, %v5709, 128
    %v5919 = vsel %vm5600, %v5713, 128
    %v5920 = vsel %vm5601, %v5717, 128
    %v5921 = vsel %vm5602, %v5721, 128
    %v5922 = vsel %vm5603, %v5725, 128
    %v5923 = vsel %vm5604, %v5729, 128
    %v5924 = vsel %vm5605, %v5733, 128
    %v5925 = vsel %vm5606, %v5737, 128
    %v5926 = vsel %vm5607, %v5741, 128
    %v5927 = vsel %vm5608, %v5745, 128
    %v5928 = vsel %vm5609, %v5749, 128
    %v5929 = vsel %vm5610, %v5753, 128
    %v5930 = vsel %vm5611, %v5693, 128
    %v5931 = vsel %vm5612, %v5697, 128
    %v5932 = vsel %vm5613, %v5701, 128
    %v5933 = vsel %vm5614, %v5705, 128
    %v5934 = vsel %vm5615, %v5709, 128
    %v5935 = vsel %vm5616, %v5713, 128
    %v5936 = vsel %vm5617, %v5717, 128
    %v5937 = vsel %vm5618, %v5721, 128
    %v5938 = vsel %vm5619, %v5725, 128
    %v5939 = vsel %vm5620, %v5729, 128
    %v5940 = vsel %vm5621, %v5733, 128
    %v5941 = vsel %vm5622, %v5737, 128
    %v5942 = vsel %vm5623, %v5741, 128
    %v5943 = vsel %vm5624, %v5745, 128
    %v5944 = vsel %vm5625, %v5749, 128
    %v5945 = vsel %vm5626, %v5753, 128
    %v5946 = vsel %vm5627, %v5693, 128
    %v5947 = vsel %vm5628, %v5697, 128
    %v5948 = vsel %vm5629, %v5701, 128
    %v5949 = vsel %vm5630, %v5705, 128
    %v5950 = vsel %vm5631, %v5709, 128
    %v5951 = vsel %vm5632, %v5713, 128
    %v5952 = vsel %vm5633, %v5717, 128
    %v5953 = vsel %vm5634, %v5721, 128
    %v5954 = vsel %vm5635, %v5725, 128
    %v5955 = vsel %vm5636, %v5729, 128
    %v5956 = vsel %vm5637, %v5733, 128
    %v5957 = vsel %vm5638, %v5737, 128
    %v5958 = vsel %vm5639, %v5741, 128
    %v5959 = vsel %vm5640, %v5745, 128
    %v5960 = vsel %vm5641, %v5749, 128
    %v5961 = vsel %vm5642, %v5753, 128
    %v5962 = vsel %vm5643, %v5693, 128
    %v5963 = vsel %vm5644, %v5697, 128
    %v5964 = vsel %vm5645, %v5701, 128
    %v5965 = vsel %vm5646, %v5705, 128
    %v5966 = vsel %vm5647, %v5709, 128
    %v5967 = vsel %vm5648, %v5713, 128
    %v5968 = vsel %vm5649, %v5717, 128
    %v5969 = vsel %vm5650, %v5721, 128
    %v5970 = vsel %vm5651, %v5725, 128
    %v5971 = vsel %vm5652, %v5729, 128
    %v5972 = vsel %vm5653, %v5733, 128
    %v5973 = vsel %vm5654, %v5737, 128
    %v5974 = vsel %vm5655, %v5741, 128
    %v5975 = vsel %vm5656, %v5745, 128
    %v5976 = vsel %vm5657, %v5749, 128
    %v5977 = vsel %vm5658, %v5753, 128
    %v5978 = vsel %vm5659, %v5693, 128
    %v5979 = vsel %vm5660, %v5697, 128
    %v5980 = vsel %vm5661, %v5701, 128
    %v5981 = vsel %vm5662, %v5705, 128
    %v5982 = vsel %vm5663, %v5709, 128
    %v5983 = vsel %vm5664, %v5713, 128
    %v5984 = vsel %vm5665, %v5717, 128
    %v5985 = vsel %vm5666, %v5721, 128
    %v5986 = vsel %vm5667, %v5725, 128
    %v5987 = vsel %vm5668, %v5729, 128
    %v5988 = vsel %vm5669, %v5733, 128
    %v5989 = vsel %vm5670, %v5737, 128
    %v5990 = vsel %vm5671, %v5741, 128
    %v5991 = vsel %vm5672, %v5745, 128
    %v5992 = vsel %vm5673, %v5749, 128
    %v5993 = vsel %vm5674, %v5753, 128
    %v5994 = vsel %vm5675, %v5693, 128
    %v5995 = vsel %vm5676, %v5697, 128
    %v5996 = vsel %vm5677, %v5701, 128
    %v5997 = vsel %vm5678, %v5705, 128
    %v5998 = vsel %vm5679, %v5709, 128
    %v5999 = vsel %vm5680, %v5713, 128
    %v6000 = vsel %vm5681, %v5717, 128
    %v6001 = vsel %vm5682, %v5721, 128
    %v6002 = vsel %vm5683, %v5725, 128
    %v6003 = vsel %vm5684, %v5729, 128
    %v6004 = vsel %vm5685, %v5733, 128
    %v6005 = vsel %vm5686, %v5737, 128
    %v6006 = vsel %vm5687, %v5741, 128
    %v6007 = vsel %vm5688, %v5745, 128
    %v6008 = vsel %vm5689, %v5749, 128
    %v6009 = vsel %vm5690, %v5753, 128
    %6010 = vset.pattern.permute.xlu0 0
    %6011 = vperm.xlu0 %6010, %v5754
    %v6012 = vpop.permute.xlu0 %6011
    %6013 = vset.pattern.permute.xlu0 0
    %6014 = vperm.xlu0 %6013, %v5755
    %v6015 = vpop.permute.xlu0 %6014
    %6016 = vset.pattern.permute.xlu0 0
    %6017 = vperm.xlu0 %6016, %v5756
    %v6018 = vpop.permute.xlu0 %6017
    %6019 = vset.pattern.permute.xlu0 0
    %6020 = vperm.xlu0 %6019, %v5757
    %v6021 = vpop.permute.xlu0 %6020
    %6022 = vset.pattern.permute.xlu0 0
    %6023 = vperm.xlu0 %6022, %v5758
    %v6024 = vpop.permute.xlu0 %6023
    %6025 = vset.pattern.permute.xlu0 0
    %6026 = vperm.xlu0 %6025, %v5759
    %v6027 = vpop.permute.xlu0 %6026
    %6028 = vset.pattern.permute.xlu0 0
    %6029 = vperm.xlu0 %6028, %v5760
    %v6030 = vpop.permute.xlu0 %6029
    %6031 = vset.pattern.permute.xlu0 0
    %6032 = vperm.xlu0 %6031, %v5761
    %v6033 = vpop.permute.xlu0 %6032
    %6034 = vset.pattern.permute.xlu0 0
    %6035 = vperm.xlu0 %6034, %v5762
    %v6036 = vpop.permute.xlu0 %6035
    %6037 = vset.pattern.permute.xlu0 0
    %6038 = vperm.xlu0 %6037, %v5763
    %v6039 = vpop.permute.xlu0 %6038
    %6040 = vset.pattern.permute.xlu0 0
    %6041 = vperm.xlu0 %6040, %v5764
    %v6042 = vpop.permute.xlu0 %6041
    %6043 = vset.pattern.permute.xlu0 0
    %6044 = vperm.xlu0 %6043, %v5765
    %v6045 = vpop.permute.xlu0 %6044
    %6046 = vset.pattern.permute.xlu0 0
    %6047 = vperm.xlu0 %6046, %v5766
    %v6048 = vpop.permute.xlu0 %6047
    %6049 = vset.pattern.permute.xlu0 0
    %6050 = vperm.xlu0 %6049, %v5767
    %v6051 = vpop.permute.xlu0 %6050
    %6052 = vset.pattern.permute.xlu0 0
    %6053 = vperm.xlu0 %6052, %v5768
    %v6054 = vpop.permute.xlu0 %6053
    %6055 = vset.pattern.permute.xlu0 0
    %6056 = vperm.xlu0 %6055, %v5769
    %v6057 = vpop.permute.xlu0 %6056
    %6058 = vset.pattern.permute.xlu0 0
    %6059 = vperm.xlu0 %6058, %v5770
    %v6060 = vpop.permute.xlu0 %6059
    %6061 = vset.pattern.permute.xlu0 0
    %6062 = vperm.xlu0 %6061, %v5771
    %v6063 = vpop.permute.xlu0 %6062
    %6064 = vset.pattern.permute.xlu0 0
    %6065 = vperm.xlu0 %6064, %v5772
    %v6066 = vpop.permute.xlu0 %6065
    %6067 = vset.pattern.permute.xlu0 0
    %6068 = vperm.xlu0 %6067, %v5773
    %v6069 = vpop.permute.xlu0 %6068
    %6070 = vset.pattern.permute.xlu0 0
    %6071 = vperm.xlu0 %6070, %v5774
    %v6072 = vpop.permute.xlu0 %6071
    %6073 = vset.pattern.permute.xlu0 0
    %6074 = vperm.xlu0 %6073, %v5775
    %v6075 = vpop.permute.xlu0 %6074
    %6076 = vset.pattern.permute.xlu0 0
    %6077 = vperm.xlu0 %6076, %v5776
    %v6078 = vpop.permute.xlu0 %6077
    %6079 = vset.pattern.permute.xlu0 0
    %6080 = vperm.xlu0 %6079, %v5777
    %v6081 = vpop.permute.xlu0 %6080
    %6082 = vset.pattern.permute.xlu0 0
    %6083 = vperm.xlu0 %6082, %v5778
    %v6084 = vpop.permute.xlu0 %6083
    %6085 = vset.pattern.permute.xlu0 0
    %6086 = vperm.xlu0 %6085, %v5779
    %v6087 = vpop.permute.xlu0 %6086
    %6088 = vset.pattern.permute.xlu0 0
    %6089 = vperm.xlu0 %6088, %v5780
    %v6090 = vpop.permute.xlu0 %6089
    %6091 = vset.pattern.permute.xlu0 0
    %6092 = vperm.xlu0 %6091, %v5781
    %v6093 = vpop.permute.xlu0 %6092
    %6094 = vset.pattern.permute.xlu0 0
    %6095 = vperm.xlu0 %6094, %v5782
    %v6096 = vpop.permute.xlu0 %6095
    %6097 = vset.pattern.permute.xlu0 0
    %6098 = vperm.xlu0 %6097, %v5783
    %v6099 = vpop.permute.xlu0 %6098
    %6100 = vset.pattern.permute.xlu0 0
    %6101 = vperm.xlu0 %6100, %v5784
    %v6102 = vpop.permute.xlu0 %6101
    %6103 = vset.pattern.permute.xlu0 0
    %6104 = vperm.xlu0 %6103, %v5785
    %v6105 = vpop.permute.xlu0 %6104
    %6106 = vset.pattern.permute.xlu0 0
    %6107 = vperm.xlu0 %6106, %v5786
    %v6108 = vpop.permute.xlu0 %6107
    %6109 = vset.pattern.permute.xlu0 0
    %6110 = vperm.xlu0 %6109, %v5787
    %v6111 = vpop.permute.xlu0 %6110
    %6112 = vset.pattern.permute.xlu0 0
    %6113 = vperm.xlu0 %6112, %v5788
    %v6114 = vpop.permute.xlu0 %6113
    %6115 = vset.pattern.permute.xlu0 0
    %6116 = vperm.xlu0 %6115, %v5789
    %v6117 = vpop.permute.xlu0 %6116
    %6118 = vset.pattern.permute.xlu0 0
    %6119 = vperm.xlu0 %6118, %v5790
    %v6120 = vpop.permute.xlu0 %6119
    %6121 = vset.pattern.permute.xlu0 0
    %6122 = vperm.xlu0 %6121, %v5791
    %v6123 = vpop.permute.xlu0 %6122
    %6124 = vset.pattern.permute.xlu0 0
    %6125 = vperm.xlu0 %6124, %v5792
    %v6126 = vpop.permute.xlu0 %6125
    %6127 = vset.pattern.permute.xlu0 0
    %6128 = vperm.xlu0 %6127, %v5793
    %v6129 = vpop.permute.xlu0 %6128
    %6130 = vset.pattern.permute.xlu0 0
    %6131 = vperm.xlu0 %6130, %v5794
    %v6132 = vpop.permute.xlu0 %6131
    %6133 = vset.pattern.permute.xlu0 0
    %6134 = vperm.xlu0 %6133, %v5795
    %v6135 = vpop.permute.xlu0 %6134
    %6136 = vset.pattern.permute.xlu0 0
    %6137 = vperm.xlu0 %6136, %v5796
    %v6138 = vpop.permute.xlu0 %6137
    %6139 = vset.pattern.permute.xlu0 0
    %6140 = vperm.xlu0 %6139, %v5797
    %v6141 = vpop.permute.xlu0 %6140
    %6142 = vset.pattern.permute.xlu0 0
    %6143 = vperm.xlu0 %6142, %v5798
    %v6144 = vpop.permute.xlu0 %6143
    %6145 = vset.pattern.permute.xlu0 0
    %6146 = vperm.xlu0 %6145, %v5799
    %v6147 = vpop.permute.xlu0 %6146
    %6148 = vset.pattern.permute.xlu0 0
    %6149 = vperm.xlu0 %6148, %v5800
    %v6150 = vpop.permute.xlu0 %6149
    %6151 = vset.pattern.permute.xlu0 0
    %6152 = vperm.xlu0 %6151, %v5801
    %v6153 = vpop.permute.xlu0 %6152
    %6154 = vset.pattern.permute.xlu0 0
    %6155 = vperm.xlu0 %6154, %v5802
    %v6156 = vpop.permute.xlu0 %6155
    %6157 = vset.pattern.permute.xlu0 0
    %6158 = vperm.xlu0 %6157, %v5803
    %v6159 = vpop.permute.xlu0 %6158
    %6160 = vset.pattern.permute.xlu0 0
    %6161 = vperm.xlu0 %6160, %v5804
    %v6162 = vpop.permute.xlu0 %6161
    %6163 = vset.pattern.permute.xlu0 0
    %6164 = vperm.xlu0 %6163, %v5805
    %v6165 = vpop.permute.xlu0 %6164
    %6166 = vset.pattern.permute.xlu0 0
    %6167 = vperm.xlu0 %6166, %v5806
    %v6168 = vpop.permute.xlu0 %6167
    %6169 = vset.pattern.permute.xlu0 0
    %6170 = vperm.xlu0 %6169, %v5807
    %v6171 = vpop.permute.xlu0 %6170
    %6172 = vset.pattern.permute.xlu0 0
    %6173 = vperm.xlu0 %6172, %v5808
    %v6174 = vpop.permute.xlu0 %6173
    %6175 = vset.pattern.permute.xlu0 0
    %6176 = vperm.xlu0 %6175, %v5809
    %v6177 = vpop.permute.xlu0 %6176
    %6178 = vset.pattern.permute.xlu0 0
    %6179 = vperm.xlu0 %6178, %v5810
    %v6180 = vpop.permute.xlu0 %6179
    %6181 = vset.pattern.permute.xlu0 0
    %6182 = vperm.xlu0 %6181, %v5811
    %v6183 = vpop.permute.xlu0 %6182
    %6184 = vset.pattern.permute.xlu0 0
    %6185 = vperm.xlu0 %6184, %v5812
    %v6186 = vpop.permute.xlu0 %6185
    %6187 = vset.pattern.permute.xlu0 0
    %6188 = vperm.xlu0 %6187, %v5813
    %v6189 = vpop.permute.xlu0 %6188
    %6190 = vset.pattern.permute.xlu0 0
    %6191 = vperm.xlu0 %6190, %v5814
    %v6192 = vpop.permute.xlu0 %6191
    %6193 = vset.pattern.permute.xlu0 0
    %6194 = vperm.xlu0 %6193, %v5815
    %v6195 = vpop.permute.xlu0 %6194
    %6196 = vset.pattern.permute.xlu0 0
    %6197 = vperm.xlu0 %6196, %v5816
    %v6198 = vpop.permute.xlu0 %6197
    %6199 = vset.pattern.permute.xlu0 0
    %6200 = vperm.xlu0 %6199, %v5817
    %v6201 = vpop.permute.xlu0 %6200
    %6202 = vset.pattern.permute.xlu0 0
    %6203 = vperm.xlu0 %6202, %v5818
    %v6204 = vpop.permute.xlu0 %6203
    %6205 = vset.pattern.permute.xlu0 0
    %6206 = vperm.xlu0 %6205, %v5819
    %v6207 = vpop.permute.xlu0 %6206
    %6208 = vset.pattern.permute.xlu0 0
    %6209 = vperm.xlu0 %6208, %v5820
    %v6210 = vpop.permute.xlu0 %6209
    %6211 = vset.pattern.permute.xlu0 0
    %6212 = vperm.xlu0 %6211, %v5821
    %v6213 = vpop.permute.xlu0 %6212
    %6214 = vset.pattern.permute.xlu0 0
    %6215 = vperm.xlu0 %6214, %v5822
    %v6216 = vpop.permute.xlu0 %6215
    %6217 = vset.pattern.permute.xlu0 0
    %6218 = vperm.xlu0 %6217, %v5823
    %v6219 = vpop.permute.xlu0 %6218
    %6220 = vset.pattern.permute.xlu0 0
    %6221 = vperm.xlu0 %6220, %v5824
    %v6222 = vpop.permute.xlu0 %6221
    %6223 = vset.pattern.permute.xlu0 0
    %6224 = vperm.xlu0 %6223, %v5825
    %v6225 = vpop.permute.xlu0 %6224
    %6226 = vset.pattern.permute.xlu0 0
    %6227 = vperm.xlu0 %6226, %v5826
    %v6228 = vpop.permute.xlu0 %6227
    %6229 = vset.pattern.permute.xlu0 0
    %6230 = vperm.xlu0 %6229, %v5827
    %v6231 = vpop.permute.xlu0 %6230
    %6232 = vset.pattern.permute.xlu0 0
    %6233 = vperm.xlu0 %6232, %v5828
    %v6234 = vpop.permute.xlu0 %6233
    %6235 = vset.pattern.permute.xlu0 0
    %6236 = vperm.xlu0 %6235, %v5829
    %v6237 = vpop.permute.xlu0 %6236
    %6238 = vset.pattern.permute.xlu0 0
    %6239 = vperm.xlu0 %6238, %v5830
    %v6240 = vpop.permute.xlu0 %6239
    %6241 = vset.pattern.permute.xlu0 0
    %6242 = vperm.xlu0 %6241, %v5831
    %v6243 = vpop.permute.xlu0 %6242
    %6244 = vset.pattern.permute.xlu0 0
    %6245 = vperm.xlu0 %6244, %v5832
    %v6246 = vpop.permute.xlu0 %6245
    %6247 = vset.pattern.permute.xlu0 0
    %6248 = vperm.xlu0 %6247, %v5833
    %v6249 = vpop.permute.xlu0 %6248
    %6250 = vset.pattern.permute.xlu0 0
    %6251 = vperm.xlu0 %6250, %v5834
    %v6252 = vpop.permute.xlu0 %6251
    %6253 = vset.pattern.permute.xlu0 0
    %6254 = vperm.xlu0 %6253, %v5835
    %v6255 = vpop.permute.xlu0 %6254
    %6256 = vset.pattern.permute.xlu0 0
    %6257 = vperm.xlu0 %6256, %v5836
    %v6258 = vpop.permute.xlu0 %6257
    %6259 = vset.pattern.permute.xlu0 0
    %6260 = vperm.xlu0 %6259, %v5837
    %v6261 = vpop.permute.xlu0 %6260
    %6262 = vset.pattern.permute.xlu0 0
    %6263 = vperm.xlu0 %6262, %v5838
    %v6264 = vpop.permute.xlu0 %6263
    %6265 = vset.pattern.permute.xlu0 0
    %6266 = vperm.xlu0 %6265, %v5839
    %v6267 = vpop.permute.xlu0 %6266
    %6268 = vset.pattern.permute.xlu0 0
    %6269 = vperm.xlu0 %6268, %v5840
    %v6270 = vpop.permute.xlu0 %6269
    %6271 = vset.pattern.permute.xlu0 0
    %6272 = vperm.xlu0 %6271, %v5841
    %v6273 = vpop.permute.xlu0 %6272
    %6274 = vset.pattern.permute.xlu0 0
    %6275 = vperm.xlu0 %6274, %v5842
    %v6276 = vpop.permute.xlu0 %6275
    %6277 = vset.pattern.permute.xlu0 0
    %6278 = vperm.xlu0 %6277, %v5843
    %v6279 = vpop.permute.xlu0 %6278
    %6280 = vset.pattern.permute.xlu0 0
    %6281 = vperm.xlu0 %6280, %v5844
    %v6282 = vpop.permute.xlu0 %6281
    %6283 = vset.pattern.permute.xlu0 0
    %6284 = vperm.xlu0 %6283, %v5845
    %v6285 = vpop.permute.xlu0 %6284
    %6286 = vset.pattern.permute.xlu0 0
    %6287 = vperm.xlu0 %6286, %v5846
    %v6288 = vpop.permute.xlu0 %6287
    %6289 = vset.pattern.permute.xlu0 0
    %6290 = vperm.xlu0 %6289, %v5847
    %v6291 = vpop.permute.xlu0 %6290
    %6292 = vset.pattern.permute.xlu0 0
    %6293 = vperm.xlu0 %6292, %v5848
    %v6294 = vpop.permute.xlu0 %6293
    %6295 = vset.pattern.permute.xlu0 0
    %6296 = vperm.xlu0 %6295, %v5849
    %v6297 = vpop.permute.xlu0 %6296
    %6298 = vset.pattern.permute.xlu0 0
    %6299 = vperm.xlu0 %6298, %v5850
    %v6300 = vpop.permute.xlu0 %6299
    %6301 = vset.pattern.permute.xlu0 0
    %6302 = vperm.xlu0 %6301, %v5851
    %v6303 = vpop.permute.xlu0 %6302
    %6304 = vset.pattern.permute.xlu0 0
    %6305 = vperm.xlu0 %6304, %v5852
    %v6306 = vpop.permute.xlu0 %6305
    %6307 = vset.pattern.permute.xlu0 0
    %6308 = vperm.xlu0 %6307, %v5853
    %v6309 = vpop.permute.xlu0 %6308
    %6310 = vset.pattern.permute.xlu0 0
    %6311 = vperm.xlu0 %6310, %v5854
    %v6312 = vpop.permute.xlu0 %6311
    %6313 = vset.pattern.permute.xlu0 0
    %6314 = vperm.xlu0 %6313, %v5855
    %v6315 = vpop.permute.xlu0 %6314
    %6316 = vset.pattern.permute.xlu0 0
    %6317 = vperm.xlu0 %6316, %v5856
    %v6318 = vpop.permute.xlu0 %6317
    %6319 = vset.pattern.permute.xlu0 0
    %6320 = vperm.xlu0 %6319, %v5857
    %v6321 = vpop.permute.xlu0 %6320
    %6322 = vset.pattern.permute.xlu0 0
    %6323 = vperm.xlu0 %6322, %v5858
    %v6324 = vpop.permute.xlu0 %6323
    %6325 = vset.pattern.permute.xlu0 0
    %6326 = vperm.xlu0 %6325, %v5859
    %v6327 = vpop.permute.xlu0 %6326
    %6328 = vset.pattern.permute.xlu0 0
    %6329 = vperm.xlu0 %6328, %v5860
    %v6330 = vpop.permute.xlu0 %6329
    %6331 = vset.pattern.permute.xlu0 0
    %6332 = vperm.xlu0 %6331, %v5861
    %v6333 = vpop.permute.xlu0 %6332
    %6334 = vset.pattern.permute.xlu0 0
    %6335 = vperm.xlu0 %6334, %v5862
    %v6336 = vpop.permute.xlu0 %6335
    %6337 = vset.pattern.permute.xlu0 0
    %6338 = vperm.xlu0 %6337, %v5863
    %v6339 = vpop.permute.xlu0 %6338
    %6340 = vset.pattern.permute.xlu0 0
    %6341 = vperm.xlu0 %6340, %v5864
    %v6342 = vpop.permute.xlu0 %6341
    %6343 = vset.pattern.permute.xlu0 0
    %6344 = vperm.xlu0 %6343, %v5865
    %v6345 = vpop.permute.xlu0 %6344
    %6346 = vset.pattern.permute.xlu0 0
    %6347 = vperm.xlu0 %6346, %v5866
    %v6348 = vpop.permute.xlu0 %6347
    %6349 = vset.pattern.permute.xlu0 0
    %6350 = vperm.xlu0 %6349, %v5867
    %v6351 = vpop.permute.xlu0 %6350
    %6352 = vset.pattern.permute.xlu0 0
    %6353 = vperm.xlu0 %6352, %v5868
    %v6354 = vpop.permute.xlu0 %6353
    %6355 = vset.pattern.permute.xlu0 0
    %6356 = vperm.xlu0 %6355, %v5869
    %v6357 = vpop.permute.xlu0 %6356
    %6358 = vset.pattern.permute.xlu0 0
    %6359 = vperm.xlu0 %6358, %v5870
    %v6360 = vpop.permute.xlu0 %6359
    %6361 = vset.pattern.permute.xlu0 0
    %6362 = vperm.xlu0 %6361, %v5871
    %v6363 = vpop.permute.xlu0 %6362
    %6364 = vset.pattern.permute.xlu0 0
    %6365 = vperm.xlu0 %6364, %v5872
    %v6366 = vpop.permute.xlu0 %6365
    %6367 = vset.pattern.permute.xlu0 0
    %6368 = vperm.xlu0 %6367, %v5873
    %v6369 = vpop.permute.xlu0 %6368
    %6370 = vset.pattern.permute.xlu0 0
    %6371 = vperm.xlu0 %6370, %v5874
    %v6372 = vpop.permute.xlu0 %6371
    %6373 = vset.pattern.permute.xlu0 0
    %6374 = vperm.xlu0 %6373, %v5875
    %v6375 = vpop.permute.xlu0 %6374
    %6376 = vset.pattern.permute.xlu0 0
    %6377 = vperm.xlu0 %6376, %v5876
    %v6378 = vpop.permute.xlu0 %6377
    %6379 = vset.pattern.permute.xlu0 0
    %6380 = vperm.xlu0 %6379, %v5877
    %v6381 = vpop.permute.xlu0 %6380
    %6382 = vset.pattern.permute.xlu0 0
    %6383 = vperm.xlu0 %6382, %v5878
    %v6384 = vpop.permute.xlu0 %6383
    %6385 = vset.pattern.permute.xlu0 0
    %6386 = vperm.xlu0 %6385, %v5879
    %v6387 = vpop.permute.xlu0 %6386
    %6388 = vset.pattern.permute.xlu0 0
    %6389 = vperm.xlu0 %6388, %v5880
    %v6390 = vpop.permute.xlu0 %6389
    %6391 = vset.pattern.permute.xlu0 0
    %6392 = vperm.xlu0 %6391, %v5881
    %v6393 = vpop.permute.xlu0 %6392
    %6394 = vset.pattern.permute.xlu0 0
    %6395 = vperm.xlu0 %6394, %v5882
    %v6396 = vpop.permute.xlu0 %6395
    %6397 = vset.pattern.permute.xlu0 0
    %6398 = vperm.xlu0 %6397, %v5883
    %v6399 = vpop.permute.xlu0 %6398
    %6400 = vset.pattern.permute.xlu0 0
    %6401 = vperm.xlu0 %6400, %v5884
    %v6402 = vpop.permute.xlu0 %6401
    %6403 = vset.pattern.permute.xlu0 0
    %6404 = vperm.xlu0 %6403, %v5885
    %v6405 = vpop.permute.xlu0 %6404
    %6406 = vset.pattern.permute.xlu0 0
    %6407 = vperm.xlu0 %6406, %v5886
    %v6408 = vpop.permute.xlu0 %6407
    %6409 = vset.pattern.permute.xlu0 0
    %6410 = vperm.xlu0 %6409, %v5887
    %v6411 = vpop.permute.xlu0 %6410
    %6412 = vset.pattern.permute.xlu0 0
    %6413 = vperm.xlu0 %6412, %v5888
    %v6414 = vpop.permute.xlu0 %6413
    %6415 = vset.pattern.permute.xlu0 0
    %6416 = vperm.xlu0 %6415, %v5889
    %v6417 = vpop.permute.xlu0 %6416
    %6418 = vset.pattern.permute.xlu0 0
    %6419 = vperm.xlu0 %6418, %v5890
    %v6420 = vpop.permute.xlu0 %6419
    %6421 = vset.pattern.permute.xlu0 0
    %6422 = vperm.xlu0 %6421, %v5891
    %v6423 = vpop.permute.xlu0 %6422
    %6424 = vset.pattern.permute.xlu0 0
    %6425 = vperm.xlu0 %6424, %v5892
    %v6426 = vpop.permute.xlu0 %6425
    %6427 = vset.pattern.permute.xlu0 0
    %6428 = vperm.xlu0 %6427, %v5893
    %v6429 = vpop.permute.xlu0 %6428
    %6430 = vset.pattern.permute.xlu0 0
    %6431 = vperm.xlu0 %6430, %v5894
    %v6432 = vpop.permute.xlu0 %6431
    %6433 = vset.pattern.permute.xlu0 0
    %6434 = vperm.xlu0 %6433, %v5895
    %v6435 = vpop.permute.xlu0 %6434
    %6436 = vset.pattern.permute.xlu0 0
    %6437 = vperm.xlu0 %6436, %v5896
    %v6438 = vpop.permute.xlu0 %6437
    %6439 = vset.pattern.permute.xlu0 0
    %6440 = vperm.xlu0 %6439, %v5897
    %v6441 = vpop.permute.xlu0 %6440
    %6442 = vset.pattern.permute.xlu0 0
    %6443 = vperm.xlu0 %6442, %v5898
    %v6444 = vpop.permute.xlu0 %6443
    %6445 = vset.pattern.permute.xlu0 0
    %6446 = vperm.xlu0 %6445, %v5899
    %v6447 = vpop.permute.xlu0 %6446
    %6448 = vset.pattern.permute.xlu0 0
    %6449 = vperm.xlu0 %6448, %v5900
    %v6450 = vpop.permute.xlu0 %6449
    %6451 = vset.pattern.permute.xlu0 0
    %6452 = vperm.xlu0 %6451, %v5901
    %v6453 = vpop.permute.xlu0 %6452
    %6454 = vset.pattern.permute.xlu0 0
    %6455 = vperm.xlu0 %6454, %v5902
    %v6456 = vpop.permute.xlu0 %6455
    %6457 = vset.pattern.permute.xlu0 0
    %6458 = vperm.xlu0 %6457, %v5903
    %v6459 = vpop.permute.xlu0 %6458
    %6460 = vset.pattern.permute.xlu0 0
    %6461 = vperm.xlu0 %6460, %v5904
    %v6462 = vpop.permute.xlu0 %6461
    %6463 = vset.pattern.permute.xlu0 0
    %6464 = vperm.xlu0 %6463, %v5905
    %v6465 = vpop.permute.xlu0 %6464
    %6466 = vset.pattern.permute.xlu0 0
    %6467 = vperm.xlu0 %6466, %v5906
    %v6468 = vpop.permute.xlu0 %6467
    %6469 = vset.pattern.permute.xlu0 0
    %6470 = vperm.xlu0 %6469, %v5907
    %v6471 = vpop.permute.xlu0 %6470
    %6472 = vset.pattern.permute.xlu0 0
    %6473 = vperm.xlu0 %6472, %v5908
    %v6474 = vpop.permute.xlu0 %6473
    %6475 = vset.pattern.permute.xlu0 0
    %6476 = vperm.xlu0 %6475, %v5909
    %v6477 = vpop.permute.xlu0 %6476
    %6478 = vset.pattern.permute.xlu0 0
    %6479 = vperm.xlu0 %6478, %v5910
    %v6480 = vpop.permute.xlu0 %6479
    %6481 = vset.pattern.permute.xlu0 0
    %6482 = vperm.xlu0 %6481, %v5911
    %v6483 = vpop.permute.xlu0 %6482
    %6484 = vset.pattern.permute.xlu0 0
    %6485 = vperm.xlu0 %6484, %v5912
    %v6486 = vpop.permute.xlu0 %6485
    %6487 = vset.pattern.permute.xlu0 0
    %6488 = vperm.xlu0 %6487, %v5913
    %v6489 = vpop.permute.xlu0 %6488
    %6490 = vset.pattern.permute.xlu0 0
    %6491 = vperm.xlu0 %6490, %v5914
    %v6492 = vpop.permute.xlu0 %6491
    %6493 = vset.pattern.permute.xlu0 0
    %6494 = vperm.xlu0 %6493, %v5915
    %v6495 = vpop.permute.xlu0 %6494
    %6496 = vset.pattern.permute.xlu0 0
    %6497 = vperm.xlu0 %6496, %v5916
    %v6498 = vpop.permute.xlu0 %6497
    %6499 = vset.pattern.permute.xlu0 0
    %6500 = vperm.xlu0 %6499, %v5917
    %v6501 = vpop.permute.xlu0 %6500
    %6502 = vset.pattern.permute.xlu0 0
    %6503 = vperm.xlu0 %6502, %v5918
    %v6504 = vpop.permute.xlu0 %6503
    %6505 = vset.pattern.permute.xlu0 0
    %6506 = vperm.xlu0 %6505, %v5919
    %v6507 = vpop.permute.xlu0 %6506
    %6508 = vset.pattern.permute.xlu0 0
    %6509 = vperm.xlu0 %6508, %v5920
    %v6510 = vpop.permute.xlu0 %6509
    %6511 = vset.pattern.permute.xlu0 0
    %6512 = vperm.xlu0 %6511, %v5921
    %v6513 = vpop.permute.xlu0 %6512
    %6514 = vset.pattern.permute.xlu0 0
    %6515 = vperm.xlu0 %6514, %v5922
    %v6516 = vpop.permute.xlu0 %6515
    %6517 = vset.pattern.permute.xlu0 0
    %6518 = vperm.xlu0 %6517, %v5923
    %v6519 = vpop.permute.xlu0 %6518
    %6520 = vset.pattern.permute.xlu0 0
    %6521 = vperm.xlu0 %6520, %v5924
    %v6522 = vpop.permute.xlu0 %6521
    %6523 = vset.pattern.permute.xlu0 0
    %6524 = vperm.xlu0 %6523, %v5925
    %v6525 = vpop.permute.xlu0 %6524
    %6526 = vset.pattern.permute.xlu0 0
    %6527 = vperm.xlu0 %6526, %v5926
    %v6528 = vpop.permute.xlu0 %6527
    %6529 = vset.pattern.permute.xlu0 0
    %6530 = vperm.xlu0 %6529, %v5927
    %v6531 = vpop.permute.xlu0 %6530
    %6532 = vset.pattern.permute.xlu0 0
    %6533 = vperm.xlu0 %6532, %v5928
    %v6534 = vpop.permute.xlu0 %6533
    %6535 = vset.pattern.permute.xlu0 0
    %6536 = vperm.xlu0 %6535, %v5929
    %v6537 = vpop.permute.xlu0 %6536
    %6538 = vset.pattern.permute.xlu0 0
    %6539 = vperm.xlu0 %6538, %v5930
    %v6540 = vpop.permute.xlu0 %6539
    %6541 = vset.pattern.permute.xlu0 0
    %6542 = vperm.xlu0 %6541, %v5931
    %v6543 = vpop.permute.xlu0 %6542
    %6544 = vset.pattern.permute.xlu0 0
    %6545 = vperm.xlu0 %6544, %v5932
    %v6546 = vpop.permute.xlu0 %6545
    %6547 = vset.pattern.permute.xlu0 0
    %6548 = vperm.xlu0 %6547, %v5933
    %v6549 = vpop.permute.xlu0 %6548
    %6550 = vset.pattern.permute.xlu0 0
    %6551 = vperm.xlu0 %6550, %v5934
    %v6552 = vpop.permute.xlu0 %6551
    %6553 = vset.pattern.permute.xlu0 0
    %6554 = vperm.xlu0 %6553, %v5935
    %v6555 = vpop.permute.xlu0 %6554
    %6556 = vset.pattern.permute.xlu0 0
    %6557 = vperm.xlu0 %6556, %v5936
    %v6558 = vpop.permute.xlu0 %6557
    %6559 = vset.pattern.permute.xlu0 0
    %6560 = vperm.xlu0 %6559, %v5937
    %v6561 = vpop.permute.xlu0 %6560
    %6562 = vset.pattern.permute.xlu0 0
    %6563 = vperm.xlu0 %6562, %v5938
    %v6564 = vpop.permute.xlu0 %6563
    %6565 = vset.pattern.permute.xlu0 0
    %6566 = vperm.xlu0 %6565, %v5939
    %v6567 = vpop.permute.xlu0 %6566
    %6568 = vset.pattern.permute.xlu0 0
    %6569 = vperm.xlu0 %6568, %v5940
    %v6570 = vpop.permute.xlu0 %6569
    %6571 = vset.pattern.permute.xlu0 0
    %6572 = vperm.xlu0 %6571, %v5941
    %v6573 = vpop.permute.xlu0 %6572
    %6574 = vset.pattern.permute.xlu0 0
    %6575 = vperm.xlu0 %6574, %v5942
    %v6576 = vpop.permute.xlu0 %6575
    %6577 = vset.pattern.permute.xlu0 0
    %6578 = vperm.xlu0 %6577, %v5943
    %v6579 = vpop.permute.xlu0 %6578
    %6580 = vset.pattern.permute.xlu0 0
    %6581 = vperm.xlu0 %6580, %v5944
    %v6582 = vpop.permute.xlu0 %6581
    %6583 = vset.pattern.permute.xlu0 0
    %6584 = vperm.xlu0 %6583, %v5945
    %v6585 = vpop.permute.xlu0 %6584
    %6586 = vset.pattern.permute.xlu0 0
    %6587 = vperm.xlu0 %6586, %v5946
    %v6588 = vpop.permute.xlu0 %6587
    %6589 = vset.pattern.permute.xlu0 0
    %6590 = vperm.xlu0 %6589, %v5947
    %v6591 = vpop.permute.xlu0 %6590
    %6592 = vset.pattern.permute.xlu0 0
    %6593 = vperm.xlu0 %6592, %v5948
    %v6594 = vpop.permute.xlu0 %6593
    %6595 = vset.pattern.permute.xlu0 0
    %6596 = vperm.xlu0 %6595, %v5949
    %v6597 = vpop.permute.xlu0 %6596
    %6598 = vset.pattern.permute.xlu0 0
    %6599 = vperm.xlu0 %6598, %v5950
    %v6600 = vpop.permute.xlu0 %6599
    %6601 = vset.pattern.permute.xlu0 0
    %6602 = vperm.xlu0 %6601, %v5951
    %v6603 = vpop.permute.xlu0 %6602
    %6604 = vset.pattern.permute.xlu0 0
    %6605 = vperm.xlu0 %6604, %v5952
    %v6606 = vpop.permute.xlu0 %6605
    %6607 = vset.pattern.permute.xlu0 0
    %6608 = vperm.xlu0 %6607, %v5953
    %v6609 = vpop.permute.xlu0 %6608
    %6610 = vset.pattern.permute.xlu0 0
    %6611 = vperm.xlu0 %6610, %v5954
    %v6612 = vpop.permute.xlu0 %6611
    %6613 = vset.pattern.permute.xlu0 0
    %6614 = vperm.xlu0 %6613, %v5955
    %v6615 = vpop.permute.xlu0 %6614
    %6616 = vset.pattern.permute.xlu0 0
    %6617 = vperm.xlu0 %6616, %v5956
    %v6618 = vpop.permute.xlu0 %6617
    %6619 = vset.pattern.permute.xlu0 0
    %6620 = vperm.xlu0 %6619, %v5957
    %v6621 = vpop.permute.xlu0 %6620
    %6622 = vset.pattern.permute.xlu0 0
    %6623 = vperm.xlu0 %6622, %v5958
    %v6624 = vpop.permute.xlu0 %6623
    %6625 = vset.pattern.permute.xlu0 0
    %6626 = vperm.xlu0 %6625, %v5959
    %v6627 = vpop.permute.xlu0 %6626
    %6628 = vset.pattern.permute.xlu0 0
    %6629 = vperm.xlu0 %6628, %v5960
    %v6630 = vpop.permute.xlu0 %6629
    %6631 = vset.pattern.permute.xlu0 0
    %6632 = vperm.xlu0 %6631, %v5961
    %v6633 = vpop.permute.xlu0 %6632
    %6634 = vset.pattern.permute.xlu0 0
    %6635 = vperm.xlu0 %6634, %v5962
    %v6636 = vpop.permute.xlu0 %6635
    %6637 = vset.pattern.permute.xlu0 0
    %6638 = vperm.xlu0 %6637, %v5963
    %v6639 = vpop.permute.xlu0 %6638
    %6640 = vset.pattern.permute.xlu0 0
    %6641 = vperm.xlu0 %6640, %v5964
    %v6642 = vpop.permute.xlu0 %6641
    %6643 = vset.pattern.permute.xlu0 0
    %6644 = vperm.xlu0 %6643, %v5965
    %v6645 = vpop.permute.xlu0 %6644
    %6646 = vset.pattern.permute.xlu0 0
    %6647 = vperm.xlu0 %6646, %v5966
    %v6648 = vpop.permute.xlu0 %6647
    %6649 = vset.pattern.permute.xlu0 0
    %6650 = vperm.xlu0 %6649, %v5967
    %v6651 = vpop.permute.xlu0 %6650
    %6652 = vset.pattern.permute.xlu0 0
    %6653 = vperm.xlu0 %6652, %v5968
    %v6654 = vpop.permute.xlu0 %6653
    %6655 = vset.pattern.permute.xlu0 0
    %6656 = vperm.xlu0 %6655, %v5969
    %v6657 = vpop.permute.xlu0 %6656
    %6658 = vset.pattern.permute.xlu0 0
    %6659 = vperm.xlu0 %6658, %v5970
    %v6660 = vpop.permute.xlu0 %6659
    %6661 = vset.pattern.permute.xlu0 0
    %6662 = vperm.xlu0 %6661, %v5971
    %v6663 = vpop.permute.xlu0 %6662
    %6664 = vset.pattern.permute.xlu0 0
    %6665 = vperm.xlu0 %6664, %v5972
    %v6666 = vpop.permute.xlu0 %6665
    %6667 = vset.pattern.permute.xlu0 0
    %6668 = vperm.xlu0 %6667, %v5973
    %v6669 = vpop.permute.xlu0 %6668
    %6670 = vset.pattern.permute.xlu0 0
    %6671 = vperm.xlu0 %6670, %v5974
    %v6672 = vpop.permute.xlu0 %6671
    %6673 = vset.pattern.permute.xlu0 0
    %6674 = vperm.xlu0 %6673, %v5975
    %v6675 = vpop.permute.xlu0 %6674
    %6676 = vset.pattern.permute.xlu0 0
    %6677 = vperm.xlu0 %6676, %v5976
    %v6678 = vpop.permute.xlu0 %6677
    %6679 = vset.pattern.permute.xlu0 0
    %6680 = vperm.xlu0 %6679, %v5977
    %v6681 = vpop.permute.xlu0 %6680
    %6682 = vset.pattern.permute.xlu0 0
    %6683 = vperm.xlu0 %6682, %v5978
    %v6684 = vpop.permute.xlu0 %6683
    %6685 = vset.pattern.permute.xlu0 0
    %6686 = vperm.xlu0 %6685, %v5979
    %v6687 = vpop.permute.xlu0 %6686
    %6688 = vset.pattern.permute.xlu0 0
    %6689 = vperm.xlu0 %6688, %v5980
    %v6690 = vpop.permute.xlu0 %6689
    %6691 = vset.pattern.permute.xlu0 0
    %6692 = vperm.xlu0 %6691, %v5981
    %v6693 = vpop.permute.xlu0 %6692
    %6694 = vset.pattern.permute.xlu0 0
    %6695 = vperm.xlu0 %6694, %v5982
    %v6696 = vpop.permute.xlu0 %6695
    %6697 = vset.pattern.permute.xlu0 0
    %6698 = vperm.xlu0 %6697, %v5983
    %v6699 = vpop.permute.xlu0 %6698
    %6700 = vset.pattern.permute.xlu0 0
    %6701 = vperm.xlu0 %6700, %v5984
    %v6702 = vpop.permute.xlu0 %6701
    %6703 = vset.pattern.permute.xlu0 0
    %6704 = vperm.xlu0 %6703, %v5985
    %v6705 = vpop.permute.xlu0 %6704
    %6706 = vset.pattern.permute.xlu0 0
    %6707 = vperm.xlu0 %6706, %v5986
    %v6708 = vpop.permute.xlu0 %6707
    %6709 = vset.pattern.permute.xlu0 0
    %6710 = vperm.xlu0 %6709, %v5987
    %v6711 = vpop.permute.xlu0 %6710
    %6712 = vset.pattern.permute.xlu0 0
    %6713 = vperm.xlu0 %6712, %v5988
    %v6714 = vpop.permute.xlu0 %6713
    %6715 = vset.pattern.permute.xlu0 0
    %6716 = vperm.xlu0 %6715, %v5989
    %v6717 = vpop.permute.xlu0 %6716
    %6718 = vset.pattern.permute.xlu0 0
    %6719 = vperm.xlu0 %6718, %v5990
    %v6720 = vpop.permute.xlu0 %6719
    %6721 = vset.pattern.permute.xlu0 0
    %6722 = vperm.xlu0 %6721, %v5991
    %v6723 = vpop.permute.xlu0 %6722
    %6724 = vset.pattern.permute.xlu0 0
    %6725 = vperm.xlu0 %6724, %v5992
    %v6726 = vpop.permute.xlu0 %6725
    %6727 = vset.pattern.permute.xlu0 0
    %6728 = vperm.xlu0 %6727, %v5993
    %v6729 = vpop.permute.xlu0 %6728
    %6730 = vset.pattern.permute.xlu0 0
    %6731 = vperm.xlu0 %6730, %v5994
    %v6732 = vpop.permute.xlu0 %6731
    %6733 = vset.pattern.permute.xlu0 0
    %6734 = vperm.xlu0 %6733, %v5995
    %v6735 = vpop.permute.xlu0 %6734
    %6736 = vset.pattern.permute.xlu0 0
    %6737 = vperm.xlu0 %6736, %v5996
    %v6738 = vpop.permute.xlu0 %6737
    %6739 = vset.pattern.permute.xlu0 0
    %6740 = vperm.xlu0 %6739, %v5997
    %v6741 = vpop.permute.xlu0 %6740
    %6742 = vset.pattern.permute.xlu0 0
    %6743 = vperm.xlu0 %6742, %v5998
    %v6744 = vpop.permute.xlu0 %6743
    %6745 = vset.pattern.permute.xlu0 0
    %6746 = vperm.xlu0 %6745, %v5999
    %v6747 = vpop.permute.xlu0 %6746
    %6748 = vset.pattern.permute.xlu0 0
    %6749 = vperm.xlu0 %6748, %v6000
    %v6750 = vpop.permute.xlu0 %6749
    %6751 = vset.pattern.permute.xlu0 0
    %6752 = vperm.xlu0 %6751, %v6001
    %v6753 = vpop.permute.xlu0 %6752
    %6754 = vset.pattern.permute.xlu0 0
    %6755 = vperm.xlu0 %6754, %v6002
    %v6756 = vpop.permute.xlu0 %6755
    %6757 = vset.pattern.permute.xlu0 0
    %6758 = vperm.xlu0 %6757, %v6003
    %v6759 = vpop.permute.xlu0 %6758
    %6760 = vset.pattern.permute.xlu0 0
    %6761 = vperm.xlu0 %6760, %v6004
    %v6762 = vpop.permute.xlu0 %6761
    %6763 = vset.pattern.permute.xlu0 0
    %6764 = vperm.xlu0 %6763, %v6005
    %v6765 = vpop.permute.xlu0 %6764
    %6766 = vset.pattern.permute.xlu0 0
    %6767 = vperm.xlu0 %6766, %v6006
    %v6768 = vpop.permute.xlu0 %6767
    %6769 = vset.pattern.permute.xlu0 0
    %6770 = vperm.xlu0 %6769, %v6007
    %v6771 = vpop.permute.xlu0 %6770
    %6772 = vset.pattern.permute.xlu0 0
    %6773 = vperm.xlu0 %6772, %v6008
    %v6774 = vpop.permute.xlu0 %6773
    %6775 = vset.pattern.permute.xlu0 0
    %6776 = vperm.xlu0 %6775, %v6009
    %v6777 = vpop.permute.xlu0 %6776
    %v6778 = vlaneseq
    %v6779 = vshrl.u32 %v6778, 7
    %v6780 = vsub.s32 %v3007, %v6779
    %v6781 = vrot.slane %v6012, %v6780
    %v6782 = vlaneseq
    %v6783 = vshrl.u32 %v6782, 7
    %v6784 = vsub.s32 %v4036, %v6783
    %v6785 = vrot.slane %v6015, %v6784
    %v6786 = vsel %vm4041, %v6785, %v6781
    %v6787 = vlaneseq
    %v6788 = vshrl.u32 %v6787, 7
    %v6789 = vsub.s32 %v4043, %v6788
    %v6790 = vrot.slane %v6018, %v6789
    %v6791 = vsel %vm4048, %v6790, %v6786
    %v6792 = vlaneseq
    %v6793 = vshrl.u32 %v6792, 7
    %v6794 = vsub.s32 %v4050, %v6793
    %v6795 = vrot.slane %v6021, %v6794
    %v6796 = vsel %vm4055, %v6795, %v6791
    %v6797 = vlaneseq
    %v6798 = vshrl.u32 %v6797, 7
    %v6799 = vsub.s32 %v4057, %v6798
    %v6800 = vrot.slane %v6024, %v6799
    %v6801 = vsel %vm4062, %v6800, %v6796
    %v6802 = vlaneseq
    %v6803 = vshrl.u32 %v6802, 7
    %v6804 = vsub.s32 %v4064, %v6803
    %v6805 = vrot.slane %v6027, %v6804
    %v6806 = vsel %vm4069, %v6805, %v6801
    %v6807 = vlaneseq
    %v6808 = vshrl.u32 %v6807, 7
    %v6809 = vsub.s32 %v4071, %v6808
    %v6810 = vrot.slane %v6030, %v6809
    %v6811 = vsel %vm4076, %v6810, %v6806
    %v6812 = vlaneseq
    %v6813 = vshrl.u32 %v6812, 7
    %v6814 = vsub.s32 %v4078, %v6813
    %v6815 = vrot.slane %v6033, %v6814
    %v6816 = vsel %vm4083, %v6815, %v6811
    %v6817 = vlaneseq
    %v6818 = vshrl.u32 %v6817, 7
    %v6819 = vsub.s32 %v4085, %v6818
    %v6820 = vrot.slane %v6036, %v6819
    %v6821 = vsel %vm4090, %v6820, %v6816
    %v6822 = vlaneseq
    %v6823 = vshrl.u32 %v6822, 7
    %v6824 = vsub.s32 %v4092, %v6823
    %v6825 = vrot.slane %v6039, %v6824
    %v6826 = vsel %vm4097, %v6825, %v6821
    %v6827 = vlaneseq
    %v6828 = vshrl.u32 %v6827, 7
    %v6829 = vsub.s32 %v4099, %v6828
    %v6830 = vrot.slane %v6042, %v6829
    %v6831 = vsel %vm4104, %v6830, %v6826
    %v6832 = vlaneseq
    %v6833 = vshrl.u32 %v6832, 7
    %v6834 = vsub.s32 %v4106, %v6833
    %v6835 = vrot.slane %v6045, %v6834
    %v6836 = vsel %vm4111, %v6835, %v6831
    %v6837 = vlaneseq
    %v6838 = vshrl.u32 %v6837, 7
    %v6839 = vsub.s32 %v4113, %v6838
    %v6840 = vrot.slane %v6048, %v6839
    %v6841 = vsel %vm4118, %v6840, %v6836
    %v6842 = vlaneseq
    %v6843 = vshrl.u32 %v6842, 7
    %v6844 = vsub.s32 %v4120, %v6843
    %v6845 = vrot.slane %v6051, %v6844
    %v6846 = vsel %vm4125, %v6845, %v6841
    %v6847 = vlaneseq
    %v6848 = vshrl.u32 %v6847, 7
    %v6849 = vsub.s32 %v4127, %v6848
    %v6850 = vrot.slane %v6054, %v6849
    %v6851 = vsel %vm4132, %v6850, %v6846
    %v6852 = vlaneseq
    %v6853 = vshrl.u32 %v6852, 7
    %v6854 = vsub.s32 %v4134, %v6853
    %v6855 = vrot.slane %v6057, %v6854
    %v6856 = vsel %vm4139, %v6855, %v6851
    %v6857 = vlaneseq
    %v6858 = vshrl.u32 %v6857, 7
    %v6859 = vsub.s32 %v3007, %v6858
    %v6860 = vrot.slane %v6060, %v6859
    %v6861 = vlaneseq
    %v6862 = vshrl.u32 %v6861, 7
    %v6863 = vsub.s32 %v4036, %v6862
    %v6864 = vrot.slane %v6063, %v6863
    %v6865 = vsel %vm4041, %v6864, %v6860
    %v6866 = vlaneseq
    %v6867 = vshrl.u32 %v6866, 7
    %v6868 = vsub.s32 %v4043, %v6867
    %v6869 = vrot.slane %v6066, %v6868
    %v6870 = vsel %vm4048, %v6869, %v6865
    %v6871 = vlaneseq
    %v6872 = vshrl.u32 %v6871, 7
    %v6873 = vsub.s32 %v4050, %v6872
    %v6874 = vrot.slane %v6069, %v6873
    %v6875 = vsel %vm4055, %v6874, %v6870
    %v6876 = vlaneseq
    %v6877 = vshrl.u32 %v6876, 7
    %v6878 = vsub.s32 %v4057, %v6877
    %v6879 = vrot.slane %v6072, %v6878
    %v6880 = vsel %vm4062, %v6879, %v6875
    %v6881 = vlaneseq
    %v6882 = vshrl.u32 %v6881, 7
    %v6883 = vsub.s32 %v4064, %v6882
    %v6884 = vrot.slane %v6075, %v6883
    %v6885 = vsel %vm4069, %v6884, %v6880
    %v6886 = vlaneseq
    %v6887 = vshrl.u32 %v6886, 7
    %v6888 = vsub.s32 %v4071, %v6887
    %v6889 = vrot.slane %v6078, %v6888
    %v6890 = vsel %vm4076, %v6889, %v6885
    %v6891 = vlaneseq
    %v6892 = vshrl.u32 %v6891, 7
    %v6893 = vsub.s32 %v4078, %v6892
    %v6894 = vrot.slane %v6081, %v6893
    %v6895 = vsel %vm4083, %v6894, %v6890
    %v6896 = vlaneseq
    %v6897 = vshrl.u32 %v6896, 7
    %v6898 = vsub.s32 %v4085, %v6897
    %v6899 = vrot.slane %v6084, %v6898
    %v6900 = vsel %vm4090, %v6899, %v6895
    %v6901 = vlaneseq
    %v6902 = vshrl.u32 %v6901, 7
    %v6903 = vsub.s32 %v4092, %v6902
    %v6904 = vrot.slane %v6087, %v6903
    %v6905 = vsel %vm4097, %v6904, %v6900
    %v6906 = vlaneseq
    %v6907 = vshrl.u32 %v6906, 7
    %v6908 = vsub.s32 %v4099, %v6907
    %v6909 = vrot.slane %v6090, %v6908
    %v6910 = vsel %vm4104, %v6909, %v6905
    %v6911 = vlaneseq
    %v6912 = vshrl.u32 %v6911, 7
    %v6913 = vsub.s32 %v4106, %v6912
    %v6914 = vrot.slane %v6093, %v6913
    %v6915 = vsel %vm4111, %v6914, %v6910
    %v6916 = vlaneseq
    %v6917 = vshrl.u32 %v6916, 7
    %v6918 = vsub.s32 %v4113, %v6917
    %v6919 = vrot.slane %v6096, %v6918
    %v6920 = vsel %vm4118, %v6919, %v6915
    %v6921 = vlaneseq
    %v6922 = vshrl.u32 %v6921, 7
    %v6923 = vsub.s32 %v4120, %v6922
    %v6924 = vrot.slane %v6099, %v6923
    %v6925 = vsel %vm4125, %v6924, %v6920
    %v6926 = vlaneseq
    %v6927 = vshrl.u32 %v6926, 7
    %v6928 = vsub.s32 %v4127, %v6927
    %v6929 = vrot.slane %v6102, %v6928
    %v6930 = vsel %vm4132, %v6929, %v6925
    %v6931 = vlaneseq
    %v6932 = vshrl.u32 %v6931, 7
    %v6933 = vsub.s32 %v4134, %v6932
    %v6934 = vrot.slane %v6105, %v6933
    %v6935 = vsel %vm4139, %v6934, %v6930
    %v6936 = vlaneseq
    %v6937 = vshrl.u32 %v6936, 7
    %v6938 = vsub.s32 %v3007, %v6937
    %v6939 = vrot.slane %v6108, %v6938
    %v6940 = vlaneseq
    %v6941 = vshrl.u32 %v6940, 7
    %v6942 = vsub.s32 %v4036, %v6941
    %v6943 = vrot.slane %v6111, %v6942
    %v6944 = vsel %vm4041, %v6943, %v6939
    %v6945 = vlaneseq
    %v6946 = vshrl.u32 %v6945, 7
    %v6947 = vsub.s32 %v4043, %v6946
    %v6948 = vrot.slane %v6114, %v6947
    %v6949 = vsel %vm4048, %v6948, %v6944
    %v6950 = vlaneseq
    %v6951 = vshrl.u32 %v6950, 7
    %v6952 = vsub.s32 %v4050, %v6951
    %v6953 = vrot.slane %v6117, %v6952
    %v6954 = vsel %vm4055, %v6953, %v6949
    %v6955 = vlaneseq
    %v6956 = vshrl.u32 %v6955, 7
    %v6957 = vsub.s32 %v4057, %v6956
    %v6958 = vrot.slane %v6120, %v6957
    %v6959 = vsel %vm4062, %v6958, %v6954
    %v6960 = vlaneseq
    %v6961 = vshrl.u32 %v6960, 7
    %v6962 = vsub.s32 %v4064, %v6961
    %v6963 = vrot.slane %v6123, %v6962
    %v6964 = vsel %vm4069, %v6963, %v6959
    %v6965 = vlaneseq
    %v6966 = vshrl.u32 %v6965, 7
    %v6967 = vsub.s32 %v4071, %v6966
    %v6968 = vrot.slane %v6126, %v6967
    %v6969 = vsel %vm4076, %v6968, %v6964
    %v6970 = vlaneseq
    %v6971 = vshrl.u32 %v6970, 7
    %v6972 = vsub.s32 %v4078, %v6971
    %v6973 = vrot.slane %v6129, %v6972
    %v6974 = vsel %vm4083, %v6973, %v6969
    %v6975 = vlaneseq
    %v6976 = vshrl.u32 %v6975, 7
    %v6977 = vsub.s32 %v4085, %v6976
    %v6978 = vrot.slane %v6132, %v6977
    %v6979 = vsel %vm4090, %v6978, %v6974
    %v6980 = vlaneseq
    %v6981 = vshrl.u32 %v6980, 7
    %v6982 = vsub.s32 %v4092, %v6981
    %v6983 = vrot.slane %v6135, %v6982
    %v6984 = vsel %vm4097, %v6983, %v6979
    %v6985 = vlaneseq
    %v6986 = vshrl.u32 %v6985, 7
    %v6987 = vsub.s32 %v4099, %v6986
    %v6988 = vrot.slane %v6138, %v6987
    %v6989 = vsel %vm4104, %v6988, %v6984
    %v6990 = vlaneseq
    %v6991 = vshrl.u32 %v6990, 7
    %v6992 = vsub.s32 %v4106, %v6991
    %v6993 = vrot.slane %v6141, %v6992
    %v6994 = vsel %vm4111, %v6993, %v6989
    %v6995 = vlaneseq
    %v6996 = vshrl.u32 %v6995, 7
    %v6997 = vsub.s32 %v4113, %v6996
    %v6998 = vrot.slane %v6144, %v6997
    %v6999 = vsel %vm4118, %v6998, %v6994
    %v7000 = vlaneseq
    %v7001 = vshrl.u32 %v7000, 7
    %v7002 = vsub.s32 %v4120, %v7001
    %v7003 = vrot.slane %v6147, %v7002
    %v7004 = vsel %vm4125, %v7003, %v6999
    %v7005 = vlaneseq
    %v7006 = vshrl.u32 %v7005, 7
    %v7007 = vsub.s32 %v4127, %v7006
    %v7008 = vrot.slane %v6150, %v7007
    %v7009 = vsel %vm4132, %v7008, %v7004
    %v7010 = vlaneseq
    %v7011 = vshrl.u32 %v7010, 7
    %v7012 = vsub.s32 %v4134, %v7011
    %v7013 = vrot.slane %v6153, %v7012
    %v7014 = vsel %vm4139, %v7013, %v7009
    %v7015 = vlaneseq
    %v7016 = vshrl.u32 %v7015, 7
    %v7017 = vsub.s32 %v3007, %v7016
    %v7018 = vrot.slane %v6156, %v7017
    %v7019 = vlaneseq
    %v7020 = vshrl.u32 %v7019, 7
    %v7021 = vsub.s32 %v4036, %v7020
    %v7022 = vrot.slane %v6159, %v7021
    %v7023 = vsel %vm4041, %v7022, %v7018
    %v7024 = vlaneseq
    %v7025 = vshrl.u32 %v7024, 7
    %v7026 = vsub.s32 %v4043, %v7025
    %v7027 = vrot.slane %v6162, %v7026
    %v7028 = vsel %vm4048, %v7027, %v7023
    %v7029 = vlaneseq
    %v7030 = vshrl.u32 %v7029, 7
    %v7031 = vsub.s32 %v4050, %v7030
    %v7032 = vrot.slane %v6165, %v7031
    %v7033 = vsel %vm4055, %v7032, %v7028
    %v7034 = vlaneseq
    %v7035 = vshrl.u32 %v7034, 7
    %v7036 = vsub.s32 %v4057, %v7035
    %v7037 = vrot.slane %v6168, %v7036
    %v7038 = vsel %vm4062, %v7037, %v7033
    %v7039 = vlaneseq
    %v7040 = vshrl.u32 %v7039, 7
    %v7041 = vsub.s32 %v4064, %v7040
    %v7042 = vrot.slane %v6171, %v7041
    %v7043 = vsel %vm4069, %v7042, %v7038
    %v7044 = vlaneseq
    %v7045 = vshrl.u32 %v7044, 7
    %v7046 = vsub.s32 %v4071, %v7045
    %v7047 = vrot.slane %v6174, %v7046
    %v7048 = vsel %vm4076, %v7047, %v7043
    %v7049 = vlaneseq
    %v7050 = vshrl.u32 %v7049, 7
    %v7051 = vsub.s32 %v4078, %v7050
    %v7052 = vrot.slane %v6177, %v7051
    %v7053 = vsel %vm4083, %v7052, %v7048
    %v7054 = vlaneseq
    %v7055 = vshrl.u32 %v7054, 7
    %v7056 = vsub.s32 %v4085, %v7055
    %v7057 = vrot.slane %v6180, %v7056
    %v7058 = vsel %vm4090, %v7057, %v7053
    %v7059 = vlaneseq
    %v7060 = vshrl.u32 %v7059, 7
    %v7061 = vsub.s32 %v4092, %v7060
    %v7062 = vrot.slane %v6183, %v7061
    %v7063 = vsel %vm4097, %v7062, %v7058
    %v7064 = vlaneseq
    %v7065 = vshrl.u32 %v7064, 7
    %v7066 = vsub.s32 %v4099, %v7065
    %v7067 = vrot.slane %v6186, %v7066
    %v7068 = vsel %vm4104, %v7067, %v7063
    %v7069 = vlaneseq
    %v7070 = vshrl.u32 %v7069, 7
    %v7071 = vsub.s32 %v4106, %v7070
    %v7072 = vrot.slane %v6189, %v7071
    %v7073 = vsel %vm4111, %v7072, %v7068
    %v7074 = vlaneseq
    %v7075 = vshrl.u32 %v7074, 7
    %v7076 = vsub.s32 %v4113, %v7075
    %v7077 = vrot.slane %v6192, %v7076
    %v7078 = vsel %vm4118, %v7077, %v7073
    %v7079 = vlaneseq
    %v7080 = vshrl.u32 %v7079, 7
    %v7081 = vsub.s32 %v4120, %v7080
    %v7082 = vrot.slane %v6195, %v7081
    %v7083 = vsel %vm4125, %v7082, %v7078
    %v7084 = vlaneseq
    %v7085 = vshrl.u32 %v7084, 7
    %v7086 = vsub.s32 %v4127, %v7085
    %v7087 = vrot.slane %v6198, %v7086
    %v7088 = vsel %vm4132, %v7087, %v7083
    %v7089 = vlaneseq
    %v7090 = vshrl.u32 %v7089, 7
    %v7091 = vsub.s32 %v4134, %v7090
    %v7092 = vrot.slane %v6201, %v7091
    %v7093 = vsel %vm4139, %v7092, %v7088
    %v7094 = vlaneseq
    %v7095 = vshrl.u32 %v7094, 7
    %v7096 = vsub.s32 %v3007, %v7095
    %v7097 = vrot.slane %v6204, %v7096
    %v7098 = vlaneseq
    %v7099 = vshrl.u32 %v7098, 7
    %v7100 = vsub.s32 %v4036, %v7099
    %v7101 = vrot.slane %v6207, %v7100
    %v7102 = vsel %vm4041, %v7101, %v7097
    %v7103 = vlaneseq
    %v7104 = vshrl.u32 %v7103, 7
    %v7105 = vsub.s32 %v4043, %v7104
    %v7106 = vrot.slane %v6210, %v7105
    %v7107 = vsel %vm4048, %v7106, %v7102
    %v7108 = vlaneseq
    %v7109 = vshrl.u32 %v7108, 7
    %v7110 = vsub.s32 %v4050, %v7109
    %v7111 = vrot.slane %v6213, %v7110
    %v7112 = vsel %vm4055, %v7111, %v7107
    %v7113 = vlaneseq
    %v7114 = vshrl.u32 %v7113, 7
    %v7115 = vsub.s32 %v4057, %v7114
    %v7116 = vrot.slane %v6216, %v7115
    %v7117 = vsel %vm4062, %v7116, %v7112
    %v7118 = vlaneseq
    %v7119 = vshrl.u32 %v7118, 7
    %v7120 = vsub.s32 %v4064, %v7119
    %v7121 = vrot.slane %v6219, %v7120
    %v7122 = vsel %vm4069, %v7121, %v7117
    %v7123 = vlaneseq
    %v7124 = vshrl.u32 %v7123, 7
    %v7125 = vsub.s32 %v4071, %v7124
    %v7126 = vrot.slane %v6222, %v7125
    %v7127 = vsel %vm4076, %v7126, %v7122
    %v7128 = vlaneseq
    %v7129 = vshrl.u32 %v7128, 7
    %v7130 = vsub.s32 %v4078, %v7129
    %v7131 = vrot.slane %v6225, %v7130
    %v7132 = vsel %vm4083, %v7131, %v7127
    %v7133 = vlaneseq
    %v7134 = vshrl.u32 %v7133, 7
    %v7135 = vsub.s32 %v4085, %v7134
    %v7136 = vrot.slane %v6228, %v7135
    %v7137 = vsel %vm4090, %v7136, %v7132
    %v7138 = vlaneseq
    %v7139 = vshrl.u32 %v7138, 7
    %v7140 = vsub.s32 %v4092, %v7139
    %v7141 = vrot.slane %v6231, %v7140
    %v7142 = vsel %vm4097, %v7141, %v7137
    %v7143 = vlaneseq
    %v7144 = vshrl.u32 %v7143, 7
    %v7145 = vsub.s32 %v4099, %v7144
    %v7146 = vrot.slane %v6234, %v7145
    %v7147 = vsel %vm4104, %v7146, %v7142
    %v7148 = vlaneseq
    %v7149 = vshrl.u32 %v7148, 7
    %v7150 = vsub.s32 %v4106, %v7149
    %v7151 = vrot.slane %v6237, %v7150
    %v7152 = vsel %vm4111, %v7151, %v7147
    %v7153 = vlaneseq
    %v7154 = vshrl.u32 %v7153, 7
    %v7155 = vsub.s32 %v4113, %v7154
    %v7156 = vrot.slane %v6240, %v7155
    %v7157 = vsel %vm4118, %v7156, %v7152
    %v7158 = vlaneseq
    %v7159 = vshrl.u32 %v7158, 7
    %v7160 = vsub.s32 %v4120, %v7159
    %v7161 = vrot.slane %v6243, %v7160
    %v7162 = vsel %vm4125, %v7161, %v7157
    %v7163 = vlaneseq
    %v7164 = vshrl.u32 %v7163, 7
    %v7165 = vsub.s32 %v4127, %v7164
    %v7166 = vrot.slane %v6246, %v7165
    %v7167 = vsel %vm4132, %v7166, %v7162
    %v7168 = vlaneseq
    %v7169 = vshrl.u32 %v7168, 7
    %v7170 = vsub.s32 %v4134, %v7169
    %v7171 = vrot.slane %v6249, %v7170
    %v7172 = vsel %vm4139, %v7171, %v7167
    %v7173 = vlaneseq
    %v7174 = vshrl.u32 %v7173, 7
    %v7175 = vsub.s32 %v3007, %v7174
    %v7176 = vrot.slane %v6252, %v7175
    %v7177 = vlaneseq
    %v7178 = vshrl.u32 %v7177, 7
    %v7179 = vsub.s32 %v4036, %v7178
    %v7180 = vrot.slane %v6255, %v7179
    %v7181 = vsel %vm4041, %v7180, %v7176
    %v7182 = vlaneseq
    %v7183 = vshrl.u32 %v7182, 7
    %v7184 = vsub.s32 %v4043, %v7183
    %v7185 = vrot.slane %v6258, %v7184
    %v7186 = vsel %vm4048, %v7185, %v7181
    %v7187 = vlaneseq
    %v7188 = vshrl.u32 %v7187, 7
    %v7189 = vsub.s32 %v4050, %v7188
    %v7190 = vrot.slane %v6261, %v7189
    %v7191 = vsel %vm4055, %v7190, %v7186
    %v7192 = vlaneseq
    %v7193 = vshrl.u32 %v7192, 7
    %v7194 = vsub.s32 %v4057, %v7193
    %v7195 = vrot.slane %v6264, %v7194
    %v7196 = vsel %vm4062, %v7195, %v7191
    %v7197 = vlaneseq
    %v7198 = vshrl.u32 %v7197, 7
    %v7199 = vsub.s32 %v4064, %v7198
    %v7200 = vrot.slane %v6267, %v7199
    %v7201 = vsel %vm4069, %v7200, %v7196
    %v7202 = vlaneseq
    %v7203 = vshrl.u32 %v7202, 7
    %v7204 = vsub.s32 %v4071, %v7203
    %v7205 = vrot.slane %v6270, %v7204
    %v7206 = vsel %vm4076, %v7205, %v7201
    %v7207 = vlaneseq
    %v7208 = vshrl.u32 %v7207, 7
    %v7209 = vsub.s32 %v4078, %v7208
    %v7210 = vrot.slane %v6273, %v7209
    %v7211 = vsel %vm4083, %v7210, %v7206
    %v7212 = vlaneseq
    %v7213 = vshrl.u32 %v7212, 7
    %v7214 = vsub.s32 %v4085, %v7213
    %v7215 = vrot.slane %v6276, %v7214
    %v7216 = vsel %vm4090, %v7215, %v7211
    %v7217 = vlaneseq
    %v7218 = vshrl.u32 %v7217, 7
    %v7219 = vsub.s32 %v4092, %v7218
    %v7220 = vrot.slane %v6279, %v7219
    %v7221 = vsel %vm4097, %v7220, %v7216
    %v7222 = vlaneseq
    %v7223 = vshrl.u32 %v7222, 7
    %v7224 = vsub.s32 %v4099, %v7223
    %v7225 = vrot.slane %v6282, %v7224
    %v7226 = vsel %vm4104, %v7225, %v7221
    %v7227 = vlaneseq
    %v7228 = vshrl.u32 %v7227, 7
    %v7229 = vsub.s32 %v4106, %v7228
    %v7230 = vrot.slane %v6285, %v7229
    %v7231 = vsel %vm4111, %v7230, %v7226
    %v7232 = vlaneseq
    %v7233 = vshrl.u32 %v7232, 7
    %v7234 = vsub.s32 %v4113, %v7233
    %v7235 = vrot.slane %v6288, %v7234
    %v7236 = vsel %vm4118, %v7235, %v7231
    %v7237 = vlaneseq
    %v7238 = vshrl.u32 %v7237, 7
    %v7239 = vsub.s32 %v4120, %v7238
    %v7240 = vrot.slane %v6291, %v7239
    %v7241 = vsel %vm4125, %v7240, %v7236
    %v7242 = vlaneseq
    %v7243 = vshrl.u32 %v7242, 7
    %v7244 = vsub.s32 %v4127, %v7243
    %v7245 = vrot.slane %v6294, %v7244
    %v7246 = vsel %vm4132, %v7245, %v7241
    %v7247 = vlaneseq
    %v7248 = vshrl.u32 %v7247, 7
    %v7249 = vsub.s32 %v4134, %v7248
    %v7250 = vrot.slane %v6297, %v7249
    %v7251 = vsel %vm4139, %v7250, %v7246
    %v7252 = vlaneseq
    %v7253 = vshrl.u32 %v7252, 7
    %v7254 = vsub.s32 %v3007, %v7253
    %v7255 = vrot.slane %v6300, %v7254
    %v7256 = vlaneseq
    %v7257 = vshrl.u32 %v7256, 7
    %v7258 = vsub.s32 %v4036, %v7257
    %v7259 = vrot.slane %v6303, %v7258
    %v7260 = vsel %vm4041, %v7259, %v7255
    %v7261 = vlaneseq
    %v7262 = vshrl.u32 %v7261, 7
    %v7263 = vsub.s32 %v4043, %v7262
    %v7264 = vrot.slane %v6306, %v7263
    %v7265 = vsel %vm4048, %v7264, %v7260
    %v7266 = vlaneseq
    %v7267 = vshrl.u32 %v7266, 7
    %v7268 = vsub.s32 %v4050, %v7267
    %v7269 = vrot.slane %v6309, %v7268
    %v7270 = vsel %vm4055, %v7269, %v7265
    %v7271 = vlaneseq
    %v7272 = vshrl.u32 %v7271, 7
    %v7273 = vsub.s32 %v4057, %v7272
    %v7274 = vrot.slane %v6312, %v7273
    %v7275 = vsel %vm4062, %v7274, %v7270
    %v7276 = vlaneseq
    %v7277 = vshrl.u32 %v7276, 7
    %v7278 = vsub.s32 %v4064, %v7277
    %v7279 = vrot.slane %v6315, %v7278
    %v7280 = vsel %vm4069, %v7279, %v7275
    %v7281 = vlaneseq
    %v7282 = vshrl.u32 %v7281, 7
    %v7283 = vsub.s32 %v4071, %v7282
    %v7284 = vrot.slane %v6318, %v7283
    %v7285 = vsel %vm4076, %v7284, %v7280
    %v7286 = vlaneseq
    %v7287 = vshrl.u32 %v7286, 7
    %v7288 = vsub.s32 %v4078, %v7287
    %v7289 = vrot.slane %v6321, %v7288
    %v7290 = vsel %vm4083, %v7289, %v7285
    %v7291 = vlaneseq
    %v7292 = vshrl.u32 %v7291, 7
    %v7293 = vsub.s32 %v4085, %v7292
    %v7294 = vrot.slane %v6324, %v7293
    %v7295 = vsel %vm4090, %v7294, %v7290
    %v7296 = vlaneseq
    %v7297 = vshrl.u32 %v7296, 7
    %v7298 = vsub.s32 %v4092, %v7297
    %v7299 = vrot.slane %v6327, %v7298
    %v7300 = vsel %vm4097, %v7299, %v7295
    %v7301 = vlaneseq
    %v7302 = vshrl.u32 %v7301, 7
    %v7303 = vsub.s32 %v4099, %v7302
    %v7304 = vrot.slane %v6330, %v7303
    %v7305 = vsel %vm4104, %v7304, %v7300
    %v7306 = vlaneseq
    %v7307 = vshrl.u32 %v7306, 7
    %v7308 = vsub.s32 %v4106, %v7307
    %v7309 = vrot.slane %v6333, %v7308
    %v7310 = vsel %vm4111, %v7309, %v7305
    %v7311 = vlaneseq
    %v7312 = vshrl.u32 %v7311, 7
    %v7313 = vsub.s32 %v4113, %v7312
    %v7314 = vrot.slane %v6336, %v7313
    %v7315 = vsel %vm4118, %v7314, %v7310
    %v7316 = vlaneseq
    %v7317 = vshrl.u32 %v7316, 7
    %v7318 = vsub.s32 %v4120, %v7317
    %v7319 = vrot.slane %v6339, %v7318
    %v7320 = vsel %vm4125, %v7319, %v7315
    %v7321 = vlaneseq
    %v7322 = vshrl.u32 %v7321, 7
    %v7323 = vsub.s32 %v4127, %v7322
    %v7324 = vrot.slane %v6342, %v7323
    %v7325 = vsel %vm4132, %v7324, %v7320
    %v7326 = vlaneseq
    %v7327 = vshrl.u32 %v7326, 7
    %v7328 = vsub.s32 %v4134, %v7327
    %v7329 = vrot.slane %v6345, %v7328
    %v7330 = vsel %vm4139, %v7329, %v7325
    %v7331 = vlaneseq
    %v7332 = vshrl.u32 %v7331, 7
    %v7333 = vsub.s32 %v3007, %v7332
    %v7334 = vrot.slane %v6348, %v7333
    %v7335 = vlaneseq
    %v7336 = vshrl.u32 %v7335, 7
    %v7337 = vsub.s32 %v4036, %v7336
    %v7338 = vrot.slane %v6351, %v7337
    %v7339 = vsel %vm4041, %v7338, %v7334
    %v7340 = vlaneseq
    %v7341 = vshrl.u32 %v7340, 7
    %v7342 = vsub.s32 %v4043, %v7341
    %v7343 = vrot.slane %v6354, %v7342
    %v7344 = vsel %vm4048, %v7343, %v7339
    %v7345 = vlaneseq
    %v7346 = vshrl.u32 %v7345, 7
    %v7347 = vsub.s32 %v4050, %v7346
    %v7348 = vrot.slane %v6357, %v7347
    %v7349 = vsel %vm4055, %v7348, %v7344
    %v7350 = vlaneseq
    %v7351 = vshrl.u32 %v7350, 7
    %v7352 = vsub.s32 %v4057, %v7351
    %v7353 = vrot.slane %v6360, %v7352
    %v7354 = vsel %vm4062, %v7353, %v7349
    %v7355 = vlaneseq
    %v7356 = vshrl.u32 %v7355, 7
    %v7357 = vsub.s32 %v4064, %v7356
    %v7358 = vrot.slane %v6363, %v7357
    %v7359 = vsel %vm4069, %v7358, %v7354
    %v7360 = vlaneseq
    %v7361 = vshrl.u32 %v7360, 7
    %v7362 = vsub.s32 %v4071, %v7361
    %v7363 = vrot.slane %v6366, %v7362
    %v7364 = vsel %vm4076, %v7363, %v7359
    %v7365 = vlaneseq
    %v7366 = vshrl.u32 %v7365, 7
    %v7367 = vsub.s32 %v4078, %v7366
    %v7368 = vrot.slane %v6369, %v7367
    %v7369 = vsel %vm4083, %v7368, %v7364
    %v7370 = vlaneseq
    %v7371 = vshrl.u32 %v7370, 7
    %v7372 = vsub.s32 %v4085, %v7371
    %v7373 = vrot.slane %v6372, %v7372
    %v7374 = vsel %vm4090, %v7373, %v7369
    %v7375 = vlaneseq
    %v7376 = vshrl.u32 %v7375, 7
    %v7377 = vsub.s32 %v4092, %v7376
    %v7378 = vrot.slane %v6375, %v7377
    %v7379 = vsel %vm4097, %v7378, %v7374
    %v7380 = vlaneseq
    %v7381 = vshrl.u32 %v7380, 7
    %v7382 = vsub.s32 %v4099, %v7381
    %v7383 = vrot.slane %v6378, %v7382
    %v7384 = vsel %vm4104, %v7383, %v7379
    %v7385 = vlaneseq
    %v7386 = vshrl.u32 %v7385, 7
    %v7387 = vsub.s32 %v4106, %v7386
    %v7388 = vrot.slane %v6381, %v7387
    %v7389 = vsel %vm4111, %v7388, %v7384
    %v7390 = vlaneseq
    %v7391 = vshrl.u32 %v7390, 7
    %v7392 = vsub.s32 %v4113, %v7391
    %v7393 = vrot.slane %v6384, %v7392
    %v7394 = vsel %vm4118, %v7393, %v7389
    %v7395 = vlaneseq
    %v7396 = vshrl.u32 %v7395, 7
    %v7397 = vsub.s32 %v4120, %v7396
    %v7398 = vrot.slane %v6387, %v7397
    %v7399 = vsel %vm4125, %v7398, %v7394
    %v7400 = vlaneseq
    %v7401 = vshrl.u32 %v7400, 7
    %v7402 = vsub.s32 %v4127, %v7401
    %v7403 = vrot.slane %v6390, %v7402
    %v7404 = vsel %vm4132, %v7403, %v7399
    %v7405 = vlaneseq
    %v7406 = vshrl.u32 %v7405, 7
    %v7407 = vsub.s32 %v4134, %v7406
    %v7408 = vrot.slane %v6393, %v7407
    %v7409 = vsel %vm4139, %v7408, %v7404
    %v7410 = vlaneseq
    %v7411 = vshrl.u32 %v7410, 7
    %v7412 = vsub.s32 %v3007, %v7411
    %v7413 = vrot.slane %v6396, %v7412
    %v7414 = vlaneseq
    %v7415 = vshrl.u32 %v7414, 7
    %v7416 = vsub.s32 %v4036, %v7415
    %v7417 = vrot.slane %v6399, %v7416
    %v7418 = vsel %vm4041, %v7417, %v7413
    %v7419 = vlaneseq
    %v7420 = vshrl.u32 %v7419, 7
    %v7421 = vsub.s32 %v4043, %v7420
    %v7422 = vrot.slane %v6402, %v7421
    %v7423 = vsel %vm4048, %v7422, %v7418
    %v7424 = vlaneseq
    %v7425 = vshrl.u32 %v7424, 7
    %v7426 = vsub.s32 %v4050, %v7425
    %v7427 = vrot.slane %v6405, %v7426
    %v7428 = vsel %vm4055, %v7427, %v7423
    %v7429 = vlaneseq
    %v7430 = vshrl.u32 %v7429, 7
    %v7431 = vsub.s32 %v4057, %v7430
    %v7432 = vrot.slane %v6408, %v7431
    %v7433 = vsel %vm4062, %v7432, %v7428
    %v7434 = vlaneseq
    %v7435 = vshrl.u32 %v7434, 7
    %v7436 = vsub.s32 %v4064, %v7435
    %v7437 = vrot.slane %v6411, %v7436
    %v7438 = vsel %vm4069, %v7437, %v7433
    %v7439 = vlaneseq
    %v7440 = vshrl.u32 %v7439, 7
    %v7441 = vsub.s32 %v4071, %v7440
    %v7442 = vrot.slane %v6414, %v7441
    %v7443 = vsel %vm4076, %v7442, %v7438
    %v7444 = vlaneseq
    %v7445 = vshrl.u32 %v7444, 7
    %v7446 = vsub.s32 %v4078, %v7445
    %v7447 = vrot.slane %v6417, %v7446
    %v7448 = vsel %vm4083, %v7447, %v7443
    %v7449 = vlaneseq
    %v7450 = vshrl.u32 %v7449, 7
    %v7451 = vsub.s32 %v4085, %v7450
    %v7452 = vrot.slane %v6420, %v7451
    %v7453 = vsel %vm4090, %v7452, %v7448
    %v7454 = vlaneseq
    %v7455 = vshrl.u32 %v7454, 7
    %v7456 = vsub.s32 %v4092, %v7455
    %v7457 = vrot.slane %v6423, %v7456
    %v7458 = vsel %vm4097, %v7457, %v7453
    %v7459 = vlaneseq
    %v7460 = vshrl.u32 %v7459, 7
    %v7461 = vsub.s32 %v4099, %v7460
    %v7462 = vrot.slane %v6426, %v7461
    %v7463 = vsel %vm4104, %v7462, %v7458
    %v7464 = vlaneseq
    %v7465 = vshrl.u32 %v7464, 7
    %v7466 = vsub.s32 %v4106, %v7465
    %v7467 = vrot.slane %v6429, %v7466
    %v7468 = vsel %vm4111, %v7467, %v7463
    %v7469 = vlaneseq
    %v7470 = vshrl.u32 %v7469, 7
    %v7471 = vsub.s32 %v4113, %v7470
    %v7472 = vrot.slane %v6432, %v7471
    %v7473 = vsel %vm4118, %v7472, %v7468
    %v7474 = vlaneseq
    %v7475 = vshrl.u32 %v7474, 7
    %v7476 = vsub.s32 %v4120, %v7475
    %v7477 = vrot.slane %v6435, %v7476
    %v7478 = vsel %vm4125, %v7477, %v7473
    %v7479 = vlaneseq
    %v7480 = vshrl.u32 %v7479, 7
    %v7481 = vsub.s32 %v4127, %v7480
    %v7482 = vrot.slane %v6438, %v7481
    %v7483 = vsel %vm4132, %v7482, %v7478
    %v7484 = vlaneseq
    %v7485 = vshrl.u32 %v7484, 7
    %v7486 = vsub.s32 %v4134, %v7485
    %v7487 = vrot.slane %v6441, %v7486
    %v7488 = vsel %vm4139, %v7487, %v7483
    %v7489 = vlaneseq
    %v7490 = vshrl.u32 %v7489, 7
    %v7491 = vsub.s32 %v3007, %v7490
    %v7492 = vrot.slane %v6444, %v7491
    %v7493 = vlaneseq
    %v7494 = vshrl.u32 %v7493, 7
    %v7495 = vsub.s32 %v4036, %v7494
    %v7496 = vrot.slane %v6447, %v7495
    %v7497 = vsel %vm4041, %v7496, %v7492
    %v7498 = vlaneseq
    %v7499 = vshrl.u32 %v7498, 7
    %v7500 = vsub.s32 %v4043, %v7499
    %v7501 = vrot.slane %v6450, %v7500
    %v7502 = vsel %vm4048, %v7501, %v7497
    %v7503 = vlaneseq
    %v7504 = vshrl.u32 %v7503, 7
    %v7505 = vsub.s32 %v4050, %v7504
    %v7506 = vrot.slane %v6453, %v7505
    %v7507 = vsel %vm4055, %v7506, %v7502
    %v7508 = vlaneseq
    %v7509 = vshrl.u32 %v7508, 7
    %v7510 = vsub.s32 %v4057, %v7509
    %v7511 = vrot.slane %v6456, %v7510
    %v7512 = vsel %vm4062, %v7511, %v7507
    %v7513 = vlaneseq
    %v7514 = vshrl.u32 %v7513, 7
    %v7515 = vsub.s32 %v4064, %v7514
    %v7516 = vrot.slane %v6459, %v7515
    %v7517 = vsel %vm4069, %v7516, %v7512
    %v7518 = vlaneseq
    %v7519 = vshrl.u32 %v7518, 7
    %v7520 = vsub.s32 %v4071, %v7519
    %v7521 = vrot.slane %v6462, %v7520
    %v7522 = vsel %vm4076, %v7521, %v7517
    %v7523 = vlaneseq
    %v7524 = vshrl.u32 %v7523, 7
    %v7525 = vsub.s32 %v4078, %v7524
    %v7526 = vrot.slane %v6465, %v7525
    %v7527 = vsel %vm4083, %v7526, %v7522
    %v7528 = vlaneseq
    %v7529 = vshrl.u32 %v7528, 7
    %v7530 = vsub.s32 %v4085, %v7529
    %v7531 = vrot.slane %v6468, %v7530
    %v7532 = vsel %vm4090, %v7531, %v7527
    %v7533 = vlaneseq
    %v7534 = vshrl.u32 %v7533, 7
    %v7535 = vsub.s32 %v4092, %v7534
    %v7536 = vrot.slane %v6471, %v7535
    %v7537 = vsel %vm4097, %v7536, %v7532
    %v7538 = vlaneseq
    %v7539 = vshrl.u32 %v7538, 7
    %v7540 = vsub.s32 %v4099, %v7539
    %v7541 = vrot.slane %v6474, %v7540
    %v7542 = vsel %vm4104, %v7541, %v7537
    %v7543 = vlaneseq
    %v7544 = vshrl.u32 %v7543, 7
    %v7545 = vsub.s32 %v4106, %v7544
    %v7546 = vrot.slane %v6477, %v7545
    %v7547 = vsel %vm4111, %v7546, %v7542
    %v7548 = vlaneseq
    %v7549 = vshrl.u32 %v7548, 7
    %v7550 = vsub.s32 %v4113, %v7549
    %v7551 = vrot.slane %v6480, %v7550
    %v7552 = vsel %vm4118, %v7551, %v7547
    %v7553 = vlaneseq
    %v7554 = vshrl.u32 %v7553, 7
    %v7555 = vsub.s32 %v4120, %v7554
    %v7556 = vrot.slane %v6483, %v7555
    %v7557 = vsel %vm4125, %v7556, %v7552
    %v7558 = vlaneseq
    %v7559 = vshrl.u32 %v7558, 7
    %v7560 = vsub.s32 %v4127, %v7559
    %v7561 = vrot.slane %v6486, %v7560
    %v7562 = vsel %vm4132, %v7561, %v7557
    %v7563 = vlaneseq
    %v7564 = vshrl.u32 %v7563, 7
    %v7565 = vsub.s32 %v4134, %v7564
    %v7566 = vrot.slane %v6489, %v7565
    %v7567 = vsel %vm4139, %v7566, %v7562
    %v7568 = vlaneseq
    %v7569 = vshrl.u32 %v7568, 7
    %v7570 = vsub.s32 %v3007, %v7569
    %v7571 = vrot.slane %v6492, %v7570
    %v7572 = vlaneseq
    %v7573 = vshrl.u32 %v7572, 7
    %v7574 = vsub.s32 %v4036, %v7573
    %v7575 = vrot.slane %v6495, %v7574
    %v7576 = vsel %vm4041, %v7575, %v7571
    %v7577 = vlaneseq
    %v7578 = vshrl.u32 %v7577, 7
    %v7579 = vsub.s32 %v4043, %v7578
    %v7580 = vrot.slane %v6498, %v7579
    %v7581 = vsel %vm4048, %v7580, %v7576
    %v7582 = vlaneseq
    %v7583 = vshrl.u32 %v7582, 7
    %v7584 = vsub.s32 %v4050, %v7583
    %v7585 = vrot.slane %v6501, %v7584
    %v7586 = vsel %vm4055, %v7585, %v7581
    %v7587 = vlaneseq
    %v7588 = vshrl.u32 %v7587, 7
    %v7589 = vsub.s32 %v4057, %v7588
    %v7590 = vrot.slane %v6504, %v7589
    %v7591 = vsel %vm4062, %v7590, %v7586
    %v7592 = vlaneseq
    %v7593 = vshrl.u32 %v7592, 7
    %v7594 = vsub.s32 %v4064, %v7593
    %v7595 = vrot.slane %v6507, %v7594
    %v7596 = vsel %vm4069, %v7595, %v7591
    %v7597 = vlaneseq
    %v7598 = vshrl.u32 %v7597, 7
    %v7599 = vsub.s32 %v4071, %v7598
    %v7600 = vrot.slane %v6510, %v7599
    %v7601 = vsel %vm4076, %v7600, %v7596
    %v7602 = vlaneseq
    %v7603 = vshrl.u32 %v7602, 7
    %v7604 = vsub.s32 %v4078, %v7603
    %v7605 = vrot.slane %v6513, %v7604
    %v7606 = vsel %vm4083, %v7605, %v7601
    %v7607 = vlaneseq
    %v7608 = vshrl.u32 %v7607, 7
    %v7609 = vsub.s32 %v4085, %v7608
    %v7610 = vrot.slane %v6516, %v7609
    %v7611 = vsel %vm4090, %v7610, %v7606
    %v7612 = vlaneseq
    %v7613 = vshrl.u32 %v7612, 7
    %v7614 = vsub.s32 %v4092, %v7613
    %v7615 = vrot.slane %v6519, %v7614
    %v7616 = vsel %vm4097, %v7615, %v7611
    %v7617 = vlaneseq
    %v7618 = vshrl.u32 %v7617, 7
    %v7619 = vsub.s32 %v4099, %v7618
    %v7620 = vrot.slane %v6522, %v7619
    %v7621 = vsel %vm4104, %v7620, %v7616
    %v7622 = vlaneseq
    %v7623 = vshrl.u32 %v7622, 7
    %v7624 = vsub.s32 %v4106, %v7623
    %v7625 = vrot.slane %v6525, %v7624
    %v7626 = vsel %vm4111, %v7625, %v7621
    %v7627 = vlaneseq
    %v7628 = vshrl.u32 %v7627, 7
    %v7629 = vsub.s32 %v4113, %v7628
    %v7630 = vrot.slane %v6528, %v7629
    %v7631 = vsel %vm4118, %v7630, %v7626
    %v7632 = vlaneseq
    %v7633 = vshrl.u32 %v7632, 7
    %v7634 = vsub.s32 %v4120, %v7633
    %v7635 = vrot.slane %v6531, %v7634
    %v7636 = vsel %vm4125, %v7635, %v7631
    %v7637 = vlaneseq
    %v7638 = vshrl.u32 %v7637, 7
    %v7639 = vsub.s32 %v4127, %v7638
    %v7640 = vrot.slane %v6534, %v7639
    %v7641 = vsel %vm4132, %v7640, %v7636
    %v7642 = vlaneseq
    %v7643 = vshrl.u32 %v7642, 7
    %v7644 = vsub.s32 %v4134, %v7643
    %v7645 = vrot.slane %v6537, %v7644
    %v7646 = vsel %vm4139, %v7645, %v7641
    %v7647 = vlaneseq
    %v7648 = vshrl.u32 %v7647, 7
    %v7649 = vsub.s32 %v3007, %v7648
    %v7650 = vrot.slane %v6540, %v7649
    %v7651 = vlaneseq
    %v7652 = vshrl.u32 %v7651, 7
    %v7653 = vsub.s32 %v4036, %v7652
    %v7654 = vrot.slane %v6543, %v7653
    %v7655 = vsel %vm4041, %v7654, %v7650
    %v7656 = vlaneseq
    %v7657 = vshrl.u32 %v7656, 7
    %v7658 = vsub.s32 %v4043, %v7657
    %v7659 = vrot.slane %v6546, %v7658
    %v7660 = vsel %vm4048, %v7659, %v7655
    %v7661 = vlaneseq
    %v7662 = vshrl.u32 %v7661, 7
    %v7663 = vsub.s32 %v4050, %v7662
    %v7664 = vrot.slane %v6549, %v7663
    %v7665 = vsel %vm4055, %v7664, %v7660
    %v7666 = vlaneseq
    %v7667 = vshrl.u32 %v7666, 7
    %v7668 = vsub.s32 %v4057, %v7667
    %v7669 = vrot.slane %v6552, %v7668
    %v7670 = vsel %vm4062, %v7669, %v7665
    %v7671 = vlaneseq
    %v7672 = vshrl.u32 %v7671, 7
    %v7673 = vsub.s32 %v4064, %v7672
    %v7674 = vrot.slane %v6555, %v7673
    %v7675 = vsel %vm4069, %v7674, %v7670
    %v7676 = vlaneseq
    %v7677 = vshrl.u32 %v7676, 7
    %v7678 = vsub.s32 %v4071, %v7677
    %v7679 = vrot.slane %v6558, %v7678
    %v7680 = vsel %vm4076, %v7679, %v7675
    %v7681 = vlaneseq
    %v7682 = vshrl.u32 %v7681, 7
    %v7683 = vsub.s32 %v4078, %v7682
    %v7684 = vrot.slane %v6561, %v7683
    %v7685 = vsel %vm4083, %v7684, %v7680
    %v7686 = vlaneseq
    %v7687 = vshrl.u32 %v7686, 7
    %v7688 = vsub.s32 %v4085, %v7687
    %v7689 = vrot.slane %v6564, %v7688
    %v7690 = vsel %vm4090, %v7689, %v7685
    %v7691 = vlaneseq
    %v7692 = vshrl.u32 %v7691, 7
    %v7693 = vsub.s32 %v4092, %v7692
    %v7694 = vrot.slane %v6567, %v7693
    %v7695 = vsel %vm4097, %v7694, %v7690
    %v7696 = vlaneseq
    %v7697 = vshrl.u32 %v7696, 7
    %v7698 = vsub.s32 %v4099, %v7697
    %v7699 = vrot.slane %v6570, %v7698
    %v7700 = vsel %vm4104, %v7699, %v7695
    %v7701 = vlaneseq
    %v7702 = vshrl.u32 %v7701, 7
    %v7703 = vsub.s32 %v4106, %v7702
    %v7704 = vrot.slane %v6573, %v7703
    %v7705 = vsel %vm4111, %v7704, %v7700
    %v7706 = vlaneseq
    %v7707 = vshrl.u32 %v7706, 7
    %v7708 = vsub.s32 %v4113, %v7707
    %v7709 = vrot.slane %v6576, %v7708
    %v7710 = vsel %vm4118, %v7709, %v7705
    %v7711 = vlaneseq
    %v7712 = vshrl.u32 %v7711, 7
    %v7713 = vsub.s32 %v4120, %v7712
    %v7714 = vrot.slane %v6579, %v7713
    %v7715 = vsel %vm4125, %v7714, %v7710
    %v7716 = vlaneseq
    %v7717 = vshrl.u32 %v7716, 7
    %v7718 = vsub.s32 %v4127, %v7717
    %v7719 = vrot.slane %v6582, %v7718
    %v7720 = vsel %vm4132, %v7719, %v7715
    %v7721 = vlaneseq
    %v7722 = vshrl.u32 %v7721, 7
    %v7723 = vsub.s32 %v4134, %v7722
    %v7724 = vrot.slane %v6585, %v7723
    %v7725 = vsel %vm4139, %v7724, %v7720
    %v7726 = vlaneseq
    %v7727 = vshrl.u32 %v7726, 7
    %v7728 = vsub.s32 %v3007, %v7727
    %v7729 = vrot.slane %v6588, %v7728
    %v7730 = vlaneseq
    %v7731 = vshrl.u32 %v7730, 7
    %v7732 = vsub.s32 %v4036, %v7731
    %v7733 = vrot.slane %v6591, %v7732
    %v7734 = vsel %vm4041, %v7733, %v7729
    %v7735 = vlaneseq
    %v7736 = vshrl.u32 %v7735, 7
    %v7737 = vsub.s32 %v4043, %v7736
    %v7738 = vrot.slane %v6594, %v7737
    %v7739 = vsel %vm4048, %v7738, %v7734
    %v7740 = vlaneseq
    %v7741 = vshrl.u32 %v7740, 7
    %v7742 = vsub.s32 %v4050, %v7741
    %v7743 = vrot.slane %v6597, %v7742
    %v7744 = vsel %vm4055, %v7743, %v7739
    %v7745 = vlaneseq
    %v7746 = vshrl.u32 %v7745, 7
    %v7747 = vsub.s32 %v4057, %v7746
    %v7748 = vrot.slane %v6600, %v7747
    %v7749 = vsel %vm4062, %v7748, %v7744
    %v7750 = vlaneseq
    %v7751 = vshrl.u32 %v7750, 7
    %v7752 = vsub.s32 %v4064, %v7751
    %v7753 = vrot.slane %v6603, %v7752
    %v7754 = vsel %vm4069, %v7753, %v7749
    %v7755 = vlaneseq
    %v7756 = vshrl.u32 %v7755, 7
    %v7757 = vsub.s32 %v4071, %v7756
    %v7758 = vrot.slane %v6606, %v7757
    %v7759 = vsel %vm4076, %v7758, %v7754
    %v7760 = vlaneseq
    %v7761 = vshrl.u32 %v7760, 7
    %v7762 = vsub.s32 %v4078, %v7761
    %v7763 = vrot.slane %v6609, %v7762
    %v7764 = vsel %vm4083, %v7763, %v7759
    %v7765 = vlaneseq
    %v7766 = vshrl.u32 %v7765, 7
    %v7767 = vsub.s32 %v4085, %v7766
    %v7768 = vrot.slane %v6612, %v7767
    %v7769 = vsel %vm4090, %v7768, %v7764
    %v7770 = vlaneseq
    %v7771 = vshrl.u32 %v7770, 7
    %v7772 = vsub.s32 %v4092, %v7771
    %v7773 = vrot.slane %v6615, %v7772
    %v7774 = vsel %vm4097, %v7773, %v7769
    %v7775 = vlaneseq
    %v7776 = vshrl.u32 %v7775, 7
    %v7777 = vsub.s32 %v4099, %v7776
    %v7778 = vrot.slane %v6618, %v7777
    %v7779 = vsel %vm4104, %v7778, %v7774
    %v7780 = vlaneseq
    %v7781 = vshrl.u32 %v7780, 7
    %v7782 = vsub.s32 %v4106, %v7781
    %v7783 = vrot.slane %v6621, %v7782
    %v7784 = vsel %vm4111, %v7783, %v7779
    %v7785 = vlaneseq
    %v7786 = vshrl.u32 %v7785, 7
    %v7787 = vsub.s32 %v4113, %v7786
    %v7788 = vrot.slane %v6624, %v7787
    %v7789 = vsel %vm4118, %v7788, %v7784
    %v7790 = vlaneseq
    %v7791 = vshrl.u32 %v7790, 7
    %v7792 = vsub.s32 %v4120, %v7791
    %v7793 = vrot.slane %v6627, %v7792
    %v7794 = vsel %vm4125, %v7793, %v7789
    %v7795 = vlaneseq
    %v7796 = vshrl.u32 %v7795, 7
    %v7797 = vsub.s32 %v4127, %v7796
    %v7798 = vrot.slane %v6630, %v7797
    %v7799 = vsel %vm4132, %v7798, %v7794
    %v7800 = vlaneseq
    %v7801 = vshrl.u32 %v7800, 7
    %v7802 = vsub.s32 %v4134, %v7801
    %v7803 = vrot.slane %v6633, %v7802
    %v7804 = vsel %vm4139, %v7803, %v7799
    %v7805 = vlaneseq
    %v7806 = vshrl.u32 %v7805, 7
    %v7807 = vsub.s32 %v3007, %v7806
    %v7808 = vrot.slane %v6636, %v7807
    %v7809 = vlaneseq
    %v7810 = vshrl.u32 %v7809, 7
    %v7811 = vsub.s32 %v4036, %v7810
    %v7812 = vrot.slane %v6639, %v7811
    %v7813 = vsel %vm4041, %v7812, %v7808
    %v7814 = vlaneseq
    %v7815 = vshrl.u32 %v7814, 7
    %v7816 = vsub.s32 %v4043, %v7815
    %v7817 = vrot.slane %v6642, %v7816
    %v7818 = vsel %vm4048, %v7817, %v7813
    %v7819 = vlaneseq
    %v7820 = vshrl.u32 %v7819, 7
    %v7821 = vsub.s32 %v4050, %v7820
    %v7822 = vrot.slane %v6645, %v7821
    %v7823 = vsel %vm4055, %v7822, %v7818
    %v7824 = vlaneseq
    %v7825 = vshrl.u32 %v7824, 7
    %v7826 = vsub.s32 %v4057, %v7825
    %v7827 = vrot.slane %v6648, %v7826
    %v7828 = vsel %vm4062, %v7827, %v7823
    %v7829 = vlaneseq
    %v7830 = vshrl.u32 %v7829, 7
    %v7831 = vsub.s32 %v4064, %v7830
    %v7832 = vrot.slane %v6651, %v7831
    %v7833 = vsel %vm4069, %v7832, %v7828
    %v7834 = vlaneseq
    %v7835 = vshrl.u32 %v7834, 7
    %v7836 = vsub.s32 %v4071, %v7835
    %v7837 = vrot.slane %v6654, %v7836
    %v7838 = vsel %vm4076, %v7837, %v7833
    %v7839 = vlaneseq
    %v7840 = vshrl.u32 %v7839, 7
    %v7841 = vsub.s32 %v4078, %v7840
    %v7842 = vrot.slane %v6657, %v7841
    %v7843 = vsel %vm4083, %v7842, %v7838
    %v7844 = vlaneseq
    %v7845 = vshrl.u32 %v7844, 7
    %v7846 = vsub.s32 %v4085, %v7845
    %v7847 = vrot.slane %v6660, %v7846
    %v7848 = vsel %vm4090, %v7847, %v7843
    %v7849 = vlaneseq
    %v7850 = vshrl.u32 %v7849, 7
    %v7851 = vsub.s32 %v4092, %v7850
    %v7852 = vrot.slane %v6663, %v7851
    %v7853 = vsel %vm4097, %v7852, %v7848
    %v7854 = vlaneseq
    %v7855 = vshrl.u32 %v7854, 7
    %v7856 = vsub.s32 %v4099, %v7855
    %v7857 = vrot.slane %v6666, %v7856
    %v7858 = vsel %vm4104, %v7857, %v7853
    %v7859 = vlaneseq
    %v7860 = vshrl.u32 %v7859, 7
    %v7861 = vsub.s32 %v4106, %v7860
    %v7862 = vrot.slane %v6669, %v7861
    %v7863 = vsel %vm4111, %v7862, %v7858
    %v7864 = vlaneseq
    %v7865 = vshrl.u32 %v7864, 7
    %v7866 = vsub.s32 %v4113, %v7865
    %v7867 = vrot.slane %v6672, %v7866
    %v7868 = vsel %vm4118, %v7867, %v7863
    %v7869 = vlaneseq
    %v7870 = vshrl.u32 %v7869, 7
    %v7871 = vsub.s32 %v4120, %v7870
    %v7872 = vrot.slane %v6675, %v7871
    %v7873 = vsel %vm4125, %v7872, %v7868
    %v7874 = vlaneseq
    %v7875 = vshrl.u32 %v7874, 7
    %v7876 = vsub.s32 %v4127, %v7875
    %v7877 = vrot.slane %v6678, %v7876
    %v7878 = vsel %vm4132, %v7877, %v7873
    %v7879 = vlaneseq
    %v7880 = vshrl.u32 %v7879, 7
    %v7881 = vsub.s32 %v4134, %v7880
    %v7882 = vrot.slane %v6681, %v7881
    %v7883 = vsel %vm4139, %v7882, %v7878
    %v7884 = vlaneseq
    %v7885 = vshrl.u32 %v7884, 7
    %v7886 = vsub.s32 %v3007, %v7885
    %v7887 = vrot.slane %v6684, %v7886
    %v7888 = vlaneseq
    %v7889 = vshrl.u32 %v7888, 7
    %v7890 = vsub.s32 %v4036, %v7889
    %v7891 = vrot.slane %v6687, %v7890
    %v7892 = vsel %vm4041, %v7891, %v7887
    %v7893 = vlaneseq
    %v7894 = vshrl.u32 %v7893, 7
    %v7895 = vsub.s32 %v4043, %v7894
    %v7896 = vrot.slane %v6690, %v7895
    %v7897 = vsel %vm4048, %v7896, %v7892
    %v7898 = vlaneseq
    %v7899 = vshrl.u32 %v7898, 7
    %v7900 = vsub.s32 %v4050, %v7899
    %v7901 = vrot.slane %v6693, %v7900
    %v7902 = vsel %vm4055, %v7901, %v7897
    %v7903 = vlaneseq
    %v7904 = vshrl.u32 %v7903, 7
    %v7905 = vsub.s32 %v4057, %v7904
    %v7906 = vrot.slane %v6696, %v7905
    %v7907 = vsel %vm4062, %v7906, %v7902
    %v7908 = vlaneseq
    %v7909 = vshrl.u32 %v7908, 7
    %v7910 = vsub.s32 %v4064, %v7909
    %v7911 = vrot.slane %v6699, %v7910
    %v7912 = vsel %vm4069, %v7911, %v7907
    %v7913 = vlaneseq
    %v7914 = vshrl.u32 %v7913, 7
    %v7915 = vsub.s32 %v4071, %v7914
    %v7916 = vrot.slane %v6702, %v7915
    %v7917 = vsel %vm4076, %v7916, %v7912
    %v7918 = vlaneseq
    %v7919 = vshrl.u32 %v7918, 7
    %v7920 = vsub.s32 %v4078, %v7919
    %v7921 = vrot.slane %v6705, %v7920
    %v7922 = vsel %vm4083, %v7921, %v7917
    %v7923 = vlaneseq
    %v7924 = vshrl.u32 %v7923, 7
    %v7925 = vsub.s32 %v4085, %v7924
    %v7926 = vrot.slane %v6708, %v7925
    %v7927 = vsel %vm4090, %v7926, %v7922
    %v7928 = vlaneseq
    %v7929 = vshrl.u32 %v7928, 7
    %v7930 = vsub.s32 %v4092, %v7929
    %v7931 = vrot.slane %v6711, %v7930
    %v7932 = vsel %vm4097, %v7931, %v7927
    %v7933 = vlaneseq
    %v7934 = vshrl.u32 %v7933, 7
    %v7935 = vsub.s32 %v4099, %v7934
    %v7936 = vrot.slane %v6714, %v7935
    %v7937 = vsel %vm4104, %v7936, %v7932
    %v7938 = vlaneseq
    %v7939 = vshrl.u32 %v7938, 7
    %v7940 = vsub.s32 %v4106, %v7939
    %v7941 = vrot.slane %v6717, %v7940
    %v7942 = vsel %vm4111, %v7941, %v7937
    %v7943 = vlaneseq
    %v7944 = vshrl.u32 %v7943, 7
    %v7945 = vsub.s32 %v4113, %v7944
    %v7946 = vrot.slane %v6720, %v7945
    %v7947 = vsel %vm4118, %v7946, %v7942
    %v7948 = vlaneseq
    %v7949 = vshrl.u32 %v7948, 7
    %v7950 = vsub.s32 %v4120, %v7949
    %v7951 = vrot.slane %v6723, %v7950
    %v7952 = vsel %vm4125, %v7951, %v7947
    %v7953 = vlaneseq
    %v7954 = vshrl.u32 %v7953, 7
    %v7955 = vsub.s32 %v4127, %v7954
    %v7956 = vrot.slane %v6726, %v7955
    %v7957 = vsel %vm4132, %v7956, %v7952
    %v7958 = vlaneseq
    %v7959 = vshrl.u32 %v7958, 7
    %v7960 = vsub.s32 %v4134, %v7959
    %v7961 = vrot.slane %v6729, %v7960
    %v7962 = vsel %vm4139, %v7961, %v7957
    %v7963 = vlaneseq
    %v7964 = vshrl.u32 %v7963, 7
    %v7965 = vsub.s32 %v3007, %v7964
    %v7966 = vrot.slane %v6732, %v7965
    %v7967 = vlaneseq
    %v7968 = vshrl.u32 %v7967, 7
    %v7969 = vsub.s32 %v4036, %v7968
    %v7970 = vrot.slane %v6735, %v7969
    %v7971 = vsel %vm4041, %v7970, %v7966
    %v7972 = vlaneseq
    %v7973 = vshrl.u32 %v7972, 7
    %v7974 = vsub.s32 %v4043, %v7973
    %v7975 = vrot.slane %v6738, %v7974
    %v7976 = vsel %vm4048, %v7975, %v7971
    %v7977 = vlaneseq
    %v7978 = vshrl.u32 %v7977, 7
    %v7979 = vsub.s32 %v4050, %v7978
    %v7980 = vrot.slane %v6741, %v7979
    %v7981 = vsel %vm4055, %v7980, %v7976
    %v7982 = vlaneseq
    %v7983 = vshrl.u32 %v7982, 7
    %v7984 = vsub.s32 %v4057, %v7983
    %v7985 = vrot.slane %v6744, %v7984
    %v7986 = vsel %vm4062, %v7985, %v7981
    %v7987 = vlaneseq
    %v7988 = vshrl.u32 %v7987, 7
    %v7989 = vsub.s32 %v4064, %v7988
    %v7990 = vrot.slane %v6747, %v7989
    %v7991 = vsel %vm4069, %v7990, %v7986
    %v7992 = vlaneseq
    %v7993 = vshrl.u32 %v7992, 7
    %v7994 = vsub.s32 %v4071, %v7993
    %v7995 = vrot.slane %v6750, %v7994
    %v7996 = vsel %vm4076, %v7995, %v7991
    %v7997 = vlaneseq
    %v7998 = vshrl.u32 %v7997, 7
    %v7999 = vsub.s32 %v4078, %v7998
    %v8000 = vrot.slane %v6753, %v7999
    %v8001 = vsel %vm4083, %v8000, %v7996
    %v8002 = vlaneseq
    %v8003 = vshrl.u32 %v8002, 7
    %v8004 = vsub.s32 %v4085, %v8003
    %v8005 = vrot.slane %v6756, %v8004
    %v8006 = vsel %vm4090, %v8005, %v8001
    %v8007 = vlaneseq
    %v8008 = vshrl.u32 %v8007, 7
    %v8009 = vsub.s32 %v4092, %v8008
    %v8010 = vrot.slane %v6759, %v8009
    %v8011 = vsel %vm4097, %v8010, %v8006
    %v8012 = vlaneseq
    %v8013 = vshrl.u32 %v8012, 7
    %v8014 = vsub.s32 %v4099, %v8013
    %v8015 = vrot.slane %v6762, %v8014
    %v8016 = vsel %vm4104, %v8015, %v8011
    %v8017 = vlaneseq
    %v8018 = vshrl.u32 %v8017, 7
    %v8019 = vsub.s32 %v4106, %v8018
    %v8020 = vrot.slane %v6765, %v8019
    %v8021 = vsel %vm4111, %v8020, %v8016
    %v8022 = vlaneseq
    %v8023 = vshrl.u32 %v8022, 7
    %v8024 = vsub.s32 %v4113, %v8023
    %v8025 = vrot.slane %v6768, %v8024
    %v8026 = vsel %vm4118, %v8025, %v8021
    %v8027 = vlaneseq
    %v8028 = vshrl.u32 %v8027, 7
    %v8029 = vsub.s32 %v4120, %v8028
    %v8030 = vrot.slane %v6771, %v8029
    %v8031 = vsel %vm4125, %v8030, %v8026
    %v8032 = vlaneseq
    %v8033 = vshrl.u32 %v8032, 7
    %v8034 = vsub.s32 %v4127, %v8033
    %v8035 = vrot.slane %v6774, %v8034
    %v8036 = vsel %vm4132, %v8035, %v8031
    %v8037 = vlaneseq
    %v8038 = vshrl.u32 %v8037, 7
    %v8039 = vsub.s32 %v4134, %v8038
    %v8040 = vrot.slane %v6777, %v8039
    %v8041 = vsel %vm4139, %v8040, %v8036
    %v8042 = vsel %vm5326, %v6935, %v6856
    %v8043 = vsel %vm5328, %v7014, %v8042
    %v8044 = vsel %vm5330, %v7093, %v8043
    %v8045 = vsel %vm5332, %v7172, %v8044
    %v8046 = vsel %vm5334, %v7251, %v8045
    %v8047 = vsel %vm5336, %v7330, %v8046
    %v8048 = vsel %vm5338, %v7409, %v8047
    %v8049 = vsel %vm5326, %v7567, %v7488
    %v8050 = vsel %vm5328, %v7646, %v8049
    %v8051 = vsel %vm5330, %v7725, %v8050
    %v8052 = vsel %vm5332, %v7804, %v8051
    %v8053 = vsel %vm5334, %v7883, %v8052
    %v8054 = vsel %vm5336, %v7962, %v8053
    %v8055 = vsel %vm5338, %v8041, %v8054
    %v8056 = vand.u32 %v8048, 65535
    %v8057 = vshra.s32 %v8048, 16
    %v8058 = vcvt.s32.f32 %v8056
    %v8059 = vcvt.s32.f32 %v8057
    %8060 = vmin.xlane.f32.xlu0 %v8059
    %v8061 = vpop.xlane.xlu0 %8060
    %vm8062 = vcmp.eq.f32.partialorder %v8059, %v8061
    %v8063 = vsel %vm8062, %v8058, inf
    %8064 = vmin.xlane.f32.xlu0 %v8063
    %v8065 = vpop.xlane.xlu0 %8064
    %v8066 = vcvt.f32.s32 %v8065
    %v8067 = vcvt.f32.s32 %v8061
    %v8068 = vshll.u32 %v8067, 16
    %v8069 = vadd.s32 %v8068, %v8066
    %v8070 = vand.u32 %v8055, 65535
    %v8071 = vshra.s32 %v8055, 16
    %v8072 = vcvt.s32.f32 %v8070
    %v8073 = vcvt.s32.f32 %v8071
    %8074 = vmin.xlane.f32.xlu0 %v8073
    %v8075 = vpop.xlane.xlu0 %8074
    %vm8076 = vcmp.eq.f32.partialorder %v8073, %v8075
    %v8077 = vsel %vm8076, %v8072, inf
    %8078 = vmin.xlane.f32.xlu0 %v8077
    %v8079 = vpop.xlane.xlu0 %8078
    %v8080 = vcvt.f32.s32 %v8079
    %v8081 = vcvt.f32.s32 %v8075
    %v8082 = vshll.u32 %v8081, 16
    %v8083 = vadd.s32 %v8082, %v8080
    %vm8084 = vcmp.eq.s32.totalorder %v3007, %v8069
    %vm8085 = vcmp.eq.s32.totalorder %v3007, %v8083
    %v8086 = vsel %vm8084, 1, 0
    %v8087 = vsel %vm8085, 1, 0
    %v8088 = vcvt.s32.f32 %v8086
    %v8089 = vcvt.s32.f32 %v8087
    %8090 = vmatprep.subr.mxu0 0.0
    %8091 = vmatpush1.msra.mxu0 %v1209
    %8092 = vmatprep.subr.mxu0 0.0
    %8093 = vmatpush1.msra.mxu0 %v1210
    %8094 = vmatprep.subr.mxu0 0.0
    %8095 = vmatpush1.msra.mxu0 %v1211
    %8096 = vmatprep.subr.mxu0 0.0
    %8097 = vmatpush1.msra.mxu0 %v1212
    %8098 = vmatprep.subr.mxu0 0.0
    %8099 = vmatpush1.msra.mxu0 %v1213
    %8100 = vmatprep.subr.mxu0 0.0
    %8101 = vmatpush1.msra.mxu0 %v1214
    %8102 = vmatprep.subr.mxu0 0.0
    %8103 = vmatpush1.msra.mxu0 %v1215
    %8104 = vmatprep.subr.mxu0 0.0
    %8105 = vmatpush1.msra.mxu0 %v1216
    %8106 = vmatprep.subr.mxu0 0.0
    %8107 = vmatpush1.msra.mxu0 %v1217
    %8108 = vmatprep.subr.mxu0 0.0
    %8109 = vmatpush1.msra.mxu0 %v1218
    %8110 = vmatprep.subr.mxu0 0.0
    %8111 = vmatpush1.msra.mxu0 %v1219
    %8112 = vmatprep.subr.mxu0 0.0
    %8113 = vmatpush1.msra.mxu0 %v1220
    %8114 = vmatprep.subr.mxu0 0.0
    %8115 = vmatpush1.msra.mxu0 %v1221
    %8116 = vmatprep.subr.mxu0 0.0
    %8117 = vmatpush1.msra.mxu0 %v1222
    %8118 = vmatprep.subr.mxu0 0.0
    %8119 = vmatpush1.msra.mxu0 %v1223
    %8120 = vmatprep.subr.mxu0 0.0
    %8121 = vmatpush1.msra.mxu0 %v1224
    %8122 = vmatprep.subr.mxu0 0.0
    %8123 = vmatpush1.msra.mxu0 0.0
    %8124 = vmatprep.subr.mxu0 0.0
    %8125 = vmatpush1.msra.mxu0 0.0
    %8126 = vmatprep.subr.mxu0 0.0
    %8127 = vmatpush1.msra.mxu0 0.0
    %8128 = vmatprep.subr.mxu0 0.0
    %8129 = vmatpush1.msra.mxu0 0.0
    %8130 = vmatprep.subr.mxu0 0.0
    %8131 = vmatpush1.msra.mxu0 0.0
    %8132 = vmatprep.subr.mxu0 0.0
    %8133 = vmatpush1.msra.mxu0 0.0
    %8134 = vmatprep.subr.mxu0 0.0
    %8135 = vmatpush1.msra.mxu0 0.0
    %8136 = vmatprep.subr.mxu0 0.0
    %8137 = vmatpush1.msra.mxu0 0.0
    %8138 = vmatprep.subr.mxu0 0.0
    %8139 = vmatpush1.msra.mxu0 0.0
    %8140 = vmatprep.subr.mxu0 0.0
    %8141 = vmatpush1.msra.mxu0 0.0
    %8142 = vmatprep.subr.mxu0 0.0
    %8143 = vmatpush1.msra.mxu0 0.0
    %8144 = vmatprep.subr.mxu0 0.0
    %8145 = vmatpush1.msra.mxu0 0.0
    %8146 = vmatprep.subr.mxu0 0.0
    %8147 = vmatpush1.msra.mxu0 0.0
    %8148 = vmatprep.subr.mxu0 0.0
    %8149 = vmatpush1.msra.mxu0 0.0
    %8150 = vmatprep.subr.mxu0 0.0
    %8151 = vmatpush1.msra.mxu0 0.0
    %8152 = vmatprep.subr.mxu0 0.0
    %8153 = vmatpush1.msra.mxu0 0.0
    %8154 = vmatprep.mubr.f32.mxu0 0.0
    %8155 = vmatmul.mubr.f32.gmra.mrb[0].mxu0 %v8088
    %v8156 = vpop.f32.mrb[0].mxu0
    %v8157 = vadd.f32 0.0, %v8156
    %v8158 = vpop.f32.mrb[0].mxu0
    %8159 = vmatprep.mubr.f32.mxu0 0.0
    %8160 = vmatmul.mubr.f32.gmra.mrb[0].mxu0 %v8089
    %v8161 = vpop.f32.mrb[0].mxu0
    %v8162 = vadd.f32 0.0, %v8161
    %v8163 = vpop.f32.mrb[0].mxu0
    %8164 = vdwg.mxu0
    %v8165 = vsub.f32 %v8157, %v1207
    %v8166 = vsub.f32 %v8162, %v1208
    %v8167 = vmul.f32 %v8165, %v8165
    %v8168 = vmul.f32 %v8166, %v8166
    %v8169 = vsel %vm164, %v8167, 0.0
    %v8170 = vsel %vm164, %v8168, 0.0
    %v8171 = vadd.f32 %v8169, %v8170
    %8172 = vadd.xlane.f32.xlu0 %v8171
    %v8173 = vpop.xlane.xlu0 %8172
    %v8174 = vrot.slane %v8173, 4
    %v8175 = vadd.f32 %v8173, %v8174
    %v8176 = vrot.slane %v8175, 2
    %v8177 = vadd.f32 %v8175, %v8176
    %v8178 = vrot.slane %v8177, 1
    %v8179 = vadd.f32 %v8177, %v8178
    %s8180 = vtos %v8179
    %v8181 = vstv %s8180
    %v8182 = vrcp.pop 512.0
    %v8183 = vmul.f32 %v8181, %v8182
    %8184 = vst [vmem:[%s18] sm:$0xff] %v8069
    %8185 = vst [vmem:[%s18 + $0x8] sm:$0xff] %v8083
    %v8186 = vld [vmem:[%s8] sm:$0xff]
    %v8187 = vld [vmem:[%s8 + $0x8] sm:$0xff]
    %v8188 = vld [vmem:[%s8 + $0x10] sm:$0xff]
    %v8189 = vld [vmem:[%s8 + $0x18] sm:$0xff]
    %v8190 = vld [vmem:[%s8 + $0x20] sm:$0xff]
    %v8191 = vld [vmem:[%s8 + $0x28] sm:$0xff]
    %v8192 = vld [vmem:[%s8 + $0x30] sm:$0xff]
    %v8193 = vld [vmem:[%s8 + $0x38] sm:$0xff]
    %v8194 = vld [vmem:[%s8 + $0x40] sm:$0xff]
    %v8195 = vld [vmem:[%s8 + $0x48] sm:$0xff]
    %v8196 = vld [vmem:[%s8 + $0x50] sm:$0xff]
    %v8197 = vld [vmem:[%s8 + $0x58] sm:$0xff]
    %v8198 = vld [vmem:[%s10] sm:$0xff]
    %v8199 = vlaneseq
    %v8200 = vshrl.u32 %v8199, 7
    %v8201 = vsub.s32 0, %v8200
    %v8202 = vrot.slane %v8198, %v8201
    %v8204 = vsel %vm164, %v8157, 0
    %v8207 = vsel %vm164, %v8162, 0
    %8209 = vmatprep.subr.mxu0 0.0
    %8210 = vmatpush1.msra.mxu0 %v8188
    %8211 = vmatprep.subr.mxu0 0.0
    %8212 = vmatpush1.msra.mxu0 %v8191
    %8213 = vmatprep.subr.mxu0 0.0
    %8214 = vmatpush1.msra.mxu0 %v8194
    %8215 = vmatprep.subr.mxu0 0.0
    %8216 = vmatpush1.msra.mxu0 %v8197
    %8217 = vmatprep.subr.mxu0 0.0
    %8218 = vmatpush1.msra.mxu0 0.0
    %8219 = vmatprep.subr.mxu0 0.0
    %8220 = vmatpush1.msra.mxu0 0.0
    %8221 = vmatprep.subr.mxu0 0.0
    %8222 = vmatpush1.msra.mxu0 0.0
    %8223 = vmatprep.subr.mxu0 0.0
    %8224 = vmatpush1.msra.mxu0 0.0
    %8225 = vmatprep.subr.mxu0 0.0
    %8226 = vmatpush1.msra.mxu0 0.0
    %8227 = vmatprep.subr.mxu0 0.0
    %8228 = vmatpush1.msra.mxu0 0.0
    %8229 = vmatprep.subr.mxu0 0.0
    %8230 = vmatpush1.msra.mxu0 0.0
    %8231 = vmatprep.subr.mxu0 0.0
    %8232 = vmatpush1.msra.mxu0 0.0
    %8233 = vmatprep.subr.mxu0 0.0
    %8234 = vmatpush1.msra.mxu0 0.0
    %8235 = vmatprep.subr.mxu0 0.0
    %8236 = vmatpush1.msra.mxu0 0.0
    %8237 = vmatprep.subr.mxu0 0.0
    %8238 = vmatpush1.msra.mxu0 0.0
    %8239 = vmatprep.subr.mxu0 0.0
    %8240 = vmatpush1.msra.mxu0 0.0
    %8241 = vmatprep.subr.mxu0 0.0
    %8242 = vmatpush1.msra.mxu0 0.0
    %8243 = vmatprep.subr.mxu0 0.0
    %8244 = vmatpush1.msra.mxu0 0.0
    %8245 = vmatprep.subr.mxu0 0.0
    %8246 = vmatpush1.msra.mxu0 0.0
    %8247 = vmatprep.subr.mxu0 0.0
    %8248 = vmatpush1.msra.mxu0 0.0
    %8249 = vmatprep.subr.mxu0 0.0
    %8250 = vmatpush1.msra.mxu0 0.0
    %8251 = vmatprep.subr.mxu0 0.0
    %8252 = vmatpush1.msra.mxu0 0.0
    %8253 = vmatprep.subr.mxu0 0.0
    %8254 = vmatpush1.msra.mxu0 0.0
    %8255 = vmatprep.subr.mxu0 0.0
    %8256 = vmatpush1.msra.mxu0 0.0
    %8257 = vmatprep.subr.mxu0 0.0
    %8258 = vmatpush1.msra.mxu0 0.0
    %8259 = vmatprep.subr.mxu0 0.0
    %8260 = vmatpush1.msra.mxu0 0.0
    %8261 = vmatprep.subr.mxu0 0.0
    %8262 = vmatpush1.msra.mxu0 0.0
    %8263 = vmatprep.subr.mxu0 0.0
    %8264 = vmatpush1.msra.mxu0 0.0
    %8265 = vmatprep.subr.mxu0 0.0
    %8266 = vmatpush1.msra.mxu0 0.0
    %8267 = vmatprep.subr.mxu0 0.0
    %8268 = vmatpush1.msra.mxu0 0.0
    %8269 = vmatprep.subr.mxu0 0.0
    %8270 = vmatpush1.msra.mxu0 0.0
    %8271 = vmatprep.subr.mxu0 0.0
    %8272 = vmatpush1.msra.mxu0 0.0
    %8273 = vmatprep.mubr.f32.mxu0 0.0
    %8274 = vmatmul.mubr.f32.gmra.mrb[0].mxu0 %v8204
    %v8275 = vpop.f32.mrb[0].mxu0
    %v8276 = vadd.f32 %v8202, %v8275
    %v8277 = vpop.f32.mrb[0].mxu0
    %8278 = vmatprep.mubr.f32.mxu0 0.0
    %8279 = vmatmul.mubr.f32.gmra.mrb[0].mxu0 %v8207
    %v8280 = vpop.f32.mrb[0].mxu0
    %v8281 = vadd.f32 %v8202, %v8280
    %v8282 = vpop.f32.mrb[0].mxu0
    %8283 = vdwg.mxu0
    %v8284 = vsel %vm164, %v8276, 0.0
    %8285 = vadd.xlane.f32.xlu0 %v8284
    %v8286 = vpop.xlane.xlu0 %8285
    %v8287 = vsel %vm164, %v8281, 0.0
    %8288 = vadd.xlane.f32.xlu0 %v8287
    %v8289 = vpop.xlane.xlu0 %8288
    %v8290 = vmul.f32 %v8286, %v171
    %v8291 = vmul.f32 %v8289, %v171
    %v8292 = vsub.f32 %v8276, %v8290
    %v8293 = vsub.f32 %v8281, %v8291
    %v8294 = vmul.f32 %v8292, %v8292
    %v8295 = vmul.f32 %v8293, %v8293
    %v8296 = vsel %vm164, %v8294, 0.0
    %8297 = vadd.xlane.f32.xlu0 %v8296
    %v8298 = vpop.xlane.xlu0 %8297
    %v8299 = vsel %vm164, %v8295, 0.0
    %8300 = vadd.xlane.f32.xlu0 %v8299
    %v8301 = vpop.xlane.xlu0 %8300
    %v8302 = vmul.f32 %v8298, %v171
    %v8303 = vmul.f32 %v8301, %v171
    %v8304 = vadd.f32 %v8302, 1e-05
    %v8305 = vadd.f32 %v8303, 1e-05
    %v8306 = vrsqrt.pop %v8304
    %v8307 = vrsqrt.pop %v8305
    %v8308 = vmul.f32 %v8292, %v8306
    %v8309 = vmul.f32 %v8293, %v8307
    %v8310 = vlaneseq
    %v8311 = vshrl.u32 %v8310, 7
    %v8312 = vsub.s32 1, %v8311
    %v8313 = vrot.slane %v8198, %v8312
    %v8314 = vmul.f32 %v8308, %v8313
    %v8315 = vmul.f32 %v8309, %v8313
    %v8316 = vlaneseq
    %v8317 = vshrl.u32 %v8316, 7
    %v8318 = vsub.s32 2, %v8317
    %v8319 = vrot.slane %v8198, %v8318
    %v8320 = vadd.f32 %v8314, %v8319
    %v8321 = vadd.f32 %v8315, %v8319
    %v8323 = vsel %vm164, %v8320, 0
    %v8326 = vsel %vm164, %v8321, 0
    %8328 = vmatprep.subr.mxu0 0.0
    %8329 = vmatpush1.msra.mxu0 %v8187
    %8330 = vmatprep.subr.mxu0 0.0
    %8331 = vmatpush1.msra.mxu0 %v8190
    %8332 = vmatprep.subr.mxu0 0.0
    %8333 = vmatpush1.msra.mxu0 %v8193
    %8334 = vmatprep.subr.mxu0 0.0
    %8335 = vmatpush1.msra.mxu0 %v8196
    %8336 = vmatprep.subr.mxu0 0.0
    %8337 = vmatpush1.msra.mxu0 0.0
    %8338 = vmatprep.subr.mxu0 0.0
    %8339 = vmatpush1.msra.mxu0 0.0
    %8340 = vmatprep.subr.mxu0 0.0
    %8341 = vmatpush1.msra.mxu0 0.0
    %8342 = vmatprep.subr.mxu0 0.0
    %8343 = vmatpush1.msra.mxu0 0.0
    %8344 = vmatprep.subr.mxu0 0.0
    %8345 = vmatpush1.msra.mxu0 0.0
    %8346 = vmatprep.subr.mxu0 0.0
    %8347 = vmatpush1.msra.mxu0 0.0
    %8348 = vmatprep.subr.mxu0 0.0
    %8349 = vmatpush1.msra.mxu0 0.0
    %8350 = vmatprep.subr.mxu0 0.0
    %8351 = vmatpush1.msra.mxu0 0.0
    %8352 = vmatprep.subr.mxu0 0.0
    %8353 = vmatpush1.msra.mxu0 0.0
    %8354 = vmatprep.subr.mxu0 0.0
    %8355 = vmatpush1.msra.mxu0 0.0
    %8356 = vmatprep.subr.mxu0 0.0
    %8357 = vmatpush1.msra.mxu0 0.0
    %8358 = vmatprep.subr.mxu0 0.0
    %8359 = vmatpush1.msra.mxu0 0.0
    %8360 = vmatprep.subr.mxu0 0.0
    %8361 = vmatpush1.msra.mxu0 0.0
    %8362 = vmatprep.subr.mxu0 0.0
    %8363 = vmatpush1.msra.mxu0 0.0
    %8364 = vmatprep.subr.mxu0 0.0
    %8365 = vmatpush1.msra.mxu0 0.0
    %8366 = vmatprep.subr.mxu0 0.0
    %8367 = vmatpush1.msra.mxu0 0.0
    %8368 = vmatprep.subr.mxu0 0.0
    %8369 = vmatpush1.msra.mxu0 0.0
    %8370 = vmatprep.subr.mxu0 0.0
    %8371 = vmatpush1.msra.mxu0 0.0
    %8372 = vmatprep.subr.mxu0 0.0
    %8373 = vmatpush1.msra.mxu0 0.0
    %8374 = vmatprep.subr.mxu0 0.0
    %8375 = vmatpush1.msra.mxu0 0.0
    %8376 = vmatprep.subr.mxu0 0.0
    %8377 = vmatpush1.msra.mxu0 0.0
    %8378 = vmatprep.subr.mxu0 0.0
    %8379 = vmatpush1.msra.mxu0 0.0
    %8380 = vmatprep.subr.mxu0 0.0
    %8381 = vmatpush1.msra.mxu0 0.0
    %8382 = vmatprep.subr.mxu0 0.0
    %8383 = vmatpush1.msra.mxu0 0.0
    %8384 = vmatprep.subr.mxu0 0.0
    %8385 = vmatpush1.msra.mxu0 0.0
    %8386 = vmatprep.subr.mxu0 0.0
    %8387 = vmatpush1.msra.mxu0 0.0
    %8388 = vmatprep.subr.mxu0 0.0
    %8389 = vmatpush1.msra.mxu0 0.0
    %8390 = vmatprep.subr.mxu0 0.0
    %8391 = vmatpush1.msra.mxu0 0.0
    %8392 = vmatprep.mubr.f32.mxu0 0.0
    %8393 = vmatmul.mubr.f32.gmra.mrb[0].mxu0 %v8323
    %v8394 = vpop.f32.mrb[0].mxu0
    %v8395 = vadd.f32 0.0, %v8394
    %v8396 = vpop.f32.mrb[0].mxu0
    %8397 = vmatprep.mubr.f32.mxu0 0.0
    %8398 = vmatmul.mubr.f32.gmra.mrb[0].mxu0 %v8326
    %v8399 = vpop.f32.mrb[0].mxu0
    %v8400 = vadd.f32 0.0, %v8399
    %v8401 = vpop.f32.mrb[0].mxu0
    %8402 = vdwg.mxu0
    %8404 = vrot.lane.b32.xlu0 %v8395, 96
    %v8405 = vpop.permute.xlu0 %8404
    %v8406 = vsel %vm164, %v8395, 0
    %v8408 = vsel %vm164, %v8405, 0
    %8410 = vmatprep.subr.mxu0 0.0
    %8411 = vmatpush1.xpose.msra.mxu0 %v8408
    %8412 = vmatprep.subr.mxu0 0.0
    %8413 = vmatpush1.xpose.msra.mxu0 0.0
    %8414 = vmatprep.subr.mxu0 0.0
    %8415 = vmatpush1.xpose.msra.mxu0 0.0
    %8416 = vmatprep.subr.mxu0 0.0
    %8417 = vmatpush1.xpose.msra.mxu0 0.0
    %8418 = vmatprep.subr.mxu0 0.0
    %8419 = vmatpush1.xpose.msra.mxu0 0.0
    %8420 = vmatprep.subr.mxu0 0.0
    %8421 = vmatpush1.xpose.msra.mxu0 0.0
    %8422 = vmatprep.subr.mxu0 0.0
    %8423 = vmatpush1.xpose.msra.mxu0 0.0
    %8424 = vmatprep.subr.mxu0 0.0
    %8425 = vmatpush1.xpose.msra.mxu0 0.0
    %8426 = vmatprep.subr.mxu0 0.0
    %8427 = vmatpush1.xpose.msra.mxu0 0.0
    %8428 = vmatprep.subr.mxu0 0.0
    %8429 = vmatpush1.xpose.msra.mxu0 0.0
    %8430 = vmatprep.subr.mxu0 0.0
    %8431 = vmatpush1.xpose.msra.mxu0 0.0
    %8432 = vmatprep.subr.mxu0 0.0
    %8433 = vmatpush1.xpose.msra.mxu0 0.0
    %8434 = vmatprep.subr.mxu0 0.0
    %8435 = vmatpush1.xpose.msra.mxu0 0.0
    %8436 = vmatprep.subr.mxu0 0.0
    %8437 = vmatpush1.xpose.msra.mxu0 0.0
    %8438 = vmatprep.subr.mxu0 0.0
    %8439 = vmatpush1.xpose.msra.mxu0 0.0
    %8440 = vmatprep.subr.mxu0 0.0
    %8441 = vmatpush1.xpose.msra.mxu0 0.0
    %8442 = vmatprep.subr.mxu0 0.0
    %8443 = vmatpush1.xpose.msra.mxu0 0.0
    %8444 = vmatprep.subr.mxu0 0.0
    %8445 = vmatpush1.xpose.msra.mxu0 0.0
    %8446 = vmatprep.subr.mxu0 0.0
    %8447 = vmatpush1.xpose.msra.mxu0 0.0
    %8448 = vmatprep.subr.mxu0 0.0
    %8449 = vmatpush1.xpose.msra.mxu0 0.0
    %8450 = vmatprep.subr.mxu0 0.0
    %8451 = vmatpush1.xpose.msra.mxu0 0.0
    %8452 = vmatprep.subr.mxu0 0.0
    %8453 = vmatpush1.xpose.msra.mxu0 0.0
    %8454 = vmatprep.subr.mxu0 0.0
    %8455 = vmatpush1.xpose.msra.mxu0 0.0
    %8456 = vmatprep.subr.mxu0 0.0
    %8457 = vmatpush1.xpose.msra.mxu0 0.0
    %8458 = vmatprep.subr.mxu0 0.0
    %8459 = vmatpush1.xpose.msra.mxu0 0.0
    %8460 = vmatprep.subr.mxu0 0.0
    %8461 = vmatpush1.xpose.msra.mxu0 0.0
    %8462 = vmatprep.subr.mxu0 0.0
    %8463 = vmatpush1.xpose.msra.mxu0 0.0
    %8464 = vmatprep.subr.mxu0 0.0
    %8465 = vmatpush1.xpose.msra.mxu0 0.0
    %8466 = vmatprep.subr.mxu0 0.0
    %8467 = vmatpush1.xpose.msra.mxu0 0.0
    %8468 = vmatprep.subr.mxu0 0.0
    %8469 = vmatpush1.xpose.msra.mxu0 0.0
    %8470 = vmatprep.subr.mxu0 0.0
    %8471 = vmatpush1.xpose.msra.mxu0 0.0
    %8472 = vmatprep.subr.mxu0 0.0
    %8473 = vmatpush1.xpose.msra.mxu0 0.0
    %8474 = vmatprep.mubr.f32.mxu0 0.0
    %8475 = vmatmul.mubr.f32.gmra.mrb[0].mxu0 %v8406
    %v8476 = vpop.f32.mrb[0].mxu0
    %v8477 = vadd.f32 0.0, %v8476
    %v8478 = vpop.f32.mrb[0].mxu0
    %8479 = vdwg.mxu0
    %8481 = vrot.lane.b32.xlu0 %v8400, 96
    %v8482 = vpop.permute.xlu0 %8481
    %v8483 = vsel %vm164, %v8400, 0
    %v8485 = vsel %vm164, %v8482, 0
    %8487 = vmatprep.subr.mxu0 0.0
    %8488 = vmatpush1.xpose.msra.mxu0 %v8485
    %8489 = vmatprep.subr.mxu0 0.0
    %8490 = vmatpush1.xpose.msra.mxu0 0.0
    %8491 = vmatprep.subr.mxu0 0.0
    %8492 = vmatpush1.xpose.msra.mxu0 0.0
    %8493 = vmatprep.subr.mxu0 0.0
    %8494 = vmatpush1.xpose.msra.mxu0 0.0
    %8495 = vmatprep.subr.mxu0 0.0
    %8496 = vmatpush1.xpose.msra.mxu0 0.0
    %8497 = vmatprep.subr.mxu0 0.0
    %8498 = vmatpush1.xpose.msra.mxu0 0.0
    %8499 = vmatprep.subr.mxu0 0.0
    %8500 = vmatpush1.xpose.msra.mxu0 0.0
    %8501 = vmatprep.subr.mxu0 0.0
    %8502 = vmatpush1.xpose.msra.mxu0 0.0
    %8503 = vmatprep.subr.mxu0 0.0
    %8504 = vmatpush1.xpose.msra.mxu0 0.0
    %8505 = vmatprep.subr.mxu0 0.0
    %8506 = vmatpush1.xpose.msra.mxu0 0.0
    %8507 = vmatprep.subr.mxu0 0.0
    %8508 = vmatpush1.xpose.msra.mxu0 0.0
    %8509 = vmatprep.subr.mxu0 0.0
    %8510 = vmatpush1.xpose.msra.mxu0 0.0
    %8511 = vmatprep.subr.mxu0 0.0
    %8512 = vmatpush1.xpose.msra.mxu0 0.0
    %8513 = vmatprep.subr.mxu0 0.0
    %8514 = vmatpush1.xpose.msra.mxu0 0.0
    %8515 = vmatprep.subr.mxu0 0.0
    %8516 = vmatpush1.xpose.msra.mxu0 0.0
    %8517 = vmatprep.subr.mxu0 0.0
    %8518 = vmatpush1.xpose.msra.mxu0 0.0
    %8519 = vmatprep.subr.mxu0 0.0
    %8520 = vmatpush1.xpose.msra.mxu0 0.0
    %8521 = vmatprep.subr.mxu0 0.0
    %8522 = vmatpush1.xpose.msra.mxu0 0.0
    %8523 = vmatprep.subr.mxu0 0.0
    %8524 = vmatpush1.xpose.msra.mxu0 0.0
    %8525 = vmatprep.subr.mxu0 0.0
    %8526 = vmatpush1.xpose.msra.mxu0 0.0
    %8527 = vmatprep.subr.mxu0 0.0
    %8528 = vmatpush1.xpose.msra.mxu0 0.0
    %8529 = vmatprep.subr.mxu0 0.0
    %8530 = vmatpush1.xpose.msra.mxu0 0.0
    %8531 = vmatprep.subr.mxu0 0.0
    %8532 = vmatpush1.xpose.msra.mxu0 0.0
    %8533 = vmatprep.subr.mxu0 0.0
    %8534 = vmatpush1.xpose.msra.mxu0 0.0
    %8535 = vmatprep.subr.mxu0 0.0
    %8536 = vmatpush1.xpose.msra.mxu0 0.0
    %8537 = vmatprep.subr.mxu0 0.0
    %8538 = vmatpush1.xpose.msra.mxu0 0.0
    %8539 = vmatprep.subr.mxu0 0.0
    %8540 = vmatpush1.xpose.msra.mxu0 0.0
    %8541 = vmatprep.subr.mxu0 0.0
    %8542 = vmatpush1.xpose.msra.mxu0 0.0
    %8543 = vmatprep.subr.mxu0 0.0
    %8544 = vmatpush1.xpose.msra.mxu0 0.0
    %8545 = vmatprep.subr.mxu0 0.0
    %8546 = vmatpush1.xpose.msra.mxu0 0.0
    %8547 = vmatprep.subr.mxu0 0.0
    %8548 = vmatpush1.xpose.msra.mxu0 0.0
    %8549 = vmatprep.subr.mxu0 0.0
    %8550 = vmatpush1.xpose.msra.mxu0 0.0
    %8551 = vmatprep.mubr.f32.mxu0 0.0
    %8552 = vmatmul.mubr.f32.gmra.mrb[0].mxu0 %v8483
    %v8553 = vpop.f32.mrb[0].mxu0
    %v8554 = vadd.f32 0.0, %v8553
    %v8555 = vpop.f32.mrb[0].mxu0
    %8556 = vdwg.mxu0
    %v8557 = vmul.f32 %v8477, 0.17677669
    %v8558 = vmul.f32 %v8554, 0.17677669
    %v8559 = vsel %vm478, %v8557, -1e+09
    %v8560 = vsel %vm479, %v8558, -1e+09
    %v8561 = vsel %vm482, %v8559, -inf
    %8562 = vmax.xlane.f32.xlu0 %v8561
    %v8563 = vpop.xlane.xlu0 %8562
    %v8564 = vsel %vm482, %v8560, -inf
    %8565 = vmax.xlane.f32.xlu0 %v8564
    %v8566 = vpop.xlane.xlu0 %8565
    %v8567 = vsub.f32 %v8559, %v8563
    %v8568 = vsub.f32 %v8560, %v8566
    %v8569 = vmul.f32 %v8567, 1.442695
    %v8570 = vpow.pop %v8569
    %v8571 = vmul.f32 %v8568, 1.442695
    %v8572 = vpow.pop %v8571
    %v8573 = vsel %vm482, %v8570, 0.0
    %8574 = vadd.xlane.f32.xlu0 %v8573
    %v8575 = vpop.xlane.xlu0 %8574
    %v8576 = vsel %vm482, %v8572, 0.0
    %8577 = vadd.xlane.f32.xlu0 %v8576
    %v8578 = vpop.xlane.xlu0 %8577
    %v8579 = vrcp.pop %v8575
    %v8580 = vmul.f32 %v8570, %v8579
    %v8581 = vrcp.pop %v8578
    %v8582 = vmul.f32 %v8572, %v8581
    %8583 = vrot.lane.b32.xlu0 %v8395, 64
    %v8584 = vpop.permute.xlu0 %8583
    %v8587 = vsel %vm482, %v8580, 0
    %8589 = vmatprep.subr.mxu0 0.0
    %8590 = vmatpush1.msra.mxu0 %v8584
    %8591 = vmatprep.subr.mxu0 0.0
    %8592 = vmatpush1.msra.mxu0 0.0
    %8593 = vmatprep.subr.mxu0 0.0
    %8594 = vmatpush1.msra.mxu0 0.0
    %8595 = vmatprep.subr.mxu0 0.0
    %8596 = vmatpush1.msra.mxu0 0.0
    %8597 = vmatprep.subr.mxu0 0.0
    %8598 = vmatpush1.msra.mxu0 0.0
    %8599 = vmatprep.subr.mxu0 0.0
    %8600 = vmatpush1.msra.mxu0 0.0
    %8601 = vmatprep.subr.mxu0 0.0
    %8602 = vmatpush1.msra.mxu0 0.0
    %8603 = vmatprep.subr.mxu0 0.0
    %8604 = vmatpush1.msra.mxu0 0.0
    %8605 = vmatprep.subr.mxu0 0.0
    %8606 = vmatpush1.msra.mxu0 0.0
    %8607 = vmatprep.subr.mxu0 0.0
    %8608 = vmatpush1.msra.mxu0 0.0
    %8609 = vmatprep.subr.mxu0 0.0
    %8610 = vmatpush1.msra.mxu0 0.0
    %8611 = vmatprep.subr.mxu0 0.0
    %8612 = vmatpush1.msra.mxu0 0.0
    %8613 = vmatprep.subr.mxu0 0.0
    %8614 = vmatpush1.msra.mxu0 0.0
    %8615 = vmatprep.subr.mxu0 0.0
    %8616 = vmatpush1.msra.mxu0 0.0
    %8617 = vmatprep.subr.mxu0 0.0
    %8618 = vmatpush1.msra.mxu0 0.0
    %8619 = vmatprep.subr.mxu0 0.0
    %8620 = vmatpush1.msra.mxu0 0.0
    %8621 = vmatprep.subr.mxu0 0.0
    %8622 = vmatpush1.msra.mxu0 0.0
    %8623 = vmatprep.subr.mxu0 0.0
    %8624 = vmatpush1.msra.mxu0 0.0
    %8625 = vmatprep.subr.mxu0 0.0
    %8626 = vmatpush1.msra.mxu0 0.0
    %8627 = vmatprep.subr.mxu0 0.0
    %8628 = vmatpush1.msra.mxu0 0.0
    %8629 = vmatprep.subr.mxu0 0.0
    %8630 = vmatpush1.msra.mxu0 0.0
    %8631 = vmatprep.subr.mxu0 0.0
    %8632 = vmatpush1.msra.mxu0 0.0
    %8633 = vmatprep.subr.mxu0 0.0
    %8634 = vmatpush1.msra.mxu0 0.0
    %8635 = vmatprep.subr.mxu0 0.0
    %8636 = vmatpush1.msra.mxu0 0.0
    %8637 = vmatprep.subr.mxu0 0.0
    %8638 = vmatpush1.msra.mxu0 0.0
    %8639 = vmatprep.subr.mxu0 0.0
    %8640 = vmatpush1.msra.mxu0 0.0
    %8641 = vmatprep.subr.mxu0 0.0
    %8642 = vmatpush1.msra.mxu0 0.0
    %8643 = vmatprep.subr.mxu0 0.0
    %8644 = vmatpush1.msra.mxu0 0.0
    %8645 = vmatprep.subr.mxu0 0.0
    %8646 = vmatpush1.msra.mxu0 0.0
    %8647 = vmatprep.subr.mxu0 0.0
    %8648 = vmatpush1.msra.mxu0 0.0
    %8649 = vmatprep.subr.mxu0 0.0
    %8650 = vmatpush1.msra.mxu0 0.0
    %8651 = vmatprep.subr.mxu0 0.0
    %8652 = vmatpush1.msra.mxu0 0.0
    %8653 = vmatprep.mubr.f32.mxu0 0.0
    %8654 = vmatmul.mubr.f32.gmra.mrb[0].mxu0 %v8587
    %v8655 = vpop.f32.mrb[0].mxu0
    %v8656 = vadd.f32 0.0, %v8655
    %v8657 = vpop.f32.mrb[0].mxu0
    %8658 = vdwg.mxu0
    %8659 = vrot.lane.b32.xlu0 %v8400, 64
    %v8660 = vpop.permute.xlu0 %8659
    %v8663 = vsel %vm482, %v8582, 0
    %8665 = vmatprep.subr.mxu0 0.0
    %8666 = vmatpush1.msra.mxu0 %v8660
    %8667 = vmatprep.subr.mxu0 0.0
    %8668 = vmatpush1.msra.mxu0 0.0
    %8669 = vmatprep.subr.mxu0 0.0
    %8670 = vmatpush1.msra.mxu0 0.0
    %8671 = vmatprep.subr.mxu0 0.0
    %8672 = vmatpush1.msra.mxu0 0.0
    %8673 = vmatprep.subr.mxu0 0.0
    %8674 = vmatpush1.msra.mxu0 0.0
    %8675 = vmatprep.subr.mxu0 0.0
    %8676 = vmatpush1.msra.mxu0 0.0
    %8677 = vmatprep.subr.mxu0 0.0
    %8678 = vmatpush1.msra.mxu0 0.0
    %8679 = vmatprep.subr.mxu0 0.0
    %8680 = vmatpush1.msra.mxu0 0.0
    %8681 = vmatprep.subr.mxu0 0.0
    %8682 = vmatpush1.msra.mxu0 0.0
    %8683 = vmatprep.subr.mxu0 0.0
    %8684 = vmatpush1.msra.mxu0 0.0
    %8685 = vmatprep.subr.mxu0 0.0
    %8686 = vmatpush1.msra.mxu0 0.0
    %8687 = vmatprep.subr.mxu0 0.0
    %8688 = vmatpush1.msra.mxu0 0.0
    %8689 = vmatprep.subr.mxu0 0.0
    %8690 = vmatpush1.msra.mxu0 0.0
    %8691 = vmatprep.subr.mxu0 0.0
    %8692 = vmatpush1.msra.mxu0 0.0
    %8693 = vmatprep.subr.mxu0 0.0
    %8694 = vmatpush1.msra.mxu0 0.0
    %8695 = vmatprep.subr.mxu0 0.0
    %8696 = vmatpush1.msra.mxu0 0.0
    %8697 = vmatprep.subr.mxu0 0.0
    %8698 = vmatpush1.msra.mxu0 0.0
    %8699 = vmatprep.subr.mxu0 0.0
    %8700 = vmatpush1.msra.mxu0 0.0
    %8701 = vmatprep.subr.mxu0 0.0
    %8702 = vmatpush1.msra.mxu0 0.0
    %8703 = vmatprep.subr.mxu0 0.0
    %8704 = vmatpush1.msra.mxu0 0.0
    %8705 = vmatprep.subr.mxu0 0.0
    %8706 = vmatpush1.msra.mxu0 0.0
    %8707 = vmatprep.subr.mxu0 0.0
    %8708 = vmatpush1.msra.mxu0 0.0
    %8709 = vmatprep.subr.mxu0 0.0
    %8710 = vmatpush1.msra.mxu0 0.0
    %8711 = vmatprep.subr.mxu0 0.0
    %8712 = vmatpush1.msra.mxu0 0.0
    %8713 = vmatprep.subr.mxu0 0.0
    %8714 = vmatpush1.msra.mxu0 0.0
    %8715 = vmatprep.subr.mxu0 0.0
    %8716 = vmatpush1.msra.mxu0 0.0
    %8717 = vmatprep.subr.mxu0 0.0
    %8718 = vmatpush1.msra.mxu0 0.0
    %8719 = vmatprep.subr.mxu0 0.0
    %8720 = vmatpush1.msra.mxu0 0.0
    %8721 = vmatprep.subr.mxu0 0.0
    %8722 = vmatpush1.msra.mxu0 0.0
    %8723 = vmatprep.subr.mxu0 0.0
    %8724 = vmatpush1.msra.mxu0 0.0
    %8725 = vmatprep.subr.mxu0 0.0
    %8726 = vmatpush1.msra.mxu0 0.0
    %8727 = vmatprep.subr.mxu0 0.0
    %8728 = vmatpush1.msra.mxu0 0.0
    %8729 = vmatprep.mubr.f32.mxu0 0.0
    %8730 = vmatmul.mubr.f32.gmra.mrb[0].mxu0 %v8663
    %v8731 = vpop.f32.mrb[0].mxu0
    %v8732 = vadd.f32 0.0, %v8731
    %v8733 = vpop.f32.mrb[0].mxu0
    %8734 = vdwg.mxu0
    %8739 = vrot.lane.b32.xlu0 %v8188, 96
    %v8740 = vpop.permute.xlu0 %8739
    %8741 = vrot.lane.b32.xlu0 %v8191, 96
    %v8742 = vpop.permute.xlu0 %8741
    %8743 = vrot.lane.b32.xlu0 %v8194, 96
    %v8744 = vpop.permute.xlu0 %8743
    %8745 = vrot.lane.b32.xlu0 %v8197, 96
    %v8746 = vpop.permute.xlu0 %8745
    %v8752 = vsel %vm164, %v8656, 0
    %v8755 = vsel %vm164, %v8732, 0
    %8757 = vmatprep.subr.mxu0 0.0
    %8758 = vmatpush1.msra.mxu0 %v8740
    %8759 = vmatprep.subr.mxu0 0.0
    %8760 = vmatpush1.msra.mxu0 %v8742
    %8761 = vmatprep.subr.mxu0 0.0
    %8762 = vmatpush1.msra.mxu0 %v8744
    %8763 = vmatprep.subr.mxu0 0.0
    %8764 = vmatpush1.msra.mxu0 %v8746
    %8765 = vmatprep.subr.mxu0 0.0
    %8766 = vmatpush1.msra.mxu0 0.0
    %8767 = vmatprep.subr.mxu0 0.0
    %8768 = vmatpush1.msra.mxu0 0.0
    %8769 = vmatprep.subr.mxu0 0.0
    %8770 = vmatpush1.msra.mxu0 0.0
    %8771 = vmatprep.subr.mxu0 0.0
    %8772 = vmatpush1.msra.mxu0 0.0
    %8773 = vmatprep.subr.mxu0 0.0
    %8774 = vmatpush1.msra.mxu0 0.0
    %8775 = vmatprep.subr.mxu0 0.0
    %8776 = vmatpush1.msra.mxu0 0.0
    %8777 = vmatprep.subr.mxu0 0.0
    %8778 = vmatpush1.msra.mxu0 0.0
    %8779 = vmatprep.subr.mxu0 0.0
    %8780 = vmatpush1.msra.mxu0 0.0
    %8781 = vmatprep.subr.mxu0 0.0
    %8782 = vmatpush1.msra.mxu0 0.0
    %8783 = vmatprep.subr.mxu0 0.0
    %8784 = vmatpush1.msra.mxu0 0.0
    %8785 = vmatprep.subr.mxu0 0.0
    %8786 = vmatpush1.msra.mxu0 0.0
    %8787 = vmatprep.subr.mxu0 0.0
    %8788 = vmatpush1.msra.mxu0 0.0
    %8789 = vmatprep.subr.mxu0 0.0
    %8790 = vmatpush1.msra.mxu0 0.0
    %8791 = vmatprep.subr.mxu0 0.0
    %8792 = vmatpush1.msra.mxu0 0.0
    %8793 = vmatprep.subr.mxu0 0.0
    %8794 = vmatpush1.msra.mxu0 0.0
    %8795 = vmatprep.subr.mxu0 0.0
    %8796 = vmatpush1.msra.mxu0 0.0
    %8797 = vmatprep.subr.mxu0 0.0
    %8798 = vmatpush1.msra.mxu0 0.0
    %8799 = vmatprep.subr.mxu0 0.0
    %8800 = vmatpush1.msra.mxu0 0.0
    %8801 = vmatprep.subr.mxu0 0.0
    %8802 = vmatpush1.msra.mxu0 0.0
    %8803 = vmatprep.subr.mxu0 0.0
    %8804 = vmatpush1.msra.mxu0 0.0
    %8805 = vmatprep.subr.mxu0 0.0
    %8806 = vmatpush1.msra.mxu0 0.0
    %8807 = vmatprep.subr.mxu0 0.0
    %8808 = vmatpush1.msra.mxu0 0.0
    %8809 = vmatprep.subr.mxu0 0.0
    %8810 = vmatpush1.msra.mxu0 0.0
    %8811 = vmatprep.subr.mxu0 0.0
    %8812 = vmatpush1.msra.mxu0 0.0
    %8813 = vmatprep.subr.mxu0 0.0
    %8814 = vmatpush1.msra.mxu0 0.0
    %8815 = vmatprep.subr.mxu0 0.0
    %8816 = vmatpush1.msra.mxu0 0.0
    %8817 = vmatprep.subr.mxu0 0.0
    %8818 = vmatpush1.msra.mxu0 0.0
    %8819 = vmatprep.subr.mxu0 0.0
    %8820 = vmatpush1.msra.mxu0 0.0
    %8821 = vmatprep.mubr.f32.mxu0 0.0
    %8822 = vmatmul.mubr.f32.gmra.mrb[0].mxu0 %v8752
    %v8823 = vpop.f32.mrb[0].mxu0
    %v8824 = vadd.f32 0.0, %v8823
    %v8825 = vpop.f32.mrb[0].mxu0
    %8826 = vmatprep.mubr.f32.mxu0 0.0
    %8827 = vmatmul.mubr.f32.gmra.mrb[0].mxu0 %v8755
    %v8828 = vpop.f32.mrb[0].mxu0
    %v8829 = vadd.f32 0.0, %v8828
    %v8830 = vpop.f32.mrb[0].mxu0
    %8831 = vdwg.mxu0
    %v8832 = vadd.f32 %v8276, %v8824
    %v8833 = vadd.f32 %v8281, %v8829
    %v8834 = vsel %vm164, %v8832, 0.0
    %8835 = vadd.xlane.f32.xlu0 %v8834
    %v8836 = vpop.xlane.xlu0 %8835
    %v8837 = vsel %vm164, %v8833, 0.0
    %8838 = vadd.xlane.f32.xlu0 %v8837
    %v8839 = vpop.xlane.xlu0 %8838
    %v8840 = vmul.f32 %v8836, %v171
    %v8841 = vmul.f32 %v8839, %v171
    %v8842 = vsub.f32 %v8832, %v8840
    %v8843 = vsub.f32 %v8833, %v8841
    %v8844 = vmul.f32 %v8842, %v8842
    %v8845 = vmul.f32 %v8843, %v8843
    %v8846 = vsel %vm164, %v8844, 0.0
    %8847 = vadd.xlane.f32.xlu0 %v8846
    %v8848 = vpop.xlane.xlu0 %8847
    %v8849 = vsel %vm164, %v8845, 0.0
    %8850 = vadd.xlane.f32.xlu0 %v8849
    %v8851 = vpop.xlane.xlu0 %8850
    %v8852 = vmul.f32 %v8848, %v171
    %v8853 = vmul.f32 %v8851, %v171
    %v8854 = vadd.f32 %v8852, 1e-05
    %v8855 = vadd.f32 %v8853, 1e-05
    %v8856 = vrsqrt.pop %v8854
    %v8857 = vrsqrt.pop %v8855
    %v8858 = vmul.f32 %v8842, %v8856
    %v8859 = vmul.f32 %v8843, %v8857
    %v8860 = vlaneseq
    %v8861 = vshrl.u32 %v8860, 7
    %v8862 = vsub.s32 3, %v8861
    %v8863 = vrot.slane %v8198, %v8862
    %v8864 = vmul.f32 %v8858, %v8863
    %v8865 = vmul.f32 %v8859, %v8863
    %v8866 = vlaneseq
    %v8867 = vshrl.u32 %v8866, 7
    %v8868 = vsub.s32 4, %v8867
    %v8869 = vrot.slane %v8198, %v8868
    %v8870 = vadd.f32 %v8864, %v8869
    %v8871 = vadd.f32 %v8865, %v8869
    %v8872 = vlaneseq
    %v8873 = vshrl.u32 %v8872, 7
    %v8874 = vsub.s32 6, %v8873
    %v8875 = vrot.slane %v8198, %v8874
    %v8877 = vsel %vm164, %v8870, 0
    %v8880 = vsel %vm164, %v8871, 0
    %8882 = vmatprep.subr.mxu0 0.0
    %8883 = vmatpush1.msra.mxu0 %v8186
    %8884 = vmatprep.subr.mxu0 0.0
    %8885 = vmatpush1.msra.mxu0 %v8189
    %8886 = vmatprep.subr.mxu0 0.0
    %8887 = vmatpush1.msra.mxu0 %v8192
    %8888 = vmatprep.subr.mxu0 0.0
    %8889 = vmatpush1.msra.mxu0 %v8195
    %8890 = vmatprep.subr.mxu0 0.0
    %8891 = vmatpush1.msra.mxu0 0.0
    %8892 = vmatprep.subr.mxu0 0.0
    %8893 = vmatpush1.msra.mxu0 0.0
    %8894 = vmatprep.subr.mxu0 0.0
    %8895 = vmatpush1.msra.mxu0 0.0
    %8896 = vmatprep.subr.mxu0 0.0
    %8897 = vmatpush1.msra.mxu0 0.0
    %8898 = vmatprep.subr.mxu0 0.0
    %8899 = vmatpush1.msra.mxu0 0.0
    %8900 = vmatprep.subr.mxu0 0.0
    %8901 = vmatpush1.msra.mxu0 0.0
    %8902 = vmatprep.subr.mxu0 0.0
    %8903 = vmatpush1.msra.mxu0 0.0
    %8904 = vmatprep.subr.mxu0 0.0
    %8905 = vmatpush1.msra.mxu0 0.0
    %8906 = vmatprep.subr.mxu0 0.0
    %8907 = vmatpush1.msra.mxu0 0.0
    %8908 = vmatprep.subr.mxu0 0.0
    %8909 = vmatpush1.msra.mxu0 0.0
    %8910 = vmatprep.subr.mxu0 0.0
    %8911 = vmatpush1.msra.mxu0 0.0
    %8912 = vmatprep.subr.mxu0 0.0
    %8913 = vmatpush1.msra.mxu0 0.0
    %8914 = vmatprep.subr.mxu0 0.0
    %8915 = vmatpush1.msra.mxu0 0.0
    %8916 = vmatprep.subr.mxu0 0.0
    %8917 = vmatpush1.msra.mxu0 0.0
    %8918 = vmatprep.subr.mxu0 0.0
    %8919 = vmatpush1.msra.mxu0 0.0
    %8920 = vmatprep.subr.mxu0 0.0
    %8921 = vmatpush1.msra.mxu0 0.0
    %8922 = vmatprep.subr.mxu0 0.0
    %8923 = vmatpush1.msra.mxu0 0.0
    %8924 = vmatprep.subr.mxu0 0.0
    %8925 = vmatpush1.msra.mxu0 0.0
    %8926 = vmatprep.subr.mxu0 0.0
    %8927 = vmatpush1.msra.mxu0 0.0
    %8928 = vmatprep.subr.mxu0 0.0
    %8929 = vmatpush1.msra.mxu0 0.0
    %8930 = vmatprep.subr.mxu0 0.0
    %8931 = vmatpush1.msra.mxu0 0.0
    %8932 = vmatprep.subr.mxu0 0.0
    %8933 = vmatpush1.msra.mxu0 0.0
    %8934 = vmatprep.subr.mxu0 0.0
    %8935 = vmatpush1.msra.mxu0 0.0
    %8936 = vmatprep.subr.mxu0 0.0
    %8937 = vmatpush1.msra.mxu0 0.0
    %8938 = vmatprep.subr.mxu0 0.0
    %8939 = vmatpush1.msra.mxu0 0.0
    %8940 = vmatprep.subr.mxu0 0.0
    %8941 = vmatpush1.msra.mxu0 0.0
    %8942 = vmatprep.subr.mxu0 0.0
    %8943 = vmatpush1.msra.mxu0 0.0
    %8944 = vmatprep.subr.mxu0 0.0
    %8945 = vmatpush1.msra.mxu0 0.0
    %8946 = vmatprep.mubr.f32.mxu0 0.0
    %8947 = vmatmul.mubr.f32.gmra.mrb[0].mxu0 %v8877
    %v8948 = vpop.f32.mrb[0].mxu0
    %v8949 = vadd.f32 %v8875, %v8948
    %v8950 = vpop.f32.mrb[0].mxu0
    %8951 = vmatprep.mubr.f32.mxu0 0.0
    %8952 = vmatmul.mubr.f32.gmra.mrb[0].mxu0 %v8880
    %v8953 = vpop.f32.mrb[0].mxu0
    %v8954 = vadd.f32 %v8875, %v8953
    %v8955 = vpop.f32.mrb[0].mxu0
    %8956 = vdwg.mxu0
    %v8957 = vmul.f32 %v8949, %v8949
    %v8958 = vmul.f32 %v8954, %v8954
    %v8959 = vmul.f32 %v8949, %v8957
    %v8960 = vmul.f32 %v8954, %v8958
    %v8961 = vmul.f32 %v8959, 0.044715
    %v8962 = vmul.f32 %v8960, 0.044715
    %v8963 = vadd.f32 %v8949, %v8961
    %v8964 = vadd.f32 %v8954, %v8962
    %v8965 = vmul.f32 %v8963, 0.7978846
    %v8966 = vmul.f32 %v8964, 0.7978846
    %v8967 = vtanh.pop %v8965
    %v8968 = vtanh.pop %v8966
    %v8969 = vadd.f32 %v8967, 1.0
    %v8970 = vadd.f32 %v8968, 1.0
    %v8971 = vmul.f32 %v8969, 0.5
    %v8972 = vmul.f32 %v8970, 0.5
    %v8973 = vmul.f32 %v8949, %v8971
    %v8974 = vmul.f32 %v8954, %v8972
    %v8975 = vld [vmem:[%s9] sm:$0xff]
    %v8976 = vld [vmem:[%s9 + $0x8] sm:$0xff]
    %v8977 = vld [vmem:[%s9 + $0x10] sm:$0xff]
    %v8978 = vld [vmem:[%s9 + $0x18] sm:$0xff]
    %v8979 = vld [vmem:[%s9 + $0x20] sm:$0xff]
    %v8980 = vld [vmem:[%s9 + $0x28] sm:$0xff]
    %v8981 = vld [vmem:[%s9 + $0x30] sm:$0xff]
    %v8982 = vld [vmem:[%s9 + $0x38] sm:$0xff]
    %v8983 = vld [vmem:[%s9 + $0x40] sm:$0xff]
    %v8984 = vld [vmem:[%s9 + $0x48] sm:$0xff]
    %v8985 = vld [vmem:[%s9 + $0x50] sm:$0xff]
    %v8986 = vld [vmem:[%s9 + $0x58] sm:$0xff]
    %v8987 = vld [vmem:[%s9 + $0x60] sm:$0xff]
    %v8988 = vld [vmem:[%s9 + $0x68] sm:$0xff]
    %v8989 = vld [vmem:[%s9 + $0x70] sm:$0xff]
    %v8990 = vld [vmem:[%s9 + $0x78] sm:$0xff]
    %8991 = vmatprep.subr.mxu0 0.0
    %8992 = vmatpush1.msra.mxu0 %v8975
    %8993 = vmatprep.subr.mxu0 0.0
    %8994 = vmatpush1.msra.mxu0 %v8976
    %8995 = vmatprep.subr.mxu0 0.0
    %8996 = vmatpush1.msra.mxu0 %v8977
    %8997 = vmatprep.subr.mxu0 0.0
    %8998 = vmatpush1.msra.mxu0 %v8978
    %8999 = vmatprep.subr.mxu0 0.0
    %9000 = vmatpush1.msra.mxu0 %v8979
    %9001 = vmatprep.subr.mxu0 0.0
    %9002 = vmatpush1.msra.mxu0 %v8980
    %9003 = vmatprep.subr.mxu0 0.0
    %9004 = vmatpush1.msra.mxu0 %v8981
    %9005 = vmatprep.subr.mxu0 0.0
    %9006 = vmatpush1.msra.mxu0 %v8982
    %9007 = vmatprep.subr.mxu0 0.0
    %9008 = vmatpush1.msra.mxu0 %v8983
    %9009 = vmatprep.subr.mxu0 0.0
    %9010 = vmatpush1.msra.mxu0 %v8984
    %9011 = vmatprep.subr.mxu0 0.0
    %9012 = vmatpush1.msra.mxu0 %v8985
    %9013 = vmatprep.subr.mxu0 0.0
    %9014 = vmatpush1.msra.mxu0 %v8986
    %9015 = vmatprep.subr.mxu0 0.0
    %9016 = vmatpush1.msra.mxu0 %v8987
    %9017 = vmatprep.subr.mxu0 0.0
    %9018 = vmatpush1.msra.mxu0 %v8988
    %9019 = vmatprep.subr.mxu0 0.0
    %9020 = vmatpush1.msra.mxu0 %v8989
    %9021 = vmatprep.subr.mxu0 0.0
    %9022 = vmatpush1.msra.mxu0 %v8990
    %9023 = vmatprep.subr.mxu0 0.0
    %9024 = vmatpush1.msra.mxu0 0.0
    %9025 = vmatprep.subr.mxu0 0.0
    %9026 = vmatpush1.msra.mxu0 0.0
    %9027 = vmatprep.subr.mxu0 0.0
    %9028 = vmatpush1.msra.mxu0 0.0
    %9029 = vmatprep.subr.mxu0 0.0
    %9030 = vmatpush1.msra.mxu0 0.0
    %9031 = vmatprep.subr.mxu0 0.0
    %9032 = vmatpush1.msra.mxu0 0.0
    %9033 = vmatprep.subr.mxu0 0.0
    %9034 = vmatpush1.msra.mxu0 0.0
    %9035 = vmatprep.subr.mxu0 0.0
    %9036 = vmatpush1.msra.mxu0 0.0
    %9037 = vmatprep.subr.mxu0 0.0
    %9038 = vmatpush1.msra.mxu0 0.0
    %9039 = vmatprep.subr.mxu0 0.0
    %9040 = vmatpush1.msra.mxu0 0.0
    %9041 = vmatprep.subr.mxu0 0.0
    %9042 = vmatpush1.msra.mxu0 0.0
    %9043 = vmatprep.subr.mxu0 0.0
    %9044 = vmatpush1.msra.mxu0 0.0
    %9045 = vmatprep.subr.mxu0 0.0
    %9046 = vmatpush1.msra.mxu0 0.0
    %9047 = vmatprep.subr.mxu0 0.0
    %9048 = vmatpush1.msra.mxu0 0.0
    %9049 = vmatprep.subr.mxu0 0.0
    %9050 = vmatpush1.msra.mxu0 0.0
    %9051 = vmatprep.subr.mxu0 0.0
    %9052 = vmatpush1.msra.mxu0 0.0
    %9053 = vmatprep.subr.mxu0 0.0
    %9054 = vmatpush1.msra.mxu0 0.0
    %9055 = vmatprep.mubr.f32.mxu0 0.0
    %9056 = vmatmul.mubr.f32.gmra.mrb[0].mxu0 %v8973
    %v9057 = vpop.f32.mrb[0].mxu0
    %v9058 = vadd.f32 0.0, %v9057
    %v9059 = vpop.f32.mrb[0].mxu0
    %9060 = vmatprep.mubr.f32.mxu0 0.0
    %9061 = vmatmul.mubr.f32.gmra.mrb[0].mxu0 %v8974
    %v9062 = vpop.f32.mrb[0].mxu0
    %v9063 = vadd.f32 0.0, %v9062
    %v9064 = vpop.f32.mrb[0].mxu0
    %9065 = vdwg.mxu0
    %v9066 = vadd.f32 %v8832, %v9058
    %v9067 = vadd.f32 %v8833, %v9063
    %v9068 = vlaneseq
    %v9069 = vshrl.u32 %v9068, 7
    %v9070 = vsub.s32 5, %v9069
    %v9071 = vrot.slane %v8198, %v9070
    %v9072 = vadd.f32 %v9066, %v9071
    %v9073 = vadd.f32 %v9067, %v9071
    %v9074 = vld [vmem:[%s11] sm:$0xff]
    %v9075 = vld [vmem:[%s11 + $0x8] sm:$0xff]
    %v9076 = vld [vmem:[%s11 + $0x10] sm:$0xff]
    %v9077 = vld [vmem:[%s11 + $0x18] sm:$0xff]
    %v9078 = vld [vmem:[%s11 + $0x20] sm:$0xff]
    %v9079 = vld [vmem:[%s11 + $0x28] sm:$0xff]
    %v9080 = vld [vmem:[%s11 + $0x30] sm:$0xff]
    %v9081 = vld [vmem:[%s11 + $0x38] sm:$0xff]
    %v9082 = vld [vmem:[%s11 + $0x40] sm:$0xff]
    %v9083 = vld [vmem:[%s11 + $0x48] sm:$0xff]
    %v9084 = vld [vmem:[%s11 + $0x50] sm:$0xff]
    %v9085 = vld [vmem:[%s11 + $0x58] sm:$0xff]
    %v9086 = vld [vmem:[%s13] sm:$0xff]
    %v9087 = vlaneseq
    %v9088 = vshrl.u32 %v9087, 7
    %v9089 = vsub.s32 0, %v9088
    %v9090 = vrot.slane %v9086, %v9089
    %9091 = vmatprep.subr.mxu0 0.0
    %9092 = vmatpush1.msra.mxu0 %v9076
    %9093 = vmatprep.subr.mxu0 0.0
    %9094 = vmatpush1.msra.mxu0 %v9079
    %9095 = vmatprep.subr.mxu0 0.0
    %9096 = vmatpush1.msra.mxu0 %v9082
    %9097 = vmatprep.subr.mxu0 0.0
    %9098 = vmatpush1.msra.mxu0 %v9085
    %9099 = vmatprep.subr.mxu0 0.0
    %9100 = vmatpush1.msra.mxu0 0.0
    %9101 = vmatprep.subr.mxu0 0.0
    %9102 = vmatpush1.msra.mxu0 0.0
    %9103 = vmatprep.subr.mxu0 0.0
    %9104 = vmatpush1.msra.mxu0 0.0
    %9105 = vmatprep.subr.mxu0 0.0
    %9106 = vmatpush1.msra.mxu0 0.0
    %9107 = vmatprep.subr.mxu0 0.0
    %9108 = vmatpush1.msra.mxu0 0.0
    %9109 = vmatprep.subr.mxu0 0.0
    %9110 = vmatpush1.msra.mxu0 0.0
    %9111 = vmatprep.subr.mxu0 0.0
    %9112 = vmatpush1.msra.mxu0 0.0
    %9113 = vmatprep.subr.mxu0 0.0
    %9114 = vmatpush1.msra.mxu0 0.0
    %9115 = vmatprep.subr.mxu0 0.0
    %9116 = vmatpush1.msra.mxu0 0.0
    %9117 = vmatprep.subr.mxu0 0.0
    %9118 = vmatpush1.msra.mxu0 0.0
    %9119 = vmatprep.subr.mxu0 0.0
    %9120 = vmatpush1.msra.mxu0 0.0
    %9121 = vmatprep.subr.mxu0 0.0
    %9122 = vmatpush1.msra.mxu0 0.0
    %9123 = vmatprep.subr.mxu0 0.0
    %9124 = vmatpush1.msra.mxu0 0.0
    %9125 = vmatprep.subr.mxu0 0.0
    %9126 = vmatpush1.msra.mxu0 0.0
    %9127 = vmatprep.subr.mxu0 0.0
    %9128 = vmatpush1.msra.mxu0 0.0
    %9129 = vmatprep.subr.mxu0 0.0
    %9130 = vmatpush1.msra.mxu0 0.0
    %9131 = vmatprep.subr.mxu0 0.0
    %9132 = vmatpush1.msra.mxu0 0.0
    %9133 = vmatprep.subr.mxu0 0.0
    %9134 = vmatpush1.msra.mxu0 0.0
    %9135 = vmatprep.subr.mxu0 0.0
    %9136 = vmatpush1.msra.mxu0 0.0
    %9137 = vmatprep.subr.mxu0 0.0
    %9138 = vmatpush1.msra.mxu0 0.0
    %9139 = vmatprep.subr.mxu0 0.0
    %9140 = vmatpush1.msra.mxu0 0.0
    %9141 = vmatprep.subr.mxu0 0.0
    %9142 = vmatpush1.msra.mxu0 0.0
    %9143 = vmatprep.subr.mxu0 0.0
    %9144 = vmatpush1.msra.mxu0 0.0
    %9145 = vmatprep.subr.mxu0 0.0
    %9146 = vmatpush1.msra.mxu0 0.0
    %9147 = vmatprep.subr.mxu0 0.0
    %9148 = vmatpush1.msra.mxu0 0.0
    %9149 = vmatprep.subr.mxu0 0.0
    %9150 = vmatpush1.msra.mxu0 0.0
    %9151 = vmatprep.subr.mxu0 0.0
    %9152 = vmatpush1.msra.mxu0 0.0
    %9153 = vmatprep.subr.mxu0 0.0
    %9154 = vmatpush1.msra.mxu0 0.0
    %9155 = vmatprep.mubr.f32.mxu0 0.0
    %9156 = vmatmul.mubr.f32.gmra.mrb[0].mxu0 %v8204
    %v9157 = vpop.f32.mrb[0].mxu0
    %v9158 = vadd.f32 %v9090, %v9157
    %v9159 = vpop.f32.mrb[0].mxu0
    %9160 = vmatprep.mubr.f32.mxu0 0.0
    %9161 = vmatmul.mubr.f32.gmra.mrb[0].mxu0 %v8207
    %v9162 = vpop.f32.mrb[0].mxu0
    %v9163 = vadd.f32 %v9090, %v9162
    %v9164 = vpop.f32.mrb[0].mxu0
    %9165 = vdwg.mxu0
    %v9166 = vsel %vm164, %v9158, 0.0
    %9167 = vadd.xlane.f32.xlu0 %v9166
    %v9168 = vpop.xlane.xlu0 %9167
    %v9169 = vsel %vm164, %v9163, 0.0
    %9170 = vadd.xlane.f32.xlu0 %v9169
    %v9171 = vpop.xlane.xlu0 %9170
    %v9172 = vmul.f32 %v9168, %v171
    %v9173 = vmul.f32 %v9171, %v171
    %v9174 = vsub.f32 %v9158, %v9172
    %v9175 = vsub.f32 %v9163, %v9173
    %v9176 = vmul.f32 %v9174, %v9174
    %v9177 = vmul.f32 %v9175, %v9175
    %v9178 = vsel %vm164, %v9176, 0.0
    %9179 = vadd.xlane.f32.xlu0 %v9178
    %v9180 = vpop.xlane.xlu0 %9179
    %v9181 = vsel %vm164, %v9177, 0.0
    %9182 = vadd.xlane.f32.xlu0 %v9181
    %v9183 = vpop.xlane.xlu0 %9182
    %v9184 = vmul.f32 %v9180, %v171
    %v9185 = vmul.f32 %v9183, %v171
    %v9186 = vadd.f32 %v9184, 1e-05
    %v9187 = vadd.f32 %v9185, 1e-05
    %v9188 = vrsqrt.pop %v9186
    %v9189 = vrsqrt.pop %v9187
    %v9190 = vmul.f32 %v9174, %v9188
    %v9191 = vmul.f32 %v9175, %v9189
    %v9192 = vlaneseq
    %v9193 = vshrl.u32 %v9192, 7
    %v9194 = vsub.s32 1, %v9193
    %v9195 = vrot.slane %v9086, %v9194
    %v9196 = vmul.f32 %v9190, %v9195
    %v9197 = vmul.f32 %v9191, %v9195
    %v9198 = vlaneseq
    %v9199 = vshrl.u32 %v9198, 7
    %v9200 = vsub.s32 2, %v9199
    %v9201 = vrot.slane %v9086, %v9200
    %v9202 = vadd.f32 %v9196, %v9201
    %v9203 = vadd.f32 %v9197, %v9201
    %v9205 = vsel %vm164, %v9202, 0
    %v9208 = vsel %vm164, %v9203, 0
    %9210 = vmatprep.subr.mxu0 0.0
    %9211 = vmatpush1.msra.mxu0 %v9075
    %9212 = vmatprep.subr.mxu0 0.0
    %9213 = vmatpush1.msra.mxu0 %v9078
    %9214 = vmatprep.subr.mxu0 0.0
    %9215 = vmatpush1.msra.mxu0 %v9081
    %9216 = vmatprep.subr.mxu0 0.0
    %9217 = vmatpush1.msra.mxu0 %v9084
    %9218 = vmatprep.subr.mxu0 0.0
    %9219 = vmatpush1.msra.mxu0 0.0
    %9220 = vmatprep.subr.mxu0 0.0
    %9221 = vmatpush1.msra.mxu0 0.0
    %9222 = vmatprep.subr.mxu0 0.0
    %9223 = vmatpush1.msra.mxu0 0.0
    %9224 = vmatprep.subr.mxu0 0.0
    %9225 = vmatpush1.msra.mxu0 0.0
    %9226 = vmatprep.subr.mxu0 0.0
    %9227 = vmatpush1.msra.mxu0 0.0
    %9228 = vmatprep.subr.mxu0 0.0
    %9229 = vmatpush1.msra.mxu0 0.0
    %9230 = vmatprep.subr.mxu0 0.0
    %9231 = vmatpush1.msra.mxu0 0.0
    %9232 = vmatprep.subr.mxu0 0.0
    %9233 = vmatpush1.msra.mxu0 0.0
    %9234 = vmatprep.subr.mxu0 0.0
    %9235 = vmatpush1.msra.mxu0 0.0
    %9236 = vmatprep.subr.mxu0 0.0
    %9237 = vmatpush1.msra.mxu0 0.0
    %9238 = vmatprep.subr.mxu0 0.0
    %9239 = vmatpush1.msra.mxu0 0.0
    %9240 = vmatprep.subr.mxu0 0.0
    %9241 = vmatpush1.msra.mxu0 0.0
    %9242 = vmatprep.subr.mxu0 0.0
    %9243 = vmatpush1.msra.mxu0 0.0
    %9244 = vmatprep.subr.mxu0 0.0
    %9245 = vmatpush1.msra.mxu0 0.0
    %9246 = vmatprep.subr.mxu0 0.0
    %9247 = vmatpush1.msra.mxu0 0.0
    %9248 = vmatprep.subr.mxu0 0.0
    %9249 = vmatpush1.msra.mxu0 0.0
    %9250 = vmatprep.subr.mxu0 0.0
    %9251 = vmatpush1.msra.mxu0 0.0
    %9252 = vmatprep.subr.mxu0 0.0
    %9253 = vmatpush1.msra.mxu0 0.0
    %9254 = vmatprep.subr.mxu0 0.0
    %9255 = vmatpush1.msra.mxu0 0.0
    %9256 = vmatprep.subr.mxu0 0.0
    %9257 = vmatpush1.msra.mxu0 0.0
    %9258 = vmatprep.subr.mxu0 0.0
    %9259 = vmatpush1.msra.mxu0 0.0
    %9260 = vmatprep.subr.mxu0 0.0
    %9261 = vmatpush1.msra.mxu0 0.0
    %9262 = vmatprep.subr.mxu0 0.0
    %9263 = vmatpush1.msra.mxu0 0.0
    %9264 = vmatprep.subr.mxu0 0.0
    %9265 = vmatpush1.msra.mxu0 0.0
    %9266 = vmatprep.subr.mxu0 0.0
    %9267 = vmatpush1.msra.mxu0 0.0
    %9268 = vmatprep.subr.mxu0 0.0
    %9269 = vmatpush1.msra.mxu0 0.0
    %9270 = vmatprep.subr.mxu0 0.0
    %9271 = vmatpush1.msra.mxu0 0.0
    %9272 = vmatprep.subr.mxu0 0.0
    %9273 = vmatpush1.msra.mxu0 0.0
    %9274 = vmatprep.mubr.f32.mxu0 0.0
    %9275 = vmatmul.mubr.f32.gmra.mrb[0].mxu0 %v9205
    %v9276 = vpop.f32.mrb[0].mxu0
    %v9277 = vadd.f32 0.0, %v9276
    %v9278 = vpop.f32.mrb[0].mxu0
    %9279 = vmatprep.mubr.f32.mxu0 0.0
    %9280 = vmatmul.mubr.f32.gmra.mrb[0].mxu0 %v9208
    %v9281 = vpop.f32.mrb[0].mxu0
    %v9282 = vadd.f32 0.0, %v9281
    %v9283 = vpop.f32.mrb[0].mxu0
    %9284 = vdwg.mxu0
    %9286 = vrot.lane.b32.xlu0 %v9277, 96
    %v9287 = vpop.permute.xlu0 %9286
    %v9288 = vsel %vm164, %v9277, 0
    %v9290 = vsel %vm164, %v9287, 0
    %9292 = vmatprep.subr.mxu0 0.0
    %9293 = vmatpush1.xpose.msra.mxu0 %v9290
    %9294 = vmatprep.subr.mxu0 0.0
    %9295 = vmatpush1.xpose.msra.mxu0 0.0
    %9296 = vmatprep.subr.mxu0 0.0
    %9297 = vmatpush1.xpose.msra.mxu0 0.0
    %9298 = vmatprep.subr.mxu0 0.0
    %9299 = vmatpush1.xpose.msra.mxu0 0.0
    %9300 = vmatprep.subr.mxu0 0.0
    %9301 = vmatpush1.xpose.msra.mxu0 0.0
    %9302 = vmatprep.subr.mxu0 0.0
    %9303 = vmatpush1.xpose.msra.mxu0 0.0
    %9304 = vmatprep.subr.mxu0 0.0
    %9305 = vmatpush1.xpose.msra.mxu0 0.0
    %9306 = vmatprep.subr.mxu0 0.0
    %9307 = vmatpush1.xpose.msra.mxu0 0.0
    %9308 = vmatprep.subr.mxu0 0.0
    %9309 = vmatpush1.xpose.msra.mxu0 0.0
    %9310 = vmatprep.subr.mxu0 0.0
    %9311 = vmatpush1.xpose.msra.mxu0 0.0
    %9312 = vmatprep.subr.mxu0 0.0
    %9313 = vmatpush1.xpose.msra.mxu0 0.0
    %9314 = vmatprep.subr.mxu0 0.0
    %9315 = vmatpush1.xpose.msra.mxu0 0.0
    %9316 = vmatprep.subr.mxu0 0.0
    %9317 = vmatpush1.xpose.msra.mxu0 0.0
    %9318 = vmatprep.subr.mxu0 0.0
    %9319 = vmatpush1.xpose.msra.mxu0 0.0
    %9320 = vmatprep.subr.mxu0 0.0
    %9321 = vmatpush1.xpose.msra.mxu0 0.0
    %9322 = vmatprep.subr.mxu0 0.0
    %9323 = vmatpush1.xpose.msra.mxu0 0.0
    %9324 = vmatprep.subr.mxu0 0.0
    %9325 = vmatpush1.xpose.msra.mxu0 0.0
    %9326 = vmatprep.subr.mxu0 0.0
    %9327 = vmatpush1.xpose.msra.mxu0 0.0
    %9328 = vmatprep.subr.mxu0 0.0
    %9329 = vmatpush1.xpose.msra.mxu0 0.0
    %9330 = vmatprep.subr.mxu0 0.0
    %9331 = vmatpush1.xpose.msra.mxu0 0.0
    %9332 = vmatprep.subr.mxu0 0.0
    %9333 = vmatpush1.xpose.msra.mxu0 0.0
    %9334 = vmatprep.subr.mxu0 0.0
    %9335 = vmatpush1.xpose.msra.mxu0 0.0
    %9336 = vmatprep.subr.mxu0 0.0
    %9337 = vmatpush1.xpose.msra.mxu0 0.0
    %9338 = vmatprep.subr.mxu0 0.0
    %9339 = vmatpush1.xpose.msra.mxu0 0.0
    %9340 = vmatprep.subr.mxu0 0.0
    %9341 = vmatpush1.xpose.msra.mxu0 0.0
    %9342 = vmatprep.subr.mxu0 0.0
    %9343 = vmatpush1.xpose.msra.mxu0 0.0
    %9344 = vmatprep.subr.mxu0 0.0
    %9345 = vmatpush1.xpose.msra.mxu0 0.0
    %9346 = vmatprep.subr.mxu0 0.0
    %9347 = vmatpush1.xpose.msra.mxu0 0.0
    %9348 = vmatprep.subr.mxu0 0.0
    %9349 = vmatpush1.xpose.msra.mxu0 0.0
    %9350 = vmatprep.subr.mxu0 0.0
    %9351 = vmatpush1.xpose.msra.mxu0 0.0
    %9352 = vmatprep.subr.mxu0 0.0
    %9353 = vmatpush1.xpose.msra.mxu0 0.0
    %9354 = vmatprep.subr.mxu0 0.0
    %9355 = vmatpush1.xpose.msra.mxu0 0.0
    %9356 = vmatprep.mubr.f32.mxu0 0.0
    %9357 = vmatmul.mubr.f32.gmra.mrb[0].mxu0 %v9288
    %v9358 = vpop.f32.mrb[0].mxu0
    %v9359 = vadd.f32 0.0, %v9358
    %v9360 = vpop.f32.mrb[0].mxu0
    %9361 = vdwg.mxu0
    %9363 = vrot.lane.b32.xlu0 %v9282, 96
    %v9364 = vpop.permute.xlu0 %9363
    %v9365 = vsel %vm164, %v9282, 0
    %v9367 = vsel %vm164, %v9364, 0
    %9369 = vmatprep.subr.mxu0 0.0
    %9370 = vmatpush1.xpose.msra.mxu0 %v9367
    %9371 = vmatprep.subr.mxu0 0.0
    %9372 = vmatpush1.xpose.msra.mxu0 0.0
    %9373 = vmatprep.subr.mxu0 0.0
    %9374 = vmatpush1.xpose.msra.mxu0 0.0
    %9375 = vmatprep.subr.mxu0 0.0
    %9376 = vmatpush1.xpose.msra.mxu0 0.0
    %9377 = vmatprep.subr.mxu0 0.0
    %9378 = vmatpush1.xpose.msra.mxu0 0.0
    %9379 = vmatprep.subr.mxu0 0.0
    %9380 = vmatpush1.xpose.msra.mxu0 0.0
    %9381 = vmatprep.subr.mxu0 0.0
    %9382 = vmatpush1.xpose.msra.mxu0 0.0
    %9383 = vmatprep.subr.mxu0 0.0
    %9384 = vmatpush1.xpose.msra.mxu0 0.0
    %9385 = vmatprep.subr.mxu0 0.0
    %9386 = vmatpush1.xpose.msra.mxu0 0.0
    %9387 = vmatprep.subr.mxu0 0.0
    %9388 = vmatpush1.xpose.msra.mxu0 0.0
    %9389 = vmatprep.subr.mxu0 0.0
    %9390 = vmatpush1.xpose.msra.mxu0 0.0
    %9391 = vmatprep.subr.mxu0 0.0
    %9392 = vmatpush1.xpose.msra.mxu0 0.0
    %9393 = vmatprep.subr.mxu0 0.0
    %9394 = vmatpush1.xpose.msra.mxu0 0.0
    %9395 = vmatprep.subr.mxu0 0.0
    %9396 = vmatpush1.xpose.msra.mxu0 0.0
    %9397 = vmatprep.subr.mxu0 0.0
    %9398 = vmatpush1.xpose.msra.mxu0 0.0
    %9399 = vmatprep.subr.mxu0 0.0
    %9400 = vmatpush1.xpose.msra.mxu0 0.0
    %9401 = vmatprep.subr.mxu0 0.0
    %9402 = vmatpush1.xpose.msra.mxu0 0.0
    %9403 = vmatprep.subr.mxu0 0.0
    %9404 = vmatpush1.xpose.msra.mxu0 0.0
    %9405 = vmatprep.subr.mxu0 0.0
    %9406 = vmatpush1.xpose.msra.mxu0 0.0
    %9407 = vmatprep.subr.mxu0 0.0
    %9408 = vmatpush1.xpose.msra.mxu0 0.0
    %9409 = vmatprep.subr.mxu0 0.0
    %9410 = vmatpush1.xpose.msra.mxu0 0.0
    %9411 = vmatprep.subr.mxu0 0.0
    %9412 = vmatpush1.xpose.msra.mxu0 0.0
    %9413 = vmatprep.subr.mxu0 0.0
    %9414 = vmatpush1.xpose.msra.mxu0 0.0
    %9415 = vmatprep.subr.mxu0 0.0
    %9416 = vmatpush1.xpose.msra.mxu0 0.0
    %9417 = vmatprep.subr.mxu0 0.0
    %9418 = vmatpush1.xpose.msra.mxu0 0.0
    %9419 = vmatprep.subr.mxu0 0.0
    %9420 = vmatpush1.xpose.msra.mxu0 0.0
    %9421 = vmatprep.subr.mxu0 0.0
    %9422 = vmatpush1.xpose.msra.mxu0 0.0
    %9423 = vmatprep.subr.mxu0 0.0
    %9424 = vmatpush1.xpose.msra.mxu0 0.0
    %9425 = vmatprep.subr.mxu0 0.0
    %9426 = vmatpush1.xpose.msra.mxu0 0.0
    %9427 = vmatprep.subr.mxu0 0.0
    %9428 = vmatpush1.xpose.msra.mxu0 0.0
    %9429 = vmatprep.subr.mxu0 0.0
    %9430 = vmatpush1.xpose.msra.mxu0 0.0
    %9431 = vmatprep.subr.mxu0 0.0
    %9432 = vmatpush1.xpose.msra.mxu0 0.0
    %9433 = vmatprep.mubr.f32.mxu0 0.0
    %9434 = vmatmul.mubr.f32.gmra.mrb[0].mxu0 %v9365
    %v9435 = vpop.f32.mrb[0].mxu0
    %v9436 = vadd.f32 0.0, %v9435
    %v9437 = vpop.f32.mrb[0].mxu0
    %9438 = vdwg.mxu0
    %v9439 = vmul.f32 %v9359, 0.17677669
    %v9440 = vmul.f32 %v9436, 0.17677669
    %v9441 = vsel %vm478, %v9439, -1e+09
    %v9442 = vsel %vm479, %v9440, -1e+09
    %v9443 = vsel %vm482, %v9441, -inf
    %9444 = vmax.xlane.f32.xlu0 %v9443
    %v9445 = vpop.xlane.xlu0 %9444
    %v9446 = vsel %vm482, %v9442, -inf
    %9447 = vmax.xlane.f32.xlu0 %v9446
    %v9448 = vpop.xlane.xlu0 %9447
    %v9449 = vsub.f32 %v9441, %v9445
    %v9450 = vsub.f32 %v9442, %v9448
    %v9451 = vmul.f32 %v9449, 1.442695
    %v9452 = vpow.pop %v9451
    %v9453 = vmul.f32 %v9450, 1.442695
    %v9454 = vpow.pop %v9453
    %v9455 = vsel %vm482, %v9452, 0.0
    %9456 = vadd.xlane.f32.xlu0 %v9455
    %v9457 = vpop.xlane.xlu0 %9456
    %v9458 = vsel %vm482, %v9454, 0.0
    %9459 = vadd.xlane.f32.xlu0 %v9458
    %v9460 = vpop.xlane.xlu0 %9459
    %v9461 = vrcp.pop %v9457
    %v9462 = vmul.f32 %v9452, %v9461
    %v9463 = vrcp.pop %v9460
    %v9464 = vmul.f32 %v9454, %v9463
    %9465 = vrot.lane.b32.xlu0 %v9277, 64
    %v9466 = vpop.permute.xlu0 %9465
    %v9469 = vsel %vm482, %v9462, 0
    %9471 = vmatprep.subr.mxu0 0.0
    %9472 = vmatpush1.msra.mxu0 %v9466
    %9473 = vmatprep.subr.mxu0 0.0
    %9474 = vmatpush1.msra.mxu0 0.0
    %9475 = vmatprep.subr.mxu0 0.0
    %9476 = vmatpush1.msra.mxu0 0.0
    %9477 = vmatprep.subr.mxu0 0.0
    %9478 = vmatpush1.msra.mxu0 0.0
    %9479 = vmatprep.subr.mxu0 0.0
    %9480 = vmatpush1.msra.mxu0 0.0
    %9481 = vmatprep.subr.mxu0 0.0
    %9482 = vmatpush1.msra.mxu0 0.0
    %9483 = vmatprep.subr.mxu0 0.0
    %9484 = vmatpush1.msra.mxu0 0.0
    %9485 = vmatprep.subr.mxu0 0.0
    %9486 = vmatpush1.msra.mxu0 0.0
    %9487 = vmatprep.subr.mxu0 0.0
    %9488 = vmatpush1.msra.mxu0 0.0
    %9489 = vmatprep.subr.mxu0 0.0
    %9490 = vmatpush1.msra.mxu0 0.0
    %9491 = vmatprep.subr.mxu0 0.0
    %9492 = vmatpush1.msra.mxu0 0.0
    %9493 = vmatprep.subr.mxu0 0.0
    %9494 = vmatpush1.msra.mxu0 0.0
    %9495 = vmatprep.subr.mxu0 0.0
    %9496 = vmatpush1.msra.mxu0 0.0
    %9497 = vmatprep.subr.mxu0 0.0
    %9498 = vmatpush1.msra.mxu0 0.0
    %9499 = vmatprep.subr.mxu0 0.0
    %9500 = vmatpush1.msra.mxu0 0.0
    %9501 = vmatprep.subr.mxu0 0.0
    %9502 = vmatpush1.msra.mxu0 0.0
    %9503 = vmatprep.subr.mxu0 0.0
    %9504 = vmatpush1.msra.mxu0 0.0
    %9505 = vmatprep.subr.mxu0 0.0
    %9506 = vmatpush1.msra.mxu0 0.0
    %9507 = vmatprep.subr.mxu0 0.0
    %9508 = vmatpush1.msra.mxu0 0.0
    %9509 = vmatprep.subr.mxu0 0.0
    %9510 = vmatpush1.msra.mxu0 0.0
    %9511 = vmatprep.subr.mxu0 0.0
    %9512 = vmatpush1.msra.mxu0 0.0
    %9513 = vmatprep.subr.mxu0 0.0
    %9514 = vmatpush1.msra.mxu0 0.0
    %9515 = vmatprep.subr.mxu0 0.0
    %9516 = vmatpush1.msra.mxu0 0.0
    %9517 = vmatprep.subr.mxu0 0.0
    %9518 = vmatpush1.msra.mxu0 0.0
    %9519 = vmatprep.subr.mxu0 0.0
    %9520 = vmatpush1.msra.mxu0 0.0
    %9521 = vmatprep.subr.mxu0 0.0
    %9522 = vmatpush1.msra.mxu0 0.0
    %9523 = vmatprep.subr.mxu0 0.0
    %9524 = vmatpush1.msra.mxu0 0.0
    %9525 = vmatprep.subr.mxu0 0.0
    %9526 = vmatpush1.msra.mxu0 0.0
    %9527 = vmatprep.subr.mxu0 0.0
    %9528 = vmatpush1.msra.mxu0 0.0
    %9529 = vmatprep.subr.mxu0 0.0
    %9530 = vmatpush1.msra.mxu0 0.0
    %9531 = vmatprep.subr.mxu0 0.0
    %9532 = vmatpush1.msra.mxu0 0.0
    %9533 = vmatprep.subr.mxu0 0.0
    %9534 = vmatpush1.msra.mxu0 0.0
    %9535 = vmatprep.mubr.f32.mxu0 0.0
    %9536 = vmatmul.mubr.f32.gmra.mrb[0].mxu0 %v9469
    %v9537 = vpop.f32.mrb[0].mxu0
    %v9538 = vadd.f32 0.0, %v9537
    %v9539 = vpop.f32.mrb[0].mxu0
    %9540 = vdwg.mxu0
    %9541 = vrot.lane.b32.xlu0 %v9282, 64
    %v9542 = vpop.permute.xlu0 %9541
    %v9545 = vsel %vm482, %v9464, 0
    %9547 = vmatprep.subr.mxu0 0.0
    %9548 = vmatpush1.msra.mxu0 %v9542
    %9549 = vmatprep.subr.mxu0 0.0
    %9550 = vmatpush1.msra.mxu0 0.0
    %9551 = vmatprep.subr.mxu0 0.0
    %9552 = vmatpush1.msra.mxu0 0.0
    %9553 = vmatprep.subr.mxu0 0.0
    %9554 = vmatpush1.msra.mxu0 0.0
    %9555 = vmatprep.subr.mxu0 0.0
    %9556 = vmatpush1.msra.mxu0 0.0
    %9557 = vmatprep.subr.mxu0 0.0
    %9558 = vmatpush1.msra.mxu0 0.0
    %9559 = vmatprep.subr.mxu0 0.0
    %9560 = vmatpush1.msra.mxu0 0.0
    %9561 = vmatprep.subr.mxu0 0.0
    %9562 = vmatpush1.msra.mxu0 0.0
    %9563 = vmatprep.subr.mxu0 0.0
    %9564 = vmatpush1.msra.mxu0 0.0
    %9565 = vmatprep.subr.mxu0 0.0
    %9566 = vmatpush1.msra.mxu0 0.0
    %9567 = vmatprep.subr.mxu0 0.0
    %9568 = vmatpush1.msra.mxu0 0.0
    %9569 = vmatprep.subr.mxu0 0.0
    %9570 = vmatpush1.msra.mxu0 0.0
    %9571 = vmatprep.subr.mxu0 0.0
    %9572 = vmatpush1.msra.mxu0 0.0
    %9573 = vmatprep.subr.mxu0 0.0
    %9574 = vmatpush1.msra.mxu0 0.0
    %9575 = vmatprep.subr.mxu0 0.0
    %9576 = vmatpush1.msra.mxu0 0.0
    %9577 = vmatprep.subr.mxu0 0.0
    %9578 = vmatpush1.msra.mxu0 0.0
    %9579 = vmatprep.subr.mxu0 0.0
    %9580 = vmatpush1.msra.mxu0 0.0
    %9581 = vmatprep.subr.mxu0 0.0
    %9582 = vmatpush1.msra.mxu0 0.0
    %9583 = vmatprep.subr.mxu0 0.0
    %9584 = vmatpush1.msra.mxu0 0.0
    %9585 = vmatprep.subr.mxu0 0.0
    %9586 = vmatpush1.msra.mxu0 0.0
    %9587 = vmatprep.subr.mxu0 0.0
    %9588 = vmatpush1.msra.mxu0 0.0
    %9589 = vmatprep.subr.mxu0 0.0
    %9590 = vmatpush1.msra.mxu0 0.0
    %9591 = vmatprep.subr.mxu0 0.0
    %9592 = vmatpush1.msra.mxu0 0.0
    %9593 = vmatprep.subr.mxu0 0.0
    %9594 = vmatpush1.msra.mxu0 0.0
    %9595 = vmatprep.subr.mxu0 0.0
    %9596 = vmatpush1.msra.mxu0 0.0
    %9597 = vmatprep.subr.mxu0 0.0
    %9598 = vmatpush1.msra.mxu0 0.0
    %9599 = vmatprep.subr.mxu0 0.0
    %9600 = vmatpush1.msra.mxu0 0.0
    %9601 = vmatprep.subr.mxu0 0.0
    %9602 = vmatpush1.msra.mxu0 0.0
    %9603 = vmatprep.subr.mxu0 0.0
    %9604 = vmatpush1.msra.mxu0 0.0
    %9605 = vmatprep.subr.mxu0 0.0
    %9606 = vmatpush1.msra.mxu0 0.0
    %9607 = vmatprep.subr.mxu0 0.0
    %9608 = vmatpush1.msra.mxu0 0.0
    %9609 = vmatprep.subr.mxu0 0.0
    %9610 = vmatpush1.msra.mxu0 0.0
    %9611 = vmatprep.mubr.f32.mxu0 0.0
    %9612 = vmatmul.mubr.f32.gmra.mrb[0].mxu0 %v9545
    %v9613 = vpop.f32.mrb[0].mxu0
    %v9614 = vadd.f32 0.0, %v9613
    %v9615 = vpop.f32.mrb[0].mxu0
    %9616 = vdwg.mxu0
    %9621 = vrot.lane.b32.xlu0 %v9076, 96
    %v9622 = vpop.permute.xlu0 %9621
    %9623 = vrot.lane.b32.xlu0 %v9079, 96
    %v9624 = vpop.permute.xlu0 %9623
    %9625 = vrot.lane.b32.xlu0 %v9082, 96
    %v9626 = vpop.permute.xlu0 %9625
    %9627 = vrot.lane.b32.xlu0 %v9085, 96
    %v9628 = vpop.permute.xlu0 %9627
    %v9634 = vsel %vm164, %v9538, 0
    %v9637 = vsel %vm164, %v9614, 0
    %9639 = vmatprep.subr.mxu0 0.0
    %9640 = vmatpush1.msra.mxu0 %v9622
    %9641 = vmatprep.subr.mxu0 0.0
    %9642 = vmatpush1.msra.mxu0 %v9624
    %9643 = vmatprep.subr.mxu0 0.0
    %9644 = vmatpush1.msra.mxu0 %v9626
    %9645 = vmatprep.subr.mxu0 0.0
    %9646 = vmatpush1.msra.mxu0 %v9628
    %9647 = vmatprep.subr.mxu0 0.0
    %9648 = vmatpush1.msra.mxu0 0.0
    %9649 = vmatprep.subr.mxu0 0.0
    %9650 = vmatpush1.msra.mxu0 0.0
    %9651 = vmatprep.subr.mxu0 0.0
    %9652 = vmatpush1.msra.mxu0 0.0
    %9653 = vmatprep.subr.mxu0 0.0
    %9654 = vmatpush1.msra.mxu0 0.0
    %9655 = vmatprep.subr.mxu0 0.0
    %9656 = vmatpush1.msra.mxu0 0.0
    %9657 = vmatprep.subr.mxu0 0.0
    %9658 = vmatpush1.msra.mxu0 0.0
    %9659 = vmatprep.subr.mxu0 0.0
    %9660 = vmatpush1.msra.mxu0 0.0
    %9661 = vmatprep.subr.mxu0 0.0
    %9662 = vmatpush1.msra.mxu0 0.0
    %9663 = vmatprep.subr.mxu0 0.0
    %9664 = vmatpush1.msra.mxu0 0.0
    %9665 = vmatprep.subr.mxu0 0.0
    %9666 = vmatpush1.msra.mxu0 0.0
    %9667 = vmatprep.subr.mxu0 0.0
    %9668 = vmatpush1.msra.mxu0 0.0
    %9669 = vmatprep.subr.mxu0 0.0
    %9670 = vmatpush1.msra.mxu0 0.0
    %9671 = vmatprep.subr.mxu0 0.0
    %9672 = vmatpush1.msra.mxu0 0.0
    %9673 = vmatprep.subr.mxu0 0.0
    %9674 = vmatpush1.msra.mxu0 0.0
    %9675 = vmatprep.subr.mxu0 0.0
    %9676 = vmatpush1.msra.mxu0 0.0
    %9677 = vmatprep.subr.mxu0 0.0
    %9678 = vmatpush1.msra.mxu0 0.0
    %9679 = vmatprep.subr.mxu0 0.0
    %9680 = vmatpush1.msra.mxu0 0.0
    %9681 = vmatprep.subr.mxu0 0.0
    %9682 = vmatpush1.msra.mxu0 0.0
    %9683 = vmatprep.subr.mxu0 0.0
    %9684 = vmatpush1.msra.mxu0 0.0
    %9685 = vmatprep.subr.mxu0 0.0
    %9686 = vmatpush1.msra.mxu0 0.0
    %9687 = vmatprep.subr.mxu0 0.0
    %9688 = vmatpush1.msra.mxu0 0.0
    %9689 = vmatprep.subr.mxu0 0.0
    %9690 = vmatpush1.msra.mxu0 0.0
    %9691 = vmatprep.subr.mxu0 0.0
    %9692 = vmatpush1.msra.mxu0 0.0
    %9693 = vmatprep.subr.mxu0 0.0
    %9694 = vmatpush1.msra.mxu0 0.0
    %9695 = vmatprep.subr.mxu0 0.0
    %9696 = vmatpush1.msra.mxu0 0.0
    %9697 = vmatprep.subr.mxu0 0.0
    %9698 = vmatpush1.msra.mxu0 0.0
    %9699 = vmatprep.subr.mxu0 0.0
    %9700 = vmatpush1.msra.mxu0 0.0
    %9701 = vmatprep.subr.mxu0 0.0
    %9702 = vmatpush1.msra.mxu0 0.0
    %9703 = vmatprep.mubr.f32.mxu0 0.0
    %9704 = vmatmul.mubr.f32.gmra.mrb[0].mxu0 %v9634
    %v9705 = vpop.f32.mrb[0].mxu0
    %v9706 = vadd.f32 0.0, %v9705
    %v9707 = vpop.f32.mrb[0].mxu0
    %9708 = vmatprep.mubr.f32.mxu0 0.0
    %9709 = vmatmul.mubr.f32.gmra.mrb[0].mxu0 %v9637
    %v9710 = vpop.f32.mrb[0].mxu0
    %v9711 = vadd.f32 0.0, %v9710
    %v9712 = vpop.f32.mrb[0].mxu0
    %9713 = vdwg.mxu0
    %v9714 = vadd.f32 %v9158, %v9706
    %v9715 = vadd.f32 %v9163, %v9711
    %v9716 = vsel %vm164, %v9714, 0.0
    %9717 = vadd.xlane.f32.xlu0 %v9716
    %v9718 = vpop.xlane.xlu0 %9717
    %v9719 = vsel %vm164, %v9715, 0.0
    %9720 = vadd.xlane.f32.xlu0 %v9719
    %v9721 = vpop.xlane.xlu0 %9720
    %v9722 = vmul.f32 %v9718, %v171
    %v9723 = vmul.f32 %v9721, %v171
    %v9724 = vsub.f32 %v9714, %v9722
    %v9725 = vsub.f32 %v9715, %v9723
    %v9726 = vmul.f32 %v9724, %v9724
    %v9727 = vmul.f32 %v9725, %v9725
    %v9728 = vsel %vm164, %v9726, 0.0
    %9729 = vadd.xlane.f32.xlu0 %v9728
    %v9730 = vpop.xlane.xlu0 %9729
    %v9731 = vsel %vm164, %v9727, 0.0
    %9732 = vadd.xlane.f32.xlu0 %v9731
    %v9733 = vpop.xlane.xlu0 %9732
    %v9734 = vmul.f32 %v9730, %v171
    %v9735 = vmul.f32 %v9733, %v171
    %v9736 = vadd.f32 %v9734, 1e-05
    %v9737 = vadd.f32 %v9735, 1e-05
    %v9738 = vrsqrt.pop %v9736
    %v9739 = vrsqrt.pop %v9737
    %v9740 = vmul.f32 %v9724, %v9738
    %v9741 = vmul.f32 %v9725, %v9739
    %v9742 = vlaneseq
    %v9743 = vshrl.u32 %v9742, 7
    %v9744 = vsub.s32 3, %v9743
    %v9745 = vrot.slane %v9086, %v9744
    %v9746 = vmul.f32 %v9740, %v9745
    %v9747 = vmul.f32 %v9741, %v9745
    %v9748 = vlaneseq
    %v9749 = vshrl.u32 %v9748, 7
    %v9750 = vsub.s32 4, %v9749
    %v9751 = vrot.slane %v9086, %v9750
    %v9752 = vadd.f32 %v9746, %v9751
    %v9753 = vadd.f32 %v9747, %v9751
    %v9754 = vlaneseq
    %v9755 = vshrl.u32 %v9754, 7
    %v9756 = vsub.s32 6, %v9755
    %v9757 = vrot.slane %v9086, %v9756
    %v9759 = vsel %vm164, %v9752, 0
    %v9762 = vsel %vm164, %v9753, 0
    %9764 = vmatprep.subr.mxu0 0.0
    %9765 = vmatpush1.msra.mxu0 %v9074
    %9766 = vmatprep.subr.mxu0 0.0
    %9767 = vmatpush1.msra.mxu0 %v9077
    %9768 = vmatprep.subr.mxu0 0.0
    %9769 = vmatpush1.msra.mxu0 %v9080
    %9770 = vmatprep.subr.mxu0 0.0
    %9771 = vmatpush1.msra.mxu0 %v9083
    %9772 = vmatprep.subr.mxu0 0.0
    %9773 = vmatpush1.msra.mxu0 0.0
    %9774 = vmatprep.subr.mxu0 0.0
    %9775 = vmatpush1.msra.mxu0 0.0
    %9776 = vmatprep.subr.mxu0 0.0
    %9777 = vmatpush1.msra.mxu0 0.0
    %9778 = vmatprep.subr.mxu0 0.0
    %9779 = vmatpush1.msra.mxu0 0.0
    %9780 = vmatprep.subr.mxu0 0.0
    %9781 = vmatpush1.msra.mxu0 0.0
    %9782 = vmatprep.subr.mxu0 0.0
    %9783 = vmatpush1.msra.mxu0 0.0
    %9784 = vmatprep.subr.mxu0 0.0
    %9785 = vmatpush1.msra.mxu0 0.0
    %9786 = vmatprep.subr.mxu0 0.0
    %9787 = vmatpush1.msra.mxu0 0.0
    %9788 = vmatprep.subr.mxu0 0.0
    %9789 = vmatpush1.msra.mxu0 0.0
    %9790 = vmatprep.subr.mxu0 0.0
    %9791 = vmatpush1.msra.mxu0 0.0
    %9792 = vmatprep.subr.mxu0 0.0
    %9793 = vmatpush1.msra.mxu0 0.0
    %9794 = vmatprep.subr.mxu0 0.0
    %9795 = vmatpush1.msra.mxu0 0.0
    %9796 = vmatprep.subr.mxu0 0.0
    %9797 = vmatpush1.msra.mxu0 0.0
    %9798 = vmatprep.subr.mxu0 0.0
    %9799 = vmatpush1.msra.mxu0 0.0
    %9800 = vmatprep.subr.mxu0 0.0
    %9801 = vmatpush1.msra.mxu0 0.0
    %9802 = vmatprep.subr.mxu0 0.0
    %9803 = vmatpush1.msra.mxu0 0.0
    %9804 = vmatprep.subr.mxu0 0.0
    %9805 = vmatpush1.msra.mxu0 0.0
    %9806 = vmatprep.subr.mxu0 0.0
    %9807 = vmatpush1.msra.mxu0 0.0
    %9808 = vmatprep.subr.mxu0 0.0
    %9809 = vmatpush1.msra.mxu0 0.0
    %9810 = vmatprep.subr.mxu0 0.0
    %9811 = vmatpush1.msra.mxu0 0.0
    %9812 = vmatprep.subr.mxu0 0.0
    %9813 = vmatpush1.msra.mxu0 0.0
    %9814 = vmatprep.subr.mxu0 0.0
    %9815 = vmatpush1.msra.mxu0 0.0
    %9816 = vmatprep.subr.mxu0 0.0
    %9817 = vmatpush1.msra.mxu0 0.0
    %9818 = vmatprep.subr.mxu0 0.0
    %9819 = vmatpush1.msra.mxu0 0.0
    %9820 = vmatprep.subr.mxu0 0.0
    %9821 = vmatpush1.msra.mxu0 0.0
    %9822 = vmatprep.subr.mxu0 0.0
    %9823 = vmatpush1.msra.mxu0 0.0
    %9824 = vmatprep.subr.mxu0 0.0
    %9825 = vmatpush1.msra.mxu0 0.0
    %9826 = vmatprep.subr.mxu0 0.0
    %9827 = vmatpush1.msra.mxu0 0.0
    %9828 = vmatprep.mubr.f32.mxu0 0.0
    %9829 = vmatmul.mubr.f32.gmra.mrb[0].mxu0 %v9759
    %v9830 = vpop.f32.mrb[0].mxu0
    %v9831 = vadd.f32 %v9757, %v9830
    %v9832 = vpop.f32.mrb[0].mxu0
    %9833 = vmatprep.mubr.f32.mxu0 0.0
    %9834 = vmatmul.mubr.f32.gmra.mrb[0].mxu0 %v9762
    %v9835 = vpop.f32.mrb[0].mxu0
    %v9836 = vadd.f32 %v9757, %v9835
    %v9837 = vpop.f32.mrb[0].mxu0
    %9838 = vdwg.mxu0
    %v9839 = vmul.f32 %v9831, %v9831
    %v9840 = vmul.f32 %v9836, %v9836
    %v9841 = vmul.f32 %v9831, %v9839
    %v9842 = vmul.f32 %v9836, %v9840
    %v9843 = vmul.f32 %v9841, 0.044715
    %v9844 = vmul.f32 %v9842, 0.044715
    %v9845 = vadd.f32 %v9831, %v9843
    %v9846 = vadd.f32 %v9836, %v9844
    %v9847 = vmul.f32 %v9845, 0.7978846
    %v9848 = vmul.f32 %v9846, 0.7978846
    %v9849 = vtanh.pop %v9847
    %v9850 = vtanh.pop %v9848
    %v9851 = vadd.f32 %v9849, 1.0
    %v9852 = vadd.f32 %v9850, 1.0
    %v9853 = vmul.f32 %v9851, 0.5
    %v9854 = vmul.f32 %v9852, 0.5
    %v9855 = vmul.f32 %v9831, %v9853
    %v9856 = vmul.f32 %v9836, %v9854
    %v9857 = vld [vmem:[%s12] sm:$0xff]
    %v9858 = vld [vmem:[%s12 + $0x8] sm:$0xff]
    %v9859 = vld [vmem:[%s12 + $0x10] sm:$0xff]
    %v9860 = vld [vmem:[%s12 + $0x18] sm:$0xff]
    %v9861 = vld [vmem:[%s12 + $0x20] sm:$0xff]
    %v9862 = vld [vmem:[%s12 + $0x28] sm:$0xff]
    %v9863 = vld [vmem:[%s12 + $0x30] sm:$0xff]
    %v9864 = vld [vmem:[%s12 + $0x38] sm:$0xff]
    %v9865 = vld [vmem:[%s12 + $0x40] sm:$0xff]
    %v9866 = vld [vmem:[%s12 + $0x48] sm:$0xff]
    %v9867 = vld [vmem:[%s12 + $0x50] sm:$0xff]
    %v9868 = vld [vmem:[%s12 + $0x58] sm:$0xff]
    %v9869 = vld [vmem:[%s12 + $0x60] sm:$0xff]
    %v9870 = vld [vmem:[%s12 + $0x68] sm:$0xff]
    %v9871 = vld [vmem:[%s12 + $0x70] sm:$0xff]
    %v9872 = vld [vmem:[%s12 + $0x78] sm:$0xff]
    %9873 = vmatprep.subr.mxu0 0.0
    %9874 = vmatpush1.msra.mxu0 %v9857
    %9875 = vmatprep.subr.mxu0 0.0
    %9876 = vmatpush1.msra.mxu0 %v9858
    %9877 = vmatprep.subr.mxu0 0.0
    %9878 = vmatpush1.msra.mxu0 %v9859
    %9879 = vmatprep.subr.mxu0 0.0
    %9880 = vmatpush1.msra.mxu0 %v9860
    %9881 = vmatprep.subr.mxu0 0.0
    %9882 = vmatpush1.msra.mxu0 %v9861
    %9883 = vmatprep.subr.mxu0 0.0
    %9884 = vmatpush1.msra.mxu0 %v9862
    %9885 = vmatprep.subr.mxu0 0.0
    %9886 = vmatpush1.msra.mxu0 %v9863
    %9887 = vmatprep.subr.mxu0 0.0
    %9888 = vmatpush1.msra.mxu0 %v9864
    %9889 = vmatprep.subr.mxu0 0.0
    %9890 = vmatpush1.msra.mxu0 %v9865
    %9891 = vmatprep.subr.mxu0 0.0
    %9892 = vmatpush1.msra.mxu0 %v9866
    %9893 = vmatprep.subr.mxu0 0.0
    %9894 = vmatpush1.msra.mxu0 %v9867
    %9895 = vmatprep.subr.mxu0 0.0
    %9896 = vmatpush1.msra.mxu0 %v9868
    %9897 = vmatprep.subr.mxu0 0.0
    %9898 = vmatpush1.msra.mxu0 %v9869
    %9899 = vmatprep.subr.mxu0 0.0
    %9900 = vmatpush1.msra.mxu0 %v9870
    %9901 = vmatprep.subr.mxu0 0.0
    %9902 = vmatpush1.msra.mxu0 %v9871
    %9903 = vmatprep.subr.mxu0 0.0
    %9904 = vmatpush1.msra.mxu0 %v9872
    %9905 = vmatprep.subr.mxu0 0.0
    %9906 = vmatpush1.msra.mxu0 0.0
    %9907 = vmatprep.subr.mxu0 0.0
    %9908 = vmatpush1.msra.mxu0 0.0
    %9909 = vmatprep.subr.mxu0 0.0
    %9910 = vmatpush1.msra.mxu0 0.0
    %9911 = vmatprep.subr.mxu0 0.0
    %9912 = vmatpush1.msra.mxu0 0.0
    %9913 = vmatprep.subr.mxu0 0.0
    %9914 = vmatpush1.msra.mxu0 0.0
    %9915 = vmatprep.subr.mxu0 0.0
    %9916 = vmatpush1.msra.mxu0 0.0
    %9917 = vmatprep.subr.mxu0 0.0
    %9918 = vmatpush1.msra.mxu0 0.0
    %9919 = vmatprep.subr.mxu0 0.0
    %9920 = vmatpush1.msra.mxu0 0.0
    %9921 = vmatprep.subr.mxu0 0.0
    %9922 = vmatpush1.msra.mxu0 0.0
    %9923 = vmatprep.subr.mxu0 0.0
    %9924 = vmatpush1.msra.mxu0 0.0
    %9925 = vmatprep.subr.mxu0 0.0
    %9926 = vmatpush1.msra.mxu0 0.0
    %9927 = vmatprep.subr.mxu0 0.0
    %9928 = vmatpush1.msra.mxu0 0.0
    %9929 = vmatprep.subr.mxu0 0.0
    %9930 = vmatpush1.msra.mxu0 0.0
    %9931 = vmatprep.subr.mxu0 0.0
    %9932 = vmatpush1.msra.mxu0 0.0
    %9933 = vmatprep.subr.mxu0 0.0
    %9934 = vmatpush1.msra.mxu0 0.0
    %9935 = vmatprep.subr.mxu0 0.0
    %9936 = vmatpush1.msra.mxu0 0.0
    %9937 = vmatprep.mubr.f32.mxu0 0.0
    %9938 = vmatmul.mubr.f32.gmra.mrb[0].mxu0 %v9855
    %v9939 = vpop.f32.mrb[0].mxu0
    %v9940 = vadd.f32 0.0, %v9939
    %v9941 = vpop.f32.mrb[0].mxu0
    %9942 = vmatprep.mubr.f32.mxu0 0.0
    %9943 = vmatmul.mubr.f32.gmra.mrb[0].mxu0 %v9856
    %v9944 = vpop.f32.mrb[0].mxu0
    %v9945 = vadd.f32 0.0, %v9944
    %v9946 = vpop.f32.mrb[0].mxu0
    %9947 = vdwg.mxu0
    %v9948 = vadd.f32 %v9714, %v9940
    %v9949 = vadd.f32 %v9715, %v9945
    %v9950 = vlaneseq
    %v9951 = vshrl.u32 %v9950, 7
    %v9952 = vsub.s32 5, %v9951
    %v9953 = vrot.slane %v9086, %v9952
    %v9954 = vadd.f32 %v9948, %v9953
    %v9955 = vadd.f32 %v9949, %v9953
    %v9956 = vlaneseq
    %v9957 = vshrl.u32 %v9956, 7
    %v9958 = vsub.s32 2, %v9957
    %v9959 = vrot.slane %v1006, %v9958
    %9960 = vrot.lane.b32.xlu0 %v998, 64
    %v9961 = vpop.permute.xlu0 %9960
    %9962 = vrot.lane.b32.xlu0 %v1000, 64
    %v9963 = vpop.permute.xlu0 %9962
    %9964 = vrot.lane.b32.xlu0 %v1002, 64
    %v9965 = vpop.permute.xlu0 %9964
    %9966 = vrot.lane.b32.xlu0 %v1004, 64
    %v9967 = vpop.permute.xlu0 %9966
    %v9973 = vsel %vm164, %v9072, 0
    %v9976 = vsel %vm164, %v9073, 0
    %9978 = vmatprep.subr.mxu0 0.0
    %9979 = vmatpush1.msra.mxu0 %v9961
    %9980 = vmatprep.subr.mxu0 0.0
    %9981 = vmatpush1.msra.mxu0 %v9963
    %9982 = vmatprep.subr.mxu0 0.0
    %9983 = vmatpush1.msra.mxu0 %v9965
    %9984 = vmatprep.subr.mxu0 0.0
    %9985 = vmatpush1.msra.mxu0 %v9967
    %9986 = vmatprep.subr.mxu0 0.0
    %9987 = vmatpush1.msra.mxu0 0.0
    %9988 = vmatprep.subr.mxu0 0.0
    %9989 = vmatpush1.msra.mxu0 0.0
    %9990 = vmatprep.subr.mxu0 0.0
    %9991 = vmatpush1.msra.mxu0 0.0
    %9992 = vmatprep.subr.mxu0 0.0
    %9993 = vmatpush1.msra.mxu0 0.0
    %9994 = vmatprep.subr.mxu0 0.0
    %9995 = vmatpush1.msra.mxu0 0.0
    %9996 = vmatprep.subr.mxu0 0.0
    %9997 = vmatpush1.msra.mxu0 0.0
    %9998 = vmatprep.subr.mxu0 0.0
    %9999 = vmatpush1.msra.mxu0 0.0
    %10000 = vmatprep.subr.mxu0 0.0
    %10001 = vmatpush1.msra.mxu0 0.0
    %10002 = vmatprep.subr.mxu0 0.0
    %10003 = vmatpush1.msra.mxu0 0.0
    %10004 = vmatprep.subr.mxu0 0.0
    %10005 = vmatpush1.msra.mxu0 0.0
    %10006 = vmatprep.subr.mxu0 0.0
    %10007 = vmatpush1.msra.mxu0 0.0
    %10008 = vmatprep.subr.mxu0 0.0
    %10009 = vmatpush1.msra.mxu0 0.0
    %10010 = vmatprep.subr.mxu0 0.0
    %10011 = vmatpush1.msra.mxu0 0.0
    %10012 = vmatprep.subr.mxu0 0.0
    %10013 = vmatpush1.msra.mxu0 0.0
    %10014 = vmatprep.subr.mxu0 0.0
    %10015 = vmatpush1.msra.mxu0 0.0
    %10016 = vmatprep.subr.mxu0 0.0
    %10017 = vmatpush1.msra.mxu0 0.0
    %10018 = vmatprep.subr.mxu0 0.0
    %10019 = vmatpush1.msra.mxu0 0.0
    %10020 = vmatprep.subr.mxu0 0.0
    %10021 = vmatpush1.msra.mxu0 0.0
    %10022 = vmatprep.subr.mxu0 0.0
    %10023 = vmatpush1.msra.mxu0 0.0
    %10024 = vmatprep.subr.mxu0 0.0
    %10025 = vmatpush1.msra.mxu0 0.0
    %10026 = vmatprep.subr.mxu0 0.0
    %10027 = vmatpush1.msra.mxu0 0.0
    %10028 = vmatprep.subr.mxu0 0.0
    %10029 = vmatpush1.msra.mxu0 0.0
    %10030 = vmatprep.subr.mxu0 0.0
    %10031 = vmatpush1.msra.mxu0 0.0
    %10032 = vmatprep.subr.mxu0 0.0
    %10033 = vmatpush1.msra.mxu0 0.0
    %10034 = vmatprep.subr.mxu0 0.0
    %10035 = vmatpush1.msra.mxu0 0.0
    %10036 = vmatprep.subr.mxu0 0.0
    %10037 = vmatpush1.msra.mxu0 0.0
    %10038 = vmatprep.subr.mxu0 0.0
    %10039 = vmatpush1.msra.mxu0 0.0
    %10040 = vmatprep.subr.mxu0 0.0
    %10041 = vmatpush1.msra.mxu0 0.0
    %10042 = vmatprep.mubr.f32.mxu0 0.0
    %10043 = vmatmul.mubr.f32.gmra.mrb[0].mxu0 %v9973
    %v10044 = vpop.f32.mrb[0].mxu0
    %v10045 = vadd.f32 %v9959, %v10044
    %v10046 = vpop.f32.mrb[0].mxu0
    %10047 = vmatprep.mubr.f32.mxu0 0.0
    %10048 = vmatmul.mubr.f32.gmra.mrb[0].mxu0 %v9976
    %v10049 = vpop.f32.mrb[0].mxu0
    %v10050 = vadd.f32 %v9959, %v10049
    %v10051 = vpop.f32.mrb[0].mxu0
    %10052 = vdwg.mxu0
    %v10053 = vtanh.pop %v10045
    %v10054 = vtanh.pop %v10050
    %v10055 = vlaneseq
    %v10056 = vshrl.u32 %v10055, 7
    %v10057 = vsub.s32 3, %v10056
    %v10058 = vrot.slane %v1006, %v10057
    %v10060 = vsel %vm164, %v10053, 0
    %v10063 = vsel %vm164, %v10054, 0
    %10065 = vmatprep.subr.mxu0 0.0
    %10066 = vmatpush1.msra.mxu0 %v999
    %10067 = vmatprep.subr.mxu0 0.0
    %10068 = vmatpush1.msra.mxu0 %v1001
    %10069 = vmatprep.subr.mxu0 0.0
    %10070 = vmatpush1.msra.mxu0 %v1003
    %10071 = vmatprep.subr.mxu0 0.0
    %10072 = vmatpush1.msra.mxu0 %v1005
    %10073 = vmatprep.subr.mxu0 0.0
    %10074 = vmatpush1.msra.mxu0 0.0
    %10075 = vmatprep.subr.mxu0 0.0
    %10076 = vmatpush1.msra.mxu0 0.0
    %10077 = vmatprep.subr.mxu0 0.0
    %10078 = vmatpush1.msra.mxu0 0.0
    %10079 = vmatprep.subr.mxu0 0.0
    %10080 = vmatpush1.msra.mxu0 0.0
    %10081 = vmatprep.subr.mxu0 0.0
    %10082 = vmatpush1.msra.mxu0 0.0
    %10083 = vmatprep.subr.mxu0 0.0
    %10084 = vmatpush1.msra.mxu0 0.0
    %10085 = vmatprep.subr.mxu0 0.0
    %10086 = vmatpush1.msra.mxu0 0.0
    %10087 = vmatprep.subr.mxu0 0.0
    %10088 = vmatpush1.msra.mxu0 0.0
    %10089 = vmatprep.subr.mxu0 0.0
    %10090 = vmatpush1.msra.mxu0 0.0
    %10091 = vmatprep.subr.mxu0 0.0
    %10092 = vmatpush1.msra.mxu0 0.0
    %10093 = vmatprep.subr.mxu0 0.0
    %10094 = vmatpush1.msra.mxu0 0.0
    %10095 = vmatprep.subr.mxu0 0.0
    %10096 = vmatpush1.msra.mxu0 0.0
    %10097 = vmatprep.subr.mxu0 0.0
    %10098 = vmatpush1.msra.mxu0 0.0
    %10099 = vmatprep.subr.mxu0 0.0
    %10100 = vmatpush1.msra.mxu0 0.0
    %10101 = vmatprep.subr.mxu0 0.0
    %10102 = vmatpush1.msra.mxu0 0.0
    %10103 = vmatprep.subr.mxu0 0.0
    %10104 = vmatpush1.msra.mxu0 0.0
    %10105 = vmatprep.subr.mxu0 0.0
    %10106 = vmatpush1.msra.mxu0 0.0
    %10107 = vmatprep.subr.mxu0 0.0
    %10108 = vmatpush1.msra.mxu0 0.0
    %10109 = vmatprep.subr.mxu0 0.0
    %10110 = vmatpush1.msra.mxu0 0.0
    %10111 = vmatprep.subr.mxu0 0.0
    %10112 = vmatpush1.msra.mxu0 0.0
    %10113 = vmatprep.subr.mxu0 0.0
    %10114 = vmatpush1.msra.mxu0 0.0
    %10115 = vmatprep.subr.mxu0 0.0
    %10116 = vmatpush1.msra.mxu0 0.0
    %10117 = vmatprep.subr.mxu0 0.0
    %10118 = vmatpush1.msra.mxu0 0.0
    %10119 = vmatprep.subr.mxu0 0.0
    %10120 = vmatpush1.msra.mxu0 0.0
    %10121 = vmatprep.subr.mxu0 0.0
    %10122 = vmatpush1.msra.mxu0 0.0
    %10123 = vmatprep.subr.mxu0 0.0
    %10124 = vmatpush1.msra.mxu0 0.0
    %10125 = vmatprep.subr.mxu0 0.0
    %10126 = vmatpush1.msra.mxu0 0.0
    %10127 = vmatprep.subr.mxu0 0.0
    %10128 = vmatpush1.msra.mxu0 0.0
    %10129 = vmatprep.mubr.f32.mxu0 0.0
    %10130 = vmatmul.mubr.f32.gmra.mrb[0].mxu0 %v10060
    %v10131 = vpop.f32.mrb[0].mxu0
    %v10132 = vadd.f32 %v10058, %v10131
    %v10133 = vpop.f32.mrb[0].mxu0
    %10134 = vmatprep.mubr.f32.mxu0 0.0
    %10135 = vmatmul.mubr.f32.gmra.mrb[0].mxu0 %v10063
    %v10136 = vpop.f32.mrb[0].mxu0
    %v10137 = vadd.f32 %v10058, %v10136
    %v10138 = vpop.f32.mrb[0].mxu0
    %10139 = vdwg.mxu0
    %v10140 = vlaneseq
    %v10141 = vshrl.u32 %v10140, 7
    %v10142 = vsub.s32 4, %v10141
    %v10143 = vrot.slane %v1006, %v10142
    %10144 = vrot.lane.b32.xlu0 %v998, 32
    %v10145 = vpop.permute.xlu0 %10144
    %10146 = vrot.lane.b32.xlu0 %v1000, 32
    %v10147 = vpop.permute.xlu0 %10146
    %10148 = vrot.lane.b32.xlu0 %v1002, 32
    %v10149 = vpop.permute.xlu0 %10148
    %10150 = vrot.lane.b32.xlu0 %v1004, 32
    %v10151 = vpop.permute.xlu0 %10150
    %v10157 = vsel %vm164, %v9954, 0
    %v10160 = vsel %vm164, %v9955, 0
    %10162 = vmatprep.subr.mxu0 0.0
    %10163 = vmatpush1.msra.mxu0 %v10145
    %10164 = vmatprep.subr.mxu0 0.0
    %10165 = vmatpush1.msra.mxu0 %v10147
    %10166 = vmatprep.subr.mxu0 0.0
    %10167 = vmatpush1.msra.mxu0 %v10149
    %10168 = vmatprep.subr.mxu0 0.0
    %10169 = vmatpush1.msra.mxu0 %v10151
    %10170 = vmatprep.subr.mxu0 0.0
    %10171 = vmatpush1.msra.mxu0 0.0
    %10172 = vmatprep.subr.mxu0 0.0
    %10173 = vmatpush1.msra.mxu0 0.0
    %10174 = vmatprep.subr.mxu0 0.0
    %10175 = vmatpush1.msra.mxu0 0.0
    %10176 = vmatprep.subr.mxu0 0.0
    %10177 = vmatpush1.msra.mxu0 0.0
    %10178 = vmatprep.subr.mxu0 0.0
    %10179 = vmatpush1.msra.mxu0 0.0
    %10180 = vmatprep.subr.mxu0 0.0
    %10181 = vmatpush1.msra.mxu0 0.0
    %10182 = vmatprep.subr.mxu0 0.0
    %10183 = vmatpush1.msra.mxu0 0.0
    %10184 = vmatprep.subr.mxu0 0.0
    %10185 = vmatpush1.msra.mxu0 0.0
    %10186 = vmatprep.subr.mxu0 0.0
    %10187 = vmatpush1.msra.mxu0 0.0
    %10188 = vmatprep.subr.mxu0 0.0
    %10189 = vmatpush1.msra.mxu0 0.0
    %10190 = vmatprep.subr.mxu0 0.0
    %10191 = vmatpush1.msra.mxu0 0.0
    %10192 = vmatprep.subr.mxu0 0.0
    %10193 = vmatpush1.msra.mxu0 0.0
    %10194 = vmatprep.subr.mxu0 0.0
    %10195 = vmatpush1.msra.mxu0 0.0
    %10196 = vmatprep.subr.mxu0 0.0
    %10197 = vmatpush1.msra.mxu0 0.0
    %10198 = vmatprep.subr.mxu0 0.0
    %10199 = vmatpush1.msra.mxu0 0.0
    %10200 = vmatprep.subr.mxu0 0.0
    %10201 = vmatpush1.msra.mxu0 0.0
    %10202 = vmatprep.subr.mxu0 0.0
    %10203 = vmatpush1.msra.mxu0 0.0
    %10204 = vmatprep.subr.mxu0 0.0
    %10205 = vmatpush1.msra.mxu0 0.0
    %10206 = vmatprep.subr.mxu0 0.0
    %10207 = vmatpush1.msra.mxu0 0.0
    %10208 = vmatprep.subr.mxu0 0.0
    %10209 = vmatpush1.msra.mxu0 0.0
    %10210 = vmatprep.subr.mxu0 0.0
    %10211 = vmatpush1.msra.mxu0 0.0
    %10212 = vmatprep.subr.mxu0 0.0
    %10213 = vmatpush1.msra.mxu0 0.0
    %10214 = vmatprep.subr.mxu0 0.0
    %10215 = vmatpush1.msra.mxu0 0.0
    %10216 = vmatprep.subr.mxu0 0.0
    %10217 = vmatpush1.msra.mxu0 0.0
    %10218 = vmatprep.subr.mxu0 0.0
    %10219 = vmatpush1.msra.mxu0 0.0
    %10220 = vmatprep.subr.mxu0 0.0
    %10221 = vmatpush1.msra.mxu0 0.0
    %10222 = vmatprep.subr.mxu0 0.0
    %10223 = vmatpush1.msra.mxu0 0.0
    %10224 = vmatprep.subr.mxu0 0.0
    %10225 = vmatpush1.msra.mxu0 0.0
    %10226 = vmatprep.mubr.f32.mxu0 0.0
    %10227 = vmatmul.mubr.f32.gmra.mrb[0].mxu0 %v10157
    %v10228 = vpop.f32.mrb[0].mxu0
    %v10229 = vadd.f32 %v10143, %v10228
    %v10230 = vpop.f32.mrb[0].mxu0
    %10231 = vmatprep.mubr.f32.mxu0 0.0
    %10232 = vmatmul.mubr.f32.gmra.mrb[0].mxu0 %v10160
    %v10233 = vpop.f32.mrb[0].mxu0
    %v10234 = vadd.f32 %v10143, %v10233
    %v10235 = vpop.f32.mrb[0].mxu0
    %10236 = vdwg.mxu0
    %v10237 = vtanh.pop %v10229
    %v10238 = vtanh.pop %v10234
    %v10239 = vlaneseq
    %v10240 = vshrl.u32 %v10239, 7
    %v10241 = vsub.s32 5, %v10240
    %v10242 = vrot.slane %v1006, %v10241
    %10247 = vrot.lane.b32.xlu0 %v999, 120
    %v10248 = vpop.permute.xlu0 %10247
    %10249 = vrot.lane.b32.xlu0 %v1001, 120
    %v10250 = vpop.permute.xlu0 %10249
    %10251 = vrot.lane.b32.xlu0 %v1003, 120
    %v10252 = vpop.permute.xlu0 %10251
    %10253 = vrot.lane.b32.xlu0 %v1005, 120
    %v10254 = vpop.permute.xlu0 %10253
    %v10260 = vsel %vm164, %v10237, 0
    %v10263 = vsel %vm164, %v10238, 0
    %10265 = vmatprep.subr.mxu0 0.0
    %10266 = vmatpush1.msra.mxu0 %v10248
    %10267 = vmatprep.subr.mxu0 0.0
    %10268 = vmatpush1.msra.mxu0 %v10250
    %10269 = vmatprep.subr.mxu0 0.0
    %10270 = vmatpush1.msra.mxu0 %v10252
    %10271 = vmatprep.subr.mxu0 0.0
    %10272 = vmatpush1.msra.mxu0 %v10254
    %10273 = vmatprep.subr.mxu0 0.0
    %10274 = vmatpush1.msra.mxu0 0.0
    %10275 = vmatprep.subr.mxu0 0.0
    %10276 = vmatpush1.msra.mxu0 0.0
    %10277 = vmatprep.subr.mxu0 0.0
    %10278 = vmatpush1.msra.mxu0 0.0
    %10279 = vmatprep.subr.mxu0 0.0
    %10280 = vmatpush1.msra.mxu0 0.0
    %10281 = vmatprep.subr.mxu0 0.0
    %10282 = vmatpush1.msra.mxu0 0.0
    %10283 = vmatprep.subr.mxu0 0.0
    %10284 = vmatpush1.msra.mxu0 0.0
    %10285 = vmatprep.subr.mxu0 0.0
    %10286 = vmatpush1.msra.mxu0 0.0
    %10287 = vmatprep.subr.mxu0 0.0
    %10288 = vmatpush1.msra.mxu0 0.0
    %10289 = vmatprep.subr.mxu0 0.0
    %10290 = vmatpush1.msra.mxu0 0.0
    %10291 = vmatprep.subr.mxu0 0.0
    %10292 = vmatpush1.msra.mxu0 0.0
    %10293 = vmatprep.subr.mxu0 0.0
    %10294 = vmatpush1.msra.mxu0 0.0
    %10295 = vmatprep.subr.mxu0 0.0
    %10296 = vmatpush1.msra.mxu0 0.0
    %10297 = vmatprep.subr.mxu0 0.0
    %10298 = vmatpush1.msra.mxu0 0.0
    %10299 = vmatprep.subr.mxu0 0.0
    %10300 = vmatpush1.msra.mxu0 0.0
    %10301 = vmatprep.subr.mxu0 0.0
    %10302 = vmatpush1.msra.mxu0 0.0
    %10303 = vmatprep.subr.mxu0 0.0
    %10304 = vmatpush1.msra.mxu0 0.0
    %10305 = vmatprep.subr.mxu0 0.0
    %10306 = vmatpush1.msra.mxu0 0.0
    %10307 = vmatprep.subr.mxu0 0.0
    %10308 = vmatpush1.msra.mxu0 0.0
    %10309 = vmatprep.subr.mxu0 0.0
    %10310 = vmatpush1.msra.mxu0 0.0
    %10311 = vmatprep.subr.mxu0 0.0
    %10312 = vmatpush1.msra.mxu0 0.0
    %10313 = vmatprep.subr.mxu0 0.0
    %10314 = vmatpush1.msra.mxu0 0.0
    %10315 = vmatprep.subr.mxu0 0.0
    %10316 = vmatpush1.msra.mxu0 0.0
    %10317 = vmatprep.subr.mxu0 0.0
    %10318 = vmatpush1.msra.mxu0 0.0
    %10319 = vmatprep.subr.mxu0 0.0
    %10320 = vmatpush1.msra.mxu0 0.0
    %10321 = vmatprep.subr.mxu0 0.0
    %10322 = vmatpush1.msra.mxu0 0.0
    %10323 = vmatprep.subr.mxu0 0.0
    %10324 = vmatpush1.msra.mxu0 0.0
    %10325 = vmatprep.subr.mxu0 0.0
    %10326 = vmatpush1.msra.mxu0 0.0
    %10327 = vmatprep.subr.mxu0 0.0
    %10328 = vmatpush1.msra.mxu0 0.0
    %10329 = vmatprep.mubr.f32.mxu0 0.0
    %10330 = vmatmul.mubr.f32.gmra.mrb[0].mxu0 %v10260
    %v10331 = vpop.f32.mrb[0].mxu0
    %v10332 = vadd.f32 %v10242, %v10331
    %v10333 = vpop.f32.mrb[0].mxu0
    %10334 = vmatprep.mubr.f32.mxu0 0.0
    %10335 = vmatmul.mubr.f32.gmra.mrb[0].mxu0 %v10263
    %v10336 = vpop.f32.mrb[0].mxu0
    %v10337 = vadd.f32 %v10242, %v10336
    %v10338 = vpop.f32.mrb[0].mxu0
    %10339 = vdwg.mxu0
    %10341 = vset.pattern.permute.xlu0 0
    %10342 = vperm.xlu0 %10341, %v61
    %v10343 = vpop.permute.xlu0 %10342
    %10346 = vset.pattern.permute.xlu0 0
    %10347 = vperm.xlu0 %10346, %v62
    %v10348 = vpop.permute.xlu0 %10347
    %v10350 = vmul.f32 %v10132, %v10343
    %v10351 = vmul.f32 %v10137, %v10348
    %v10352 = vld [vmem:[%s3] sm:$0xff]
    %v10353 = vld [vmem:[%s3 + $0x8] sm:$0xff]
    %v10354 = vsub.f32 %v10350, %v10352
    %v10355 = vsub.f32 %v10351, %v10353
    %v10356 = vmul.f32 %v10332, %v10343
    %v10357 = vmul.f32 %v10337, %v10348
    %v10358 = vld [vmem:[%s4] sm:$0xff]
    %v10359 = vld [vmem:[%s4 + $0x8] sm:$0xff]
    %v10360 = vsub.f32 %v10356, %v10358
    %v10361 = vsub.f32 %v10357, %v10359
    %v10362 = vmul.f32 %v10354, %v10354
    %v10363 = vmul.f32 %v10355, %v10355
    %v10364 = vsel %vm482, %v10362, 0.0
    %v10365 = vsel %vm482, %v10363, 0.0
    %v10366 = vadd.f32 %v10364, %v10365
    %10367 = vadd.xlane.f32.xlu0 %v10366
    %v10368 = vpop.xlane.xlu0 %10367
    %v10369 = vrot.slane %v10368, 4
    %v10370 = vadd.f32 %v10368, %v10369
    %v10371 = vrot.slane %v10370, 2
    %v10372 = vadd.f32 %v10370, %v10371
    %v10373 = vrot.slane %v10372, 1
    %v10374 = vadd.f32 %v10372, %v10373
    %s10375 = vtos %v10374
    %v10376 = vstv %s10375
    %v10377 = vrcp.pop 128.0
    %v10378 = vmul.f32 %v10376, %v10377
    %v10379 = vmul.f32 %v10360, %v10360
    %v10380 = vmul.f32 %v10361, %v10361
    %v10381 = vsel %vm82, %v10379, 0.0
    %v10382 = vsel %vm82, %v10380, 0.0
    %v10383 = vadd.f32 %v10381, %v10382
    %10384 = vadd.xlane.f32.xlu0 %v10383
    %v10385 = vpop.xlane.xlu0 %10384
    %v10386 = vrot.slane %v10385, 4
    %v10387 = vadd.f32 %v10385, %v10386
    %v10388 = vrot.slane %v10387, 2
    %v10389 = vadd.f32 %v10387, %v10388
    %v10390 = vrot.slane %v10389, 1
    %v10391 = vadd.f32 %v10389, %v10390
    %s10392 = vtos %v10391
    %v10393 = vstv %s10392
    %v10394 = vrcp.pop 256.0
    %v10395 = vmul.f32 %v10393, %v10394
    %vm10396 = vcmp.eq.s32.totalorder %v3007, 0
    %v10397 = vsel %vm10396, %v8183, 0.0
    %vm10398 = vcmp.eq.s32.totalorder %v3007, 1
    %v10399 = vsel %vm10398, %v10378, 0.0
    %v10400 = vadd.f32 %v10397, %v10399
    %vm10401 = vcmp.eq.s32.totalorder %v3007, 2
    %v10402 = vsel %vm10401, %v10395, 0.0
    %v10403 = vadd.f32 %v10400, %v10402
    %10404 = vst [vmem:[%s19] sm:$0x1] %v10403
    // Predicated region
    $region70: #{vq_forward.1} parent=1 // pred_check
      _
    $region71: #{vq_forward.1} parent=1 // pred_check_branch
      %10406 = sbr.rel (0) target = $region73
    $region72: #{vq_forward.1} parent=1 // pred_region
      %s10408 = ssub.s32 256, 256
      %10409 = vsyncadd [#allocation3], %s10408
      %s10410 = sshll.u32 [#allocation2], 4
      %s10411 = int_to_ptr.vmem [resolvable:$true] %s10410
      %10416 = dma.vmem_to_hbm [thread:$0]  %s10411, 256, %s17, [#allocation3], 128, 128, 8
    $region73: #{vq_forward.1} parent=1 // pred_fallthru
      _
    // Predicated region
    $region74: #{vq_forward.1} parent=1 // pred_check
      _
    $region75: #{vq_forward.1} parent=1 // pred_check_branch
      %10418 = sbr.rel (0) target = $region77
    $region76: #{vq_forward.1} parent=1 // pred_region
      _
    $region77: #{vq_forward.1} parent=1 // pred_fallthru
      _
    // Predicated region
    $region78: #{vq_forward.1} parent=1 // pred_check
      _
    $region79: #{vq_forward.1} parent=1 // pred_check_branch
      %10420 = sbr.rel (0) target = $region81
    $region80: #{vq_forward.1} parent=1 // pred_region
      _
    $region81: #{vq_forward.1} parent=1 // pred_fallthru
      _
    // Predicated region
    $region82: #{vq_forward.1} parent=1 // pred_check
      _
    $region83: #{vq_forward.1} parent=1 // pred_check_branch
      %10422 = sbr.rel (0) target = $region85
    $region84: #{vq_forward.1} parent=1 // pred_region
      %10423 = dma.done [#allocation3], 256
    $region85: #{vq_forward.1} parent=1 // pred_fallthru
      _
    // Predicated region
    $region86: #{vq_forward.1} parent=1 // pred_check
      _
    $region87: #{vq_forward.1} parent=1 // pred_check_branch
      %10425 = sbr.rel (0) target = $region89
    $region88: #{vq_forward.1} parent=1 // pred_region
      _
    $region89: #{vq_forward.1} parent=1 // pred_fallthru
      _
    // Predicated region
    $region90: #{vq_forward.1} parent=1 // pred_check
      _
    $region91: #{vq_forward.1} parent=1 // pred_check_branch
      %10427 = sbr.rel (0) target = $region93
    $region92: #{vq_forward.1} parent=1 // pred_region
      _
    $region93: #{vq_forward.1} parent=1 // pred_fallthru
      _
    %10428 = vsyncpa [#allocation3], 1

</llo_original>
